<compile_context>
chip_gen: v7x
topology: tpu7x:2x2x1
jax: 0.10.0
libtpu: 0.0.40
codegen_flags: <defaults>
</compile_context>

<pallas_src>
import functools

import numpy as np
import jax
import jax.numpy as jnp
from jax.experimental import pallas as pl
from jax.experimental.pallas import tpu as pltpu

# ----------------------------- model config ---------------------------------
C_IMG = 4                 # image channels of x
C0 = 32                   # unet.config.block_out_channels[0]
NUM_CLASSES = 2
TIME_DIM = 4 * C0         # 128
GROUPS = 8
CG = C0 // GROUPS         # channels per group
H = W = 16
HW = H * W                # 256 -> lane dimension (2 x 128, dense stores)
B = 2
C_IN_TOT = C_IMG + C0     # 36
EPS = 1e-5
INV_GROUP_N = 1.0 / (HW * CG)

# MXU operand dtype.  Keep f32 for exact semantics; set to jnp.bfloat16 on
# v6e/v7x for native-MXU throughput (accumulation is always f32; SiLU/GroupNorm
# statistics stay in f32 either way, which also keeps v5e happy).
MXU_DTYPE = jnp.float32

_TAPS = tuple((dy, dx) for dy in range(3) for dx in range(3))   # PyTorch (kh, kw) order


# ============================ fused Pallas kernel ============================

def _silu(x):
    return x * jax.nn.sigmoid(x)


def _conv3x3(x_val, w_ref, b_ref, masks):
    """3x3 'same' conv in (C, HW) layout as 9 shifted MXU matmuls.

    x_val: (C_in, HW) f32, w_ref: (9, C_out, C_in), b_ref: (C_out, 1),
    masks: (9, 1, HW) f32 border-validity masks (tap order = PyTorch (kh, kw)).
    """
    c_out = w_ref.shape[1]
    acc = jnp.zeros((c_out, HW), jnp.float32)
    for k, (dy, dx) in enumerate(_TAPS):
        off = (dy - 1) * W + (dx - 1)
        if off == 0:                       # centre tap: no shift, always valid
            shifted = x_val
        else:
            shifted = pltpu.roll(x_val, (-off) % HW, 1) * masks[k]
        acc = acc + jnp.dot(w_ref[k].astype(MXU_DTYPE),
                            shifted.astype(MXU_DTYPE),
                            preferred_element_type=jnp.float32)
    return acc + b_ref[...]


def _group_norm_silu(x_val, g_ref, b_ref, mgrp):
    """GroupNorm(8 groups) + SiLU in (C, HW) layout.

    Group statistics via (C, C) group-membership matmul + one lane reduction
    per channel -- no width-4 lane slices, no python loop, no concat."""
    gsum = jnp.sum(jnp.dot(mgrp, x_val, preferred_element_type=jnp.float32),
                   axis=1, keepdims=True)                       # (C, 1) group totals
    mean = gsum * INV_GROUP_N
    xm = x_val - mean
    gvar = jnp.sum(jnp.dot(mgrp, xm * xm, preferred_element_type=jnp.float32),
                   axis=1, keepdims=True) * INV_GROUP_N
    y = xm * jax.lax.rsqrt(gvar + EPS) * g_ref[...] + b_ref[...]
    return _silu(y)


def unet_kernel(labels_ref,                                      # scalar prefetch (SMEM)
                x_ref, emb_ref, temb_ref, masks_ref, mgrp_ref,
                t_w1_ref, t_b1_ref, t_w2_ref, t_b2_ref, tp_w_ref, tp_b_ref,
                ci_w_ref, ci_b_ref, gn1_g_ref, gn1_b_ref,
                c1_w_ref, c1_b_ref, gn2_g_ref, gn2_b_ref,
                c2_w_ref, c2_b_ref, gno_g_ref, gno_b_ref,
                co_w_ref, co_b_ref,
                o_ref, xc_ref):
    del labels_ref   # consumed by the class-embedding BlockSpec index_map (DMA gather)

    masks = masks_ref[...]                                       # (9, 1, HW)
    mgrp = mgrp_ref[...]                                         # (C0, C0)

    # --- ConditionalUNet-specific: class emb broadcast + channel concat -----
    # Two slice stores into VMEM scratch; the 36-channel tensor never hits HBM.
    xc_ref[0:C_IMG, :] = x_ref[0]                                # (C_IMG, HW)
    xc_ref[C_IMG:C_IN_TOT, :] = jnp.broadcast_to(emb_ref[0], (C0, HW))
    xc = xc_ref[...]                                             # (C_IN_TOT, HW)

    # --- timestep-embedding MLP (linear -> SiLU -> linear), column form -----
    # Lane dim widened to TIME_DIM=128 so every dot is lane-dense; the columns
    # are all identical, so we keep lane 0 at the end.
    e0 = jnp.broadcast_to(temb_ref[0], (C0, TIME_DIM))           # (C0, 128)
    t1 = _silu(jnp.dot(t_w1_ref[...], e0,
                       preferred_element_type=jnp.float32) + t_b1_ref[...])
    t2 = jnp.dot(t_w2_ref[...], t1,
                 preferred_element_type=jnp.float32) + t_b2_ref[...]
    tproj = (jnp.dot(tp_w_ref[...], _silu(t2),
                     preferred_element_type=jnp.float32) + tp_b_ref[...])[:, 0:1]

    # --- UNet body surrogate -------------------------------------------------
    h = _conv3x3(xc, ci_w_ref, ci_b_ref, masks)                  # (C0, HW)
    res = h
    h = _group_norm_silu(h, gn1_g_ref, gn1_b_ref, mgrp)
    h = _conv3x3(h, c1_w_ref, c1_b_ref, masks)
    h = h + tproj                                                # time add (bcast over HW)
    h = _group_norm_silu(h, gn2_g_ref, gn2_b_ref, mgrp)
    h = _conv3x3(h, c2_w_ref, c2_b_ref, masks)
    h = h + res                                                  # residual add
    h = _group_norm_silu(h, gno_g_ref, gno_b_ref, mgrp)
    out = _conv3x3(h, co_w_ref, co_b_ref, masks)                 # (C_IMG, HW)

    o_ref[0] = out.astype(o_ref.dtype)


# ============================ wrapper / glue =================================

def _const_spec(shape):
    zeros = (0,) * len(shape)
    return pl.BlockSpec(shape, lambda b, lbl, _z=zeros: _z)


def timestep_embedding(t, dim):
    half = dim // 2
    freqs = jnp.exp(-jnp.log(10000.0) *
                    jnp.arange(half, dtype=jnp.float32) / half)
    args = t.astype(jnp.float32)[:, None] * freqs[None, :]
    return jnp.concatenate([jnp.sin(args), jnp.cos(args)], axis=-1)     # (B, dim)


@jax.jit
def conditional_unet_forward(params, x_nchw, t, class_labels):
    b, c, height, width = x_nchw.shape
    assert (c, height, width) == (C_IMG, H, W)
    hw = height * width

    x_cb = x_nchw.reshape(b, c, hw)                     # NCHW -> (B, C, HW); HW in lanes
    labels = class_labels.reshape(-1).astype(jnp.int32)            # .flatten() semantics
    temb = timestep_embedding(t, C0).reshape(b, C0, 1)              # column form

    in_specs = [
        pl.BlockSpec((1, C_IMG, hw), lambda i, lbl: (i, 0, 0)),      # x
        pl.BlockSpec((1, C0, 1), lambda i, lbl: (lbl[i], 0, 0)),     # class-emb gather
        pl.BlockSpec((1, C0, 1), lambda i, lbl: (i, 0, 0)),          # sinusoidal temb
        _const_spec((9, 1, hw)),                                     # conv tap masks
        _const_spec((C0, C0)),                                       # group-membership
        _const_spec((TIME_DIM, C0)), _const_spec((TIME_DIM, 1)),     # time linear 1
        _const_spec((TIME_DIM, TIME_DIM)), _const_spec((TIME_DIM, 1)),  # time linear 2
        _const_spec((C0, TIME_DIM)), _const_spec((C0, 1)),           # time proj
        _const_spec((9, C0, C_IN_TOT)), _const_spec((C0, 1)),        # conv_in
        _const_spec((C0, 1)), _const_spec((C0, 1)),                  # gn1
        _const_spec((9, C0, C0)), _const_spec((C0, 1)),              # conv1
        _const_spec((C0, 1)), _const_spec((C0, 1)),                  # gn2
        _const_spec((9, C0, C0)), _const_spec((C0, 1)),              # conv2
        _const_spec((C0, 1)), _const_spec((C0, 1)),                  # gn_out
        _const_spec((9, C_IMG, C0)), _const_spec((C_IMG, 1)),        # conv_out
    ]

    grid_spec = pltpu.PrefetchScalarGridSpec(
        num_scalar_prefetch=1,
        grid=(b,),
        in_specs=in_specs,
        out_specs=pl.BlockSpec((1, C_IMG, hw), lambda i, lbl: (i, 0, 0)),
        scratch_shapes=[pltpu.VMEM((C_IN_TOT, hw), jnp.float32)],
    )

    out = pl.pallas_call(
        unet_kernel,
        out_shape=jax.ShapeDtypeStruct((b, C_IMG, hw), jnp.float32),
        grid_spec=grid_spec,
        compiler_params=pltpu.CompilerParams(
            dimension_semantics=("parallel",)),   # v7x: one batch element per TC
    )(labels, x_cb, params["class_emb"], temb, params["masks"], params["mgrp"],
      params["t_w1"], params["t_b1"], params["t_w2"], params["t_b2"],
      params["tp_w"], params["tp_b"],
      params["conv_in_w"], params["conv_in_b"], params["gn1_g"], params["gn1_b"],
      params["conv1_w"], params["conv1_b"], params["gn2_g"], params["gn2_b"],
      params["conv2_w"], params["conv2_b"], params["gn_out_g"], params["gn_out_b"],
      params["conv_out_w"], params["conv_out_b"])

    return out.reshape(b, C_IMG, height, width)     # back to NCHW


# ============================ params / constants =============================

def init_params(key):
    ks = jax.random.split(key, 8)

    def dense(k, shape, scale=0.05):
        return jax.random.normal(k, shape, jnp.float32) * scale

    # Border-validity masks for the 9 conv taps (tap order dy-major, matching
    # PyTorch kernel index (kh, kw)); centre tap is all-ones.
    p = np.arange(HW)
    hh, ww = p // W, p % W
    masks = np.stack(
        [((hh + dy - 1 >= 0) & (hh + dy - 1 < H) &
          (ww + dx - 1 >= 0) & (ww + dx - 1 < W)).astype(np.float32)
         for dy, dx in _TAPS]).reshape(9, 1, HW)

    cidx = np.arange(C0)
    mgrp = (cidx[:, None] // CG == cidx[None, :] // CG).astype(np.float32)

    # Linear weights are stored PyTorch-style (out_features, in_features); conv
    # weights as (kh*kw, C_out, C_in) -- real PyTorch (C_out, C_in, 3, 3) weights
    # would map via w.transpose(2, 3, 0, 1).reshape(9, C_out, C_in).
    return {
        "masks": jnp.asarray(masks),
        "mgrp": jnp.asarray(mgrp),
        "class_emb": jax.random.normal(ks[0], (NUM_CLASSES, C0, 1), jnp.float32),
        "t_w1": dense(ks[1], (TIME_DIM, C0)),
        "t_b1": jnp.zeros((TIME_DIM, 1), jnp.float32),
        "t_w2": dense(ks[2], (TIME_DIM, TIME_DIM)),
        "t_b2": jnp.zeros((TIME_DIM, 1), jnp.float32),
        "tp_w": dense(ks[3], (C0, TIME_DIM)),
        "tp_b": jnp.zeros((C0, 1), jnp.float32),
        "conv_in_w": dense(ks[4], (9, C0, C_IN_TOT)),
        "conv_in_b": jnp.zeros((C0, 1), jnp.float32),
        "gn1_g": jnp.ones((C0, 1), jnp.float32),
        "gn1_b": jnp.zeros((C0, 1), jnp.float32),
        "conv1_w": dense(ks[5], (9, C0, C0)),
        "conv1_b": jnp.zeros((C0, 1), jnp.float32),
        "gn2_g": jnp.ones((C0, 1), jnp.float32),
        "gn2_b": jnp.zeros((C0, 1), jnp.float32),
        "conv2_w": dense(ks[6], (9, C0, C0)),
        "conv2_b": jnp.zeros((C0, 1), jnp.float32),
        "gn_out_g": jnp.ones((C0, 1), jnp.float32),
        "gn_out_b": jnp.zeros((C0, 1), jnp.float32),
        "conv_out_w": dense(ks[7], (9, C_IMG, C0)),
        "conv_out_b": jnp.zeros((C_IMG, 1), jnp.float32),
    }


# ================================ main =======================================

if __name__ == "__main__":
    key = jax.random.PRNGKey(0)
    kx, kt, kl = jax.random.split(key, 3)

    x = jax.random.normal(kx, (B, C_IMG, H, W), jnp.float32)          # NCHW
    t = jax.random.uniform(kt, (B,), jnp.float32, 0.0, 1000.0)        # timesteps
    class_labels = jax.random.randint(kl, (B,), 0, NUM_CLASSES)       # (B,)

    params = init_params(jax.random.PRNGKey(42))

    out = conditional_unet_forward(params, x, t, class_labels)
    jax.block_until_ready(out)
    assert out.shape == (B, C_IMG, H, W)
    print("KERNEL_OK")
</pallas_src>

<mosaic_0001>
module attributes {stable_mosaic.version = 11 : i64} {
  func.func @unet_kernel(%arg0: i32, %arg1: memref<2xi32, #tpu.memory_space<smem>>, %arg2: memref<1x4x256xf32, #tpu.memory_space<vmem>>, %arg3: memref<1x32x1xf32, #tpu.memory_space<vmem>>, %arg4: memref<1x32x1xf32, #tpu.memory_space<vmem>>, %arg5: memref<9x1x256xf32, #tpu.memory_space<vmem>>, %arg6: memref<32x32xf32, #tpu.memory_space<vmem>>, %arg7: memref<128x32xf32, #tpu.memory_space<vmem>>, %arg8: memref<128x1xf32, #tpu.memory_space<vmem>>, %arg9: memref<128x128xf32, #tpu.memory_space<vmem>>, %arg10: memref<128x1xf32, #tpu.memory_space<vmem>>, %arg11: memref<32x128xf32, #tpu.memory_space<vmem>>, %arg12: memref<32x1xf32, #tpu.memory_space<vmem>>, %arg13: memref<9x32x36xf32, #tpu.memory_space<vmem>>, %arg14: memref<32x1xf32, #tpu.memory_space<vmem>>, %arg15: memref<32x1xf32, #tpu.memory_space<vmem>>, %arg16: memref<32x1xf32, #tpu.memory_space<vmem>>, %arg17: memref<9x32x32xf32, #tpu.memory_space<vmem>>, %arg18: memref<32x1xf32, #tpu.memory_space<vmem>>, %arg19: memref<32x1xf32, #tpu.memory_space<vmem>>, %arg20: memref<32x1xf32, #tpu.memory_space<vmem>>, %arg21: memref<9x32x32xf32, #tpu.memory_space<vmem>>, %arg22: memref<32x1xf32, #tpu.memory_space<vmem>>, %arg23: memref<32x1xf32, #tpu.memory_space<vmem>>, %arg24: memref<32x1xf32, #tpu.memory_space<vmem>>, %arg25: memref<9x4x32xf32, #tpu.memory_space<vmem>>, %arg26: memref<4x1xf32, #tpu.memory_space<vmem>>, %arg27: memref<1x4x256xf32, #tpu.memory_space<vmem>>, %arg28: memref<36x256xf32, #tpu.memory_space<vmem>>) attributes {dimension_semantics = [#tpu.dimension_semantics<parallel>], iteration_bounds = array<i64: 2>, scalar_prefetch = 1 : i64, scratch_operands = 1 : i64, tpu.core_type = #tpu.core_type<tc>, window_params = [{transform_indices = @transform_0, window_bounds = array<i64: 1, 4, 256>}, {transform_indices = @transform_1, window_bounds = array<i64: 1, 32, 1>}, {transform_indices = @transform_2, window_bounds = array<i64: 1, 32, 1>}, {pipeline_mode = #tpu.pipeline_mode<synchronous>, transform_indices = @transform_3, window_bounds = array<i64: 9, 1, 256>}, {pipeline_mode = #tpu.pipeline_mode<synchronous>, transform_indices = @transform_4, window_bounds = array<i64: 32, 32>}, {pipeline_mode = #tpu.pipeline_mode<synchronous>, transform_indices = @transform_5, window_bounds = array<i64: 128, 32>}, {pipeline_mode = #tpu.pipeline_mode<synchronous>, transform_indices = @transform_6, window_bounds = array<i64: 128, 1>}, {pipeline_mode = #tpu.pipeline_mode<synchronous>, transform_indices = @transform_7, window_bounds = array<i64: 128, 128>}, {pipeline_mode = #tpu.pipeline_mode<synchronous>, transform_indices = @transform_8, window_bounds = array<i64: 128, 1>}, {pipeline_mode = #tpu.pipeline_mode<synchronous>, transform_indices = @transform_9, window_bounds = array<i64: 32, 128>}, {pipeline_mode = #tpu.pipeline_mode<synchronous>, transform_indices = @transform_10, window_bounds = array<i64: 32, 1>}, {pipeline_mode = #tpu.pipeline_mode<synchronous>, transform_indices = @transform_11, window_bounds = array<i64: 9, 32, 36>}, {pipeline_mode = #tpu.pipeline_mode<synchronous>, transform_indices = @transform_12, window_bounds = array<i64: 32, 1>}, {pipeline_mode = #tpu.pipeline_mode<synchronous>, transform_indices = @transform_13, window_bounds = array<i64: 32, 1>}, {pipeline_mode = #tpu.pipeline_mode<synchronous>, transform_indices = @transform_14, window_bounds = array<i64: 32, 1>}, {pipeline_mode = #tpu.pipeline_mode<synchronous>, transform_indices = @transform_15, window_bounds = array<i64: 9, 32, 32>}, {pipeline_mode = #tpu.pipeline_mode<synchronous>, transform_indices = @transform_16, window_bounds = array<i64: 32, 1>}, {pipeline_mode = #tpu.pipeline_mode<synchronous>, transform_indices = @transform_17, window_bounds = array<i64: 32, 1>}, {pipeline_mode = #tpu.pipeline_mode<synchronous>, transform_indices = @transform_18, window_bounds = array<i64: 32, 1>}, {pipeline_mode = #tpu.pipeline_mode<synchronous>, transform_indices = @transform_19, window_bounds = array<i64: 9, 32, 32>}, {pipeline_mode = #tpu.pipeline_mode<synchronous>, transform_indices = @transform_20, window_bounds = array<i64: 32, 1>}, {pipeline_mode = #tpu.pipeline_mode<synchronous>, transform_indices = @transform_21, window_bounds = array<i64: 32, 1>}, {pipeline_mode = #tpu.pipeline_mode<synchronous>, transform_indices = @transform_22, window_bounds = array<i64: 32, 1>}, {pipeline_mode = #tpu.pipeline_mode<synchronous>, transform_indices = @transform_23, window_bounds = array<i64: 9, 4, 32>}, {pipeline_mode = #tpu.pipeline_mode<synchronous>, transform_indices = @transform_24, window_bounds = array<i64: 4, 1>}, {transform_indices = @transform_25, window_bounds = array<i64: 1, 4, 256>}]} {
    %c0 = arith.constant 0 : index
    %c0_0 = arith.constant 0 : index
    %c0_1 = arith.constant 0 : index
    %0 = vector.load %arg5[%c0, %c0_0, %c0_1] : memref<9x1x256xf32, #tpu.memory_space<vmem>>, vector<9x1x256xf32>
    %c0_2 = arith.constant 0 : index
    %c0_3 = arith.constant 0 : index
    %1 = vector.load %arg6[%c0_2, %c0_3] : memref<32x32xf32, #tpu.memory_space<vmem>>, vector<32x32xf32>
    %c0_4 = arith.constant 0 : index
    %c0_5 = arith.constant 0 : index
    %c0_6 = arith.constant 0 : index
    %2 = vector.load %arg2[%c0_4, %c0_5, %c0_6] : memref<1x4x256xf32, #tpu.memory_space<vmem>>, vector<1x4x256xf32>
    %3 = vector.shape_cast %2 : vector<1x4x256xf32> to vector<4x256xf32>
    %c0_7 = arith.constant 0 : index
    %c0_8 = arith.constant 0 : index
    %4 = vector.load %arg28[%c0_7, %c0_8] : memref<36x256xf32, #tpu.memory_space<vmem>>, vector<4x256xf32>
    tpu.vector_store %arg28[%c0_7, %c0_8], %3 {strides = array<i32>} : memref<36x256xf32, #tpu.memory_space<vmem>>, vector<4x256xf32>,
    %c0_9 = arith.constant 0 : index
    %c0_10 = arith.constant 0 : index
    %c0_11 = arith.constant 0 : index
    %5 = vector.load %arg3[%c0_9, %c0_10, %c0_11] : memref<1x32x1xf32, #tpu.memory_space<vmem>>, vector<1x32x1xf32>
    %6 = vector.shape_cast %5 : vector<1x32x1xf32> to vector<32x1xf32>
    %7 = vector.shape_cast %6 : vector<32x1xf32> to vector<32x1xf32>
    %8 = vector.broadcast %7 : vector<32x1xf32> to vector<32x256xf32>
    %c4 = arith.constant 4 : index
    %c0_12 = arith.constant 0 : index
    %9 = vector.load %arg28[%c4, %c0_12] : memref<36x256xf32, #tpu.memory_space<vmem>>, vector<32x256xf32>
    tpu.vector_store %arg28[%c4, %c0_12], %8 {strides = array<i32>} : memref<36x256xf32, #tpu.memory_space<vmem>>, vector<32x256xf32>,
    %c0_13 = arith.constant 0 : index
    %c0_14 = arith.constant 0 : index
    %10 = vector.load %arg28[%c0_13, %c0_14] : memref<36x256xf32, #tpu.memory_space<vmem>>, vector<36x256xf32>
    %c0_15 = arith.constant 0 : index
    %c0_16 = arith.constant 0 : index
    %c0_17 = arith.constant 0 : index
    %11 = vector.load %arg4[%c0_15, %c0_16, %c0_17] : memref<1x32x1xf32, #tpu.memory_space<vmem>>, vector<1x32x1xf32>
    %12 = vector.shape_cast %11 : vector<1x32x1xf32> to vector<32x1xf32>
    %13 = vector.shape_cast %12 : vector<32x1xf32> to vector<32x1xf32>
    %14 = vector.broadcast %13 : vector<32x1xf32> to vector<32x128xf32>
    %c0_18 = arith.constant 0 : index
    %c0_19 = arith.constant 0 : index
    %15 = vector.load %arg7[%c0_18, %c0_19] : memref<128x32xf32, #tpu.memory_space<vmem>>, vector<128x32xf32>
    %cst = arith.constant dense<0.000000e+00> : vector<128x128xf32>
    %16 = tpu.matmul %15, %14, %cst {dimension_numbers = #tpu.dot_dimension_numbers<[1], [0], [0], [1], [0, 0, 1, 1], [], []>} : vector<128x32xf32>, vector<32x128xf32>, vector<128x128xf32> -> vector<128x128xf32>
    %c0_20 = arith.constant 0 : index
    %c0_21 = arith.constant 0 : index
    %17 = vector.load %arg8[%c0_20, %c0_21] : memref<128x1xf32, #tpu.memory_space<vmem>>, vector<128x1xf32>
    %18 = vector.broadcast %17 : vector<128x1xf32> to vector<128x128xf32>
    %19 = arith.addf %16, %18 : vector<128x128xf32>
    %20 = arith.negf %19 : vector<128x128xf32>
    %21 = math.exp %20 : vector<128x128xf32>
    %cst_22 = arith.constant 1.000000e+00 : f32
    %22 = vector.broadcast %cst_22 : f32 to vector<128x128xf32>
    %23 = arith.addf %22, %21 : vector<128x128xf32>
    %24 = arith.divf %22, %23 : vector<128x128xf32>
    %25 = arith.mulf %19, %24 : vector<128x128xf32>
    %c0_23 = arith.constant 0 : index
    %c0_24 = arith.constant 0 : index
    %26 = vector.load %arg9[%c0_23, %c0_24] : memref<128x128xf32, #tpu.memory_space<vmem>>, vector<128x128xf32>
    %cst_25 = arith.constant dense<0.000000e+00> : vector<128x128xf32>
    %27 = tpu.matmul %26, %25, %cst_25 {dimension_numbers = #tpu.dot_dimension_numbers<[1], [0], [0], [1], [0, 0, 1, 1], [], []>} : vector<128x128xf32>, vector<128x128xf32>, vector<128x128xf32> -> vector<128x128xf32>
    %c0_26 = arith.constant 0 : index
    %c0_27 = arith.constant 0 : index
    %28 = vector.load %arg10[%c0_26, %c0_27] : memref<128x1xf32, #tpu.memory_space<vmem>>, vector<128x1xf32>
    %29 = vector.broadcast %28 : vector<128x1xf32> to vector<128x128xf32>
    %30 = arith.addf %27, %29 : vector<128x128xf32>
    %c0_28 = arith.constant 0 : index
    %c0_29 = arith.constant 0 : index
    %31 = vector.load %arg11[%c0_28, %c0_29] : memref<32x128xf32, #tpu.memory_space<vmem>>, vector<32x128xf32>
    %32 = arith.negf %30 : vector<128x128xf32>
    %33 = math.exp %32 : vector<128x128xf32>
    %cst_30 = arith.constant 1.000000e+00 : f32
    %34 = vector.broadcast %cst_30 : f32 to vector<128x128xf32>
    %35 = arith.addf %34, %33 : vector<128x128xf32>
    %36 = arith.divf %34, %35 : vector<128x128xf32>
    %37 = arith.mulf %30, %36 : vector<128x128xf32>
    %cst_31 = arith.constant dense<0.000000e+00> : vector<32x128xf32>
    %38 = tpu.matmul %31, %37, %cst_31 {dimension_numbers = #tpu.dot_dimension_numbers<[1], [0], [0], [1], [0, 0, 1, 1], [], []>} : vector<32x128xf32>, vector<128x128xf32>, vector<32x128xf32> -> vector<32x128xf32>
    %c0_32 = arith.constant 0 : index
    %c0_33 = arith.constant 0 : index
    %39 = vector.load %arg12[%c0_32, %c0_33] : memref<32x1xf32, #tpu.memory_space<vmem>>, vector<32x1xf32>
    %40 = vector.broadcast %39 : vector<32x1xf32> to vector<32x128xf32>
    %41 = arith.addf %38, %40 : vector<32x128xf32>
    %42 = vector.extract_strided_slice %41 {offsets = [0, 0], sizes = [32, 1], strides = [1, 1]} : vector<32x128xf32> to vector<32x1xf32>
    %cst_34 = arith.constant 0.000000e+00 : f32
    %43 = vector.broadcast %cst_34 : f32 to vector<32x256xf32>
    %c17_i32 = arith.constant 17 : i32
    %44 = tpu.dynamic_rotate %10 by %c17_i32 dim 1 : vector<36x256xf32>, i32 -> vector<36x256xf32>
    %45 = vector.extract_strided_slice %0 {offsets = [0, 0, 0], sizes = [1, 1, 256], strides = [1, 1, 1]} : vector<9x1x256xf32> to vector<1x1x256xf32>
    %46 = vector.shape_cast %45 : vector<1x1x256xf32> to vector<1x256xf32>
    %47 = vector.broadcast %46 : vector<1x256xf32> to vector<36x256xf32>
    %48 = arith.mulf %44, %47 : vector<36x256xf32>
    %c0_35 = arith.constant 0 : index
    %c0_36 = arith.constant 0 : index
    %c0_37 = arith.constant 0 : index
    %49 = vector.load %arg13[%c0_35, %c0_36, %c0_37] : memref<9x32x36xf32, #tpu.memory_space<vmem>>, vector<1x32x36xf32>
    %50 = vector.shape_cast %49 : vector<1x32x36xf32> to vector<32x36xf32>
    %cst_38 = arith.constant dense<0.000000e+00> : vector<32x256xf32>
    %51 = tpu.matmul %50, %48, %cst_38 {dimension_numbers = #tpu.dot_dimension_numbers<[1], [0], [0], [1], [0, 0, 1, 1], [], []>} : vector<32x36xf32>, vector<36x256xf32>, vector<32x256xf32> -> vector<32x256xf32>
    %52 = arith.addf %43, %51 : vector<32x256xf32>
    %c16_i32 = arith.constant 16 : i32
    %53 = tpu.dynamic_rotate %10 by %c16_i32 dim 1 : vector<36x256xf32>, i32 -> vector<36x256xf32>
    %54 = vector.extract_strided_slice %0 {offsets = [1, 0, 0], sizes = [1, 1, 256], strides = [1, 1, 1]} : vector<9x1x256xf32> to vector<1x1x256xf32>
    %55 = vector.shape_cast %54 : vector<1x1x256xf32> to vector<1x256xf32>
    %56 = vector.broadcast %55 : vector<1x256xf32> to vector<36x256xf32>
    %57 = arith.mulf %53, %56 : vector<36x256xf32>
    %c1 = arith.constant 1 : index
    %c0_39 = arith.constant 0 : index
    %c0_40 = arith.constant 0 : index
    %58 = vector.load %arg13[%c1, %c0_39, %c0_40] : memref<9x32x36xf32, #tpu.memory_space<vmem>>, vector<1x32x36xf32>
    %59 = vector.shape_cast %58 : vector<1x32x36xf32> to vector<32x36xf32>
    %cst_41 = arith.constant dense<0.000000e+00> : vector<32x256xf32>
    %60 = tpu.matmul %59, %57, %cst_41 {dimension_numbers = #tpu.dot_dimension_numbers<[1], [0], [0], [1], [0, 0, 1, 1], [], []>} : vector<32x36xf32>, vector<36x256xf32>, vector<32x256xf32> -> vector<32x256xf32>
    %61 = arith.addf %52, %60 : vector<32x256xf32>
    %c15_i32 = arith.constant 15 : i32
    %62 = tpu.dynamic_rotate %10 by %c15_i32 dim 1 : vector<36x256xf32>, i32 -> vector<36x256xf32>
    %63 = vector.extract_strided_slice %0 {offsets = [2, 0, 0], sizes = [1, 1, 256], strides = [1, 1, 1]} : vector<9x1x256xf32> to vector<1x1x256xf32>
    %64 = vector.shape_cast %63 : vector<1x1x256xf32> to vector<1x256xf32>
    %65 = vector.broadcast %64 : vector<1x256xf32> to vector<36x256xf32>
    %66 = arith.mulf %62, %65 : vector<36x256xf32>
    %c2 = arith.constant 2 : index
    %c0_42 = arith.constant 0 : index
    %c0_43 = arith.constant 0 : index
    %67 = vector.load %arg13[%c2, %c0_42, %c0_43] : memref<9x32x36xf32, #tpu.memory_space<vmem>>, vector<1x32x36xf32>
    %68 = vector.shape_cast %67 : vector<1x32x36xf32> to vector<32x36xf32>
    %cst_44 = arith.constant dense<0.000000e+00> : vector<32x256xf32>
    %69 = tpu.matmul %68, %66, %cst_44 {dimension_numbers = #tpu.dot_dimension_numbers<[1], [0], [0], [1], [0, 0, 1, 1], [], []>} : vector<32x36xf32>, vector<36x256xf32>, vector<32x256xf32> -> vector<32x256xf32>
    %70 = arith.addf %61, %69 : vector<32x256xf32>
    %c1_i32 = arith.constant 1 : i32
    %71 = tpu.dynamic_rotate %10 by %c1_i32 dim 1 : vector<36x256xf32>, i32 -> vector<36x256xf32>
    %72 = vector.extract_strided_slice %0 {offsets = [3, 0, 0], sizes = [1, 1, 256], strides = [1, 1, 1]} : vector<9x1x256xf32> to vector<1x1x256xf32>
    %73 = vector.shape_cast %72 : vector<1x1x256xf32> to vector<1x256xf32>
    %74 = vector.broadcast %73 : vector<1x256xf32> to vector<36x256xf32>
    %75 = arith.mulf %71, %74 : vector<36x256xf32>
    %c3 = arith.constant 3 : index
    %c0_45 = arith.constant 0 : index
    %c0_46 = arith.constant 0 : index
    %76 = vector.load %arg13[%c3, %c0_45, %c0_46] : memref<9x32x36xf32, #tpu.memory_space<vmem>>, vector<1x32x36xf32>
    %77 = vector.shape_cast %76 : vector<1x32x36xf32> to vector<32x36xf32>
    %cst_47 = arith.constant dense<0.000000e+00> : vector<32x256xf32>
    %78 = tpu.matmul %77, %75, %cst_47 {dimension_numbers = #tpu.dot_dimension_numbers<[1], [0], [0], [1], [0, 0, 1, 1], [], []>} : vector<32x36xf32>, vector<36x256xf32>, vector<32x256xf32> -> vector<32x256xf32>
    %79 = arith.addf %70, %78 : vector<32x256xf32>
    %c4_48 = arith.constant 4 : index
    %c0_49 = arith.constant 0 : index
    %c0_50 = arith.constant 0 : index
    %80 = vector.load %arg13[%c4_48, %c0_49, %c0_50] : memref<9x32x36xf32, #tpu.memory_space<vmem>>, vector<1x32x36xf32>
    %81 = vector.shape_cast %80 : vector<1x32x36xf32> to vector<32x36xf32>
    %cst_51 = arith.constant dense<0.000000e+00> : vector<32x256xf32>
    %82 = tpu.matmul %81, %10, %cst_51 {dimension_numbers = #tpu.dot_dimension_numbers<[1], [0], [0], [1], [0, 0, 1, 1], [], []>} : vector<32x36xf32>, vector<36x256xf32>, vector<32x256xf32> -> vector<32x256xf32>
    %83 = arith.addf %79, %82 : vector<32x256xf32>
    %c255_i32 = arith.constant 255 : i32
    %84 = tpu.dynamic_rotate %10 by %c255_i32 dim 1 : vector<36x256xf32>, i32 -> vector<36x256xf32>
    %85 = vector.extract_strided_slice %0 {offsets = [5, 0, 0], sizes = [1, 1, 256], strides = [1, 1, 1]} : vector<9x1x256xf32> to vector<1x1x256xf32>
    %86 = vector.shape_cast %85 : vector<1x1x256xf32> to vector<1x256xf32>
    %87 = vector.broadcast %86 : vector<1x256xf32> to vector<36x256xf32>
    %88 = arith.mulf %84, %87 : vector<36x256xf32>
    %c5 = arith.constant 5 : index
    %c0_52 = arith.constant 0 : index
    %c0_53 = arith.constant 0 : index
    %89 = vector.load %arg13[%c5, %c0_52, %c0_53] : memref<9x32x36xf32, #tpu.memory_space<vmem>>, vector<1x32x36xf32>
    %90 = vector.shape_cast %89 : vector<1x32x36xf32> to vector<32x36xf32>
    %cst_54 = arith.constant dense<0.000000e+00> : vector<32x256xf32>
    %91 = tpu.matmul %90, %88, %cst_54 {dimension_numbers = #tpu.dot_dimension_numbers<[1], [0], [0], [1], [0, 0, 1, 1], [], []>} : vector<32x36xf32>, vector<36x256xf32>, vector<32x256xf32> -> vector<32x256xf32>
    %92 = arith.addf %83, %91 : vector<32x256xf32>
    %c241_i32 = arith.constant 241 : i32
    %93 = tpu.dynamic_rotate %10 by %c241_i32 dim 1 : vector<36x256xf32>, i32 -> vector<36x256xf32>
    %94 = vector.extract_strided_slice %0 {offsets = [6, 0, 0], sizes = [1, 1, 256], strides = [1, 1, 1]} : vector<9x1x256xf32> to vector<1x1x256xf32>
    %95 = vector.shape_cast %94 : vector<1x1x256xf32> to vector<1x256xf32>
    %96 = vector.broadcast %95 : vector<1x256xf32> to vector<36x256xf32>
    %97 = arith.mulf %93, %96 : vector<36x256xf32>
    %c6 = arith.constant 6 : index
    %c0_55 = arith.constant 0 : index
    %c0_56 = arith.constant 0 : index
    %98 = vector.load %arg13[%c6, %c0_55, %c0_56] : memref<9x32x36xf32, #tpu.memory_space<vmem>>, vector<1x32x36xf32>
    %99 = vector.shape_cast %98 : vector<1x32x36xf32> to vector<32x36xf32>
    %cst_57 = arith.constant dense<0.000000e+00> : vector<32x256xf32>
    %100 = tpu.matmul %99, %97, %cst_57 {dimension_numbers = #tpu.dot_dimension_numbers<[1], [0], [0], [1], [0, 0, 1, 1], [], []>} : vector<32x36xf32>, vector<36x256xf32>, vector<32x256xf32> -> vector<32x256xf32>
    %101 = arith.addf %92, %100 : vector<32x256xf32>
    %c240_i32 = arith.constant 240 : i32
    %102 = tpu.dynamic_rotate %10 by %c240_i32 dim 1 : vector<36x256xf32>, i32 -> vector<36x256xf32>
    %103 = vector.extract_strided_slice %0 {offsets = [7, 0, 0], sizes = [1, 1, 256], strides = [1, 1, 1]} : vector<9x1x256xf32> to vector<1x1x256xf32>
    %104 = vector.shape_cast %103 : vector<1x1x256xf32> to vector<1x256xf32>
    %105 = vector.broadcast %104 : vector<1x256xf32> to vector<36x256xf32>
    %106 = arith.mulf %102, %105 : vector<36x256xf32>
    %c7 = arith.constant 7 : index
    %c0_58 = arith.constant 0 : index
    %c0_59 = arith.constant 0 : index
    %107 = vector.load %arg13[%c7, %c0_58, %c0_59] : memref<9x32x36xf32, #tpu.memory_space<vmem>>, vector<1x32x36xf32>
    %108 = vector.shape_cast %107 : vector<1x32x36xf32> to vector<32x36xf32>
    %cst_60 = arith.constant dense<0.000000e+00> : vector<32x256xf32>
    %109 = tpu.matmul %108, %106, %cst_60 {dimension_numbers = #tpu.dot_dimension_numbers<[1], [0], [0], [1], [0, 0, 1, 1], [], []>} : vector<32x36xf32>, vector<36x256xf32>, vector<32x256xf32> -> vector<32x256xf32>
    %110 = arith.addf %101, %109 : vector<32x256xf32>
    %c239_i32 = arith.constant 239 : i32
    %111 = tpu.dynamic_rotate %10 by %c239_i32 dim 1 : vector<36x256xf32>, i32 -> vector<36x256xf32>
    %112 = vector.extract_strided_slice %0 {offsets = [8, 0, 0], sizes = [1, 1, 256], strides = [1, 1, 1]} : vector<9x1x256xf32> to vector<1x1x256xf32>
    %113 = vector.shape_cast %112 : vector<1x1x256xf32> to vector<1x256xf32>
    %114 = vector.broadcast %113 : vector<1x256xf32> to vector<36x256xf32>
    %115 = arith.mulf %111, %114 : vector<36x256xf32>
    %c8 = arith.constant 8 : index
    %c0_61 = arith.constant 0 : index
    %c0_62 = arith.constant 0 : index
    %116 = vector.load %arg13[%c8, %c0_61, %c0_62] : memref<9x32x36xf32, #tpu.memory_space<vmem>>, vector<1x32x36xf32>
    %117 = vector.shape_cast %116 : vector<1x32x36xf32> to vector<32x36xf32>
    %cst_63 = arith.constant dense<0.000000e+00> : vector<32x256xf32>
    %118 = tpu.matmul %117, %115, %cst_63 {dimension_numbers = #tpu.dot_dimension_numbers<[1], [0], [0], [1], [0, 0, 1, 1], [], []>} : vector<32x36xf32>, vector<36x256xf32>, vector<32x256xf32> -> vector<32x256xf32>
    %119 = arith.addf %110, %118 : vector<32x256xf32>
    %c0_64 = arith.constant 0 : index
    %c0_65 = arith.constant 0 : index
    %120 = vector.load %arg14[%c0_64, %c0_65] : memref<32x1xf32, #tpu.memory_space<vmem>>, vector<32x1xf32>
    %121 = vector.broadcast %120 : vector<32x1xf32> to vector<32x256xf32>
    %122 = arith.addf %119, %121 : vector<32x256xf32>
    %cst_66 = arith.constant dense<0.000000e+00> : vector<32x256xf32>
    %123 = tpu.matmul %1, %122, %cst_66 {dimension_numbers = #tpu.dot_dimension_numbers<[1], [0], [0], [1], [0, 0, 1, 1], [], []>} : vector<32x32xf32>, vector<32x256xf32>, vector<32x256xf32> -> vector<32x256xf32>
    %cst_67 = arith.constant dense<0.000000e+00> : vector<32xf32>
    %124 = vector.multi_reduction <add>, %123, %cst_67 [1] : vector<32x256xf32> to vector<32xf32>
    %125 = vector.shape_cast %124 : vector<32xf32> to vector<32x1xf32>
    %cst_68 = arith.constant 9.765625E-4 : f32
    %126 = vector.broadcast %cst_68 : f32 to vector<32x1xf32>
    %127 = arith.mulf %125, %126 : vector<32x1xf32>
    %128 = vector.broadcast %127 : vector<32x1xf32> to vector<32x256xf32>
    %129 = arith.subf %122, %128 : vector<32x256xf32>
    %130 = arith.mulf %129, %129 : vector<32x256xf32>
    %cst_69 = arith.constant dense<0.000000e+00> : vector<32x256xf32>
    %131 = tpu.matmul %1, %130, %cst_69 {dimension_numbers = #tpu.dot_dimension_numbers<[1], [0], [0], [1], [0, 0, 1, 1], [], []>} : vector<32x32xf32>, vector<32x256xf32>, vector<32x256xf32> -> vector<32x256xf32>
    %cst_70 = arith.constant dense<0.000000e+00> : vector<32xf32>
    %132 = vector.multi_reduction <add>, %131, %cst_70 [1] : vector<32x256xf32> to vector<32xf32>
    %133 = vector.shape_cast %132 : vector<32xf32> to vector<32x1xf32>
    %cst_71 = arith.constant 9.765625E-4 : f32
    %134 = vector.broadcast %cst_71 : f32 to vector<32x1xf32>
    %135 = arith.mulf %133, %134 : vector<32x1xf32>
    %cst_72 = arith.constant 9.99999974E-6 : f32
    %136 = vector.broadcast %cst_72 : f32 to vector<32x1xf32>
    %137 = arith.addf %135, %136 : vector<32x1xf32>
    %138 = math.rsqrt %137 : vector<32x1xf32>
    %139 = vector.broadcast %138 : vector<32x1xf32> to vector<32x256xf32>
    %140 = arith.mulf %129, %139 : vector<32x256xf32>
    %c0_73 = arith.constant 0 : index
    %c0_74 = arith.constant 0 : index
    %141 = vector.load %arg15[%c0_73, %c0_74] : memref<32x1xf32, #tpu.memory_space<vmem>>, vector<32x1xf32>
    %142 = vector.broadcast %141 : vector<32x1xf32> to vector<32x256xf32>
    %143 = arith.mulf %140, %142 : vector<32x256xf32>
    %c0_75 = arith.constant 0 : index
    %c0_76 = arith.constant 0 : index
    %144 = vector.load %arg16[%c0_75, %c0_76] : memref<32x1xf32, #tpu.memory_space<vmem>>, vector<32x1xf32>
    %145 = vector.broadcast %144 : vector<32x1xf32> to vector<32x256xf32>
    %146 = arith.addf %143, %145 : vector<32x256xf32>
    %147 = arith.negf %146 : vector<32x256xf32>
    %148 = math.exp %147 : vector<32x256xf32>
    %cst_77 = arith.constant 1.000000e+00 : f32
    %149 = vector.broadcast %cst_77 : f32 to vector<32x256xf32>
    %150 = arith.addf %149, %148 : vector<32x256xf32>
    %151 = arith.divf %149, %150 : vector<32x256xf32>
    %152 = arith.mulf %146, %151 : vector<32x256xf32>
    %cst_78 = arith.constant 0.000000e+00 : f32
    %153 = vector.broadcast %cst_78 : f32 to vector<32x256xf32>
    %c17_i32_79 = arith.constant 17 : i32
    %154 = tpu.dynamic_rotate %152 by %c17_i32_79 dim 1 : vector<32x256xf32>, i32 -> vector<32x256xf32>
    %155 = vector.extract_strided_slice %0 {offsets = [0, 0, 0], sizes = [1, 1, 256], strides = [1, 1, 1]} : vector<9x1x256xf32> to vector<1x1x256xf32>
    %156 = vector.shape_cast %155 : vector<1x1x256xf32> to vector<1x256xf32>
    %157 = vector.broadcast %156 : vector<1x256xf32> to vector<32x256xf32>
    %158 = arith.mulf %154, %157 : vector<32x256xf32>
    %c0_80 = arith.constant 0 : index
    %c0_81 = arith.constant 0 : index
    %c0_82 = arith.constant 0 : index
    %159 = vector.load %arg17[%c0_80, %c0_81, %c0_82] : memref<9x32x32xf32, #tpu.memory_space<vmem>>, vector<1x32x32xf32>
    %160 = vector.shape_cast %159 : vector<1x32x32xf32> to vector<32x32xf32>
    %cst_83 = arith.constant dense<0.000000e+00> : vector<32x256xf32>
    %161 = tpu.matmul %160, %158, %cst_83 {dimension_numbers = #tpu.dot_dimension_numbers<[1], [0], [0], [1], [0, 0, 1, 1], [], []>} : vector<32x32xf32>, vector<32x256xf32>, vector<32x256xf32> -> vector<32x256xf32>
    %162 = arith.addf %153, %161 : vector<32x256xf32>
    %c16_i32_84 = arith.constant 16 : i32
    %163 = tpu.dynamic_rotate %152 by %c16_i32_84 dim 1 : vector<32x256xf32>, i32 -> vector<32x256xf32>
    %164 = vector.extract_strided_slice %0 {offsets = [1, 0, 0], sizes = [1, 1, 256], strides = [1, 1, 1]} : vector<9x1x256xf32> to vector<1x1x256xf32>
    %165 = vector.shape_cast %164 : vector<1x1x256xf32> to vector<1x256xf32>
    %166 = vector.broadcast %165 : vector<1x256xf32> to vector<32x256xf32>
    %167 = arith.mulf %163, %166 : vector<32x256xf32>
    %c1_85 = arith.constant 1 : index
    %c0_86 = arith.constant 0 : index
    %c0_87 = arith.constant 0 : index
    %168 = vector.load %arg17[%c1_85, %c0_86, %c0_87] : memref<9x32x32xf32, #tpu.memory_space<vmem>>, vector<1x32x32xf32>
    %169 = vector.shape_cast %168 : vector<1x32x32xf32> to vector<32x32xf32>
    %cst_88 = arith.constant dense<0.000000e+00> : vector<32x256xf32>
    %170 = tpu.matmul %169, %167, %cst_88 {dimension_numbers = #tpu.dot_dimension_numbers<[1], [0], [0], [1], [0, 0, 1, 1], [], []>} : vector<32x32xf32>, vector<32x256xf32>, vector<32x256xf32> -> vector<32x256xf32>
    %171 = arith.addf %162, %170 : vector<32x256xf32>
    %c15_i32_89 = arith.constant 15 : i32
    %172 = tpu.dynamic_rotate %152 by %c15_i32_89 dim 1 : vector<32x256xf32>, i32 -> vector<32x256xf32>
    %173 = vector.extract_strided_slice %0 {offsets = [2, 0, 0], sizes = [1, 1, 256], strides = [1, 1, 1]} : vector<9x1x256xf32> to vector<1x1x256xf32>
    %174 = vector.shape_cast %173 : vector<1x1x256xf32> to vector<1x256xf32>
    %175 = vector.broadcast %174 : vector<1x256xf32> to vector<32x256xf32>
    %176 = arith.mulf %172, %175 : vector<32x256xf32>
    %c2_90 = arith.constant 2 : index
    %c0_91 = arith.constant 0 : index
    %c0_92 = arith.constant 0 : index
    %177 = vector.load %arg17[%c2_90, %c0_91, %c0_92] : memref<9x32x32xf32, #tpu.memory_space<vmem>>, vector<1x32x32xf32>
    %178 = vector.shape_cast %177 : vector<1x32x32xf32> to vector<32x32xf32>
    %cst_93 = arith.constant dense<0.000000e+00> : vector<32x256xf32>
    %179 = tpu.matmul %178, %176, %cst_93 {dimension_numbers = #tpu.dot_dimension_numbers<[1], [0], [0], [1], [0, 0, 1, 1], [], []>} : vector<32x32xf32>, vector<32x256xf32>, vector<32x256xf32> -> vector<32x256xf32>
    %180 = arith.addf %171, %179 : vector<32x256xf32>
    %c1_i32_94 = arith.constant 1 : i32
    %181 = tpu.dynamic_rotate %152 by %c1_i32_94 dim 1 : vector<32x256xf32>, i32 -> vector<32x256xf32>
    %182 = vector.extract_strided_slice %0 {offsets = [3, 0, 0], sizes = [1, 1, 256], strides = [1, 1, 1]} : vector<9x1x256xf32> to vector<1x1x256xf32>
    %183 = vector.shape_cast %182 : vector<1x1x256xf32> to vector<1x256xf32>
    %184 = vector.broadcast %183 : vector<1x256xf32> to vector<32x256xf32>
    %185 = arith.mulf %181, %184 : vector<32x256xf32>
    %c3_95 = arith.constant 3 : index
    %c0_96 = arith.constant 0 : index
    %c0_97 = arith.constant 0 : index
    %186 = vector.load %arg17[%c3_95, %c0_96, %c0_97] : memref<9x32x32xf32, #tpu.memory_space<vmem>>, vector<1x32x32xf32>
    %187 = vector.shape_cast %186 : vector<1x32x32xf32> to vector<32x32xf32>
    %cst_98 = arith.constant dense<0.000000e+00> : vector<32x256xf32>
    %188 = tpu.matmul %187, %185, %cst_98 {dimension_numbers = #tpu.dot_dimension_numbers<[1], [0], [0], [1], [0, 0, 1, 1], [], []>} : vector<32x32xf32>, vector<32x256xf32>, vector<32x256xf32> -> vector<32x256xf32>
    %189 = arith.addf %180, %188 : vector<32x256xf32>
    %c4_99 = arith.constant 4 : index
    %c0_100 = arith.constant 0 : index
    %c0_101 = arith.constant 0 : index
    %190 = vector.load %arg17[%c4_99, %c0_100, %c0_101] : memref<9x32x32xf32, #tpu.memory_space<vmem>>, vector<1x32x32xf32>
    %191 = vector.shape_cast %190 : vector<1x32x32xf32> to vector<32x32xf32>
    %cst_102 = arith.constant dense<0.000000e+00> : vector<32x256xf32>
    %192 = tpu.matmul %191, %152, %cst_102 {dimension_numbers = #tpu.dot_dimension_numbers<[1], [0], [0], [1], [0, 0, 1, 1], [], []>} : vector<32x32xf32>, vector<32x256xf32>, vector<32x256xf32> -> vector<32x256xf32>
    %193 = arith.addf %189, %192 : vector<32x256xf32>
    %c255_i32_103 = arith.constant 255 : i32
    %194 = tpu.dynamic_rotate %152 by %c255_i32_103 dim 1 : vector<32x256xf32>, i32 -> vector<32x256xf32>
    %195 = vector.extract_strided_slice %0 {offsets = [5, 0, 0], sizes = [1, 1, 256], strides = [1, 1, 1]} : vector<9x1x256xf32> to vector<1x1x256xf32>
    %196 = vector.shape_cast %195 : vector<1x1x256xf32> to vector<1x256xf32>
    %197 = vector.broadcast %196 : vector<1x256xf32> to vector<32x256xf32>
    %198 = arith.mulf %194, %197 : vector<32x256xf32>
    %c5_104 = arith.constant 5 : index
    %c0_105 = arith.constant 0 : index
    %c0_106 = arith.constant 0 : index
    %199 = vector.load %arg17[%c5_104, %c0_105, %c0_106] : memref<9x32x32xf32, #tpu.memory_space<vmem>>, vector<1x32x32xf32>
    %200 = vector.shape_cast %199 : vector<1x32x32xf32> to vector<32x32xf32>
    %cst_107 = arith.constant dense<0.000000e+00> : vector<32x256xf32>
    %201 = tpu.matmul %200, %198, %cst_107 {dimension_numbers = #tpu.dot_dimension_numbers<[1], [0], [0], [1], [0, 0, 1, 1], [], []>} : vector<32x32xf32>, vector<32x256xf32>, vector<32x256xf32> -> vector<32x256xf32>
    %202 = arith.addf %193, %201 : vector<32x256xf32>
    %c241_i32_108 = arith.constant 241 : i32
    %203 = tpu.dynamic_rotate %152 by %c241_i32_108 dim 1 : vector<32x256xf32>, i32 -> vector<32x256xf32>
    %204 = vector.extract_strided_slice %0 {offsets = [6, 0, 0], sizes = [1, 1, 256], strides = [1, 1, 1]} : vector<9x1x256xf32> to vector<1x1x256xf32>
    %205 = vector.shape_cast %204 : vector<1x1x256xf32> to vector<1x256xf32>
    %206 = vector.broadcast %205 : vector<1x256xf32> to vector<32x256xf32>
    %207 = arith.mulf %203, %206 : vector<32x256xf32>
    %c6_109 = arith.constant 6 : index
    %c0_110 = arith.constant 0 : index
    %c0_111 = arith.constant 0 : index
    %208 = vector.load %arg17[%c6_109, %c0_110, %c0_111] : memref<9x32x32xf32, #tpu.memory_space<vmem>>, vector<1x32x32xf32>
    %209 = vector.shape_cast %208 : vector<1x32x32xf32> to vector<32x32xf32>
    %cst_112 = arith.constant dense<0.000000e+00> : vector<32x256xf32>
    %210 = tpu.matmul %209, %207, %cst_112 {dimension_numbers = #tpu.dot_dimension_numbers<[1], [0], [0], [1], [0, 0, 1, 1], [], []>} : vector<32x32xf32>, vector<32x256xf32>, vector<32x256xf32> -> vector<32x256xf32>
    %211 = arith.addf %202, %210 : vector<32x256xf32>
    %c240_i32_113 = arith.constant 240 : i32
    %212 = tpu.dynamic_rotate %152 by %c240_i32_113 dim 1 : vector<32x256xf32>, i32 -> vector<32x256xf32>
    %213 = vector.extract_strided_slice %0 {offsets = [7, 0, 0], sizes = [1, 1, 256], strides = [1, 1, 1]} : vector<9x1x256xf32> to vector<1x1x256xf32>
    %214 = vector.shape_cast %213 : vector<1x1x256xf32> to vector<1x256xf32>
    %215 = vector.broadcast %214 : vector<1x256xf32> to vector<32x256xf32>
    %216 = arith.mulf %212, %215 : vector<32x256xf32>
    %c7_114 = arith.constant 7 : index
    %c0_115 = arith.constant 0 : index
    %c0_116 = arith.constant 0 : index
    %217 = vector.load %arg17[%c7_114, %c0_115, %c0_116] : memref<9x32x32xf32, #tpu.memory_space<vmem>>, vector<1x32x32xf32>
    %218 = vector.shape_cast %217 : vector<1x32x32xf32> to vector<32x32xf32>
    %cst_117 = arith.constant dense<0.000000e+00> : vector<32x256xf32>
    %219 = tpu.matmul %218, %216, %cst_117 {dimension_numbers = #tpu.dot_dimension_numbers<[1], [0], [0], [1], [0, 0, 1, 1], [], []>} : vector<32x32xf32>, vector<32x256xf32>, vector<32x256xf32> -> vector<32x256xf32>
    %220 = arith.addf %211, %219 : vector<32x256xf32>
    %c239_i32_118 = arith.constant 239 : i32
    %221 = tpu.dynamic_rotate %152 by %c239_i32_118 dim 1 : vector<32x256xf32>, i32 -> vector<32x256xf32>
    %222 = vector.extract_strided_slice %0 {offsets = [8, 0, 0], sizes = [1, 1, 256], strides = [1, 1, 1]} : vector<9x1x256xf32> to vector<1x1x256xf32>
    %223 = vector.shape_cast %222 : vector<1x1x256xf32> to vector<1x256xf32>
    %224 = vector.broadcast %223 : vector<1x256xf32> to vector<32x256xf32>
    %225 = arith.mulf %221, %224 : vector<32x256xf32>
    %c8_119 = arith.constant 8 : index
    %c0_120 = arith.constant 0 : index
    %c0_121 = arith.constant 0 : index
    %226 = vector.load %arg17[%c8_119, %c0_120, %c0_121] : memref<9x32x32xf32, #tpu.memory_space<vmem>>, vector<1x32x32xf32>
    %227 = vector.shape_cast %226 : vector<1x32x32xf32> to vector<32x32xf32>
    %cst_122 = arith.constant dense<0.000000e+00> : vector<32x256xf32>
    %228 = tpu.matmul %227, %225, %cst_122 {dimension_numbers = #tpu.dot_dimension_numbers<[1], [0], [0], [1], [0, 0, 1, 1], [], []>} : vector<32x32xf32>, vector<32x256xf32>, vector<32x256xf32> -> vector<32x256xf32>
    %229 = arith.addf %220, %228 : vector<32x256xf32>
    %c0_123 = arith.constant 0 : index
    %c0_124 = arith.constant 0 : index
    %230 = vector.load %arg18[%c0_123, %c0_124] : memref<32x1xf32, #tpu.memory_space<vmem>>, vector<32x1xf32>
    %231 = vector.broadcast %230 : vector<32x1xf32> to vector<32x256xf32>
    %232 = arith.addf %229, %231 : vector<32x256xf32>
    %233 = vector.broadcast %42 : vector<32x1xf32> to vector<32x256xf32>
    %234 = arith.addf %232, %233 : vector<32x256xf32>
    %cst_125 = arith.constant dense<0.000000e+00> : vector<32x256xf32>
    %235 = tpu.matmul %1, %234, %cst_125 {dimension_numbers = #tpu.dot_dimension_numbers<[1], [0], [0], [1], [0, 0, 1, 1], [], []>} : vector<32x32xf32>, vector<32x256xf32>, vector<32x256xf32> -> vector<32x256xf32>
    %cst_126 = arith.constant dense<0.000000e+00> : vector<32xf32>
    %236 = vector.multi_reduction <add>, %235, %cst_126 [1] : vector<32x256xf32> to vector<32xf32>
    %237 = vector.shape_cast %236 : vector<32xf32> to vector<32x1xf32>
    %cst_127 = arith.constant 9.765625E-4 : f32
    %238 = vector.broadcast %cst_127 : f32 to vector<32x1xf32>
    %239 = arith.mulf %237, %238 : vector<32x1xf32>
    %240 = vector.broadcast %239 : vector<32x1xf32> to vector<32x256xf32>
    %241 = arith.subf %234, %240 : vector<32x256xf32>
    %242 = arith.mulf %241, %241 : vector<32x256xf32>
    %cst_128 = arith.constant dense<0.000000e+00> : vector<32x256xf32>
    %243 = tpu.matmul %1, %242, %cst_128 {dimension_numbers = #tpu.dot_dimension_numbers<[1], [0], [0], [1], [0, 0, 1, 1], [], []>} : vector<32x32xf32>, vector<32x256xf32>, vector<32x256xf32> -> vector<32x256xf32>
    %cst_129 = arith.constant dense<0.000000e+00> : vector<32xf32>
    %244 = vector.multi_reduction <add>, %243, %cst_129 [1] : vector<32x256xf32> to vector<32xf32>
    %245 = vector.shape_cast %244 : vector<32xf32> to vector<32x1xf32>
    %cst_130 = arith.constant 9.765625E-4 : f32
    %246 = vector.broadcast %cst_130 : f32 to vector<32x1xf32>
    %247 = arith.mulf %245, %246 : vector<32x1xf32>
    %cst_131 = arith.constant 9.99999974E-6 : f32
    %248 = vector.broadcast %cst_131 : f32 to vector<32x1xf32>
    %249 = arith.addf %247, %248 : vector<32x1xf32>
    %250 = math.rsqrt %249 : vector<32x1xf32>
    %251 = vector.broadcast %250 : vector<32x1xf32> to vector<32x256xf32>
    %252 = arith.mulf %241, %251 : vector<32x256xf32>
    %c0_132 = arith.constant 0 : index
    %c0_133 = arith.constant 0 : index
    %253 = vector.load %arg19[%c0_132, %c0_133] : memref<32x1xf32, #tpu.memory_space<vmem>>, vector<32x1xf32>
    %254 = vector.broadcast %253 : vector<32x1xf32> to vector<32x256xf32>
    %255 = arith.mulf %252, %254 : vector<32x256xf32>
    %c0_134 = arith.constant 0 : index
    %c0_135 = arith.constant 0 : index
    %256 = vector.load %arg20[%c0_134, %c0_135] : memref<32x1xf32, #tpu.memory_space<vmem>>, vector<32x1xf32>
    %257 = vector.broadcast %256 : vector<32x1xf32> to vector<32x256xf32>
    %258 = arith.addf %255, %257 : vector<32x256xf32>
    %259 = arith.negf %258 : vector<32x256xf32>
    %260 = math.exp %259 : vector<32x256xf32>
    %cst_136 = arith.constant 1.000000e+00 : f32
    %261 = vector.broadcast %cst_136 : f32 to vector<32x256xf32>
    %262 = arith.addf %261, %260 : vector<32x256xf32>
    %263 = arith.divf %261, %262 : vector<32x256xf32>
    %264 = arith.mulf %258, %263 : vector<32x256xf32>
    %cst_137 = arith.constant 0.000000e+00 : f32
    %265 = vector.broadcast %cst_137 : f32 to vector<32x256xf32>
    %c17_i32_138 = arith.constant 17 : i32
    %266 = tpu.dynamic_rotate %264 by %c17_i32_138 dim 1 : vector<32x256xf32>, i32 -> vector<32x256xf32>
    %267 = vector.extract_strided_slice %0 {offsets = [0, 0, 0], sizes = [1, 1, 256], strides = [1, 1, 1]} : vector<9x1x256xf32> to vector<1x1x256xf32>
    %268 = vector.shape_cast %267 : vector<1x1x256xf32> to vector<1x256xf32>
    %269 = vector.broadcast %268 : vector<1x256xf32> to vector<32x256xf32>
    %270 = arith.mulf %266, %269 : vector<32x256xf32>
    %c0_139 = arith.constant 0 : index
    %c0_140 = arith.constant 0 : index
    %c0_141 = arith.constant 0 : index
    %271 = vector.load %arg21[%c0_139, %c0_140, %c0_141] : memref<9x32x32xf32, #tpu.memory_space<vmem>>, vector<1x32x32xf32>
    %272 = vector.shape_cast %271 : vector<1x32x32xf32> to vector<32x32xf32>
    %cst_142 = arith.constant dense<0.000000e+00> : vector<32x256xf32>
    %273 = tpu.matmul %272, %270, %cst_142 {dimension_numbers = #tpu.dot_dimension_numbers<[1], [0], [0], [1], [0, 0, 1, 1], [], []>} : vector<32x32xf32>, vector<32x256xf32>, vector<32x256xf32> -> vector<32x256xf32>
    %274 = arith.addf %265, %273 : vector<32x256xf32>
    %c16_i32_143 = arith.constant 16 : i32
    %275 = tpu.dynamic_rotate %264 by %c16_i32_143 dim 1 : vector<32x256xf32>, i32 -> vector<32x256xf32>
    %276 = vector.extract_strided_slice %0 {offsets = [1, 0, 0], sizes = [1, 1, 256], strides = [1, 1, 1]} : vector<9x1x256xf32> to vector<1x1x256xf32>
    %277 = vector.shape_cast %276 : vector<1x1x256xf32> to vector<1x256xf32>
    %278 = vector.broadcast %277 : vector<1x256xf32> to vector<32x256xf32>
    %279 = arith.mulf %275, %278 : vector<32x256xf32>
    %c1_144 = arith.constant 1 : index
    %c0_145 = arith.constant 0 : index
    %c0_146 = arith.constant 0 : index
    %280 = vector.load %arg21[%c1_144, %c0_145, %c0_146] : memref<9x32x32xf32, #tpu.memory_space<vmem>>, vector<1x32x32xf32>
    %281 = vector.shape_cast %280 : vector<1x32x32xf32> to vector<32x32xf32>
    %cst_147 = arith.constant dense<0.000000e+00> : vector<32x256xf32>
    %282 = tpu.matmul %281, %279, %cst_147 {dimension_numbers = #tpu.dot_dimension_numbers<[1], [0], [0], [1], [0, 0, 1, 1], [], []>} : vector<32x32xf32>, vector<32x256xf32>, vector<32x256xf32> -> vector<32x256xf32>
    %283 = arith.addf %274, %282 : vector<32x256xf32>
    %c15_i32_148 = arith.constant 15 : i32
    %284 = tpu.dynamic_rotate %264 by %c15_i32_148 dim 1 : vector<32x256xf32>, i32 -> vector<32x256xf32>
    %285 = vector.extract_strided_slice %0 {offsets = [2, 0, 0], sizes = [1, 1, 256], strides = [1, 1, 1]} : vector<9x1x256xf32> to vector<1x1x256xf32>
    %286 = vector.shape_cast %285 : vector<1x1x256xf32> to vector<1x256xf32>
    %287 = vector.broadcast %286 : vector<1x256xf32> to vector<32x256xf32>
    %288 = arith.mulf %284, %287 : vector<32x256xf32>
    %c2_149 = arith.constant 2 : index
    %c0_150 = arith.constant 0 : index
    %c0_151 = arith.constant 0 : index
    %289 = vector.load %arg21[%c2_149, %c0_150, %c0_151] : memref<9x32x32xf32, #tpu.memory_space<vmem>>, vector<1x32x32xf32>
    %290 = vector.shape_cast %289 : vector<1x32x32xf32> to vector<32x32xf32>
    %cst_152 = arith.constant dense<0.000000e+00> : vector<32x256xf32>
    %291 = tpu.matmul %290, %288, %cst_152 {dimension_numbers = #tpu.dot_dimension_numbers<[1], [0], [0], [1], [0, 0, 1, 1], [], []>} : vector<32x32xf32>, vector<32x256xf32>, vector<32x256xf32> -> vector<32x256xf32>
    %292 = arith.addf %283, %291 : vector<32x256xf32>
    %c1_i32_153 = arith.constant 1 : i32
    %293 = tpu.dynamic_rotate %264 by %c1_i32_153 dim 1 : vector<32x256xf32>, i32 -> vector<32x256xf32>
    %294 = vector.extract_strided_slice %0 {offsets = [3, 0, 0], sizes = [1, 1, 256], strides = [1, 1, 1]} : vector<9x1x256xf32> to vector<1x1x256xf32>
    %295 = vector.shape_cast %294 : vector<1x1x256xf32> to vector<1x256xf32>
    %296 = vector.broadcast %295 : vector<1x256xf32> to vector<32x256xf32>
    %297 = arith.mulf %293, %296 : vector<32x256xf32>
    %c3_154 = arith.constant 3 : index
    %c0_155 = arith.constant 0 : index
    %c0_156 = arith.constant 0 : index
    %298 = vector.load %arg21[%c3_154, %c0_155, %c0_156] : memref<9x32x32xf32, #tpu.memory_space<vmem>>, vector<1x32x32xf32>
    %299 = vector.shape_cast %298 : vector<1x32x32xf32> to vector<32x32xf32>
    %cst_157 = arith.constant dense<0.000000e+00> : vector<32x256xf32>
    %300 = tpu.matmul %299, %297, %cst_157 {dimension_numbers = #tpu.dot_dimension_numbers<[1], [0], [0], [1], [0, 0, 1, 1], [], []>} : vector<32x32xf32>, vector<32x256xf32>, vector<32x256xf32> -> vector<32x256xf32>
    %301 = arith.addf %292, %300 : vector<32x256xf32>
    %c4_158 = arith.constant 4 : index
    %c0_159 = arith.constant 0 : index
    %c0_160 = arith.constant 0 : index
    %302 = vector.load %arg21[%c4_158, %c0_159, %c0_160] : memref<9x32x32xf32, #tpu.memory_space<vmem>>, vector<1x32x32xf32>
    %303 = vector.shape_cast %302 : vector<1x32x32xf32> to vector<32x32xf32>
    %cst_161 = arith.constant dense<0.000000e+00> : vector<32x256xf32>
    %304 = tpu.matmul %303, %264, %cst_161 {dimension_numbers = #tpu.dot_dimension_numbers<[1], [0], [0], [1], [0, 0, 1, 1], [], []>} : vector<32x32xf32>, vector<32x256xf32>, vector<32x256xf32> -> vector<32x256xf32>
    %305 = arith.addf %301, %304 : vector<32x256xf32>
    %c255_i32_162 = arith.constant 255 : i32
    %306 = tpu.dynamic_rotate %264 by %c255_i32_162 dim 1 : vector<32x256xf32>, i32 -> vector<32x256xf32>
    %307 = vector.extract_strided_slice %0 {offsets = [5, 0, 0], sizes = [1, 1, 256], strides = [1, 1, 1]} : vector<9x1x256xf32> to vector<1x1x256xf32>
    %308 = vector.shape_cast %307 : vector<1x1x256xf32> to vector<1x256xf32>
    %309 = vector.broadcast %308 : vector<1x256xf32> to vector<32x256xf32>
    %310 = arith.mulf %306, %309 : vector<32x256xf32>
    %c5_163 = arith.constant 5 : index
    %c0_164 = arith.constant 0 : index
    %c0_165 = arith.constant 0 : index
    %311 = vector.load %arg21[%c5_163, %c0_164, %c0_165] : memref<9x32x32xf32, #tpu.memory_space<vmem>>, vector<1x32x32xf32>
    %312 = vector.shape_cast %311 : vector<1x32x32xf32> to vector<32x32xf32>
    %cst_166 = arith.constant dense<0.000000e+00> : vector<32x256xf32>
    %313 = tpu.matmul %312, %310, %cst_166 {dimension_numbers = #tpu.dot_dimension_numbers<[1], [0], [0], [1], [0, 0, 1, 1], [], []>} : vector<32x32xf32>, vector<32x256xf32>, vector<32x256xf32> -> vector<32x256xf32>
    %314 = arith.addf %305, %313 : vector<32x256xf32>
    %c241_i32_167 = arith.constant 241 : i32
    %315 = tpu.dynamic_rotate %264 by %c241_i32_167 dim 1 : vector<32x256xf32>, i32 -> vector<32x256xf32>
    %316 = vector.extract_strided_slice %0 {offsets = [6, 0, 0], sizes = [1, 1, 256], strides = [1, 1, 1]} : vector<9x1x256xf32> to vector<1x1x256xf32>
    %317 = vector.shape_cast %316 : vector<1x1x256xf32> to vector<1x256xf32>
    %318 = vector.broadcast %317 : vector<1x256xf32> to vector<32x256xf32>
    %319 = arith.mulf %315, %318 : vector<32x256xf32>
    %c6_168 = arith.constant 6 : index
    %c0_169 = arith.constant 0 : index
    %c0_170 = arith.constant 0 : index
    %320 = vector.load %arg21[%c6_168, %c0_169, %c0_170] : memref<9x32x32xf32, #tpu.memory_space<vmem>>, vector<1x32x32xf32>
    %321 = vector.shape_cast %320 : vector<1x32x32xf32> to vector<32x32xf32>
    %cst_171 = arith.constant dense<0.000000e+00> : vector<32x256xf32>
    %322 = tpu.matmul %321, %319, %cst_171 {dimension_numbers = #tpu.dot_dimension_numbers<[1], [0], [0], [1], [0, 0, 1, 1], [], []>} : vector<32x32xf32>, vector<32x256xf32>, vector<32x256xf32> -> vector<32x256xf32>
    %323 = arith.addf %314, %322 : vector<32x256xf32>
    %c240_i32_172 = arith.constant 240 : i32
    %324 = tpu.dynamic_rotate %264 by %c240_i32_172 dim 1 : vector<32x256xf32>, i32 -> vector<32x256xf32>
    %325 = vector.extract_strided_slice %0 {offsets = [7, 0, 0], sizes = [1, 1, 256], strides = [1, 1, 1]} : vector<9x1x256xf32> to vector<1x1x256xf32>
    %326 = vector.shape_cast %325 : vector<1x1x256xf32> to vector<1x256xf32>
    %327 = vector.broadcast %326 : vector<1x256xf32> to vector<32x256xf32>
    %328 = arith.mulf %324, %327 : vector<32x256xf32>
    %c7_173 = arith.constant 7 : index
    %c0_174 = arith.constant 0 : index
    %c0_175 = arith.constant 0 : index
    %329 = vector.load %arg21[%c7_173, %c0_174, %c0_175] : memref<9x32x32xf32, #tpu.memory_space<vmem>>, vector<1x32x32xf32>
    %330 = vector.shape_cast %329 : vector<1x32x32xf32> to vector<32x32xf32>
    %cst_176 = arith.constant dense<0.000000e+00> : vector<32x256xf32>
    %331 = tpu.matmul %330, %328, %cst_176 {dimension_numbers = #tpu.dot_dimension_numbers<[1], [0], [0], [1], [0, 0, 1, 1], [], []>} : vector<32x32xf32>, vector<32x256xf32>, vector<32x256xf32> -> vector<32x256xf32>
    %332 = arith.addf %323, %331 : vector<32x256xf32>
    %c239_i32_177 = arith.constant 239 : i32
    %333 = tpu.dynamic_rotate %264 by %c239_i32_177 dim 1 : vector<32x256xf32>, i32 -> vector<32x256xf32>
    %334 = vector.extract_strided_slice %0 {offsets = [8, 0, 0], sizes = [1, 1, 256], strides = [1, 1, 1]} : vector<9x1x256xf32> to vector<1x1x256xf32>
    %335 = vector.shape_cast %334 : vector<1x1x256xf32> to vector<1x256xf32>
    %336 = vector.broadcast %335 : vector<1x256xf32> to vector<32x256xf32>
    %337 = arith.mulf %333, %336 : vector<32x256xf32>
    %c8_178 = arith.constant 8 : index
    %c0_179 = arith.constant 0 : index
    %c0_180 = arith.constant 0 : index
    %338 = vector.load %arg21[%c8_178, %c0_179, %c0_180] : memref<9x32x32xf32, #tpu.memory_space<vmem>>, vector<1x32x32xf32>
    %339 = vector.shape_cast %338 : vector<1x32x32xf32> to vector<32x32xf32>
    %cst_181 = arith.constant dense<0.000000e+00> : vector<32x256xf32>
    %340 = tpu.matmul %339, %337, %cst_181 {dimension_numbers = #tpu.dot_dimension_numbers<[1], [0], [0], [1], [0, 0, 1, 1], [], []>} : vector<32x32xf32>, vector<32x256xf32>, vector<32x256xf32> -> vector<32x256xf32>
    %341 = arith.addf %332, %340 : vector<32x256xf32>
    %c0_182 = arith.constant 0 : index
    %c0_183 = arith.constant 0 : index
    %342 = vector.load %arg22[%c0_182, %c0_183] : memref<32x1xf32, #tpu.memory_space<vmem>>, vector<32x1xf32>
    %343 = vector.broadcast %342 : vector<32x1xf32> to vector<32x256xf32>
    %344 = arith.addf %341, %343 : vector<32x256xf32>
    %345 = arith.addf %344, %122 : vector<32x256xf32>
    %cst_184 = arith.constant dense<0.000000e+00> : vector<32x256xf32>
    %346 = tpu.matmul %1, %345, %cst_184 {dimension_numbers = #tpu.dot_dimension_numbers<[1], [0], [0], [1], [0, 0, 1, 1], [], []>} : vector<32x32xf32>, vector<32x256xf32>, vector<32x256xf32> -> vector<32x256xf32>
    %cst_185 = arith.constant dense<0.000000e+00> : vector<32xf32>
    %347 = vector.multi_reduction <add>, %346, %cst_185 [1] : vector<32x256xf32> to vector<32xf32>
    %348 = vector.shape_cast %347 : vector<32xf32> to vector<32x1xf32>
    %cst_186 = arith.constant 9.765625E-4 : f32
    %349 = vector.broadcast %cst_186 : f32 to vector<32x1xf32>
    %350 = arith.mulf %348, %349 : vector<32x1xf32>
    %351 = vector.broadcast %350 : vector<32x1xf32> to vector<32x256xf32>
    %352 = arith.subf %345, %351 : vector<32x256xf32>
    %353 = arith.mulf %352, %352 : vector<32x256xf32>
    %cst_187 = arith.constant dense<0.000000e+00> : vector<32x256xf32>
    %354 = tpu.matmul %1, %353, %cst_187 {dimension_numbers = #tpu.dot_dimension_numbers<[1], [0], [0], [1], [0, 0, 1, 1], [], []>} : vector<32x32xf32>, vector<32x256xf32>, vector<32x256xf32> -> vector<32x256xf32>
    %cst_188 = arith.constant dense<0.000000e+00> : vector<32xf32>
    %355 = vector.multi_reduction <add>, %354, %cst_188 [1] : vector<32x256xf32> to vector<32xf32>
    %356 = vector.shape_cast %355 : vector<32xf32> to vector<32x1xf32>
    %cst_189 = arith.constant 9.765625E-4 : f32
    %357 = vector.broadcast %cst_189 : f32 to vector<32x1xf32>
    %358 = arith.mulf %356, %357 : vector<32x1xf32>
    %cst_190 = arith.constant 9.99999974E-6 : f32
    %359 = vector.broadcast %cst_190 : f32 to vector<32x1xf32>
    %360 = arith.addf %358, %359 : vector<32x1xf32>
    %361 = math.rsqrt %360 : vector<32x1xf32>
    %362 = vector.broadcast %361 : vector<32x1xf32> to vector<32x256xf32>
    %363 = arith.mulf %352, %362 : vector<32x256xf32>
    %c0_191 = arith.constant 0 : index
    %c0_192 = arith.constant 0 : index
    %364 = vector.load %arg23[%c0_191, %c0_192] : memref<32x1xf32, #tpu.memory_space<vmem>>, vector<32x1xf32>
    %365 = vector.broadcast %364 : vector<32x1xf32> to vector<32x256xf32>
    %366 = arith.mulf %363, %365 : vector<32x256xf32>
    %c0_193 = arith.constant 0 : index
    %c0_194 = arith.constant 0 : index
    %367 = vector.load %arg24[%c0_193, %c0_194] : memref<32x1xf32, #tpu.memory_space<vmem>>, vector<32x1xf32>
    %368 = vector.broadcast %367 : vector<32x1xf32> to vector<32x256xf32>
    %369 = arith.addf %366, %368 : vector<32x256xf32>
    %370 = arith.negf %369 : vector<32x256xf32>
    %371 = math.exp %370 : vector<32x256xf32>
    %cst_195 = arith.constant 1.000000e+00 : f32
    %372 = vector.broadcast %cst_195 : f32 to vector<32x256xf32>
    %373 = arith.addf %372, %371 : vector<32x256xf32>
    %374 = arith.divf %372, %373 : vector<32x256xf32>
    %375 = arith.mulf %369, %374 : vector<32x256xf32>
    %cst_196 = arith.constant 0.000000e+00 : f32
    %376 = vector.broadcast %cst_196 : f32 to vector<4x256xf32>
    %c17_i32_197 = arith.constant 17 : i32
    %377 = tpu.dynamic_rotate %375 by %c17_i32_197 dim 1 : vector<32x256xf32>, i32 -> vector<32x256xf32>
    %378 = vector.extract_strided_slice %0 {offsets = [0, 0, 0], sizes = [1, 1, 256], strides = [1, 1, 1]} : vector<9x1x256xf32> to vector<1x1x256xf32>
    %379 = vector.shape_cast %378 : vector<1x1x256xf32> to vector<1x256xf32>
    %380 = vector.broadcast %379 : vector<1x256xf32> to vector<32x256xf32>
    %381 = arith.mulf %377, %380 : vector<32x256xf32>
    %c0_198 = arith.constant 0 : index
    %c0_199 = arith.constant 0 : index
    %c0_200 = arith.constant 0 : index
    %382 = vector.load %arg25[%c0_198, %c0_199, %c0_200] : memref<9x4x32xf32, #tpu.memory_space<vmem>>, vector<1x4x32xf32>
    %383 = vector.shape_cast %382 : vector<1x4x32xf32> to vector<4x32xf32>
    %cst_201 = arith.constant dense<0.000000e+00> : vector<4x256xf32>
    %384 = tpu.matmul %383, %381, %cst_201 {dimension_numbers = #tpu.dot_dimension_numbers<[1], [0], [0], [1], [0, 0, 1, 1], [], []>} : vector<4x32xf32>, vector<32x256xf32>, vector<4x256xf32> -> vector<4x256xf32>
    %385 = arith.addf %376, %384 : vector<4x256xf32>
    %c16_i32_202 = arith.constant 16 : i32
    %386 = tpu.dynamic_rotate %375 by %c16_i32_202 dim 1 : vector<32x256xf32>, i32 -> vector<32x256xf32>
    %387 = vector.extract_strided_slice %0 {offsets = [1, 0, 0], sizes = [1, 1, 256], strides = [1, 1, 1]} : vector<9x1x256xf32> to vector<1x1x256xf32>
    %388 = vector.shape_cast %387 : vector<1x1x256xf32> to vector<1x256xf32>
    %389 = vector.broadcast %388 : vector<1x256xf32> to vector<32x256xf32>
    %390 = arith.mulf %386, %389 : vector<32x256xf32>
    %c1_203 = arith.constant 1 : index
    %c0_204 = arith.constant 0 : index
    %c0_205 = arith.constant 0 : index
    %391 = vector.load %arg25[%c1_203, %c0_204, %c0_205] : memref<9x4x32xf32, #tpu.memory_space<vmem>>, vector<1x4x32xf32>
    %392 = vector.shape_cast %391 : vector<1x4x32xf32> to vector<4x32xf32>
    %cst_206 = arith.constant dense<0.000000e+00> : vector<4x256xf32>
    %393 = tpu.matmul %392, %390, %cst_206 {dimension_numbers = #tpu.dot_dimension_numbers<[1], [0], [0], [1], [0, 0, 1, 1], [], []>} : vector<4x32xf32>, vector<32x256xf32>, vector<4x256xf32> -> vector<4x256xf32>
    %394 = arith.addf %385, %393 : vector<4x256xf32>
    %c15_i32_207 = arith.constant 15 : i32
    %395 = tpu.dynamic_rotate %375 by %c15_i32_207 dim 1 : vector<32x256xf32>, i32 -> vector<32x256xf32>
    %396 = vector.extract_strided_slice %0 {offsets = [2, 0, 0], sizes = [1, 1, 256], strides = [1, 1, 1]} : vector<9x1x256xf32> to vector<1x1x256xf32>
    %397 = vector.shape_cast %396 : vector<1x1x256xf32> to vector<1x256xf32>
    %398 = vector.broadcast %397 : vector<1x256xf32> to vector<32x256xf32>
    %399 = arith.mulf %395, %398 : vector<32x256xf32>
    %c2_208 = arith.constant 2 : index
    %c0_209 = arith.constant 0 : index
    %c0_210 = arith.constant 0 : index
    %400 = vector.load %arg25[%c2_208, %c0_209, %c0_210] : memref<9x4x32xf32, #tpu.memory_space<vmem>>, vector<1x4x32xf32>
    %401 = vector.shape_cast %400 : vector<1x4x32xf32> to vector<4x32xf32>
    %cst_211 = arith.constant dense<0.000000e+00> : vector<4x256xf32>
    %402 = tpu.matmul %401, %399, %cst_211 {dimension_numbers = #tpu.dot_dimension_numbers<[1], [0], [0], [1], [0, 0, 1, 1], [], []>} : vector<4x32xf32>, vector<32x256xf32>, vector<4x256xf32> -> vector<4x256xf32>
    %403 = arith.addf %394, %402 : vector<4x256xf32>
    %c1_i32_212 = arith.constant 1 : i32
    %404 = tpu.dynamic_rotate %375 by %c1_i32_212 dim 1 : vector<32x256xf32>, i32 -> vector<32x256xf32>
    %405 = vector.extract_strided_slice %0 {offsets = [3, 0, 0], sizes = [1, 1, 256], strides = [1, 1, 1]} : vector<9x1x256xf32> to vector<1x1x256xf32>
    %406 = vector.shape_cast %405 : vector<1x1x256xf32> to vector<1x256xf32>
    %407 = vector.broadcast %406 : vector<1x256xf32> to vector<32x256xf32>
    %408 = arith.mulf %404, %407 : vector<32x256xf32>
    %c3_213 = arith.constant 3 : index
    %c0_214 = arith.constant 0 : index
    %c0_215 = arith.constant 0 : index
    %409 = vector.load %arg25[%c3_213, %c0_214, %c0_215] : memref<9x4x32xf32, #tpu.memory_space<vmem>>, vector<1x4x32xf32>
    %410 = vector.shape_cast %409 : vector<1x4x32xf32> to vector<4x32xf32>
    %cst_216 = arith.constant dense<0.000000e+00> : vector<4x256xf32>
    %411 = tpu.matmul %410, %408, %cst_216 {dimension_numbers = #tpu.dot_dimension_numbers<[1], [0], [0], [1], [0, 0, 1, 1], [], []>} : vector<4x32xf32>, vector<32x256xf32>, vector<4x256xf32> -> vector<4x256xf32>
    %412 = arith.addf %403, %411 : vector<4x256xf32>
    %c4_217 = arith.constant 4 : index
    %c0_218 = arith.constant 0 : index
    %c0_219 = arith.constant 0 : index
    %413 = vector.load %arg25[%c4_217, %c0_218, %c0_219] : memref<9x4x32xf32, #tpu.memory_space<vmem>>, vector<1x4x32xf32>
    %414 = vector.shape_cast %413 : vector<1x4x32xf32> to vector<4x32xf32>
    %cst_220 = arith.constant dense<0.000000e+00> : vector<4x256xf32>
    %415 = tpu.matmul %414, %375, %cst_220 {dimension_numbers = #tpu.dot_dimension_numbers<[1], [0], [0], [1], [0, 0, 1, 1], [], []>} : vector<4x32xf32>, vector<32x256xf32>, vector<4x256xf32> -> vector<4x256xf32>
    %416 = arith.addf %412, %415 : vector<4x256xf32>
    %c255_i32_221 = arith.constant 255 : i32
    %417 = tpu.dynamic_rotate %375 by %c255_i32_221 dim 1 : vector<32x256xf32>, i32 -> vector<32x256xf32>
    %418 = vector.extract_strided_slice %0 {offsets = [5, 0, 0], sizes = [1, 1, 256], strides = [1, 1, 1]} : vector<9x1x256xf32> to vector<1x1x256xf32>
    %419 = vector.shape_cast %418 : vector<1x1x256xf32> to vector<1x256xf32>
    %420 = vector.broadcast %419 : vector<1x256xf32> to vector<32x256xf32>
    %421 = arith.mulf %417, %420 : vector<32x256xf32>
    %c5_222 = arith.constant 5 : index
    %c0_223 = arith.constant 0 : index
    %c0_224 = arith.constant 0 : index
    %422 = vector.load %arg25[%c5_222, %c0_223, %c0_224] : memref<9x4x32xf32, #tpu.memory_space<vmem>>, vector<1x4x32xf32>
    %423 = vector.shape_cast %422 : vector<1x4x32xf32> to vector<4x32xf32>
    %cst_225 = arith.constant dense<0.000000e+00> : vector<4x256xf32>
    %424 = tpu.matmul %423, %421, %cst_225 {dimension_numbers = #tpu.dot_dimension_numbers<[1], [0], [0], [1], [0, 0, 1, 1], [], []>} : vector<4x32xf32>, vector<32x256xf32>, vector<4x256xf32> -> vector<4x256xf32>
    %425 = arith.addf %416, %424 : vector<4x256xf32>
    %c241_i32_226 = arith.constant 241 : i32
    %426 = tpu.dynamic_rotate %375 by %c241_i32_226 dim 1 : vector<32x256xf32>, i32 -> vector<32x256xf32>
    %427 = vector.extract_strided_slice %0 {offsets = [6, 0, 0], sizes = [1, 1, 256], strides = [1, 1, 1]} : vector<9x1x256xf32> to vector<1x1x256xf32>
    %428 = vector.shape_cast %427 : vector<1x1x256xf32> to vector<1x256xf32>
    %429 = vector.broadcast %428 : vector<1x256xf32> to vector<32x256xf32>
    %430 = arith.mulf %426, %429 : vector<32x256xf32>
    %c6_227 = arith.constant 6 : index
    %c0_228 = arith.constant 0 : index
    %c0_229 = arith.constant 0 : index
    %431 = vector.load %arg25[%c6_227, %c0_228, %c0_229] : memref<9x4x32xf32, #tpu.memory_space<vmem>>, vector<1x4x32xf32>
    %432 = vector.shape_cast %431 : vector<1x4x32xf32> to vector<4x32xf32>
    %cst_230 = arith.constant dense<0.000000e+00> : vector<4x256xf32>
    %433 = tpu.matmul %432, %430, %cst_230 {dimension_numbers = #tpu.dot_dimension_numbers<[1], [0], [0], [1], [0, 0, 1, 1], [], []>} : vector<4x32xf32>, vector<32x256xf32>, vector<4x256xf32> -> vector<4x256xf32>
    %434 = arith.addf %425, %433 : vector<4x256xf32>
    %c240_i32_231 = arith.constant 240 : i32
    %435 = tpu.dynamic_rotate %375 by %c240_i32_231 dim 1 : vector<32x256xf32>, i32 -> vector<32x256xf32>
    %436 = vector.extract_strided_slice %0 {offsets = [7, 0, 0], sizes = [1, 1, 256], strides = [1, 1, 1]} : vector<9x1x256xf32> to vector<1x1x256xf32>
    %437 = vector.shape_cast %436 : vector<1x1x256xf32> to vector<1x256xf32>
    %438 = vector.broadcast %437 : vector<1x256xf32> to vector<32x256xf32>
    %439 = arith.mulf %435, %438 : vector<32x256xf32>
    %c7_232 = arith.constant 7 : index
    %c0_233 = arith.constant 0 : index
    %c0_234 = arith.constant 0 : index
    %440 = vector.load %arg25[%c7_232, %c0_233, %c0_234] : memref<9x4x32xf32, #tpu.memory_space<vmem>>, vector<1x4x32xf32>
    %441 = vector.shape_cast %440 : vector<1x4x32xf32> to vector<4x32xf32>
    %cst_235 = arith.constant dense<0.000000e+00> : vector<4x256xf32>
    %442 = tpu.matmul %441, %439, %cst_235 {dimension_numbers = #tpu.dot_dimension_numbers<[1], [0], [0], [1], [0, 0, 1, 1], [], []>} : vector<4x32xf32>, vector<32x256xf32>, vector<4x256xf32> -> vector<4x256xf32>
    %443 = arith.addf %434, %442 : vector<4x256xf32>
    %c239_i32_236 = arith.constant 239 : i32
    %444 = tpu.dynamic_rotate %375 by %c239_i32_236 dim 1 : vector<32x256xf32>, i32 -> vector<32x256xf32>
    %445 = vector.extract_strided_slice %0 {offsets = [8, 0, 0], sizes = [1, 1, 256], strides = [1, 1, 1]} : vector<9x1x256xf32> to vector<1x1x256xf32>
    %446 = vector.shape_cast %445 : vector<1x1x256xf32> to vector<1x256xf32>
    %447 = vector.broadcast %446 : vector<1x256xf32> to vector<32x256xf32>
    %448 = arith.mulf %444, %447 : vector<32x256xf32>
    %c8_237 = arith.constant 8 : index
    %c0_238 = arith.constant 0 : index
    %c0_239 = arith.constant 0 : index
    %449 = vector.load %arg25[%c8_237, %c0_238, %c0_239] : memref<9x4x32xf32, #tpu.memory_space<vmem>>, vector<1x4x32xf32>
    %450 = vector.shape_cast %449 : vector<1x4x32xf32> to vector<4x32xf32>
    %cst_240 = arith.constant dense<0.000000e+00> : vector<4x256xf32>
    %451 = tpu.matmul %450, %448, %cst_240 {dimension_numbers = #tpu.dot_dimension_numbers<[1], [0], [0], [1], [0, 0, 1, 1], [], []>} : vector<4x32xf32>, vector<32x256xf32>, vector<4x256xf32> -> vector<4x256xf32>
    %452 = arith.addf %443, %451 : vector<4x256xf32>
    %c0_241 = arith.constant 0 : index
    %c0_242 = arith.constant 0 : index
    %453 = vector.load %arg26[%c0_241, %c0_242] : memref<4x1xf32, #tpu.memory_space<vmem>>, vector<4x1xf32>
    %454 = vector.broadcast %453 : vector<4x1xf32> to vector<4x256xf32>
    %455 = arith.addf %452, %454 : vector<4x256xf32>
    %c0_243 = arith.constant 0 : index
    %c0_244 = arith.constant 0 : index
    %c0_245 = arith.constant 0 : index
    %456 = vector.load %arg27[%c0_243, %c0_244, %c0_245] : memref<1x4x256xf32, #tpu.memory_space<vmem>>, vector<1x4x256xf32>
    %457 = vector.shape_cast %456 : vector<1x4x256xf32> to vector<4x256xf32>
    %458 = vector.shape_cast %455 : vector<4x256xf32> to vector<1x4x256xf32>
    tpu.vector_store %arg27[%c0_243, %c0_244, %c0_245], %458 {strides = array<i32>} : memref<1x4x256xf32, #tpu.memory_space<vmem>>, vector<1x4x256xf32>,
    return
  }
  func.func @transform_0(%arg0: i32, %arg1: memref<2xi32, #tpu.memory_space<smem>>) -> (i32, i32, i32) {
    %c0_i32 = arith.constant 0 : i32
    %c0_i32_0 = arith.constant 0 : i32
    %c0_i32_1 = arith.constant 0 : i32
    return %arg0, %c0_i32, %c0_i32_0 : i32, i32, i32
  }
  func.func @transform_1(%arg0: i32, %arg1: memref<2xi32, #tpu.memory_space<smem>>) -> (i32, i32, i32) {
    %0 = arith.index_cast %arg0 : i32 to index
    %1 = memref.load %arg1[%0] : memref<2xi32, #tpu.memory_space<smem>>
    %c0_i32 = arith.constant 0 : i32
    %c0_i32_0 = arith.constant 0 : i32
    %c0_i32_1 = arith.constant 0 : i32
    return %1, %c0_i32, %c0_i32_0 : i32, i32, i32
  }
  func.func @transform_2(%arg0: i32, %arg1: memref<2xi32, #tpu.memory_space<smem>>) -> (i32, i32, i32) {
    %c0_i32 = arith.constant 0 : i32
    %c0_i32_0 = arith.constant 0 : i32
    %c0_i32_1 = arith.constant 0 : i32
    return %arg0, %c0_i32, %c0_i32_0 : i32, i32, i32
  }
  func.func @transform_3(%arg0: i32, %arg1: memref<2xi32, #tpu.memory_space<smem>>) -> (i32, i32, i32) {
    %c0_i32 = arith.constant 0 : i32
    %c0_i32_0 = arith.constant 0 : i32
    %c0_i32_1 = arith.constant 0 : i32
    %c0_i32_2 = arith.constant 0 : i32
    return %c0_i32, %c0_i32_0, %c0_i32_1 : i32, i32, i32
  }
  func.func @transform_4(%arg0: i32, %arg1: memref<2xi32, #tpu.memory_space<smem>>) -> (i32, i32) {
    %c0_i32 = arith.constant 0 : i32
    %c0_i32_0 = arith.constant 0 : i32
    %c0_i32_1 = arith.constant 0 : i32
    return %c0_i32, %c0_i32_0 : i32, i32
  }
  func.func @transform_5(%arg0: i32, %arg1: memref<2xi32, #tpu.memory_space<smem>>) -> (i32, i32) {
    %c0_i32 = arith.constant 0 : i32
    %c0_i32_0 = arith.constant 0 : i32
    %c0_i32_1 = arith.constant 0 : i32
    return %c0_i32, %c0_i32_0 : i32, i32
  }
  func.func @transform_6(%arg0: i32, %arg1: memref<2xi32, #tpu.memory_space<smem>>) -> (i32, i32) {
    %c0_i32 = arith.constant 0 : i32
    %c0_i32_0 = arith.constant 0 : i32
    %c0_i32_1 = arith.constant 0 : i32
    return %c0_i32, %c0_i32_0 : i32, i32
  }
  func.func @transform_7(%arg0: i32, %arg1: memref<2xi32, #tpu.memory_space<smem>>) -> (i32, i32) {
    %c0_i32 = arith.constant 0 : i32
    %c0_i32_0 = arith.constant 0 : i32
    %c0_i32_1 = arith.constant 0 : i32
    return %c0_i32, %c0_i32_0 : i32, i32
  }
  func.func @transform_8(%arg0: i32, %arg1: memref<2xi32, #tpu.memory_space<smem>>) -> (i32, i32) {
    %c0_i32 = arith.constant 0 : i32
    %c0_i32_0 = arith.constant 0 : i32
    %c0_i32_1 = arith.constant 0 : i32
    return %c0_i32, %c0_i32_0 : i32, i32
  }
  func.func @transform_9(%arg0: i32, %arg1: memref<2xi32, #tpu.memory_space<smem>>) -> (i32, i32) {
    %c0_i32 = arith.constant 0 : i32
    %c0_i32_0 = arith.constant 0 : i32
    %c0_i32_1 = arith.constant 0 : i32
    return %c0_i32, %c0_i32_0 : i32, i32
  }
  func.func @transform_10(%arg0: i32, %arg1: memref<2xi32, #tpu.memory_space<smem>>) -> (i32, i32) {
    %c0_i32 = arith.constant 0 : i32
    %c0_i32_0 = arith.constant 0 : i32
    %c0_i32_1 = arith.constant 0 : i32
    return %c0_i32, %c0_i32_0 : i32, i32
  }
  func.func @transform_11(%arg0: i32, %arg1: memref<2xi32, #tpu.memory_space<smem>>) -> (i32, i32, i32) {
    %c0_i32 = arith.constant 0 : i32
    %c0_i32_0 = arith.constant 0 : i32
    %c0_i32_1 = arith.constant 0 : i32
    %c0_i32_2 = arith.constant 0 : i32
    return %c0_i32, %c0_i32_0, %c0_i32_1 : i32, i32, i32
  }
  func.func @transform_12(%arg0: i32, %arg1: memref<2xi32, #tpu.memory_space<smem>>) -> (i32, i32) {
    %c0_i32 = arith.constant 0 : i32
    %c0_i32_0 = arith.constant 0 : i32
    %c0_i32_1 = arith.constant 0 : i32
    return %c0_i32, %c0_i32_0 : i32, i32
  }
  func.func @transform_13(%arg0: i32, %arg1: memref<2xi32, #tpu.memory_space<smem>>) -> (i32, i32) {
    %c0_i32 = arith.constant 0 : i32
    %c0_i32_0 = arith.constant 0 : i32
    %c0_i32_1 = arith.constant 0 : i32
    return %c0_i32, %c0_i32_0 : i32, i32
  }
  func.func @transform_14(%arg0: i32, %arg1: memref<2xi32, #tpu.memory_space<smem>>) -> (i32, i32) {
    %c0_i32 = arith.constant 0 : i32
    %c0_i32_0 = arith.constant 0 : i32
    %c0_i32_1 = arith.constant 0 : i32
    return %c0_i32, %c0_i32_0 : i32, i32
  }
  func.func @transform_15(%arg0: i32, %arg1: memref<2xi32, #tpu.memory_space<smem>>) -> (i32, i32, i32) {
    %c0_i32 = arith.constant 0 : i32
    %c0_i32_0 = arith.constant 0 : i32
    %c0_i32_1 = arith.constant 0 : i32
    %c0_i32_2 = arith.constant 0 : i32
    return %c0_i32, %c0_i32_0, %c0_i32_1 : i32, i32, i32
  }
  func.func @transform_16(%arg0: i32, %arg1: memref<2xi32, #tpu.memory_space<smem>>) -> (i32, i32) {
    %c0_i32 = arith.constant 0 : i32
    %c0_i32_0 = arith.constant 0 : i32
    %c0_i32_1 = arith.constant 0 : i32
    return %c0_i32, %c0_i32_0 : i32, i32
  }
  func.func @transform_17(%arg0: i32, %arg1: memref<2xi32, #tpu.memory_space<smem>>) -> (i32, i32) {
    %c0_i32 = arith.constant 0 : i32
    %c0_i32_0 = arith.constant 0 : i32
    %c0_i32_1 = arith.constant 0 : i32
    return %c0_i32, %c0_i32_0 : i32, i32
  }
  func.func @transform_18(%arg0: i32, %arg1: memref<2xi32, #tpu.memory_space<smem>>) -> (i32, i32) {
    %c0_i32 = arith.constant 0 : i32
    %c0_i32_0 = arith.constant 0 : i32
    %c0_i32_1 = arith.constant 0 : i32
    return %c0_i32, %c0_i32_0 : i32, i32
  }
  func.func @transform_19(%arg0: i32, %arg1: memref<2xi32, #tpu.memory_space<smem>>) -> (i32, i32, i32) {
    %c0_i32 = arith.constant 0 : i32
    %c0_i32_0 = arith.constant 0 : i32
    %c0_i32_1 = arith.constant 0 : i32
    %c0_i32_2 = arith.constant 0 : i32
    return %c0_i32, %c0_i32_0, %c0_i32_1 : i32, i32, i32
  }
  func.func @transform_20(%arg0: i32, %arg1: memref<2xi32, #tpu.memory_space<smem>>) -> (i32, i32) {
    %c0_i32 = arith.constant 0 : i32
    %c0_i32_0 = arith.constant 0 : i32
    %c0_i32_1 = arith.constant 0 : i32
    return %c0_i32, %c0_i32_0 : i32, i32
  }
  func.func @transform_21(%arg0: i32, %arg1: memref<2xi32, #tpu.memory_space<smem>>) -> (i32, i32) {
    %c0_i32 = arith.constant 0 : i32
    %c0_i32_0 = arith.constant 0 : i32
    %c0_i32_1 = arith.constant 0 : i32
    return %c0_i32, %c0_i32_0 : i32, i32
  }
  func.func @transform_22(%arg0: i32, %arg1: memref<2xi32, #tpu.memory_space<smem>>) -> (i32, i32) {
    %c0_i32 = arith.constant 0 : i32
    %c0_i32_0 = arith.constant 0 : i32
    %c0_i32_1 = arith.constant 0 : i32
    return %c0_i32, %c0_i32_0 : i32, i32
  }
  func.func @transform_23(%arg0: i32, %arg1: memref<2xi32, #tpu.memory_space<smem>>) -> (i32, i32, i32) {
    %c0_i32 = arith.constant 0 : i32
    %c0_i32_0 = arith.constant 0 : i32
    %c0_i32_1 = arith.constant 0 : i32
    %c0_i32_2 = arith.constant 0 : i32
    return %c0_i32, %c0_i32_0, %c0_i32_1 : i32, i32, i32
  }
  func.func @transform_24(%arg0: i32, %arg1: memref<2xi32, #tpu.memory_space<smem>>) -> (i32, i32) {
    %c0_i32 = arith.constant 0 : i32
    %c0_i32_0 = arith.constant 0 : i32
    %c0_i32_1 = arith.constant 0 : i32
    return %c0_i32, %c0_i32_0 : i32, i32
  }
  func.func @transform_25(%arg0: i32, %arg1: memref<2xi32, #tpu.memory_space<smem>>) -> (i32, i32, i32) {
    %c0_i32 = arith.constant 0 : i32
    %c0_i32_0 = arith.constant 0 : i32
    %c0_i32_1 = arith.constant 0 : i32
    return %arg0, %c0_i32, %c0_i32_0 : i32, i32, i32
  }
}

</mosaic_0001>

<llo_original>
// kernel: conditional_unet_forward.1
$region0: #{conditional_unet_forward.1}
  #allocation0 [shape = 'u32[]', space=smem, size = 0x4, offset = 0x4, fixed_abs, tag = 'smem constant byte address 0x4 - core index']
  #allocation1 [shape = 'u32[144,128]{1,0:T(1,128)}', space=vmem, size = 0x12000, scoped, tag = 'internal scratch']
  #allocation2 [shape = 'f32[36,256]{1,0:T(8,128)}', space=vmem, size = 0xa000, scoped, tag = 'scratch operand']
  #allocation3 [shape = 's32[1]{0}', space=sflag, size = 0x4, scoped, tag = 'scoped memory for conditional_unet_forward.1']
  #allocation4 [shape = 'u8[512]{0}', space=smem, size = 0x200, scoped, tag = 'prefetched SMEM operand 0']
  %s0 = inlined_call_operand.vmem [shape: s32[2], index: 0, kind: input, shape index: {}]
  %s1 = inlined_call_operand.vmem [shape: f32[2,4,256], index: 1, kind: input, shape index: {}]
  %s2 = inlined_call_operand.vmem [shape: f32[2,32,1], index: 2, kind: input, shape index: {}]
  %s3 = inlined_call_operand.vmem [shape: f32[2,32,1], index: 3, kind: input, shape index: {}]
  %s4 = inlined_call_operand.hbm [shape: f32[9,1,256], index: 4, kind: input, shape index: {}]
  %s5 = inlined_call_operand.vmem [shape: f32[32,32], index: 5, kind: input, shape index: {}]
  %s6 = inlined_call_operand.vmem [shape: f32[128,32], index: 6, kind: input, shape index: {}]
  %s7 = inlined_call_operand.vmem [shape: f32[128,1], index: 7, kind: input, shape index: {}]
  %s8 = inlined_call_operand.vmem [shape: f32[128,128], index: 8, kind: input, shape index: {}]
  %s9 = inlined_call_operand.vmem [shape: f32[128,1], index: 9, kind: input, shape index: {}]
  %s10 = inlined_call_operand.vmem [shape: f32[32,128], index: 10, kind: input, shape index: {}]
  %s11 = inlined_call_operand.vmem [shape: f32[32,1], index: 11, kind: input, shape index: {}]
  %s12 = inlined_call_operand.vmem [shape: f32[9,32,36], index: 12, kind: input, shape index: {}]
  %s13 = inlined_call_operand.vmem [shape: f32[32,1], index: 13, kind: input, shape index: {}]
  %s14 = inlined_call_operand.vmem [shape: f32[32,1], index: 14, kind: input, shape index: {}]
  %s15 = inlined_call_operand.vmem [shape: f32[32,1], index: 15, kind: input, shape index: {}]
  %s16 = inlined_call_operand.vmem [shape: f32[9,32,32], index: 16, kind: input, shape index: {}]
  %s17 = inlined_call_operand.vmem [shape: f32[32,1], index: 17, kind: input, shape index: {}]
  %s18 = inlined_call_operand.vmem [shape: f32[32,1], index: 18, kind: input, shape index: {}]
  %s19 = inlined_call_operand.vmem [shape: f32[32,1], index: 19, kind: input, shape index: {}]
  %s20 = inlined_call_operand.vmem [shape: f32[9,32,32], index: 20, kind: input, shape index: {}]
  %s21 = inlined_call_operand.vmem [shape: f32[32,1], index: 21, kind: input, shape index: {}]
  %s22 = inlined_call_operand.vmem [shape: f32[32,1], index: 22, kind: input, shape index: {}]
  %s23 = inlined_call_operand.vmem [shape: f32[32,1], index: 23, kind: input, shape index: {}]
  %s24 = inlined_call_operand.vmem [shape: f32[9,4,32], index: 24, kind: input, shape index: {}]
  %s25 = inlined_call_operand.vmem [shape: f32[4,1], index: 25, kind: input, shape index: {}]
  %s26 = inlined_call_operand.vmem [shape: f32[2,4,256], index: 26, kind: output, shape index: {}]
  %s27 = sld [smem:[#allocation0]]
  $region137: #{conditional_unet_forward.1} parent=0
    _
  %s29 = ssub.s32 1, %s27
  %s30 = scalar_select 0, %s29, %s27
  %s31 = sshll.u32 %s0, 4
  %s32 = int_to_ptr.vmem [resolvable:$true] %s31
  %34 = dma.vmem_to_smem %s32, 16, [#allocation4], [#allocation3]
  %35 = dma.done [#allocation3], 16
  %36 = sfence
  $region1: #{conditional_unet_forward.1} parent=0
    #allocation5 [shape = 'u8[9216]{0}', space=vmem, size = 0x2400, scoped, tag = 'input window, operand 4, single buffered']
    #allocation6 [shape = 's32[2]{0}', space=sflag, size = 0x8, scoped, tag = 'scoped memory for conditional_unet_forward.1']
    %37 = vsyncpa [#allocation6], 0
    loop: start=0, step=1, limit=4
    $region2: #{conditional_unet_forward.1} parent=1 // loop_pre_header
      _
    $region3: #{conditional_unet_forward.1} parent=1 // loop_header
      %s39 = sphi 0, %s43
      %p40 = scmp.ge.s32.totalorder %s39, 4
      %s49 = sphi 0, %s51
      %s52 = sphi 0, %s49
      %s53 = sphi 0, %s52
      %s69 = sphi 0, %s53
      %s77 = sphi 0, %s79
      %s80 = sphi 0, %s77
      %s81 = sphi 0, %s80
      %s97 = sphi 0, %s81
      %s103 = sphi 0, %s105
      %s106 = sphi 0, %s103
      %s107 = sphi 0, %s106
      %s123 = sphi 0, %s107
      %s127 = sphi 0, %s127
      %s129 = sphi 0, %s127
      %s130 = sphi 0, %s129
      %s144 = sphi 0, %s130
      %s148 = sphi 0, %s148
      %s150 = sphi 0, %s148
      %s151 = sphi 0, %s150
      %s165 = sphi 0, %s151
      %s169 = sphi 0, %s169
      %s171 = sphi 0, %s169
      %s172 = sphi 0, %s171
      %s186 = sphi 0, %s172
      %s190 = sphi 0, %s190
      %s192 = sphi 0, %s190
      %s193 = sphi 0, %s192
      %s207 = sphi 0, %s193
      %s211 = sphi 0, %s211
      %s213 = sphi 0, %s211
      %s214 = sphi 0, %s213
      %s228 = sphi 0, %s214
      %s232 = sphi 0, %s232
      %s234 = sphi 0, %s232
      %s235 = sphi 0, %s234
      %s249 = sphi 0, %s235
      %s253 = sphi 0, %s253
      %s255 = sphi 0, %s253
      %s256 = sphi 0, %s255
      %s270 = sphi 0, %s256
      %s274 = sphi 0, %s274
      %s276 = sphi 0, %s274
      %s277 = sphi 0, %s276
      %s291 = sphi 0, %s277
      %s295 = sphi 0, %s295
      %s297 = sphi 0, %s295
      %s298 = sphi 0, %s297
      %s312 = sphi 0, %s298
      %s316 = sphi 0, %s316
      %s318 = sphi 0, %s316
      %s319 = sphi 0, %s318
      %s333 = sphi 0, %s319
      %s337 = sphi 0, %s337
      %s339 = sphi 0, %s337
      %s340 = sphi 0, %s339
      %s354 = sphi 0, %s340
      %s358 = sphi 0, %s358
      %s360 = sphi 0, %s358
      %s361 = sphi 0, %s360
      %s375 = sphi 0, %s361
      %s379 = sphi 0, %s379
      %s381 = sphi 0, %s379
      %s382 = sphi 0, %s381
      %s396 = sphi 0, %s382
      %s400 = sphi 0, %s400
      %s402 = sphi 0, %s400
      %s403 = sphi 0, %s402
      %s417 = sphi 0, %s403
      %s421 = sphi 0, %s421
      %s423 = sphi 0, %s421
      %s424 = sphi 0, %s423
      %s438 = sphi 0, %s424
      %s442 = sphi 0, %s442
      %s444 = sphi 0, %s442
      %s445 = sphi 0, %s444
      %s459 = sphi 0, %s445
      %s463 = sphi 0, %s463
      %s465 = sphi 0, %s463
      %s466 = sphi 0, %s465
      %s480 = sphi 0, %s466
      %s484 = sphi 0, %s484
      %s486 = sphi 0, %s484
      %s487 = sphi 0, %s486
      %s501 = sphi 0, %s487
      %s505 = sphi 0, %s505
      %s507 = sphi 0, %s505
      %s508 = sphi 0, %s507
      %s522 = sphi 0, %s508
      %s526 = sphi 0, %s526
      %s528 = sphi 0, %s526
      %s529 = sphi 0, %s528
      %s543 = sphi 0, %s529
      %s547 = sphi 0, %s547
      %s549 = sphi 0, %s547
      %s550 = sphi 0, %s549
      %s564 = sphi 0, %s550
      %s568 = sphi 0, %s568
      %s570 = sphi 0, %s568
      %s571 = sphi 0, %s570
      %s585 = sphi 0, %s571
      %s591 = sphi 0, %s593
      %s594 = sphi 0, %s591
      %s595 = sphi 0, %s594
      %s611 = sphi 0, %s595
    $region4: #{conditional_unet_forward.1} parent=1 // loop_header_branch
      %42 = sbr.rel (%p40) target = $region8
    $region5: #{conditional_unet_forward.1} parent=1 // loop_body
      %s44 = ssub.s32 %s39, 1
      %s45 = ssub.s32 %s39, 2
      %s46 = sadd.s32 %s39, 1
      %s47 = ssub.s32 %s39, %s46
      %p48 = scmp.eq.s32.totalorder %s47, 0
      %s50 = sadd.s32 %s49, 1
      %s51 = scalar_select %p48, %s49, %s50
      %p54 = pneg %p48
      %p55 = scmp.eq.s32.totalorder %s39, 1
      %p56 = por %p54, %p55
      %p57 = scmp.ne.s32.totalorder %s49, %s52
      %p58 = scmp.eq.s32.totalorder %s39, 0
      %p59 = por %p57, %p58
      %p60 = scmp.ne.s32.totalorder %s49, %s52
      %p61 = scmp.eq.s32.totalorder %s44, 1
      %p62 = por %p60, %p61
      %p63 = scmp.ne.s32.totalorder %s52, %s53
      %p64 = scmp.eq.s32.totalorder %s44, 0
      %p65 = por %p63, %p64
      %p66 = scmp.ne.s32.totalorder %s52, %s53
      %p67 = scmp.eq.s32.totalorder %s45, 1
      %p68 = por %p66, %p67
      %p70 = scmp.ne.s32.totalorder %s53, %s69
      %p71 = scmp.eq.s32.totalorder %s45, 0
      %p72 = por %p70, %p71
      %s73 = sld [smem:[#allocation4 + %s39]]
      %s74 = sld [smem:[#allocation4 + %s46]]
      %s75 = ssub.s32 %s73, %s74
      %p76 = scmp.eq.s32.totalorder %s75, 0
      %s78 = sadd.s32 %s77, 1
      %s79 = scalar_select %p76, %s77, %s78
      %p82 = pneg %p76
      %p83 = scmp.eq.s32.totalorder %s39, 1
      %p84 = por %p82, %p83
      %p85 = scmp.ne.s32.totalorder %s77, %s80
      %p86 = scmp.eq.s32.totalorder %s39, 0
      %p87 = por %p85, %p86
      %p88 = scmp.ne.s32.totalorder %s77, %s80
      %p89 = scmp.eq.s32.totalorder %s44, 1
      %p90 = por %p88, %p89
      %p91 = scmp.ne.s32.totalorder %s80, %s81
      %p92 = scmp.eq.s32.totalorder %s44, 0
      %p93 = por %p91, %p92
      %p94 = scmp.ne.s32.totalorder %s80, %s81
      %p95 = scmp.eq.s32.totalorder %s45, 1
      %p96 = por %p94, %p95
      %p98 = scmp.ne.s32.totalorder %s81, %s97
      %p99 = scmp.eq.s32.totalorder %s45, 0
      %p100 = por %p98, %p99
      %s101 = ssub.s32 %s39, %s46
      %p102 = scmp.eq.s32.totalorder %s101, 0
      %s104 = sadd.s32 %s103, 1
      %s105 = scalar_select %p102, %s103, %s104
      %p108 = pneg %p102
      %p109 = scmp.eq.s32.totalorder %s39, 1
      %p110 = por %p108, %p109
      %p111 = scmp.ne.s32.totalorder %s103, %s106
      %p112 = scmp.eq.s32.totalorder %s39, 0
      %p113 = por %p111, %p112
      %p114 = scmp.ne.s32.totalorder %s103, %s106
      %p115 = scmp.eq.s32.totalorder %s44, 1
      %p116 = por %p114, %p115
      %p117 = scmp.ne.s32.totalorder %s106, %s107
      %p118 = scmp.eq.s32.totalorder %s44, 0
      %p119 = por %p117, %p118
      %p120 = scmp.ne.s32.totalorder %s106, %s107
      %p121 = scmp.eq.s32.totalorder %s45, 1
      %p122 = por %p120, %p121
      %p124 = scmp.ne.s32.totalorder %s107, %s123
      %p125 = scmp.eq.s32.totalorder %s45, 0
      %p126 = por %p124, %p125
      %s128 = sadd.s32 %s127, 1
      %p131 = scmp.eq.s32.totalorder %s39, 1
      %p132 = scmp.ne.s32.totalorder %s127, %s129
      %p133 = scmp.eq.s32.totalorder %s39, 0
      %p134 = por %p132, %p133
      %p135 = scmp.ne.s32.totalorder %s127, %s129
      %p136 = scmp.eq.s32.totalorder %s44, 1
      %p137 = por %p135, %p136
      %p138 = scmp.ne.s32.totalorder %s129, %s130
      %p139 = scmp.eq.s32.totalorder %s44, 0
      %p140 = por %p138, %p139
      %p141 = scmp.ne.s32.totalorder %s129, %s130
      %p142 = scmp.eq.s32.totalorder %s45, 1
      %p143 = por %p141, %p142
      %p145 = scmp.ne.s32.totalorder %s130, %s144
      %p146 = scmp.eq.s32.totalorder %s45, 0
      %p147 = por %p145, %p146
      %s149 = sadd.s32 %s148, 1
      %p152 = scmp.eq.s32.totalorder %s39, 1
      %p153 = scmp.ne.s32.totalorder %s148, %s150
      %p154 = scmp.eq.s32.totalorder %s39, 0
      %p155 = por %p153, %p154
      %p156 = scmp.ne.s32.totalorder %s148, %s150
      %p157 = scmp.eq.s32.totalorder %s44, 1
      %p158 = por %p156, %p157
      %p159 = scmp.ne.s32.totalorder %s150, %s151
      %p160 = scmp.eq.s32.totalorder %s44, 0
      %p161 = por %p159, %p160
      %p162 = scmp.ne.s32.totalorder %s150, %s151
      %p163 = scmp.eq.s32.totalorder %s45, 1
      %p164 = por %p162, %p163
      %p166 = scmp.ne.s32.totalorder %s151, %s165
      %p167 = scmp.eq.s32.totalorder %s45, 0
      %p168 = por %p166, %p167
      %s170 = sadd.s32 %s169, 1
      %p173 = scmp.eq.s32.totalorder %s39, 1
      %p174 = scmp.ne.s32.totalorder %s169, %s171
      %p175 = scmp.eq.s32.totalorder %s39, 0
      %p176 = por %p174, %p175
      %p177 = scmp.ne.s32.totalorder %s169, %s171
      %p178 = scmp.eq.s32.totalorder %s44, 1
      %p179 = por %p177, %p178
      %p180 = scmp.ne.s32.totalorder %s171, %s172
      %p181 = scmp.eq.s32.totalorder %s44, 0
      %p182 = por %p180, %p181
      %p183 = scmp.ne.s32.totalorder %s171, %s172
      %p184 = scmp.eq.s32.totalorder %s45, 1
      %p185 = por %p183, %p184
      %p187 = scmp.ne.s32.totalorder %s172, %s186
      %p188 = scmp.eq.s32.totalorder %s45, 0
      %p189 = por %p187, %p188
      %s191 = sadd.s32 %s190, 1
      %p194 = scmp.eq.s32.totalorder %s39, 1
      %p195 = scmp.ne.s32.totalorder %s190, %s192
      %p196 = scmp.eq.s32.totalorder %s39, 0
      %p197 = por %p195, %p196
      %p198 = scmp.ne.s32.totalorder %s190, %s192
      %p199 = scmp.eq.s32.totalorder %s44, 1
      %p200 = por %p198, %p199
      %p201 = scmp.ne.s32.totalorder %s192, %s193
      %p202 = scmp.eq.s32.totalorder %s44, 0
      %p203 = por %p201, %p202
      %p204 = scmp.ne.s32.totalorder %s192, %s193
      %p205 = scmp.eq.s32.totalorder %s45, 1
      %p206 = por %p204, %p205
      %p208 = scmp.ne.s32.totalorder %s193, %s207
      %p209 = scmp.eq.s32.totalorder %s45, 0
      %p210 = por %p208, %p209
      %s212 = sadd.s32 %s211, 1
      %p215 = scmp.eq.s32.totalorder %s39, 1
      %p216 = scmp.ne.s32.totalorder %s211, %s213
      %p217 = scmp.eq.s32.totalorder %s39, 0
      %p218 = por %p216, %p217
      %p219 = scmp.ne.s32.totalorder %s211, %s213
      %p220 = scmp.eq.s32.totalorder %s44, 1
      %p221 = por %p219, %p220
      %p222 = scmp.ne.s32.totalorder %s213, %s214
      %p223 = scmp.eq.s32.totalorder %s44, 0
      %p224 = por %p222, %p223
      %p225 = scmp.ne.s32.totalorder %s213, %s214
      %p226 = scmp.eq.s32.totalorder %s45, 1
      %p227 = por %p225, %p226
      %p229 = scmp.ne.s32.totalorder %s214, %s228
      %p230 = scmp.eq.s32.totalorder %s45, 0
      %p231 = por %p229, %p230
      %s233 = sadd.s32 %s232, 1
      %p236 = scmp.eq.s32.totalorder %s39, 1
      %p237 = scmp.ne.s32.totalorder %s232, %s234
      %p238 = scmp.eq.s32.totalorder %s39, 0
      %p239 = por %p237, %p238
      %p240 = scmp.ne.s32.totalorder %s232, %s234
      %p241 = scmp.eq.s32.totalorder %s44, 1
      %p242 = por %p240, %p241
      %p243 = scmp.ne.s32.totalorder %s234, %s235
      %p244 = scmp.eq.s32.totalorder %s44, 0
      %p245 = por %p243, %p244
      %p246 = scmp.ne.s32.totalorder %s234, %s235
      %p247 = scmp.eq.s32.totalorder %s45, 1
      %p248 = por %p246, %p247
      %p250 = scmp.ne.s32.totalorder %s235, %s249
      %p251 = scmp.eq.s32.totalorder %s45, 0
      %p252 = por %p250, %p251
      %s254 = sadd.s32 %s253, 1
      %p257 = scmp.eq.s32.totalorder %s39, 1
      %p258 = scmp.ne.s32.totalorder %s253, %s255
      %p259 = scmp.eq.s32.totalorder %s39, 0
      %p260 = por %p258, %p259
      %p261 = scmp.ne.s32.totalorder %s253, %s255
      %p262 = scmp.eq.s32.totalorder %s44, 1
      %p263 = por %p261, %p262
      %p264 = scmp.ne.s32.totalorder %s255, %s256
      %p265 = scmp.eq.s32.totalorder %s44, 0
      %p266 = por %p264, %p265
      %p267 = scmp.ne.s32.totalorder %s255, %s256
      %p268 = scmp.eq.s32.totalorder %s45, 1
      %p269 = por %p267, %p268
      %p271 = scmp.ne.s32.totalorder %s256, %s270
      %p272 = scmp.eq.s32.totalorder %s45, 0
      %p273 = por %p271, %p272
      %s275 = sadd.s32 %s274, 1
      %p278 = scmp.eq.s32.totalorder %s39, 1
      %p279 = scmp.ne.s32.totalorder %s274, %s276
      %p280 = scmp.eq.s32.totalorder %s39, 0
      %p281 = por %p279, %p280
      %p282 = scmp.ne.s32.totalorder %s274, %s276
      %p283 = scmp.eq.s32.totalorder %s44, 1
      %p284 = por %p282, %p283
      %p285 = scmp.ne.s32.totalorder %s276, %s277
      %p286 = scmp.eq.s32.totalorder %s44, 0
      %p287 = por %p285, %p286
      %p288 = scmp.ne.s32.totalorder %s276, %s277
      %p289 = scmp.eq.s32.totalorder %s45, 1
      %p290 = por %p288, %p289
      %p292 = scmp.ne.s32.totalorder %s277, %s291
      %p293 = scmp.eq.s32.totalorder %s45, 0
      %p294 = por %p292, %p293
      %s296 = sadd.s32 %s295, 1
      %p299 = scmp.eq.s32.totalorder %s39, 1
      %p300 = scmp.ne.s32.totalorder %s295, %s297
      %p301 = scmp.eq.s32.totalorder %s39, 0
      %p302 = por %p300, %p301
      %p303 = scmp.ne.s32.totalorder %s295, %s297
      %p304 = scmp.eq.s32.totalorder %s44, 1
      %p305 = por %p303, %p304
      %p306 = scmp.ne.s32.totalorder %s297, %s298
      %p307 = scmp.eq.s32.totalorder %s44, 0
      %p308 = por %p306, %p307
      %p309 = scmp.ne.s32.totalorder %s297, %s298
      %p310 = scmp.eq.s32.totalorder %s45, 1
      %p311 = por %p309, %p310
      %p313 = scmp.ne.s32.totalorder %s298, %s312
      %p314 = scmp.eq.s32.totalorder %s45, 0
      %p315 = por %p313, %p314
      %s317 = sadd.s32 %s316, 1
      %p320 = scmp.eq.s32.totalorder %s39, 1
      %p321 = scmp.ne.s32.totalorder %s316, %s318
      %p322 = scmp.eq.s32.totalorder %s39, 0
      %p323 = por %p321, %p322
      %p324 = scmp.ne.s32.totalorder %s316, %s318
      %p325 = scmp.eq.s32.totalorder %s44, 1
      %p326 = por %p324, %p325
      %p327 = scmp.ne.s32.totalorder %s318, %s319
      %p328 = scmp.eq.s32.totalorder %s44, 0
      %p329 = por %p327, %p328
      %p330 = scmp.ne.s32.totalorder %s318, %s319
      %p331 = scmp.eq.s32.totalorder %s45, 1
      %p332 = por %p330, %p331
      %p334 = scmp.ne.s32.totalorder %s319, %s333
      %p335 = scmp.eq.s32.totalorder %s45, 0
      %p336 = por %p334, %p335
      %s338 = sadd.s32 %s337, 1
      %p341 = scmp.eq.s32.totalorder %s39, 1
      %p342 = scmp.ne.s32.totalorder %s337, %s339
      %p343 = scmp.eq.s32.totalorder %s39, 0
      %p344 = por %p342, %p343
      %p345 = scmp.ne.s32.totalorder %s337, %s339
      %p346 = scmp.eq.s32.totalorder %s44, 1
      %p347 = por %p345, %p346
      %p348 = scmp.ne.s32.totalorder %s339, %s340
      %p349 = scmp.eq.s32.totalorder %s44, 0
      %p350 = por %p348, %p349
      %p351 = scmp.ne.s32.totalorder %s339, %s340
      %p352 = scmp.eq.s32.totalorder %s45, 1
      %p353 = por %p351, %p352
      %p355 = scmp.ne.s32.totalorder %s340, %s354
      %p356 = scmp.eq.s32.totalorder %s45, 0
      %p357 = por %p355, %p356
      %s359 = sadd.s32 %s358, 1
      %p362 = scmp.eq.s32.totalorder %s39, 1
      %p363 = scmp.ne.s32.totalorder %s358, %s360
      %p364 = scmp.eq.s32.totalorder %s39, 0
      %p365 = por %p363, %p364
      %p366 = scmp.ne.s32.totalorder %s358, %s360
      %p367 = scmp.eq.s32.totalorder %s44, 1
      %p368 = por %p366, %p367
      %p369 = scmp.ne.s32.totalorder %s360, %s361
      %p370 = scmp.eq.s32.totalorder %s44, 0
      %p371 = por %p369, %p370
      %p372 = scmp.ne.s32.totalorder %s360, %s361
      %p373 = scmp.eq.s32.totalorder %s45, 1
      %p374 = por %p372, %p373
      %p376 = scmp.ne.s32.totalorder %s361, %s375
      %p377 = scmp.eq.s32.totalorder %s45, 0
      %p378 = por %p376, %p377
      %s380 = sadd.s32 %s379, 1
      %p383 = scmp.eq.s32.totalorder %s39, 1
      %p384 = scmp.ne.s32.totalorder %s379, %s381
      %p385 = scmp.eq.s32.totalorder %s39, 0
      %p386 = por %p384, %p385
      %p387 = scmp.ne.s32.totalorder %s379, %s381
      %p388 = scmp.eq.s32.totalorder %s44, 1
      %p389 = por %p387, %p388
      %p390 = scmp.ne.s32.totalorder %s381, %s382
      %p391 = scmp.eq.s32.totalorder %s44, 0
      %p392 = por %p390, %p391
      %p393 = scmp.ne.s32.totalorder %s381, %s382
      %p394 = scmp.eq.s32.totalorder %s45, 1
      %p395 = por %p393, %p394
      %p397 = scmp.ne.s32.totalorder %s382, %s396
      %p398 = scmp.eq.s32.totalorder %s45, 0
      %p399 = por %p397, %p398
      %s401 = sadd.s32 %s400, 1
      %p404 = scmp.eq.s32.totalorder %s39, 1
      %p405 = scmp.ne.s32.totalorder %s400, %s402
      %p406 = scmp.eq.s32.totalorder %s39, 0
      %p407 = por %p405, %p406
      %p408 = scmp.ne.s32.totalorder %s400, %s402
      %p409 = scmp.eq.s32.totalorder %s44, 1
      %p410 = por %p408, %p409
      %p411 = scmp.ne.s32.totalorder %s402, %s403
      %p412 = scmp.eq.s32.totalorder %s44, 0
      %p413 = por %p411, %p412
      %p414 = scmp.ne.s32.totalorder %s402, %s403
      %p415 = scmp.eq.s32.totalorder %s45, 1
      %p416 = por %p414, %p415
      %p418 = scmp.ne.s32.totalorder %s403, %s417
      %p419 = scmp.eq.s32.totalorder %s45, 0
      %p420 = por %p418, %p419
      %s422 = sadd.s32 %s421, 1
      %p425 = scmp.eq.s32.totalorder %s39, 1
      %p426 = scmp.ne.s32.totalorder %s421, %s423
      %p427 = scmp.eq.s32.totalorder %s39, 0
      %p428 = por %p426, %p427
      %p429 = scmp.ne.s32.totalorder %s421, %s423
      %p430 = scmp.eq.s32.totalorder %s44, 1
      %p431 = por %p429, %p430
      %p432 = scmp.ne.s32.totalorder %s423, %s424
      %p433 = scmp.eq.s32.totalorder %s44, 0
      %p434 = por %p432, %p433
      %p435 = scmp.ne.s32.totalorder %s423, %s424
      %p436 = scmp.eq.s32.totalorder %s45, 1
      %p437 = por %p435, %p436
      %p439 = scmp.ne.s32.totalorder %s424, %s438
      %p440 = scmp.eq.s32.totalorder %s45, 0
      %p441 = por %p439, %p440
      %s443 = sadd.s32 %s442, 1
      %p446 = scmp.eq.s32.totalorder %s39, 1
      %p447 = scmp.ne.s32.totalorder %s442, %s444
      %p448 = scmp.eq.s32.totalorder %s39, 0
      %p449 = por %p447, %p448
      %p450 = scmp.ne.s32.totalorder %s442, %s444
      %p451 = scmp.eq.s32.totalorder %s44, 1
      %p452 = por %p450, %p451
      %p453 = scmp.ne.s32.totalorder %s444, %s445
      %p454 = scmp.eq.s32.totalorder %s44, 0
      %p455 = por %p453, %p454
      %p456 = scmp.ne.s32.totalorder %s444, %s445
      %p457 = scmp.eq.s32.totalorder %s45, 1
      %p458 = por %p456, %p457
      %p460 = scmp.ne.s32.totalorder %s445, %s459
      %p461 = scmp.eq.s32.totalorder %s45, 0
      %p462 = por %p460, %p461
      %s464 = sadd.s32 %s463, 1
      %p467 = scmp.eq.s32.totalorder %s39, 1
      %p468 = scmp.ne.s32.totalorder %s463, %s465
      %p469 = scmp.eq.s32.totalorder %s39, 0
      %p470 = por %p468, %p469
      %p471 = scmp.ne.s32.totalorder %s463, %s465
      %p472 = scmp.eq.s32.totalorder %s44, 1
      %p473 = por %p471, %p472
      %p474 = scmp.ne.s32.totalorder %s465, %s466
      %p475 = scmp.eq.s32.totalorder %s44, 0
      %p476 = por %p474, %p475
      %p477 = scmp.ne.s32.totalorder %s465, %s466
      %p478 = scmp.eq.s32.totalorder %s45, 1
      %p479 = por %p477, %p478
      %p481 = scmp.ne.s32.totalorder %s466, %s480
      %p482 = scmp.eq.s32.totalorder %s45, 0
      %p483 = por %p481, %p482
      %s485 = sadd.s32 %s484, 1
      %p488 = scmp.eq.s32.totalorder %s39, 1
      %p489 = scmp.ne.s32.totalorder %s484, %s486
      %p490 = scmp.eq.s32.totalorder %s39, 0
      %p491 = por %p489, %p490
      %p492 = scmp.ne.s32.totalorder %s484, %s486
      %p493 = scmp.eq.s32.totalorder %s44, 1
      %p494 = por %p492, %p493
      %p495 = scmp.ne.s32.totalorder %s486, %s487
      %p496 = scmp.eq.s32.totalorder %s44, 0
      %p497 = por %p495, %p496
      %p498 = scmp.ne.s32.totalorder %s486, %s487
      %p499 = scmp.eq.s32.totalorder %s45, 1
      %p500 = por %p498, %p499
      %p502 = scmp.ne.s32.totalorder %s487, %s501
      %p503 = scmp.eq.s32.totalorder %s45, 0
      %p504 = por %p502, %p503
      %s506 = sadd.s32 %s505, 1
      %p509 = scmp.eq.s32.totalorder %s39, 1
      %p510 = scmp.ne.s32.totalorder %s505, %s507
      %p511 = scmp.eq.s32.totalorder %s39, 0
      %p512 = por %p510, %p511
      %p513 = scmp.ne.s32.totalorder %s505, %s507
      %p514 = scmp.eq.s32.totalorder %s44, 1
      %p515 = por %p513, %p514
      %p516 = scmp.ne.s32.totalorder %s507, %s508
      %p517 = scmp.eq.s32.totalorder %s44, 0
      %p518 = por %p516, %p517
      %p519 = scmp.ne.s32.totalorder %s507, %s508
      %p520 = scmp.eq.s32.totalorder %s45, 1
      %p521 = por %p519, %p520
      %p523 = scmp.ne.s32.totalorder %s508, %s522
      %p524 = scmp.eq.s32.totalorder %s45, 0
      %p525 = por %p523, %p524
      %s527 = sadd.s32 %s526, 1
      %p530 = scmp.eq.s32.totalorder %s39, 1
      %p531 = scmp.ne.s32.totalorder %s526, %s528
      %p532 = scmp.eq.s32.totalorder %s39, 0
      %p533 = por %p531, %p532
      %p534 = scmp.ne.s32.totalorder %s526, %s528
      %p535 = scmp.eq.s32.totalorder %s44, 1
      %p536 = por %p534, %p535
      %p537 = scmp.ne.s32.totalorder %s528, %s529
      %p538 = scmp.eq.s32.totalorder %s44, 0
      %p539 = por %p537, %p538
      %p540 = scmp.ne.s32.totalorder %s528, %s529
      %p541 = scmp.eq.s32.totalorder %s45, 1
      %p542 = por %p540, %p541
      %p544 = scmp.ne.s32.totalorder %s529, %s543
      %p545 = scmp.eq.s32.totalorder %s45, 0
      %p546 = por %p544, %p545
      %s548 = sadd.s32 %s547, 1
      %p551 = scmp.eq.s32.totalorder %s39, 1
      %p552 = scmp.ne.s32.totalorder %s547, %s549
      %p553 = scmp.eq.s32.totalorder %s39, 0
      %p554 = por %p552, %p553
      %p555 = scmp.ne.s32.totalorder %s547, %s549
      %p556 = scmp.eq.s32.totalorder %s44, 1
      %p557 = por %p555, %p556
      %p558 = scmp.ne.s32.totalorder %s549, %s550
      %p559 = scmp.eq.s32.totalorder %s44, 0
      %p560 = por %p558, %p559
      %p561 = scmp.ne.s32.totalorder %s549, %s550
      %p562 = scmp.eq.s32.totalorder %s45, 1
      %p563 = por %p561, %p562
      %p565 = scmp.ne.s32.totalorder %s550, %s564
      %p566 = scmp.eq.s32.totalorder %s45, 0
      %p567 = por %p565, %p566
      %s569 = sadd.s32 %s568, 1
      %p572 = scmp.eq.s32.totalorder %s39, 1
      %p573 = scmp.ne.s32.totalorder %s568, %s570
      %p574 = scmp.eq.s32.totalorder %s39, 0
      %p575 = por %p573, %p574
      %p576 = scmp.ne.s32.totalorder %s568, %s570
      %p577 = scmp.eq.s32.totalorder %s44, 1
      %p578 = por %p576, %p577
      %p579 = scmp.ne.s32.totalorder %s570, %s571
      %p580 = scmp.eq.s32.totalorder %s44, 0
      %p581 = por %p579, %p580
      %p582 = scmp.ne.s32.totalorder %s570, %s571
      %p583 = scmp.eq.s32.totalorder %s45, 1
      %p584 = por %p582, %p583
      %p586 = scmp.ne.s32.totalorder %s571, %s585
      %p587 = scmp.eq.s32.totalorder %s45, 0
      %p588 = por %p586, %p587
      %s589 = ssub.s32 %s39, %s46
      %p590 = scmp.eq.s32.totalorder %s589, 0
      %s592 = sadd.s32 %s591, 1
      %s593 = scalar_select %p590, %s591, %s592
      %p596 = pneg %p590
      %p597 = scmp.eq.s32.totalorder %s39, 1
      %p598 = por %p596, %p597
      %p599 = scmp.ne.s32.totalorder %s591, %s594
      %p600 = scmp.eq.s32.totalorder %s39, 0
      %p601 = por %p599, %p600
      %p602 = scmp.ne.s32.totalorder %s591, %s594
      %p603 = scmp.eq.s32.totalorder %s44, 1
      %p604 = por %p602, %p603
      %p605 = scmp.ne.s32.totalorder %s594, %s595
      %p606 = scmp.eq.s32.totalorder %s44, 0
      %p607 = por %p605, %p606
      %p608 = scmp.ne.s32.totalorder %s594, %s595
      %p609 = scmp.eq.s32.totalorder %s45, 1
      %p610 = por %p608, %p609
      %p612 = scmp.ne.s32.totalorder %s595, %s611
      %p613 = scmp.eq.s32.totalorder %s45, 0
      %p614 = por %p612, %p613
      %p615 = scmp.le.s32.totalorder 1, %s39
      %p616 = scmp.lt.s32.totalorder %s39, 3
      %p617 = pnand %p615, %p616
      %p618 = pneg %p617
      // Predicated region
      $region9: #{conditional_unet_forward.1} parent=5 // pred_check
        _
      $region10: #{conditional_unet_forward.1} parent=5 // pred_check_branch
        %620 = sbr.rel (%p617) target = $region12
      $region11: #{conditional_unet_forward.1} parent=5 // pred_region
        %s621 = ssub.s32 %s39, 1
        // Predicated region
        $region13: #{conditional_unet_forward.1} parent=11 // pred_check
          %p622 = pneg %p140
        $region14: #{conditional_unet_forward.1} parent=11 // pred_check_branch
          %624 = sbr.rel (%p622) target = $region16
        $region15: #{conditional_unet_forward.1} parent=11 // pred_region
          %s626 = ssub.s32 288, 288
          %627 = vsyncadd [#allocation6], %s626
          %s628 = sshll.u32 [#allocation5], 4
          %s629 = int_to_ptr.vmem [resolvable:$true] %s628
          %634 = dma.hbm_to_vmem [thread:$0]  %s4, 288, %s629, [#allocation6], 32, 32, 2
        $region16: #{conditional_unet_forward.1} parent=11 // pred_fallthru
          _
        // Predicated region
        $region17: #{conditional_unet_forward.1} parent=11 // pred_check
          %p635 = pneg %p161
        $region18: #{conditional_unet_forward.1} parent=11 // pred_check_branch
          %637 = sbr.rel (%p635) target = $region20
        $region19: #{conditional_unet_forward.1} parent=11 // pred_region
          _
        $region20: #{conditional_unet_forward.1} parent=11 // pred_fallthru
          _
        // Predicated region
        $region21: #{conditional_unet_forward.1} parent=11 // pred_check
          %p638 = pneg %p182
        $region22: #{conditional_unet_forward.1} parent=11 // pred_check_branch
          %640 = sbr.rel (%p638) target = $region24
        $region23: #{conditional_unet_forward.1} parent=11 // pred_region
          _
        $region24: #{conditional_unet_forward.1} parent=11 // pred_fallthru
          _
        // Predicated region
        $region25: #{conditional_unet_forward.1} parent=11 // pred_check
          %p641 = pneg %p203
        $region26: #{conditional_unet_forward.1} parent=11 // pred_check_branch
          %643 = sbr.rel (%p641) target = $region28
        $region27: #{conditional_unet_forward.1} parent=11 // pred_region
          _
        $region28: #{conditional_unet_forward.1} parent=11 // pred_fallthru
          _
        // Predicated region
        $region29: #{conditional_unet_forward.1} parent=11 // pred_check
          %p644 = pneg %p224
        $region30: #{conditional_unet_forward.1} parent=11 // pred_check_branch
          %646 = sbr.rel (%p644) target = $region32
        $region31: #{conditional_unet_forward.1} parent=11 // pred_region
          _
        $region32: #{conditional_unet_forward.1} parent=11 // pred_fallthru
          _
        // Predicated region
        $region33: #{conditional_unet_forward.1} parent=11 // pred_check
          %p647 = pneg %p245
        $region34: #{conditional_unet_forward.1} parent=11 // pred_check_branch
          %649 = sbr.rel (%p647) target = $region36
        $region35: #{conditional_unet_forward.1} parent=11 // pred_region
          _
        $region36: #{conditional_unet_forward.1} parent=11 // pred_fallthru
          _
        // Predicated region
        $region37: #{conditional_unet_forward.1} parent=11 // pred_check
          %p650 = pneg %p266
        $region38: #{conditional_unet_forward.1} parent=11 // pred_check_branch
          %652 = sbr.rel (%p650) target = $region40
        $region39: #{conditional_unet_forward.1} parent=11 // pred_region
          _
        $region40: #{conditional_unet_forward.1} parent=11 // pred_fallthru
          _
        // Predicated region
        $region41: #{conditional_unet_forward.1} parent=11 // pred_check
          %p653 = pneg %p287
        $region42: #{conditional_unet_forward.1} parent=11 // pred_check_branch
          %655 = sbr.rel (%p653) target = $region44
        $region43: #{conditional_unet_forward.1} parent=11 // pred_region
          _
        $region44: #{conditional_unet_forward.1} parent=11 // pred_fallthru
          _
        // Predicated region
        $region45: #{conditional_unet_forward.1} parent=11 // pred_check
          %p656 = pneg %p308
        $region46: #{conditional_unet_forward.1} parent=11 // pred_check_branch
          %658 = sbr.rel (%p656) target = $region48
        $region47: #{conditional_unet_forward.1} parent=11 // pred_region
          _
        $region48: #{conditional_unet_forward.1} parent=11 // pred_fallthru
          _
        // Predicated region
        $region49: #{conditional_unet_forward.1} parent=11 // pred_check
          %p659 = pneg %p329
        $region50: #{conditional_unet_forward.1} parent=11 // pred_check_branch
          %661 = sbr.rel (%p659) target = $region52
        $region51: #{conditional_unet_forward.1} parent=11 // pred_region
          _
        $region52: #{conditional_unet_forward.1} parent=11 // pred_fallthru
          _
        // Predicated region
        $region53: #{conditional_unet_forward.1} parent=11 // pred_check
          %p662 = pneg %p350
        $region54: #{conditional_unet_forward.1} parent=11 // pred_check_branch
          %664 = sbr.rel (%p662) target = $region56
        $region55: #{conditional_unet_forward.1} parent=11 // pred_region
          _
        $region56: #{conditional_unet_forward.1} parent=11 // pred_fallthru
          _
        // Predicated region
        $region57: #{conditional_unet_forward.1} parent=11 // pred_check
          %p665 = pneg %p371
        $region58: #{conditional_unet_forward.1} parent=11 // pred_check_branch
          %667 = sbr.rel (%p665) target = $region60
        $region59: #{conditional_unet_forward.1} parent=11 // pred_region
          _
        $region60: #{conditional_unet_forward.1} parent=11 // pred_fallthru
          _
        // Predicated region
        $region61: #{conditional_unet_forward.1} parent=11 // pred_check
          %p668 = pneg %p392
        $region62: #{conditional_unet_forward.1} parent=11 // pred_check_branch
          %670 = sbr.rel (%p668) target = $region64
        $region63: #{conditional_unet_forward.1} parent=11 // pred_region
          _
        $region64: #{conditional_unet_forward.1} parent=11 // pred_fallthru
          _
        // Predicated region
        $region65: #{conditional_unet_forward.1} parent=11 // pred_check
          %p671 = pneg %p413
        $region66: #{conditional_unet_forward.1} parent=11 // pred_check_branch
          %673 = sbr.rel (%p671) target = $region68
        $region67: #{conditional_unet_forward.1} parent=11 // pred_region
          _
        $region68: #{conditional_unet_forward.1} parent=11 // pred_fallthru
          _
        // Predicated region
        $region69: #{conditional_unet_forward.1} parent=11 // pred_check
          %p674 = pneg %p434
        $region70: #{conditional_unet_forward.1} parent=11 // pred_check_branch
          %676 = sbr.rel (%p674) target = $region72
        $region71: #{conditional_unet_forward.1} parent=11 // pred_region
          _
        $region72: #{conditional_unet_forward.1} parent=11 // pred_fallthru
          _
        // Predicated region
        $region73: #{conditional_unet_forward.1} parent=11 // pred_check
          %p677 = pneg %p455
        $region74: #{conditional_unet_forward.1} parent=11 // pred_check_branch
          %679 = sbr.rel (%p677) target = $region76
        $region75: #{conditional_unet_forward.1} parent=11 // pred_region
          _
        $region76: #{conditional_unet_forward.1} parent=11 // pred_fallthru
          _
        // Predicated region
        $region77: #{conditional_unet_forward.1} parent=11 // pred_check
          %p680 = pneg %p476
        $region78: #{conditional_unet_forward.1} parent=11 // pred_check_branch
          %682 = sbr.rel (%p680) target = $region80
        $region79: #{conditional_unet_forward.1} parent=11 // pred_region
          _
        $region80: #{conditional_unet_forward.1} parent=11 // pred_fallthru
          _
        // Predicated region
        $region81: #{conditional_unet_forward.1} parent=11 // pred_check
          %p683 = pneg %p497
        $region82: #{conditional_unet_forward.1} parent=11 // pred_check_branch
          %685 = sbr.rel (%p683) target = $region84
        $region83: #{conditional_unet_forward.1} parent=11 // pred_region
          _
        $region84: #{conditional_unet_forward.1} parent=11 // pred_fallthru
          _
        // Predicated region
        $region85: #{conditional_unet_forward.1} parent=11 // pred_check
          %p686 = pneg %p518
        $region86: #{conditional_unet_forward.1} parent=11 // pred_check_branch
          %688 = sbr.rel (%p686) target = $region88
        $region87: #{conditional_unet_forward.1} parent=11 // pred_region
          _
        $region88: #{conditional_unet_forward.1} parent=11 // pred_fallthru
          _
        // Predicated region
        $region89: #{conditional_unet_forward.1} parent=11 // pred_check
          %p689 = pneg %p539
        $region90: #{conditional_unet_forward.1} parent=11 // pred_check_branch
          %691 = sbr.rel (%p689) target = $region92
        $region91: #{conditional_unet_forward.1} parent=11 // pred_region
          _
        $region92: #{conditional_unet_forward.1} parent=11 // pred_fallthru
          _
        // Predicated region
        $region93: #{conditional_unet_forward.1} parent=11 // pred_check
          %p692 = pneg %p560
        $region94: #{conditional_unet_forward.1} parent=11 // pred_check_branch
          %694 = sbr.rel (%p692) target = $region96
        $region95: #{conditional_unet_forward.1} parent=11 // pred_region
          _
        $region96: #{conditional_unet_forward.1} parent=11 // pred_fallthru
          _
        // Predicated region
        $region97: #{conditional_unet_forward.1} parent=11 // pred_check
          %p695 = pneg %p581
        $region98: #{conditional_unet_forward.1} parent=11 // pred_check_branch
          %697 = sbr.rel (%p695) target = $region100
        $region99: #{conditional_unet_forward.1} parent=11 // pred_region
          _
        $region100: #{conditional_unet_forward.1} parent=11 // pred_fallthru
          _
      $region12: #{conditional_unet_forward.1} parent=5 // pred_fallthru
        _
      %p698 = scmp.lt.s32.totalorder %s39, 2
      // Predicated region
      $region101: #{conditional_unet_forward.1} parent=5 // pred_check
        %p699 = pneg %p698
      $region102: #{conditional_unet_forward.1} parent=5 // pred_check_branch
        %701 = sbr.rel (%p699) target = $region104
      $region103: #{conditional_unet_forward.1} parent=5 // pred_region
        // Predicated region
        $region105: #{conditional_unet_forward.1} parent=103 // pred_check
          %p702 = pneg %p59
        $region106: #{conditional_unet_forward.1} parent=103 // pred_check_branch
          %704 = sbr.rel (%p702) target = $region108
        $region107: #{conditional_unet_forward.1} parent=103 // pred_region
          %p705 = scmp.lt.s32.totalorder %s39, 1
          %s706 = scalar_select %p705, %s39, 1
          %s707 = smul.addr %s706, 2
          %s708 = smul.addr %s707, 4
          %s709 = scalar_lea.vmem %s1, %s708
        $region108: #{conditional_unet_forward.1} parent=103 // pred_fallthru
          _
        // Predicated region
        $region109: #{conditional_unet_forward.1} parent=103 // pred_check
          %p710 = pneg %p87
        $region110: #{conditional_unet_forward.1} parent=103 // pred_check_branch
          %712 = sbr.rel (%p710) target = $region112
        $region111: #{conditional_unet_forward.1} parent=103 // pred_region
          %s713 = sld [smem:[#allocation4 + %s39]]
          %p714 = scmp.lt.s32.totalorder %s713, 1
          %s715 = scalar_select %p714, %s713, 1
          %s716 = smul.addr %s715, 4
          %s717 = smul.addr %s716, 8
          %s718 = scalar_lea.vmem %s2, %s717
          %s719 = sld [smem:[#allocation4 + %s39]]
        $region112: #{conditional_unet_forward.1} parent=103 // pred_fallthru
          _
        // Predicated region
        $region113: #{conditional_unet_forward.1} parent=103 // pred_check
          %p720 = pneg %p113
        $region114: #{conditional_unet_forward.1} parent=103 // pred_check_branch
          %722 = sbr.rel (%p720) target = $region116
        $region115: #{conditional_unet_forward.1} parent=103 // pred_region
          %p723 = scmp.lt.s32.totalorder %s39, 1
          %s724 = scalar_select %p723, %s39, 1
          %s725 = smul.addr %s724, 4
          %s726 = smul.addr %s725, 8
          %s727 = scalar_lea.vmem %s3, %s726
        $region116: #{conditional_unet_forward.1} parent=103 // pred_fallthru
          _
      $region104: #{conditional_unet_forward.1} parent=5 // pred_fallthru
        _
      %p728 = scmp.le.s32.totalorder 1, %s39
      %p729 = scmp.lt.s32.totalorder %s39, 3
      %p730 = pnand %p728, %p729
      %p731 = pneg %p730
      // Predicated region
      $region117: #{conditional_unet_forward.1} parent=5 // pred_check
        _
      $region118: #{conditional_unet_forward.1} parent=5 // pred_check_branch
        %733 = sbr.rel (%p730) target = $region120
      $region119: #{conditional_unet_forward.1} parent=5 // pred_region
        %s734 = ssub.s32 %s39, 1
        // Predicated region
        $region121: #{conditional_unet_forward.1} parent=119 // pred_check
          %p735 = pneg %p140
        $region122: #{conditional_unet_forward.1} parent=119 // pred_check_branch
          %737 = sbr.rel (%p735) target = $region124
        $region123: #{conditional_unet_forward.1} parent=119 // pred_region
          %738 = dma.done [#allocation6], 288
        $region124: #{conditional_unet_forward.1} parent=119 // pred_fallthru
          _
        %p739 = scmp.lt.s32.totalorder %s44, 1
        %s740 = scalar_select %p739, %s44, 1
        %s741 = smul.addr %s740, 2
        %s742 = smul.addr %s741, 4
        %s743 = scalar_lea.vmem %s1, %s742
        %p744 = pneg %p65
        %p745 = pneg %p62
        %s746 = sld [smem:[#allocation4 + %s44]]
        %p747 = scmp.lt.s32.totalorder %s746, 1
        %s748 = scalar_select %p747, %s746, 1
        %s749 = smul.addr %s748, 4
        %s750 = smul.addr %s749, 8
        %s751 = scalar_lea.vmem %s2, %s750
        %p752 = pneg %p93
        %p753 = pneg %p90
        %p754 = scmp.lt.s32.totalorder %s44, 1
        %s755 = scalar_select %p754, %s44, 1
        %s756 = smul.addr %s755, 4
        %s757 = smul.addr %s756, 8
        %s758 = scalar_lea.vmem %s3, %s757
        %p759 = pneg %p119
        %p760 = pneg %p116
        %p761 = pneg %p140
        %p762 = pneg %p137
        %p763 = pneg %p161
        %p764 = pneg %p158
        %p765 = pneg %p182
        %p766 = pneg %p179
        %p767 = pneg %p203
        %p768 = pneg %p200
        %p769 = pneg %p224
        %p770 = pneg %p221
        %p771 = pneg %p245
        %p772 = pneg %p242
        %p773 = pneg %p266
        %p774 = pneg %p263
        %p775 = pneg %p287
        %p776 = pneg %p284
        %p777 = pneg %p308
        %p778 = pneg %p305
        %p779 = pneg %p329
        %p780 = pneg %p326
        %p781 = pneg %p350
        %p782 = pneg %p347
        %p783 = pneg %p371
        %p784 = pneg %p368
        %p785 = pneg %p392
        %p786 = pneg %p389
        %p787 = pneg %p413
        %p788 = pneg %p410
        %p789 = pneg %p434
        %p790 = pneg %p431
        %p791 = pneg %p455
        %p792 = pneg %p452
        %p793 = pneg %p476
        %p794 = pneg %p473
        %p795 = pneg %p497
        %p796 = pneg %p494
        %p797 = pneg %p518
        %p798 = pneg %p515
        %p799 = pneg %p539
        %p800 = pneg %p536
        %p801 = pneg %p560
        %p802 = pneg %p557
        %p803 = pneg %p581
        %p804 = pneg %p578
        %p805 = pneg %p607
        %p806 = pneg %p604
        %p807 = scmp.lt.s32.totalorder %s44, 1
        %s808 = scalar_select %p807, %s44, 1
        %s809 = smul.addr %s808, 2
        %s810 = smul.addr %s809, 4
        %s811 = scalar_lea.vmem %s26, %s810
        %p812 = scmp.lt.s32.totalorder %s44, 1
        %s813 = scalar_select %p812, %s44, 1
        %s814 = smul.addr %s813, 2
        %s815 = smul.addr %s814, 4
        %s816 = scalar_lea.vmem %s1, %s815
        %s817 = sld [smem:[#allocation4 + %s44]]
        %p818 = scmp.lt.s32.totalorder %s817, 1
        %s819 = scalar_select %p818, %s817, 1
        %s820 = smul.addr %s819, 4
        %s821 = smul.addr %s820, 8
        %s822 = scalar_lea.vmem %s2, %s821
        %s823 = sld [smem:[#allocation4 + %s44]]
        %p824 = scmp.lt.s32.totalorder %s44, 1
        %s825 = scalar_select %p824, %s44, 1
        %s826 = smul.addr %s825, 4
        %s827 = smul.addr %s826, 8
        %s828 = scalar_lea.vmem %s3, %s827
        %p829 = scmp.lt.s32.totalorder %s44, 1
        %s830 = scalar_select %p829, %s44, 1
        %s831 = smul.addr %s830, 2
        %s832 = smul.addr %s831, 4
        %s833 = scalar_lea.vmem %s26, %s832
        %v834 = vld [vmem:[#allocation5] sm:$0x3]
        %v835 = vld [vmem:[#allocation5 + $0x2] sm:$0x3]
        %v836 = vld [vmem:[#allocation5 + $0x4] sm:$0x3]
        %v837 = vld [vmem:[#allocation5 + $0x6] sm:$0x3]
        %v838 = vld [vmem:[#allocation5 + $0xa] sm:$0x3]
        %v839 = vld [vmem:[#allocation5 + $0xc] sm:$0x3]
        %v840 = vld [vmem:[#allocation5 + $0xe] sm:$0x3]
        %v841 = vld [vmem:[#allocation5 + $0x10] sm:$0x3]
        %v842 = vld [vmem:[%s5] sm:$0xff]
        %v843 = vld [vmem:[%s5 + $0x8] sm:$0xff]
        %v844 = vld [vmem:[%s5 + $0x10] sm:$0xff]
        %v845 = vld [vmem:[%s5 + $0x18] sm:$0xff]
        %v846 = vld [vmem:[%s816] sm:$0xff]
        %v848 = vcombine.high %v846, %v846
        %850 = vst [vmem:[#allocation2] sm:$0xf] %v846
        %851 = vst [vmem:[#allocation2 + $0x8] sm:$0xf] %v848
        %v852 = vld [vmem:[%s822] sm:$0xff]
        %v853 = vld [vmem:[%s822 + $0x8] sm:$0xff]
        %v854 = vld [vmem:[%s822 + $0x10] sm:$0xff]
        %v855 = vld [vmem:[%s822 + $0x18] sm:$0xff]
        %857 = vset.pattern.permute.xlu0 0
        %858 = vperm.xlu0 %857, %v852
        %v859 = vpop.permute.xlu0 %858
        %861 = vset.pattern.permute.xlu0 0
        %862 = vperm.xlu0 %861, %v853
        %v863 = vpop.permute.xlu0 %862
        %865 = vset.pattern.permute.xlu0 0
        %866 = vperm.xlu0 %865, %v854
        %v867 = vpop.permute.xlu0 %866
        %869 = vset.pattern.permute.xlu0 0
        %870 = vperm.xlu0 %869, %v855
        %v871 = vpop.permute.xlu0 %870
        %vm872 = vcmask 1043456
        %v873 = vrot.slane %v859, 4
        %v874 = vrot.slane %v863, 4
        %v875 = vsel %vm872, %v873, %v874
        %v876 = vrot.slane %v867, 4
        %v877 = vsel %vm872, %v874, %v876
        %v878 = vrot.slane %v871, 4
        %v879 = vsel %vm872, %v876, %v878
        %885 = vst [vmem:[#allocation2] sm:$0xf0] %v873
        %886 = vst [vmem:[#allocation2 + $0x8] sm:$0xf0] %v873
        %887 = vst [vmem:[#allocation2 + $0x10] sm:$0xff] %v875
        %888 = vst [vmem:[#allocation2 + $0x18] sm:$0xff] %v875
        %889 = vst [vmem:[#allocation2 + $0x20] sm:$0xff] %v877
        %890 = vst [vmem:[#allocation2 + $0x28] sm:$0xff] %v877
        %891 = vst [vmem:[#allocation2 + $0x30] sm:$0xff] %v879
        %892 = vst [vmem:[#allocation2 + $0x38] sm:$0xff] %v879
        %893 = vst [vmem:[#allocation2 + $0x40] sm:$0xf] %v878
        %894 = vst [vmem:[#allocation2 + $0x48] sm:$0xf] %v878
        %v895 = vld [vmem:[#allocation2] sm:$0xff]
        %v896 = vld [vmem:[#allocation2 + $0x8] sm:$0xff]
        %v897 = vld [vmem:[#allocation2 + $0x10] sm:$0xff]
        %v898 = vld [vmem:[#allocation2 + $0x18] sm:$0xff]
        %v899 = vld [vmem:[#allocation2 + $0x20] sm:$0xff]
        %v900 = vld [vmem:[#allocation2 + $0x28] sm:$0xff]
        %v901 = vld [vmem:[#allocation2 + $0x30] sm:$0xff]
        %v902 = vld [vmem:[#allocation2 + $0x38] sm:$0xff]
        %v903 = vld [vmem:[#allocation2 + $0x40] sm:$0xf]
        %v904 = vld [vmem:[#allocation2 + $0x48] sm:$0xf]
        %v905 = vld [vmem:[%s828] sm:$0xff]
        %v906 = vld [vmem:[%s828 + $0x8] sm:$0xff]
        %v907 = vld [vmem:[%s828 + $0x10] sm:$0xff]
        %v908 = vld [vmem:[%s828 + $0x18] sm:$0xff]
        %910 = vset.pattern.permute.xlu0 0
        %911 = vperm.xlu0 %910, %v905
        %v912 = vpop.permute.xlu0 %911
        %915 = vset.pattern.permute.xlu0 0
        %916 = vperm.xlu0 %915, %v906
        %v917 = vpop.permute.xlu0 %916
        %920 = vset.pattern.permute.xlu0 0
        %921 = vperm.xlu0 %920, %v907
        %v922 = vpop.permute.xlu0 %921
        %925 = vset.pattern.permute.xlu0 0
        %926 = vperm.xlu0 %925, %v908
        %v927 = vpop.permute.xlu0 %926
        %v929 = vld [vmem:[%s6] sm:$0xff]
        %v930 = vld [vmem:[%s6 + $0x8] sm:$0xff]
        %v931 = vld [vmem:[%s6 + $0x10] sm:$0xff]
        %v932 = vld [vmem:[%s6 + $0x18] sm:$0xff]
        %v933 = vld [vmem:[%s6 + $0x20] sm:$0xff]
        %v934 = vld [vmem:[%s6 + $0x28] sm:$0xff]
        %v935 = vld [vmem:[%s6 + $0x30] sm:$0xff]
        %v936 = vld [vmem:[%s6 + $0x38] sm:$0xff]
        %v937 = vld [vmem:[%s6 + $0x40] sm:$0xff]
        %v938 = vld [vmem:[%s6 + $0x48] sm:$0xff]
        %v939 = vld [vmem:[%s6 + $0x50] sm:$0xff]
        %v940 = vld [vmem:[%s6 + $0x58] sm:$0xff]
        %v941 = vld [vmem:[%s6 + $0x60] sm:$0xff]
        %v942 = vld [vmem:[%s6 + $0x68] sm:$0xff]
        %v943 = vld [vmem:[%s6 + $0x70] sm:$0xff]
        %v944 = vld [vmem:[%s6 + $0x78] sm:$0xff]
        %v945 = vld [vmem:[%s7] sm:$0xff]
        %v946 = vld [vmem:[%s7 + $0x8] sm:$0xff]
        %v947 = vld [vmem:[%s7 + $0x10] sm:$0xff]
        %v948 = vld [vmem:[%s7 + $0x18] sm:$0xff]
        %v949 = vld [vmem:[%s7 + $0x20] sm:$0xff]
        %v950 = vld [vmem:[%s7 + $0x28] sm:$0xff]
        %v951 = vld [vmem:[%s7 + $0x30] sm:$0xff]
        %v952 = vld [vmem:[%s7 + $0x38] sm:$0xff]
        %v953 = vld [vmem:[%s7 + $0x40] sm:$0xff]
        %v954 = vld [vmem:[%s7 + $0x48] sm:$0xff]
        %v955 = vld [vmem:[%s7 + $0x50] sm:$0xff]
        %v956 = vld [vmem:[%s7 + $0x58] sm:$0xff]
        %v957 = vld [vmem:[%s7 + $0x60] sm:$0xff]
        %v958 = vld [vmem:[%s7 + $0x68] sm:$0xff]
        %v959 = vld [vmem:[%s7 + $0x70] sm:$0xff]
        %v960 = vld [vmem:[%s7 + $0x78] sm:$0xff]
        %962 = vset.pattern.permute.xlu0 0
        %963 = vperm.xlu0 %962, %v945
        %v964 = vpop.permute.xlu0 %963
        %967 = vset.pattern.permute.xlu0 0
        %968 = vperm.xlu0 %967, %v946
        %v969 = vpop.permute.xlu0 %968
        %972 = vset.pattern.permute.xlu0 0
        %973 = vperm.xlu0 %972, %v947
        %v974 = vpop.permute.xlu0 %973
        %977 = vset.pattern.permute.xlu0 0
        %978 = vperm.xlu0 %977, %v948
        %v979 = vpop.permute.xlu0 %978
        %982 = vset.pattern.permute.xlu0 0
        %983 = vperm.xlu0 %982, %v949
        %v984 = vpop.permute.xlu0 %983
        %987 = vset.pattern.permute.xlu0 0
        %988 = vperm.xlu0 %987, %v950
        %v989 = vpop.permute.xlu0 %988
        %992 = vset.pattern.permute.xlu0 0
        %993 = vperm.xlu0 %992, %v951
        %v994 = vpop.permute.xlu0 %993
        %997 = vset.pattern.permute.xlu0 0
        %998 = vperm.xlu0 %997, %v952
        %v999 = vpop.permute.xlu0 %998
        %1002 = vset.pattern.permute.xlu0 0
        %1003 = vperm.xlu0 %1002, %v953
        %v1004 = vpop.permute.xlu0 %1003
        %1007 = vset.pattern.permute.xlu0 0
        %1008 = vperm.xlu0 %1007, %v954
        %v1009 = vpop.permute.xlu0 %1008
        %1012 = vset.pattern.permute.xlu0 0
        %1013 = vperm.xlu0 %1012, %v955
        %v1014 = vpop.permute.xlu0 %1013
        %1017 = vset.pattern.permute.xlu0 0
        %1018 = vperm.xlu0 %1017, %v956
        %v1019 = vpop.permute.xlu0 %1018
        %1022 = vset.pattern.permute.xlu0 0
        %1023 = vperm.xlu0 %1022, %v957
        %v1024 = vpop.permute.xlu0 %1023
        %1027 = vset.pattern.permute.xlu0 0
        %1028 = vperm.xlu0 %1027, %v958
        %v1029 = vpop.permute.xlu0 %1028
        %1032 = vset.pattern.permute.xlu0 0
        %1033 = vperm.xlu0 %1032, %v959
        %v1034 = vpop.permute.xlu0 %1033
        %1037 = vset.pattern.permute.xlu0 0
        %1038 = vperm.xlu0 %1037, %v960
        %v1039 = vpop.permute.xlu0 %1038
        %vm1041 = vcmask 261120
        %v1043 = vsel %vm1041, %v929, 0
        %v1046 = vsel %vm1041, %v930, 0
        %v1049 = vsel %vm1041, %v931, 0
        %v1052 = vsel %vm1041, %v932, 0
        %v1055 = vsel %vm1041, %v933, 0
        %v1058 = vsel %vm1041, %v934, 0
        %v1061 = vsel %vm1041, %v935, 0
        %v1064 = vsel %vm1041, %v936, 0
        %v1067 = vsel %vm1041, %v937, 0
        %v1070 = vsel %vm1041, %v938, 0
        %v1073 = vsel %vm1041, %v939, 0
        %v1076 = vsel %vm1041, %v940, 0
        %v1079 = vsel %vm1041, %v941, 0
        %v1082 = vsel %vm1041, %v942, 0
        %v1085 = vsel %vm1041, %v943, 0
        %v1088 = vsel %vm1041, %v944, 0
        %1090 = vmatprep.subr.mxu0 0.0
        %1091 = vmatpush1.msra.mxu0 %v912
        %1092 = vmatprep.subr.mxu0 0.0
        %1093 = vmatpush1.msra.mxu0 %v917
        %1094 = vmatprep.subr.mxu0 0.0
        %1095 = vmatpush1.msra.mxu0 %v922
        %1096 = vmatprep.subr.mxu0 0.0
        %1097 = vmatpush1.msra.mxu0 %v927
        %1098 = vmatprep.subr.mxu0 0.0
        %1099 = vmatpush1.msra.mxu0 0.0
        %1100 = vmatprep.subr.mxu0 0.0
        %1101 = vmatpush1.msra.mxu0 0.0
        %1102 = vmatprep.subr.mxu0 0.0
        %1103 = vmatpush1.msra.mxu0 0.0
        %1104 = vmatprep.subr.mxu0 0.0
        %1105 = vmatpush1.msra.mxu0 0.0
        %1106 = vmatprep.subr.mxu0 0.0
        %1107 = vmatpush1.msra.mxu0 0.0
        %1108 = vmatprep.subr.mxu0 0.0
        %1109 = vmatpush1.msra.mxu0 0.0
        %1110 = vmatprep.subr.mxu0 0.0
        %1111 = vmatpush1.msra.mxu0 0.0
        %1112 = vmatprep.subr.mxu0 0.0
        %1113 = vmatpush1.msra.mxu0 0.0
        %1114 = vmatprep.subr.mxu0 0.0
        %1115 = vmatpush1.msra.mxu0 0.0
        %1116 = vmatprep.subr.mxu0 0.0
        %1117 = vmatpush1.msra.mxu0 0.0
        %1118 = vmatprep.subr.mxu0 0.0
        %1119 = vmatpush1.msra.mxu0 0.0
        %1120 = vmatprep.subr.mxu0 0.0
        %1121 = vmatpush1.msra.mxu0 0.0
        %1122 = vmatprep.subr.mxu0 0.0
        %1123 = vmatpush1.msra.mxu0 0.0
        %1124 = vmatprep.subr.mxu0 0.0
        %1125 = vmatpush1.msra.mxu0 0.0
        %1126 = vmatprep.subr.mxu0 0.0
        %1127 = vmatpush1.msra.mxu0 0.0
        %1128 = vmatprep.subr.mxu0 0.0
        %1129 = vmatpush1.msra.mxu0 0.0
        %1130 = vmatprep.subr.mxu0 0.0
        %1131 = vmatpush1.msra.mxu0 0.0
        %1132 = vmatprep.subr.mxu0 0.0
        %1133 = vmatpush1.msra.mxu0 0.0
        %1134 = vmatprep.subr.mxu0 0.0
        %1135 = vmatpush1.msra.mxu0 0.0
        %1136 = vmatprep.subr.mxu0 0.0
        %1137 = vmatpush1.msra.mxu0 0.0
        %1138 = vmatprep.subr.mxu0 0.0
        %1139 = vmatpush1.msra.mxu0 0.0
        %1140 = vmatprep.subr.mxu0 0.0
        %1141 = vmatpush1.msra.mxu0 0.0
        %1142 = vmatprep.subr.mxu0 0.0
        %1143 = vmatpush1.msra.mxu0 0.0
        %1144 = vmatprep.subr.mxu0 0.0
        %1145 = vmatpush1.msra.mxu0 0.0
        %1146 = vmatprep.subr.mxu0 0.0
        %1147 = vmatpush1.msra.mxu0 0.0
        %1148 = vmatprep.subr.mxu0 0.0
        %1149 = vmatpush1.msra.mxu0 0.0
        %1150 = vmatprep.subr.mxu0 0.0
        %1151 = vmatpush1.msra.mxu0 0.0
        %1152 = vmatprep.subr.mxu0 0.0
        %1153 = vmatpush1.msra.mxu0 0.0
        %1154 = vmatprep.mubr.f32.mxu0 0.0
        %1155 = vmatmul.mubr.f32.gmra.mrb[0].mxu0 %v1043
        %v1156 = vpop.f32.mrb[0].mxu0
        %v1157 = vadd.f32 %v964, %v1156
        %v1158 = vpop.f32.mrb[0].mxu0
        %1159 = vmatprep.mubr.f32.mxu0 0.0
        %1160 = vmatmul.mubr.f32.gmra.mrb[0].mxu0 %v1046
        %v1161 = vpop.f32.mrb[0].mxu0
        %v1162 = vadd.f32 %v969, %v1161
        %v1163 = vpop.f32.mrb[0].mxu0
        %1164 = vmatprep.mubr.f32.mxu0 0.0
        %1165 = vmatmul.mubr.f32.gmra.mrb[0].mxu0 %v1049
        %v1166 = vpop.f32.mrb[0].mxu0
        %v1167 = vadd.f32 %v974, %v1166
        %v1168 = vpop.f32.mrb[0].mxu0
        %1169 = vmatprep.mubr.f32.mxu0 0.0
        %1170 = vmatmul.mubr.f32.gmra.mrb[0].mxu0 %v1052
        %v1171 = vpop.f32.mrb[0].mxu0
        %v1172 = vadd.f32 %v979, %v1171
        %v1173 = vpop.f32.mrb[0].mxu0
        %1174 = vmatprep.mubr.f32.mxu0 0.0
        %1175 = vmatmul.mubr.f32.gmra.mrb[0].mxu0 %v1055
        %v1176 = vpop.f32.mrb[0].mxu0
        %v1177 = vadd.f32 %v984, %v1176
        %v1178 = vpop.f32.mrb[0].mxu0
        %1179 = vmatprep.mubr.f32.mxu0 0.0
        %1180 = vmatmul.mubr.f32.gmra.mrb[0].mxu0 %v1058
        %v1181 = vpop.f32.mrb[0].mxu0
        %v1182 = vadd.f32 %v989, %v1181
        %v1183 = vpop.f32.mrb[0].mxu0
        %1184 = vmatprep.mubr.f32.mxu0 0.0
        %1185 = vmatmul.mubr.f32.gmra.mrb[0].mxu0 %v1061
        %v1186 = vpop.f32.mrb[0].mxu0
        %v1187 = vadd.f32 %v994, %v1186
        %v1188 = vpop.f32.mrb[0].mxu0
        %1189 = vmatprep.mubr.f32.mxu0 0.0
        %1190 = vmatmul.mubr.f32.gmra.mrb[0].mxu0 %v1064
        %v1191 = vpop.f32.mrb[0].mxu0
        %v1192 = vadd.f32 %v999, %v1191
        %v1193 = vpop.f32.mrb[0].mxu0
        %1194 = vmatprep.mubr.f32.mxu0 0.0
        %1195 = vmatmul.mubr.f32.gmra.mrb[0].mxu0 %v1067
        %v1196 = vpop.f32.mrb[0].mxu0
        %v1197 = vadd.f32 %v1004, %v1196
        %v1198 = vpop.f32.mrb[0].mxu0
        %1199 = vmatprep.mubr.f32.mxu0 0.0
        %1200 = vmatmul.mubr.f32.gmra.mrb[0].mxu0 %v1070
        %v1201 = vpop.f32.mrb[0].mxu0
        %v1202 = vadd.f32 %v1009, %v1201
        %v1203 = vpop.f32.mrb[0].mxu0
        %1204 = vmatprep.mubr.f32.mxu0 0.0
        %1205 = vmatmul.mubr.f32.gmra.mrb[0].mxu0 %v1073
        %v1206 = vpop.f32.mrb[0].mxu0
        %v1207 = vadd.f32 %v1014, %v1206
        %v1208 = vpop.f32.mrb[0].mxu0
        %1209 = vmatprep.mubr.f32.mxu0 0.0
        %1210 = vmatmul.mubr.f32.gmra.mrb[0].mxu0 %v1076
        %v1211 = vpop.f32.mrb[0].mxu0
        %v1212 = vadd.f32 %v1019, %v1211
        %v1213 = vpop.f32.mrb[0].mxu0
        %1214 = vmatprep.mubr.f32.mxu0 0.0
        %1215 = vmatmul.mubr.f32.gmra.mrb[0].mxu0 %v1079
        %v1216 = vpop.f32.mrb[0].mxu0
        %v1217 = vadd.f32 %v1024, %v1216
        %v1218 = vpop.f32.mrb[0].mxu0
        %1219 = vmatprep.mubr.f32.mxu0 0.0
        %1220 = vmatmul.mubr.f32.gmra.mrb[0].mxu0 %v1082
        %v1221 = vpop.f32.mrb[0].mxu0
        %v1222 = vadd.f32 %v1029, %v1221
        %v1223 = vpop.f32.mrb[0].mxu0
        %1224 = vmatprep.mubr.f32.mxu0 0.0
        %1225 = vmatmul.mubr.f32.gmra.mrb[0].mxu0 %v1085
        %v1226 = vpop.f32.mrb[0].mxu0
        %v1227 = vadd.f32 %v1034, %v1226
        %v1228 = vpop.f32.mrb[0].mxu0
        %1229 = vmatprep.mubr.f32.mxu0 0.0
        %1230 = vmatmul.mubr.f32.gmra.mrb[0].mxu0 %v1088
        %v1231 = vpop.f32.mrb[0].mxu0
        %v1232 = vadd.f32 %v1039, %v1231
        %v1233 = vpop.f32.mrb[0].mxu0
        %1234 = vdwg.mxu0
        %v1235 = vxor.u32 %v1157, 2147483648
        %v1236 = vxor.u32 %v1162, 2147483648
        %v1237 = vxor.u32 %v1167, 2147483648
        %v1238 = vxor.u32 %v1172, 2147483648
        %v1239 = vxor.u32 %v1177, 2147483648
        %v1240 = vxor.u32 %v1182, 2147483648
        %v1241 = vxor.u32 %v1187, 2147483648
        %v1242 = vxor.u32 %v1192, 2147483648
        %v1243 = vxor.u32 %v1197, 2147483648
        %v1244 = vxor.u32 %v1202, 2147483648
        %v1245 = vxor.u32 %v1207, 2147483648
        %v1246 = vxor.u32 %v1212, 2147483648
        %v1247 = vxor.u32 %v1217, 2147483648
        %v1248 = vxor.u32 %v1222, 2147483648
        %v1249 = vxor.u32 %v1227, 2147483648
        %v1250 = vxor.u32 %v1232, 2147483648
        %v1251 = vmul.f32 %v1235, 1.442695
        %v1252 = vpow.pop %v1251
        %v1253 = vmul.f32 %v1236, 1.442695
        %v1254 = vpow.pop %v1253
        %v1255 = vmul.f32 %v1237, 1.442695
        %v1256 = vpow.pop %v1255
        %v1257 = vmul.f32 %v1238, 1.442695
        %v1258 = vpow.pop %v1257
        %v1259 = vmul.f32 %v1239, 1.442695
        %v1260 = vpow.pop %v1259
        %v1261 = vmul.f32 %v1240, 1.442695
        %v1262 = vpow.pop %v1261
        %v1263 = vmul.f32 %v1241, 1.442695
        %v1264 = vpow.pop %v1263
        %v1265 = vmul.f32 %v1242, 1.442695
        %v1266 = vpow.pop %v1265
        %v1267 = vmul.f32 %v1243, 1.442695
        %v1268 = vpow.pop %v1267
        %v1269 = vmul.f32 %v1244, 1.442695
        %v1270 = vpow.pop %v1269
        %v1271 = vmul.f32 %v1245, 1.442695
        %v1272 = vpow.pop %v1271
        %v1273 = vmul.f32 %v1246, 1.442695
        %v1274 = vpow.pop %v1273
        %v1275 = vmul.f32 %v1247, 1.442695
        %v1276 = vpow.pop %v1275
        %v1277 = vmul.f32 %v1248, 1.442695
        %v1278 = vpow.pop %v1277
        %v1279 = vmul.f32 %v1249, 1.442695
        %v1280 = vpow.pop %v1279
        %v1281 = vmul.f32 %v1250, 1.442695
        %v1282 = vpow.pop %v1281
        %v1283 = vadd.f32 %v1252, 1.0
        %v1284 = vadd.f32 %v1254, 1.0
        %v1285 = vadd.f32 %v1256, 1.0
        %v1286 = vadd.f32 %v1258, 1.0
        %v1287 = vadd.f32 %v1260, 1.0
        %v1288 = vadd.f32 %v1262, 1.0
        %v1289 = vadd.f32 %v1264, 1.0
        %v1290 = vadd.f32 %v1266, 1.0
        %v1291 = vadd.f32 %v1268, 1.0
        %v1292 = vadd.f32 %v1270, 1.0
        %v1293 = vadd.f32 %v1272, 1.0
        %v1294 = vadd.f32 %v1274, 1.0
        %v1295 = vadd.f32 %v1276, 1.0
        %v1296 = vadd.f32 %v1278, 1.0
        %v1297 = vadd.f32 %v1280, 1.0
        %v1298 = vadd.f32 %v1282, 1.0
        %v1299 = vrcp.pop %v1283
        %v1300 = vmul.f32 1.0, %v1299
        %v1301 = vrcp.pop %v1284
        %v1302 = vmul.f32 1.0, %v1301
        %v1303 = vrcp.pop %v1285
        %v1304 = vmul.f32 1.0, %v1303
        %v1305 = vrcp.pop %v1286
        %v1306 = vmul.f32 1.0, %v1305
        %v1307 = vrcp.pop %v1287
        %v1308 = vmul.f32 1.0, %v1307
        %v1309 = vrcp.pop %v1288
        %v1310 = vmul.f32 1.0, %v1309
        %v1311 = vrcp.pop %v1289
        %v1312 = vmul.f32 1.0, %v1311
        %v1313 = vrcp.pop %v1290
        %v1314 = vmul.f32 1.0, %v1313
        %v1315 = vrcp.pop %v1291
        %v1316 = vmul.f32 1.0, %v1315
        %v1317 = vrcp.pop %v1292
        %v1318 = vmul.f32 1.0, %v1317
        %v1319 = vrcp.pop %v1293
        %v1320 = vmul.f32 1.0, %v1319
        %v1321 = vrcp.pop %v1294
        %v1322 = vmul.f32 1.0, %v1321
        %v1323 = vrcp.pop %v1295
        %v1324 = vmul.f32 1.0, %v1323
        %v1325 = vrcp.pop %v1296
        %v1326 = vmul.f32 1.0, %v1325
        %v1327 = vrcp.pop %v1297
        %v1328 = vmul.f32 1.0, %v1327
        %v1329 = vrcp.pop %v1298
        %v1330 = vmul.f32 1.0, %v1329
        %v1331 = vmul.f32 %v1157, %v1300
        %v1332 = vmul.f32 %v1162, %v1302
        %v1333 = vmul.f32 %v1167, %v1304
        %v1334 = vmul.f32 %v1172, %v1306
        %v1335 = vmul.f32 %v1177, %v1308
        %v1336 = vmul.f32 %v1182, %v1310
        %v1337 = vmul.f32 %v1187, %v1312
        %v1338 = vmul.f32 %v1192, %v1314
        %v1339 = vmul.f32 %v1197, %v1316
        %v1340 = vmul.f32 %v1202, %v1318
        %v1341 = vmul.f32 %v1207, %v1320
        %v1342 = vmul.f32 %v1212, %v1322
        %v1343 = vmul.f32 %v1217, %v1324
        %v1344 = vmul.f32 %v1222, %v1326
        %v1345 = vmul.f32 %v1227, %v1328
        %v1346 = vmul.f32 %v1232, %v1330
        %v1347 = vld [vmem:[%s8] sm:$0xff]
        %v1348 = vld [vmem:[%s8 + $0x8] sm:$0xff]
        %v1349 = vld [vmem:[%s8 + $0x10] sm:$0xff]
        %v1350 = vld [vmem:[%s8 + $0x18] sm:$0xff]
        %v1351 = vld [vmem:[%s8 + $0x20] sm:$0xff]
        %v1352 = vld [vmem:[%s8 + $0x28] sm:$0xff]
        %v1353 = vld [vmem:[%s8 + $0x30] sm:$0xff]
        %v1354 = vld [vmem:[%s8 + $0x38] sm:$0xff]
        %v1355 = vld [vmem:[%s8 + $0x40] sm:$0xff]
        %v1356 = vld [vmem:[%s8 + $0x48] sm:$0xff]
        %v1357 = vld [vmem:[%s8 + $0x50] sm:$0xff]
        %v1358 = vld [vmem:[%s8 + $0x58] sm:$0xff]
        %v1359 = vld [vmem:[%s8 + $0x60] sm:$0xff]
        %v1360 = vld [vmem:[%s8 + $0x68] sm:$0xff]
        %v1361 = vld [vmem:[%s8 + $0x70] sm:$0xff]
        %v1362 = vld [vmem:[%s8 + $0x78] sm:$0xff]
        %v1363 = vld [vmem:[%s9] sm:$0xff]
        %v1364 = vld [vmem:[%s9 + $0x8] sm:$0xff]
        %v1365 = vld [vmem:[%s9 + $0x10] sm:$0xff]
        %v1366 = vld [vmem:[%s9 + $0x18] sm:$0xff]
        %v1367 = vld [vmem:[%s9 + $0x20] sm:$0xff]
        %v1368 = vld [vmem:[%s9 + $0x28] sm:$0xff]
        %v1369 = vld [vmem:[%s9 + $0x30] sm:$0xff]
        %v1370 = vld [vmem:[%s9 + $0x38] sm:$0xff]
        %v1371 = vld [vmem:[%s9 + $0x40] sm:$0xff]
        %v1372 = vld [vmem:[%s9 + $0x48] sm:$0xff]
        %v1373 = vld [vmem:[%s9 + $0x50] sm:$0xff]
        %v1374 = vld [vmem:[%s9 + $0x58] sm:$0xff]
        %v1375 = vld [vmem:[%s9 + $0x60] sm:$0xff]
        %v1376 = vld [vmem:[%s9 + $0x68] sm:$0xff]
        %v1377 = vld [vmem:[%s9 + $0x70] sm:$0xff]
        %v1378 = vld [vmem:[%s9 + $0x78] sm:$0xff]
        %1380 = vset.pattern.permute.xlu0 0
        %1381 = vperm.xlu0 %1380, %v1363
        %v1382 = vpop.permute.xlu0 %1381
        %1385 = vset.pattern.permute.xlu0 0
        %1386 = vperm.xlu0 %1385, %v1364
        %v1387 = vpop.permute.xlu0 %1386
        %1390 = vset.pattern.permute.xlu0 0
        %1391 = vperm.xlu0 %1390, %v1365
        %v1392 = vpop.permute.xlu0 %1391
        %1395 = vset.pattern.permute.xlu0 0
        %1396 = vperm.xlu0 %1395, %v1366
        %v1397 = vpop.permute.xlu0 %1396
        %1400 = vset.pattern.permute.xlu0 0
        %1401 = vperm.xlu0 %1400, %v1367
        %v1402 = vpop.permute.xlu0 %1401
        %1405 = vset.pattern.permute.xlu0 0
        %1406 = vperm.xlu0 %1405, %v1368
        %v1407 = vpop.permute.xlu0 %1406
        %1410 = vset.pattern.permute.xlu0 0
        %1411 = vperm.xlu0 %1410, %v1369
        %v1412 = vpop.permute.xlu0 %1411
        %1415 = vset.pattern.permute.xlu0 0
        %1416 = vperm.xlu0 %1415, %v1370
        %v1417 = vpop.permute.xlu0 %1416
        %1420 = vset.pattern.permute.xlu0 0
        %1421 = vperm.xlu0 %1420, %v1371
        %v1422 = vpop.permute.xlu0 %1421
        %1425 = vset.pattern.permute.xlu0 0
        %1426 = vperm.xlu0 %1425, %v1372
        %v1427 = vpop.permute.xlu0 %1426
        %1430 = vset.pattern.permute.xlu0 0
        %1431 = vperm.xlu0 %1430, %v1373
        %v1432 = vpop.permute.xlu0 %1431
        %1435 = vset.pattern.permute.xlu0 0
        %1436 = vperm.xlu0 %1435, %v1374
        %v1437 = vpop.permute.xlu0 %1436
        %1440 = vset.pattern.permute.xlu0 0
        %1441 = vperm.xlu0 %1440, %v1375
        %v1442 = vpop.permute.xlu0 %1441
        %1445 = vset.pattern.permute.xlu0 0
        %1446 = vperm.xlu0 %1445, %v1376
        %v1447 = vpop.permute.xlu0 %1446
        %1450 = vset.pattern.permute.xlu0 0
        %1451 = vperm.xlu0 %1450, %v1377
        %v1452 = vpop.permute.xlu0 %1451
        %1455 = vset.pattern.permute.xlu0 0
        %1456 = vperm.xlu0 %1455, %v1378
        %v1457 = vpop.permute.xlu0 %1456
        %1459 = vmatprep.subr.mxu0 0.0
        %1460 = vmatpush1.msra.mxu0 %v1331
        %1461 = vmatprep.subr.mxu0 0.0
        %1462 = vmatpush1.msra.mxu0 %v1332
        %1463 = vmatprep.subr.mxu0 0.0
        %1464 = vmatpush1.msra.mxu0 %v1333
        %1465 = vmatprep.subr.mxu0 0.0
        %1466 = vmatpush1.msra.mxu0 %v1334
        %1467 = vmatprep.subr.mxu0 0.0
        %1468 = vmatpush1.msra.mxu0 %v1335
        %1469 = vmatprep.subr.mxu0 0.0
        %1470 = vmatpush1.msra.mxu0 %v1336
        %1471 = vmatprep.subr.mxu0 0.0
        %1472 = vmatpush1.msra.mxu0 %v1337
        %1473 = vmatprep.subr.mxu0 0.0
        %1474 = vmatpush1.msra.mxu0 %v1338
        %1475 = vmatprep.subr.mxu0 0.0
        %1476 = vmatpush1.msra.mxu0 %v1339
        %1477 = vmatprep.subr.mxu0 0.0
        %1478 = vmatpush1.msra.mxu0 %v1340
        %1479 = vmatprep.subr.mxu0 0.0
        %1480 = vmatpush1.msra.mxu0 %v1341
        %1481 = vmatprep.subr.mxu0 0.0
        %1482 = vmatpush1.msra.mxu0 %v1342
        %1483 = vmatprep.subr.mxu0 0.0
        %1484 = vmatpush1.msra.mxu0 %v1343
        %1485 = vmatprep.subr.mxu0 0.0
        %1486 = vmatpush1.msra.mxu0 %v1344
        %1487 = vmatprep.subr.mxu0 0.0
        %1488 = vmatpush1.msra.mxu0 %v1345
        %1489 = vmatprep.subr.mxu0 0.0
        %1490 = vmatpush1.msra.mxu0 %v1346
        %1491 = vmatprep.subr.mxu0 0.0
        %1492 = vmatpush1.msra.mxu0 0.0
        %1493 = vmatprep.subr.mxu0 0.0
        %1494 = vmatpush1.msra.mxu0 0.0
        %1495 = vmatprep.subr.mxu0 0.0
        %1496 = vmatpush1.msra.mxu0 0.0
        %1497 = vmatprep.subr.mxu0 0.0
        %1498 = vmatpush1.msra.mxu0 0.0
        %1499 = vmatprep.subr.mxu0 0.0
        %1500 = vmatpush1.msra.mxu0 0.0
        %1501 = vmatprep.subr.mxu0 0.0
        %1502 = vmatpush1.msra.mxu0 0.0
        %1503 = vmatprep.subr.mxu0 0.0
        %1504 = vmatpush1.msra.mxu0 0.0
        %1505 = vmatprep.subr.mxu0 0.0
        %1506 = vmatpush1.msra.mxu0 0.0
        %1507 = vmatprep.subr.mxu0 0.0
        %1508 = vmatpush1.msra.mxu0 0.0
        %1509 = vmatprep.subr.mxu0 0.0
        %1510 = vmatpush1.msra.mxu0 0.0
        %1511 = vmatprep.subr.mxu0 0.0
        %1512 = vmatpush1.msra.mxu0 0.0
        %1513 = vmatprep.subr.mxu0 0.0
        %1514 = vmatpush1.msra.mxu0 0.0
        %1515 = vmatprep.subr.mxu0 0.0
        %1516 = vmatpush1.msra.mxu0 0.0
        %1517 = vmatprep.subr.mxu0 0.0
        %1518 = vmatpush1.msra.mxu0 0.0
        %1519 = vmatprep.subr.mxu0 0.0
        %1520 = vmatpush1.msra.mxu0 0.0
        %1521 = vmatprep.subr.mxu0 0.0
        %1522 = vmatpush1.msra.mxu0 0.0
        %1523 = vmatprep.mubr.f32.mxu0 0.0
        %1524 = vmatmul.mubr.f32.gmra.mrb[0].mxu0 %v1347
        %v1525 = vpop.f32.mrb[0].mxu0
        %v1526 = vadd.f32 %v1382, %v1525
        %v1527 = vpop.f32.mrb[0].mxu0
        %1528 = vmatprep.mubr.f32.mxu0 0.0
        %1529 = vmatmul.mubr.f32.gmra.mrb[0].mxu0 %v1348
        %v1530 = vpop.f32.mrb[0].mxu0
        %v1531 = vadd.f32 %v1387, %v1530
        %v1532 = vpop.f32.mrb[0].mxu0
        %1533 = vmatprep.mubr.f32.mxu0 0.0
        %1534 = vmatmul.mubr.f32.gmra.mrb[0].mxu0 %v1349
        %v1535 = vpop.f32.mrb[0].mxu0
        %v1536 = vadd.f32 %v1392, %v1535
        %v1537 = vpop.f32.mrb[0].mxu0
        %1538 = vmatprep.mubr.f32.mxu0 0.0
        %1539 = vmatmul.mubr.f32.gmra.mrb[0].mxu0 %v1350
        %v1540 = vpop.f32.mrb[0].mxu0
        %v1541 = vadd.f32 %v1397, %v1540
        %v1542 = vpop.f32.mrb[0].mxu0
        %1543 = vmatprep.mubr.f32.mxu0 0.0
        %1544 = vmatmul.mubr.f32.gmra.mrb[0].mxu0 %v1351
        %v1545 = vpop.f32.mrb[0].mxu0
        %v1546 = vadd.f32 %v1402, %v1545
        %v1547 = vpop.f32.mrb[0].mxu0
        %1548 = vmatprep.mubr.f32.mxu0 0.0
        %1549 = vmatmul.mubr.f32.gmra.mrb[0].mxu0 %v1352
        %v1550 = vpop.f32.mrb[0].mxu0
        %v1551 = vadd.f32 %v1407, %v1550
        %v1552 = vpop.f32.mrb[0].mxu0
        %1553 = vmatprep.mubr.f32.mxu0 0.0
        %1554 = vmatmul.mubr.f32.gmra.mrb[0].mxu0 %v1353
        %v1555 = vpop.f32.mrb[0].mxu0
        %v1556 = vadd.f32 %v1412, %v1555
        %v1557 = vpop.f32.mrb[0].mxu0
        %1558 = vmatprep.mubr.f32.mxu0 0.0
        %1559 = vmatmul.mubr.f32.gmra.mrb[0].mxu0 %v1354
        %v1560 = vpop.f32.mrb[0].mxu0
        %v1561 = vadd.f32 %v1417, %v1560
        %v1562 = vpop.f32.mrb[0].mxu0
        %1563 = vmatprep.mubr.f32.mxu0 0.0
        %1564 = vmatmul.mubr.f32.gmra.mrb[0].mxu0 %v1355
        %v1565 = vpop.f32.mrb[0].mxu0
        %v1566 = vadd.f32 %v1422, %v1565
        %v1567 = vpop.f32.mrb[0].mxu0
        %1568 = vmatprep.mubr.f32.mxu0 0.0
        %1569 = vmatmul.mubr.f32.gmra.mrb[0].mxu0 %v1356
        %v1570 = vpop.f32.mrb[0].mxu0
        %v1571 = vadd.f32 %v1427, %v1570
        %v1572 = vpop.f32.mrb[0].mxu0
        %1573 = vmatprep.mubr.f32.mxu0 0.0
        %1574 = vmatmul.mubr.f32.gmra.mrb[0].mxu0 %v1357
        %v1575 = vpop.f32.mrb[0].mxu0
        %v1576 = vadd.f32 %v1432, %v1575
        %v1577 = vpop.f32.mrb[0].mxu0
        %1578 = vmatprep.mubr.f32.mxu0 0.0
        %1579 = vmatmul.mubr.f32.gmra.mrb[0].mxu0 %v1358
        %v1580 = vpop.f32.mrb[0].mxu0
        %v1581 = vadd.f32 %v1437, %v1580
        %v1582 = vpop.f32.mrb[0].mxu0
        %1583 = vmatprep.mubr.f32.mxu0 0.0
        %1584 = vmatmul.mubr.f32.gmra.mrb[0].mxu0 %v1359
        %v1585 = vpop.f32.mrb[0].mxu0
        %v1586 = vadd.f32 %v1442, %v1585
        %v1587 = vpop.f32.mrb[0].mxu0
        %1588 = vmatprep.mubr.f32.mxu0 0.0
        %1589 = vmatmul.mubr.f32.gmra.mrb[0].mxu0 %v1360
        %v1590 = vpop.f32.mrb[0].mxu0
        %v1591 = vadd.f32 %v1447, %v1590
        %v1592 = vpop.f32.mrb[0].mxu0
        %1593 = vmatprep.mubr.f32.mxu0 0.0
        %1594 = vmatmul.mubr.f32.gmra.mrb[0].mxu0 %v1361
        %v1595 = vpop.f32.mrb[0].mxu0
        %v1596 = vadd.f32 %v1452, %v1595
        %v1597 = vpop.f32.mrb[0].mxu0
        %1598 = vmatprep.mubr.f32.mxu0 0.0
        %1599 = vmatmul.mubr.f32.gmra.mrb[0].mxu0 %v1362
        %v1600 = vpop.f32.mrb[0].mxu0
        %v1601 = vadd.f32 %v1457, %v1600
        %v1602 = vpop.f32.mrb[0].mxu0
        %1603 = vdwg.mxu0
        %v1604 = vld [vmem:[%s10] sm:$0xff]
        %v1605 = vld [vmem:[%s10 + $0x8] sm:$0xff]
        %v1606 = vld [vmem:[%s10 + $0x10] sm:$0xff]
        %v1607 = vld [vmem:[%s10 + $0x18] sm:$0xff]
        %v1608 = vxor.u32 %v1526, 2147483648
        %v1609 = vxor.u32 %v1531, 2147483648
        %v1610 = vxor.u32 %v1536, 2147483648
        %v1611 = vxor.u32 %v1541, 2147483648
        %v1612 = vxor.u32 %v1546, 2147483648
        %v1613 = vxor.u32 %v1551, 2147483648
        %v1614 = vxor.u32 %v1556, 2147483648
        %v1615 = vxor.u32 %v1561, 2147483648
        %v1616 = vxor.u32 %v1566, 2147483648
        %v1617 = vxor.u32 %v1571, 2147483648
        %v1618 = vxor.u32 %v1576, 2147483648
        %v1619 = vxor.u32 %v1581, 2147483648
        %v1620 = vxor.u32 %v1586, 2147483648
        %v1621 = vxor.u32 %v1591, 2147483648
        %v1622 = vxor.u32 %v1596, 2147483648
        %v1623 = vxor.u32 %v1601, 2147483648
        %v1624 = vmul.f32 %v1608, 1.442695
        %v1625 = vpow.pop %v1624
        %v1626 = vmul.f32 %v1609, 1.442695
        %v1627 = vpow.pop %v1626
        %v1628 = vmul.f32 %v1610, 1.442695
        %v1629 = vpow.pop %v1628
        %v1630 = vmul.f32 %v1611, 1.442695
        %v1631 = vpow.pop %v1630
        %v1632 = vmul.f32 %v1612, 1.442695
        %v1633 = vpow.pop %v1632
        %v1634 = vmul.f32 %v1613, 1.442695
        %v1635 = vpow.pop %v1634
        %v1636 = vmul.f32 %v1614, 1.442695
        %v1637 = vpow.pop %v1636
        %v1638 = vmul.f32 %v1615, 1.442695
        %v1639 = vpow.pop %v1638
        %v1640 = vmul.f32 %v1616, 1.442695
        %v1641 = vpow.pop %v1640
        %v1642 = vmul.f32 %v1617, 1.442695
        %v1643 = vpow.pop %v1642
        %v1644 = vmul.f32 %v1618, 1.442695
        %v1645 = vpow.pop %v1644
        %v1646 = vmul.f32 %v1619, 1.442695
        %v1647 = vpow.pop %v1646
        %v1648 = vmul.f32 %v1620, 1.442695
        %v1649 = vpow.pop %v1648
        %v1650 = vmul.f32 %v1621, 1.442695
        %v1651 = vpow.pop %v1650
        %v1652 = vmul.f32 %v1622, 1.442695
        %v1653 = vpow.pop %v1652
        %v1654 = vmul.f32 %v1623, 1.442695
        %v1655 = vpow.pop %v1654
        %v1656 = vadd.f32 %v1625, 1.0
        %v1657 = vadd.f32 %v1627, 1.0
        %v1658 = vadd.f32 %v1629, 1.0
        %v1659 = vadd.f32 %v1631, 1.0
        %v1660 = vadd.f32 %v1633, 1.0
        %v1661 = vadd.f32 %v1635, 1.0
        %v1662 = vadd.f32 %v1637, 1.0
        %v1663 = vadd.f32 %v1639, 1.0
        %v1664 = vadd.f32 %v1641, 1.0
        %v1665 = vadd.f32 %v1643, 1.0
        %v1666 = vadd.f32 %v1645, 1.0
        %v1667 = vadd.f32 %v1647, 1.0
        %v1668 = vadd.f32 %v1649, 1.0
        %v1669 = vadd.f32 %v1651, 1.0
        %v1670 = vadd.f32 %v1653, 1.0
        %v1671 = vadd.f32 %v1655, 1.0
        %v1672 = vrcp.pop %v1656
        %v1673 = vmul.f32 1.0, %v1672
        %v1674 = vrcp.pop %v1657
        %v1675 = vmul.f32 1.0, %v1674
        %v1676 = vrcp.pop %v1658
        %v1677 = vmul.f32 1.0, %v1676
        %v1678 = vrcp.pop %v1659
        %v1679 = vmul.f32 1.0, %v1678
        %v1680 = vrcp.pop %v1660
        %v1681 = vmul.f32 1.0, %v1680
        %v1682 = vrcp.pop %v1661
        %v1683 = vmul.f32 1.0, %v1682
        %v1684 = vrcp.pop %v1662
        %v1685 = vmul.f32 1.0, %v1684
        %v1686 = vrcp.pop %v1663
        %v1687 = vmul.f32 1.0, %v1686
        %v1688 = vrcp.pop %v1664
        %v1689 = vmul.f32 1.0, %v1688
        %v1690 = vrcp.pop %v1665
        %v1691 = vmul.f32 1.0, %v1690
        %v1692 = vrcp.pop %v1666
        %v1693 = vmul.f32 1.0, %v1692
        %v1694 = vrcp.pop %v1667
        %v1695 = vmul.f32 1.0, %v1694
        %v1696 = vrcp.pop %v1668
        %v1697 = vmul.f32 1.0, %v1696
        %v1698 = vrcp.pop %v1669
        %v1699 = vmul.f32 1.0, %v1698
        %v1700 = vrcp.pop %v1670
        %v1701 = vmul.f32 1.0, %v1700
        %v1702 = vrcp.pop %v1671
        %v1703 = vmul.f32 1.0, %v1702
        %v1704 = vmul.f32 %v1526, %v1673
        %v1705 = vmul.f32 %v1531, %v1675
        %v1706 = vmul.f32 %v1536, %v1677
        %v1707 = vmul.f32 %v1541, %v1679
        %v1708 = vmul.f32 %v1546, %v1681
        %v1709 = vmul.f32 %v1551, %v1683
        %v1710 = vmul.f32 %v1556, %v1685
        %v1711 = vmul.f32 %v1561, %v1687
        %v1712 = vmul.f32 %v1566, %v1689
        %v1713 = vmul.f32 %v1571, %v1691
        %v1714 = vmul.f32 %v1576, %v1693
        %v1715 = vmul.f32 %v1581, %v1695
        %v1716 = vmul.f32 %v1586, %v1697
        %v1717 = vmul.f32 %v1591, %v1699
        %v1718 = vmul.f32 %v1596, %v1701
        %v1719 = vmul.f32 %v1601, %v1703
        %v1720 = vld [vmem:[%s11] sm:$0xff]
        %v1721 = vld [vmem:[%s11 + $0x8] sm:$0xff]
        %v1722 = vld [vmem:[%s11 + $0x10] sm:$0xff]
        %v1723 = vld [vmem:[%s11 + $0x18] sm:$0xff]
        %1725 = vset.pattern.permute.xlu0 0
        %1726 = vperm.xlu0 %1725, %v1720
        %v1727 = vpop.permute.xlu0 %1726
        %1730 = vset.pattern.permute.xlu0 0
        %1731 = vperm.xlu0 %1730, %v1721
        %v1732 = vpop.permute.xlu0 %1731
        %1735 = vset.pattern.permute.xlu0 0
        %1736 = vperm.xlu0 %1735, %v1722
        %v1737 = vpop.permute.xlu0 %1736
        %1740 = vset.pattern.permute.xlu0 0
        %1741 = vperm.xlu0 %1740, %v1723
        %v1742 = vpop.permute.xlu0 %1741
        %1744 = vmatprep.subr.mxu0 0.0
        %1745 = vmatpush1.msra.mxu0 %v1704
        %1746 = vmatprep.subr.mxu0 0.0
        %1747 = vmatpush1.msra.mxu0 %v1705
        %1748 = vmatprep.subr.mxu0 0.0
        %1749 = vmatpush1.msra.mxu0 %v1706
        %1750 = vmatprep.subr.mxu0 0.0
        %1751 = vmatpush1.msra.mxu0 %v1707
        %1752 = vmatprep.subr.mxu0 0.0
        %1753 = vmatpush1.msra.mxu0 %v1708
        %1754 = vmatprep.subr.mxu0 0.0
        %1755 = vmatpush1.msra.mxu0 %v1709
        %1756 = vmatprep.subr.mxu0 0.0
        %1757 = vmatpush1.msra.mxu0 %v1710
        %1758 = vmatprep.subr.mxu0 0.0
        %1759 = vmatpush1.msra.mxu0 %v1711
        %1760 = vmatprep.subr.mxu0 0.0
        %1761 = vmatpush1.msra.mxu0 %v1712
        %1762 = vmatprep.subr.mxu0 0.0
        %1763 = vmatpush1.msra.mxu0 %v1713
        %1764 = vmatprep.subr.mxu0 0.0
        %1765 = vmatpush1.msra.mxu0 %v1714
        %1766 = vmatprep.subr.mxu0 0.0
        %1767 = vmatpush1.msra.mxu0 %v1715
        %1768 = vmatprep.subr.mxu0 0.0
        %1769 = vmatpush1.msra.mxu0 %v1716
        %1770 = vmatprep.subr.mxu0 0.0
        %1771 = vmatpush1.msra.mxu0 %v1717
        %1772 = vmatprep.subr.mxu0 0.0
        %1773 = vmatpush1.msra.mxu0 %v1718
        %1774 = vmatprep.subr.mxu0 0.0
        %1775 = vmatpush1.msra.mxu0 %v1719
        %1776 = vmatprep.subr.mxu0 0.0
        %1777 = vmatpush1.msra.mxu0 0.0
        %1778 = vmatprep.subr.mxu0 0.0
        %1779 = vmatpush1.msra.mxu0 0.0
        %1780 = vmatprep.subr.mxu0 0.0
        %1781 = vmatpush1.msra.mxu0 0.0
        %1782 = vmatprep.subr.mxu0 0.0
        %1783 = vmatpush1.msra.mxu0 0.0
        %1784 = vmatprep.subr.mxu0 0.0
        %1785 = vmatpush1.msra.mxu0 0.0
        %1786 = vmatprep.subr.mxu0 0.0
        %1787 = vmatpush1.msra.mxu0 0.0
        %1788 = vmatprep.subr.mxu0 0.0
        %1789 = vmatpush1.msra.mxu0 0.0
        %1790 = vmatprep.subr.mxu0 0.0
        %1791 = vmatpush1.msra.mxu0 0.0
        %1792 = vmatprep.subr.mxu0 0.0
        %1793 = vmatpush1.msra.mxu0 0.0
        %1794 = vmatprep.subr.mxu0 0.0
        %1795 = vmatpush1.msra.mxu0 0.0
        %1796 = vmatprep.subr.mxu0 0.0
        %1797 = vmatpush1.msra.mxu0 0.0
        %1798 = vmatprep.subr.mxu0 0.0
        %1799 = vmatpush1.msra.mxu0 0.0
        %1800 = vmatprep.subr.mxu0 0.0
        %1801 = vmatpush1.msra.mxu0 0.0
        %1802 = vmatprep.subr.mxu0 0.0
        %1803 = vmatpush1.msra.mxu0 0.0
        %1804 = vmatprep.subr.mxu0 0.0
        %1805 = vmatpush1.msra.mxu0 0.0
        %1806 = vmatprep.subr.mxu0 0.0
        %1807 = vmatpush1.msra.mxu0 0.0
        %1808 = vmatprep.mubr.f32.mxu0 0.0
        %1809 = vmatmul.mubr.f32.gmra.mrb[0].mxu0 %v1604
        %v1810 = vpop.f32.mrb[0].mxu0
        %v1811 = vadd.f32 %v1727, %v1810
        %v1812 = vpop.f32.mrb[0].mxu0
        %1813 = vmatprep.mubr.f32.mxu0 0.0
        %1814 = vmatmul.mubr.f32.gmra.mrb[0].mxu0 %v1605
        %v1815 = vpop.f32.mrb[0].mxu0
        %v1816 = vadd.f32 %v1732, %v1815
        %v1817 = vpop.f32.mrb[0].mxu0
        %1818 = vmatprep.mubr.f32.mxu0 0.0
        %1819 = vmatmul.mubr.f32.gmra.mrb[0].mxu0 %v1606
        %v1820 = vpop.f32.mrb[0].mxu0
        %v1821 = vadd.f32 %v1737, %v1820
        %v1822 = vpop.f32.mrb[0].mxu0
        %1823 = vmatprep.mubr.f32.mxu0 0.0
        %1824 = vmatmul.mubr.f32.gmra.mrb[0].mxu0 %v1607
        %v1825 = vpop.f32.mrb[0].mxu0
        %v1826 = vadd.f32 %v1742, %v1825
        %v1827 = vpop.f32.mrb[0].mxu0
        %1828 = vdwg.mxu0
        %1829 = vrot.lane.b32.xlu0 %v895, 17
        %v1830 = vpop.permute.xlu0 %1829
        %1831 = vrot.lane.b32.xlu0 %v897, 17
        %v1832 = vpop.permute.xlu0 %1831
        %1833 = vrot.lane.b32.xlu0 %v899, 17
        %v1834 = vpop.permute.xlu0 %1833
        %1835 = vrot.lane.b32.xlu0 %v901, 17
        %v1836 = vpop.permute.xlu0 %1835
        %1837 = vrot.lane.b32.xlu0 %v903, 17
        %v1838 = vpop.permute.xlu0 %1837
        %1839 = vrot.lane.b32.xlu0 %v896, 17
        %v1840 = vpop.permute.xlu0 %1839
        %1841 = vrot.lane.b32.xlu0 %v898, 17
        %v1842 = vpop.permute.xlu0 %1841
        %1843 = vrot.lane.b32.xlu0 %v900, 17
        %v1844 = vpop.permute.xlu0 %1843
        %1845 = vrot.lane.b32.xlu0 %v902, 17
        %v1846 = vpop.permute.xlu0 %1845
        %1847 = vrot.lane.b32.xlu0 %v904, 17
        %v1848 = vpop.permute.xlu0 %1847
        %v1849 = vlaneseq
        %v1850 = vand.u32 %v1849, 127
        %vm1851 = vcmp.lt.s32.totalorder %v1850, 17
        %v1852 = vsel %vm1851, %v1830, %v1840
        %v1853 = vsel %vm1851, %v1832, %v1842
        %v1854 = vsel %vm1851, %v1834, %v1844
        %v1855 = vsel %vm1851, %v1836, %v1846
        %v1856 = vsel %vm1851, %v1838, %v1848
        %v1857 = vsel %vm1851, %v1840, %v1830
        %v1858 = vsel %vm1851, %v1842, %v1832
        %v1859 = vsel %vm1851, %v1844, %v1834
        %v1860 = vsel %vm1851, %v1846, %v1836
        %v1861 = vsel %vm1851, %v1848, %v1838
        %v1863 = vlaneseq
        %v1864 = vshrl.u32 %v1863, 7
        %v1865 = vsub.s32 0, %v1864
        %v1866 = vrot.slane %v834, %v1865
        %v1867 = vlaneseq
        %v1868 = vshrl.u32 %v1867, 7
        %v1869 = vsub.s32 1, %v1868
        %v1870 = vrot.slane %v834, %v1869
        %v1873 = vmul.f32 %v1857, %v1866
        %v1874 = vmul.f32 %v1852, %v1870
        %v1875 = vmul.f32 %v1858, %v1866
        %v1876 = vmul.f32 %v1853, %v1870
        %v1877 = vmul.f32 %v1859, %v1866
        %v1878 = vmul.f32 %v1854, %v1870
        %v1879 = vmul.f32 %v1860, %v1866
        %v1880 = vmul.f32 %v1855, %v1870
        %v1881 = vmul.f32 %v1861, %v1866
        %v1882 = vmul.f32 %v1856, %v1870
        %v1883 = vld [vmem:[%s12] sm:$0xff]
        %v1884 = vld [vmem:[%s12 + $0x8] sm:$0xff]
        %v1885 = vld [vmem:[%s12 + $0x10] sm:$0xff]
        %v1886 = vld [vmem:[%s12 + $0x18] sm:$0xff]
        %1887 = vrot.lane.b32.xlu0 %v895, 16
        %v1888 = vpop.permute.xlu0 %1887
        %1889 = vrot.lane.b32.xlu0 %v897, 16
        %v1890 = vpop.permute.xlu0 %1889
        %1891 = vrot.lane.b32.xlu0 %v899, 16
        %v1892 = vpop.permute.xlu0 %1891
        %1893 = vrot.lane.b32.xlu0 %v901, 16
        %v1894 = vpop.permute.xlu0 %1893
        %1895 = vrot.lane.b32.xlu0 %v903, 16
        %v1896 = vpop.permute.xlu0 %1895
        %1897 = vrot.lane.b32.xlu0 %v896, 16
        %v1898 = vpop.permute.xlu0 %1897
        %1899 = vrot.lane.b32.xlu0 %v898, 16
        %v1900 = vpop.permute.xlu0 %1899
        %1901 = vrot.lane.b32.xlu0 %v900, 16
        %v1902 = vpop.permute.xlu0 %1901
        %1903 = vrot.lane.b32.xlu0 %v902, 16
        %v1904 = vpop.permute.xlu0 %1903
        %1905 = vrot.lane.b32.xlu0 %v904, 16
        %v1906 = vpop.permute.xlu0 %1905
        %vm1907 = vcmp.lt.s32.totalorder %v1850, 16
        %v1908 = vsel %vm1907, %v1888, %v1898
        %v1909 = vsel %vm1907, %v1890, %v1900
        %v1910 = vsel %vm1907, %v1892, %v1902
        %v1911 = vsel %vm1907, %v1894, %v1904
        %v1912 = vsel %vm1907, %v1896, %v1906
        %v1913 = vsel %vm1907, %v1898, %v1888
        %v1914 = vsel %vm1907, %v1900, %v1890
        %v1915 = vsel %vm1907, %v1902, %v1892
        %v1916 = vsel %vm1907, %v1904, %v1894
        %v1917 = vsel %vm1907, %v1906, %v1896
        %v1919 = vlaneseq
        %v1920 = vshrl.u32 %v1919, 7
        %v1921 = vsub.s32 0, %v1920
        %v1922 = vrot.slane %v835, %v1921
        %v1923 = vlaneseq
        %v1924 = vshrl.u32 %v1923, 7
        %v1925 = vsub.s32 1, %v1924
        %v1926 = vrot.slane %v835, %v1925
        %v1929 = vmul.f32 %v1913, %v1922
        %v1930 = vmul.f32 %v1908, %v1926
        %v1931 = vmul.f32 %v1914, %v1922
        %v1932 = vmul.f32 %v1909, %v1926
        %v1933 = vmul.f32 %v1915, %v1922
        %v1934 = vmul.f32 %v1910, %v1926
        %v1935 = vmul.f32 %v1916, %v1922
        %v1936 = vmul.f32 %v1911, %v1926
        %v1937 = vmul.f32 %v1917, %v1922
        %v1938 = vmul.f32 %v1912, %v1926
        %s1939 = scalar_lea.vmem %s12, 32
        %v1940 = vld [vmem:[%s1939] sm:$0xff]
        %v1941 = vld [vmem:[%s1939 + $0x8] sm:$0xff]
        %v1942 = vld [vmem:[%s1939 + $0x10] sm:$0xff]
        %v1943 = vld [vmem:[%s1939 + $0x18] sm:$0xff]
        %vm1944 = vcmask 293888
        %v1946 = vsel %vm1944, %v1940, 0
        %v1949 = vsel %vm1944, %v1941, 0
        %v1952 = vsel %vm1944, %v1942, 0
        %v1955 = vsel %vm1944, %v1943, 0
        %v1958 = vsel %vm872, %v1937, 0
        %v1961 = vsel %vm872, %v1938, 0
        %1963 = vmatprep.subr.mxu0 %v1930
        %1964 = vmatpush1.msra.mxu0 %v1929
        %1965 = vmatprep.subr.mxu0 %v1932
        %1966 = vmatpush1.msra.mxu0 %v1931
        %1967 = vmatprep.subr.mxu0 %v1934
        %1968 = vmatpush1.msra.mxu0 %v1933
        %1969 = vmatprep.subr.mxu0 %v1936
        %1970 = vmatpush1.msra.mxu0 %v1935
        %1971 = vmatprep.subr.mxu0 %v1961
        %1972 = vmatpush1.msra.mxu0 %v1958
        %1973 = vmatprep.subr.mxu0 0.0
        %1974 = vmatpush1.msra.mxu0 0.0
        %1975 = vmatprep.subr.mxu0 0.0
        %1976 = vmatpush1.msra.mxu0 0.0
        %1977 = vmatprep.subr.mxu0 0.0
        %1978 = vmatpush1.msra.mxu0 0.0
        %1979 = vmatprep.subr.mxu0 0.0
        %1980 = vmatpush1.msra.mxu0 0.0
        %1981 = vmatprep.subr.mxu0 0.0
        %1982 = vmatpush1.msra.mxu0 0.0
        %1983 = vmatprep.subr.mxu0 0.0
        %1984 = vmatpush1.msra.mxu0 0.0
        %1985 = vmatprep.subr.mxu0 0.0
        %1986 = vmatpush1.msra.mxu0 0.0
        %1987 = vmatprep.subr.mxu0 0.0
        %1988 = vmatpush1.msra.mxu0 0.0
        %1989 = vmatprep.subr.mxu0 0.0
        %1990 = vmatpush1.msra.mxu0 0.0
        %1991 = vmatprep.subr.mxu0 0.0
        %1992 = vmatpush1.msra.mxu0 0.0
        %1993 = vmatprep.subr.mxu0 0.0
        %1994 = vmatpush1.msra.mxu0 0.0
        %1995 = vmatprep.subr.mxu0 0.0
        %1996 = vmatpush1.msra.mxu0 0.0
        %1997 = vmatprep.subr.mxu0 0.0
        %1998 = vmatpush1.msra.mxu0 0.0
        %1999 = vmatprep.subr.mxu0 0.0
        %2000 = vmatpush1.msra.mxu0 0.0
        %2001 = vmatprep.subr.mxu0 0.0
        %2002 = vmatpush1.msra.mxu0 0.0
        %2003 = vmatprep.subr.mxu0 0.0
        %2004 = vmatpush1.msra.mxu0 0.0
        %2005 = vmatprep.subr.mxu0 0.0
        %2006 = vmatpush1.msra.mxu0 0.0
        %2007 = vmatprep.subr.mxu0 0.0
        %2008 = vmatpush1.msra.mxu0 0.0
        %2009 = vmatprep.subr.mxu0 0.0
        %2010 = vmatpush1.msra.mxu0 0.0
        %2011 = vmatprep.subr.mxu0 0.0
        %2012 = vmatpush1.msra.mxu0 0.0
        %2013 = vmatprep.subr.mxu0 0.0
        %2014 = vmatpush1.msra.mxu0 0.0
        %2015 = vmatprep.subr.mxu0 0.0
        %2016 = vmatpush1.msra.mxu0 0.0
        %2017 = vmatprep.subr.mxu0 0.0
        %2018 = vmatpush1.msra.mxu0 0.0
        %2019 = vmatprep.subr.mxu0 0.0
        %2020 = vmatpush1.msra.mxu0 0.0
        %2021 = vmatprep.subr.mxu0 0.0
        %2022 = vmatpush1.msra.mxu0 0.0
        %2023 = vmatprep.subr.mxu0 0.0
        %2024 = vmatpush1.msra.mxu0 0.0
        %2025 = vmatprep.subr.mxu0 0.0
        %2026 = vmatpush1.msra.mxu0 0.0
        %2027 = vmatprep.mubr.f32.mxu0 0.0
        %2028 = vmatmul.mubr.f32.gmra.mrb[0].mxu0 %v1946
        %v2029 = vpop.f32.mrb[0].mxu0
        %v2030 = vadd.f32 0.0, %v2029
        %v2031 = vpop.f32.mrb[0].mxu0
        %v2032 = vadd.f32 0.0, %v2031
        %2033 = vmatprep.mubr.f32.mxu0 0.0
        %2034 = vmatmul.mubr.f32.gmra.mrb[0].mxu0 %v1949
        %v2035 = vpop.f32.mrb[0].mxu0
        %v2036 = vadd.f32 0.0, %v2035
        %v2037 = vpop.f32.mrb[0].mxu0
        %v2038 = vadd.f32 0.0, %v2037
        %2039 = vmatprep.mubr.f32.mxu0 0.0
        %2040 = vmatmul.mubr.f32.gmra.mrb[0].mxu0 %v1952
        %v2041 = vpop.f32.mrb[0].mxu0
        %v2042 = vadd.f32 0.0, %v2041
        %v2043 = vpop.f32.mrb[0].mxu0
        %v2044 = vadd.f32 0.0, %v2043
        %2045 = vmatprep.mubr.f32.mxu0 0.0
        %2046 = vmatmul.mubr.f32.gmra.mrb[0].mxu0 %v1955
        %v2047 = vpop.f32.mrb[0].mxu0
        %v2048 = vadd.f32 0.0, %v2047
        %v2049 = vpop.f32.mrb[0].mxu0
        %v2050 = vadd.f32 0.0, %v2049
        %2051 = vdwg.mxu0
        %v2053 = vsel %vm1944, %v1883, 0
        %v2056 = vsel %vm1944, %v1884, 0
        %v2059 = vsel %vm1944, %v1885, 0
        %v2062 = vsel %vm1944, %v1886, 0
        %v2065 = vsel %vm872, %v1881, 0
        %v2068 = vsel %vm872, %v1882, 0
        %2070 = vmatprep.subr.mxu0 %v1874
        %2071 = vmatpush1.msra.mxu0 %v1873
        %2072 = vmatprep.subr.mxu0 %v1876
        %2073 = vmatpush1.msra.mxu0 %v1875
        %2074 = vmatprep.subr.mxu0 %v1878
        %2075 = vmatpush1.msra.mxu0 %v1877
        %2076 = vmatprep.subr.mxu0 %v1880
        %2077 = vmatpush1.msra.mxu0 %v1879
        %2078 = vmatprep.subr.mxu0 %v2068
        %2079 = vmatpush1.msra.mxu0 %v2065
        %2080 = vmatprep.subr.mxu0 0.0
        %2081 = vmatpush1.msra.mxu0 0.0
        %2082 = vmatprep.subr.mxu0 0.0
        %2083 = vmatpush1.msra.mxu0 0.0
        %2084 = vmatprep.subr.mxu0 0.0
        %2085 = vmatpush1.msra.mxu0 0.0
        %2086 = vmatprep.subr.mxu0 0.0
        %2087 = vmatpush1.msra.mxu0 0.0
        %2088 = vmatprep.subr.mxu0 0.0
        %2089 = vmatpush1.msra.mxu0 0.0
        %2090 = vmatprep.subr.mxu0 0.0
        %2091 = vmatpush1.msra.mxu0 0.0
        %2092 = vmatprep.subr.mxu0 0.0
        %2093 = vmatpush1.msra.mxu0 0.0
        %2094 = vmatprep.subr.mxu0 0.0
        %2095 = vmatpush1.msra.mxu0 0.0
        %2096 = vmatprep.subr.mxu0 0.0
        %2097 = vmatpush1.msra.mxu0 0.0
        %2098 = vmatprep.subr.mxu0 0.0
        %2099 = vmatpush1.msra.mxu0 0.0
        %2100 = vmatprep.subr.mxu0 0.0
        %2101 = vmatpush1.msra.mxu0 0.0
        %2102 = vmatprep.subr.mxu0 0.0
        %2103 = vmatpush1.msra.mxu0 0.0
        %2104 = vmatprep.subr.mxu0 0.0
        %2105 = vmatpush1.msra.mxu0 0.0
        %2106 = vmatprep.subr.mxu0 0.0
        %2107 = vmatpush1.msra.mxu0 0.0
        %2108 = vmatprep.subr.mxu0 0.0
        %2109 = vmatpush1.msra.mxu0 0.0
        %2110 = vmatprep.subr.mxu0 0.0
        %2111 = vmatpush1.msra.mxu0 0.0
        %2112 = vmatprep.subr.mxu0 0.0
        %2113 = vmatpush1.msra.mxu0 0.0
        %2114 = vmatprep.subr.mxu0 0.0
        %2115 = vmatpush1.msra.mxu0 0.0
        %2116 = vmatprep.subr.mxu0 0.0
        %2117 = vmatpush1.msra.mxu0 0.0
        %2118 = vmatprep.subr.mxu0 0.0
        %2119 = vmatpush1.msra.mxu0 0.0
        %2120 = vmatprep.subr.mxu0 0.0
        %2121 = vmatpush1.msra.mxu0 0.0
        %2122 = vmatprep.subr.mxu0 0.0
        %2123 = vmatpush1.msra.mxu0 0.0
        %2124 = vmatprep.subr.mxu0 0.0
        %2125 = vmatpush1.msra.mxu0 0.0
        %2126 = vmatprep.subr.mxu0 0.0
        %2127 = vmatpush1.msra.mxu0 0.0
        %2128 = vmatprep.subr.mxu0 0.0
        %2129 = vmatpush1.msra.mxu0 0.0
        %2130 = vmatprep.subr.mxu0 0.0
        %2131 = vmatpush1.msra.mxu0 0.0
        %2132 = vmatprep.subr.mxu0 0.0
        %2133 = vmatpush1.msra.mxu0 0.0
        %2134 = vmatprep.mubr.f32.mxu0 0.0
        %2135 = vmatmul.mubr.f32.gmra.mrb[0].mxu0 %v2053
        %v2136 = vpop.f32.mrb[0].mxu0
        %v2137 = vadd.f32 %v2030, %v2136
        %v2138 = vpop.f32.mrb[0].mxu0
        %v2139 = vadd.f32 %v2032, %v2138
        %2140 = vmatprep.mubr.f32.mxu0 0.0
        %2141 = vmatmul.mubr.f32.gmra.mrb[0].mxu0 %v2056
        %v2142 = vpop.f32.mrb[0].mxu0
        %v2143 = vadd.f32 %v2036, %v2142
        %v2144 = vpop.f32.mrb[0].mxu0
        %v2145 = vadd.f32 %v2038, %v2144
        %2146 = vmatprep.mubr.f32.mxu0 0.0
        %2147 = vmatmul.mubr.f32.gmra.mrb[0].mxu0 %v2059
        %v2148 = vpop.f32.mrb[0].mxu0
        %v2149 = vadd.f32 %v2042, %v2148
        %v2150 = vpop.f32.mrb[0].mxu0
        %v2151 = vadd.f32 %v2044, %v2150
        %2152 = vmatprep.mubr.f32.mxu0 0.0
        %2153 = vmatmul.mubr.f32.gmra.mrb[0].mxu0 %v2062
        %v2154 = vpop.f32.mrb[0].mxu0
        %v2155 = vadd.f32 %v2048, %v2154
        %v2156 = vpop.f32.mrb[0].mxu0
        %v2157 = vadd.f32 %v2050, %v2156
        %2158 = vdwg.mxu0
        %2159 = vrot.lane.b32.xlu0 %v895, 15
        %v2160 = vpop.permute.xlu0 %2159
        %2161 = vrot.lane.b32.xlu0 %v897, 15
        %v2162 = vpop.permute.xlu0 %2161
        %2163 = vrot.lane.b32.xlu0 %v899, 15
        %v2164 = vpop.permute.xlu0 %2163
        %2165 = vrot.lane.b32.xlu0 %v901, 15
        %v2166 = vpop.permute.xlu0 %2165
        %2167 = vrot.lane.b32.xlu0 %v903, 15
        %v2168 = vpop.permute.xlu0 %2167
        %2169 = vrot.lane.b32.xlu0 %v896, 15
        %v2170 = vpop.permute.xlu0 %2169
        %2171 = vrot.lane.b32.xlu0 %v898, 15
        %v2172 = vpop.permute.xlu0 %2171
        %2173 = vrot.lane.b32.xlu0 %v900, 15
        %v2174 = vpop.permute.xlu0 %2173
        %2175 = vrot.lane.b32.xlu0 %v902, 15
        %v2176 = vpop.permute.xlu0 %2175
        %2177 = vrot.lane.b32.xlu0 %v904, 15
        %v2178 = vpop.permute.xlu0 %2177
        %vm2179 = vcmp.lt.s32.totalorder %v1850, 15
        %v2180 = vsel %vm2179, %v2160, %v2170
        %v2181 = vsel %vm2179, %v2162, %v2172
        %v2182 = vsel %vm2179, %v2164, %v2174
        %v2183 = vsel %vm2179, %v2166, %v2176
        %v2184 = vsel %vm2179, %v2168, %v2178
        %v2185 = vsel %vm2179, %v2170, %v2160
        %v2186 = vsel %vm2179, %v2172, %v2162
        %v2187 = vsel %vm2179, %v2174, %v2164
        %v2188 = vsel %vm2179, %v2176, %v2166
        %v2189 = vsel %vm2179, %v2178, %v2168
        %v2191 = vlaneseq
        %v2192 = vshrl.u32 %v2191, 7
        %v2193 = vsub.s32 0, %v2192
        %v2194 = vrot.slane %v836, %v2193
        %v2195 = vlaneseq
        %v2196 = vshrl.u32 %v2195, 7
        %v2197 = vsub.s32 1, %v2196
        %v2198 = vrot.slane %v836, %v2197
        %v2201 = vmul.f32 %v2185, %v2194
        %v2202 = vmul.f32 %v2180, %v2198
        %v2203 = vmul.f32 %v2186, %v2194
        %v2204 = vmul.f32 %v2181, %v2198
        %v2205 = vmul.f32 %v2187, %v2194
        %v2206 = vmul.f32 %v2182, %v2198
        %v2207 = vmul.f32 %v2188, %v2194
        %v2208 = vmul.f32 %v2183, %v2198
        %v2209 = vmul.f32 %v2189, %v2194
        %v2210 = vmul.f32 %v2184, %v2198
        %s2211 = scalar_lea.vmem %s12, 64
        %v2212 = vld [vmem:[%s2211] sm:$0xff]
        %v2213 = vld [vmem:[%s2211 + $0x8] sm:$0xff]
        %v2214 = vld [vmem:[%s2211 + $0x10] sm:$0xff]
        %v2215 = vld [vmem:[%s2211 + $0x18] sm:$0xff]
        %v2217 = vsel %vm1944, %v2212, 0
        %v2220 = vsel %vm1944, %v2213, 0
        %v2223 = vsel %vm1944, %v2214, 0
        %v2226 = vsel %vm1944, %v2215, 0
        %v2229 = vsel %vm872, %v2209, 0
        %v2232 = vsel %vm872, %v2210, 0
        %2234 = vmatprep.subr.mxu0 %v2202
        %2235 = vmatpush1.msra.mxu0 %v2201
        %2236 = vmatprep.subr.mxu0 %v2204
        %2237 = vmatpush1.msra.mxu0 %v2203
        %2238 = vmatprep.subr.mxu0 %v2206
        %2239 = vmatpush1.msra.mxu0 %v2205
        %2240 = vmatprep.subr.mxu0 %v2208
        %2241 = vmatpush1.msra.mxu0 %v2207
        %2242 = vmatprep.subr.mxu0 %v2232
        %2243 = vmatpush1.msra.mxu0 %v2229
        %2244 = vmatprep.subr.mxu0 0.0
        %2245 = vmatpush1.msra.mxu0 0.0
        %2246 = vmatprep.subr.mxu0 0.0
        %2247 = vmatpush1.msra.mxu0 0.0
        %2248 = vmatprep.subr.mxu0 0.0
        %2249 = vmatpush1.msra.mxu0 0.0
        %2250 = vmatprep.subr.mxu0 0.0
        %2251 = vmatpush1.msra.mxu0 0.0
        %2252 = vmatprep.subr.mxu0 0.0
        %2253 = vmatpush1.msra.mxu0 0.0
        %2254 = vmatprep.subr.mxu0 0.0
        %2255 = vmatpush1.msra.mxu0 0.0
        %2256 = vmatprep.subr.mxu0 0.0
        %2257 = vmatpush1.msra.mxu0 0.0
        %2258 = vmatprep.subr.mxu0 0.0
        %2259 = vmatpush1.msra.mxu0 0.0
        %2260 = vmatprep.subr.mxu0 0.0
        %2261 = vmatpush1.msra.mxu0 0.0
        %2262 = vmatprep.subr.mxu0 0.0
        %2263 = vmatpush1.msra.mxu0 0.0
        %2264 = vmatprep.subr.mxu0 0.0
        %2265 = vmatpush1.msra.mxu0 0.0
        %2266 = vmatprep.subr.mxu0 0.0
        %2267 = vmatpush1.msra.mxu0 0.0
        %2268 = vmatprep.subr.mxu0 0.0
        %2269 = vmatpush1.msra.mxu0 0.0
        %2270 = vmatprep.subr.mxu0 0.0
        %2271 = vmatpush1.msra.mxu0 0.0
        %2272 = vmatprep.subr.mxu0 0.0
        %2273 = vmatpush1.msra.mxu0 0.0
        %2274 = vmatprep.subr.mxu0 0.0
        %2275 = vmatpush1.msra.mxu0 0.0
        %2276 = vmatprep.subr.mxu0 0.0
        %2277 = vmatpush1.msra.mxu0 0.0
        %2278 = vmatprep.subr.mxu0 0.0
        %2279 = vmatpush1.msra.mxu0 0.0
        %2280 = vmatprep.subr.mxu0 0.0
        %2281 = vmatpush1.msra.mxu0 0.0
        %2282 = vmatprep.subr.mxu0 0.0
        %2283 = vmatpush1.msra.mxu0 0.0
        %2284 = vmatprep.subr.mxu0 0.0
        %2285 = vmatpush1.msra.mxu0 0.0
        %2286 = vmatprep.subr.mxu0 0.0
        %2287 = vmatpush1.msra.mxu0 0.0
        %2288 = vmatprep.subr.mxu0 0.0
        %2289 = vmatpush1.msra.mxu0 0.0
        %2290 = vmatprep.subr.mxu0 0.0
        %2291 = vmatpush1.msra.mxu0 0.0
        %2292 = vmatprep.subr.mxu0 0.0
        %2293 = vmatpush1.msra.mxu0 0.0
        %2294 = vmatprep.subr.mxu0 0.0
        %2295 = vmatpush1.msra.mxu0 0.0
        %2296 = vmatprep.subr.mxu0 0.0
        %2297 = vmatpush1.msra.mxu0 0.0
        %2298 = vmatprep.mubr.f32.mxu0 0.0
        %2299 = vmatmul.mubr.f32.gmra.mrb[0].mxu0 %v2217
        %v2300 = vpop.f32.mrb[0].mxu0
        %v2301 = vadd.f32 0.0, %v2300
        %v2302 = vpop.f32.mrb[0].mxu0
        %v2303 = vadd.f32 0.0, %v2302
        %2304 = vmatprep.mubr.f32.mxu0 0.0
        %2305 = vmatmul.mubr.f32.gmra.mrb[0].mxu0 %v2220
        %v2306 = vpop.f32.mrb[0].mxu0
        %v2307 = vadd.f32 0.0, %v2306
        %v2308 = vpop.f32.mrb[0].mxu0
        %v2309 = vadd.f32 0.0, %v2308
        %2310 = vmatprep.mubr.f32.mxu0 0.0
        %2311 = vmatmul.mubr.f32.gmra.mrb[0].mxu0 %v2223
        %v2312 = vpop.f32.mrb[0].mxu0
        %v2313 = vadd.f32 0.0, %v2312
        %v2314 = vpop.f32.mrb[0].mxu0
        %v2315 = vadd.f32 0.0, %v2314
        %2316 = vmatprep.mubr.f32.mxu0 0.0
        %2317 = vmatmul.mubr.f32.gmra.mrb[0].mxu0 %v2226
        %v2318 = vpop.f32.mrb[0].mxu0
        %v2319 = vadd.f32 0.0, %v2318
        %v2320 = vpop.f32.mrb[0].mxu0
        %v2321 = vadd.f32 0.0, %v2320
        %2322 = vdwg.mxu0
        %v2323 = vadd.f32 %v2137, %v2301
        %v2324 = vadd.f32 %v2139, %v2303
        %v2325 = vadd.f32 %v2143, %v2307
        %v2326 = vadd.f32 %v2145, %v2309
        %v2327 = vadd.f32 %v2149, %v2313
        %v2328 = vadd.f32 %v2151, %v2315
        %v2329 = vadd.f32 %v2155, %v2319
        %v2330 = vadd.f32 %v2157, %v2321
        %2331 = vrot.lane.b32.xlu0 %v895, 1
        %v2332 = vpop.permute.xlu0 %2331
        %2333 = vrot.lane.b32.xlu0 %v897, 1
        %v2334 = vpop.permute.xlu0 %2333
        %2335 = vrot.lane.b32.xlu0 %v899, 1
        %v2336 = vpop.permute.xlu0 %2335
        %2337 = vrot.lane.b32.xlu0 %v901, 1
        %v2338 = vpop.permute.xlu0 %2337
        %2339 = vrot.lane.b32.xlu0 %v903, 1
        %v2340 = vpop.permute.xlu0 %2339
        %2341 = vrot.lane.b32.xlu0 %v896, 1
        %v2342 = vpop.permute.xlu0 %2341
        %2343 = vrot.lane.b32.xlu0 %v898, 1
        %v2344 = vpop.permute.xlu0 %2343
        %2345 = vrot.lane.b32.xlu0 %v900, 1
        %v2346 = vpop.permute.xlu0 %2345
        %2347 = vrot.lane.b32.xlu0 %v902, 1
        %v2348 = vpop.permute.xlu0 %2347
        %2349 = vrot.lane.b32.xlu0 %v904, 1
        %v2350 = vpop.permute.xlu0 %2349
        %vm2351 = vcmp.lt.s32.totalorder %v1850, 1
        %v2352 = vsel %vm2351, %v2332, %v2342
        %v2353 = vsel %vm2351, %v2334, %v2344
        %v2354 = vsel %vm2351, %v2336, %v2346
        %v2355 = vsel %vm2351, %v2338, %v2348
        %v2356 = vsel %vm2351, %v2340, %v2350
        %v2357 = vsel %vm2351, %v2342, %v2332
        %v2358 = vsel %vm2351, %v2344, %v2334
        %v2359 = vsel %vm2351, %v2346, %v2336
        %v2360 = vsel %vm2351, %v2348, %v2338
        %v2361 = vsel %vm2351, %v2350, %v2340
        %v2363 = vlaneseq
        %v2364 = vshrl.u32 %v2363, 7
        %v2365 = vsub.s32 0, %v2364
        %v2366 = vrot.slane %v837, %v2365
        %v2367 = vlaneseq
        %v2368 = vshrl.u32 %v2367, 7
        %v2369 = vsub.s32 1, %v2368
        %v2370 = vrot.slane %v837, %v2369
        %v2373 = vmul.f32 %v2357, %v2366
        %v2374 = vmul.f32 %v2352, %v2370
        %v2375 = vmul.f32 %v2358, %v2366
        %v2376 = vmul.f32 %v2353, %v2370
        %v2377 = vmul.f32 %v2359, %v2366
        %v2378 = vmul.f32 %v2354, %v2370
        %v2379 = vmul.f32 %v2360, %v2366
        %v2380 = vmul.f32 %v2355, %v2370
        %v2381 = vmul.f32 %v2361, %v2366
        %v2382 = vmul.f32 %v2356, %v2370
        %s2383 = scalar_lea.vmem %s12, 96
        %v2384 = vld [vmem:[%s2383] sm:$0xff]
        %v2385 = vld [vmem:[%s2383 + $0x8] sm:$0xff]
        %v2386 = vld [vmem:[%s2383 + $0x10] sm:$0xff]
        %v2387 = vld [vmem:[%s2383 + $0x18] sm:$0xff]
        %v2389 = vsel %vm1944, %v2384, 0
        %v2392 = vsel %vm1944, %v2385, 0
        %v2395 = vsel %vm1944, %v2386, 0
        %v2398 = vsel %vm1944, %v2387, 0
        %v2401 = vsel %vm872, %v2381, 0
        %v2404 = vsel %vm872, %v2382, 0
        %2406 = vmatprep.subr.mxu0 %v2374
        %2407 = vmatpush1.msra.mxu0 %v2373
        %2408 = vmatprep.subr.mxu0 %v2376
        %2409 = vmatpush1.msra.mxu0 %v2375
        %2410 = vmatprep.subr.mxu0 %v2378
        %2411 = vmatpush1.msra.mxu0 %v2377
        %2412 = vmatprep.subr.mxu0 %v2380
        %2413 = vmatpush1.msra.mxu0 %v2379
        %2414 = vmatprep.subr.mxu0 %v2404
        %2415 = vmatpush1.msra.mxu0 %v2401
        %2416 = vmatprep.subr.mxu0 0.0
        %2417 = vmatpush1.msra.mxu0 0.0
        %2418 = vmatprep.subr.mxu0 0.0
        %2419 = vmatpush1.msra.mxu0 0.0
        %2420 = vmatprep.subr.mxu0 0.0
        %2421 = vmatpush1.msra.mxu0 0.0
        %2422 = vmatprep.subr.mxu0 0.0
        %2423 = vmatpush1.msra.mxu0 0.0
        %2424 = vmatprep.subr.mxu0 0.0
        %2425 = vmatpush1.msra.mxu0 0.0
        %2426 = vmatprep.subr.mxu0 0.0
        %2427 = vmatpush1.msra.mxu0 0.0
        %2428 = vmatprep.subr.mxu0 0.0
        %2429 = vmatpush1.msra.mxu0 0.0
        %2430 = vmatprep.subr.mxu0 0.0
        %2431 = vmatpush1.msra.mxu0 0.0
        %2432 = vmatprep.subr.mxu0 0.0
        %2433 = vmatpush1.msra.mxu0 0.0
        %2434 = vmatprep.subr.mxu0 0.0
        %2435 = vmatpush1.msra.mxu0 0.0
        %2436 = vmatprep.subr.mxu0 0.0
        %2437 = vmatpush1.msra.mxu0 0.0
        %2438 = vmatprep.subr.mxu0 0.0
        %2439 = vmatpush1.msra.mxu0 0.0
        %2440 = vmatprep.subr.mxu0 0.0
        %2441 = vmatpush1.msra.mxu0 0.0
        %2442 = vmatprep.subr.mxu0 0.0
        %2443 = vmatpush1.msra.mxu0 0.0
        %2444 = vmatprep.subr.mxu0 0.0
        %2445 = vmatpush1.msra.mxu0 0.0
        %2446 = vmatprep.subr.mxu0 0.0
        %2447 = vmatpush1.msra.mxu0 0.0
        %2448 = vmatprep.subr.mxu0 0.0
        %2449 = vmatpush1.msra.mxu0 0.0
        %2450 = vmatprep.subr.mxu0 0.0
        %2451 = vmatpush1.msra.mxu0 0.0
        %2452 = vmatprep.subr.mxu0 0.0
        %2453 = vmatpush1.msra.mxu0 0.0
        %2454 = vmatprep.subr.mxu0 0.0
        %2455 = vmatpush1.msra.mxu0 0.0
        %2456 = vmatprep.subr.mxu0 0.0
        %2457 = vmatpush1.msra.mxu0 0.0
        %2458 = vmatprep.subr.mxu0 0.0
        %2459 = vmatpush1.msra.mxu0 0.0
        %2460 = vmatprep.subr.mxu0 0.0
        %2461 = vmatpush1.msra.mxu0 0.0
        %2462 = vmatprep.subr.mxu0 0.0
        %2463 = vmatpush1.msra.mxu0 0.0
        %2464 = vmatprep.subr.mxu0 0.0
        %2465 = vmatpush1.msra.mxu0 0.0
        %2466 = vmatprep.subr.mxu0 0.0
        %2467 = vmatpush1.msra.mxu0 0.0
        %2468 = vmatprep.subr.mxu0 0.0
        %2469 = vmatpush1.msra.mxu0 0.0
        %2470 = vmatprep.mubr.f32.mxu0 0.0
        %2471 = vmatmul.mubr.f32.gmra.mrb[0].mxu0 %v2389
        %v2472 = vpop.f32.mrb[0].mxu0
        %v2473 = vadd.f32 0.0, %v2472
        %v2474 = vpop.f32.mrb[0].mxu0
        %v2475 = vadd.f32 0.0, %v2474
        %2476 = vmatprep.mubr.f32.mxu0 0.0
        %2477 = vmatmul.mubr.f32.gmra.mrb[0].mxu0 %v2392
        %v2478 = vpop.f32.mrb[0].mxu0
        %v2479 = vadd.f32 0.0, %v2478
        %v2480 = vpop.f32.mrb[0].mxu0
        %v2481 = vadd.f32 0.0, %v2480
        %2482 = vmatprep.mubr.f32.mxu0 0.0
        %2483 = vmatmul.mubr.f32.gmra.mrb[0].mxu0 %v2395
        %v2484 = vpop.f32.mrb[0].mxu0
        %v2485 = vadd.f32 0.0, %v2484
        %v2486 = vpop.f32.mrb[0].mxu0
        %v2487 = vadd.f32 0.0, %v2486
        %2488 = vmatprep.mubr.f32.mxu0 0.0
        %2489 = vmatmul.mubr.f32.gmra.mrb[0].mxu0 %v2398
        %v2490 = vpop.f32.mrb[0].mxu0
        %v2491 = vadd.f32 0.0, %v2490
        %v2492 = vpop.f32.mrb[0].mxu0
        %v2493 = vadd.f32 0.0, %v2492
        %2494 = vdwg.mxu0
        %v2495 = vadd.f32 %v2323, %v2473
        %v2496 = vadd.f32 %v2324, %v2475
        %v2497 = vadd.f32 %v2325, %v2479
        %v2498 = vadd.f32 %v2326, %v2481
        %v2499 = vadd.f32 %v2327, %v2485
        %v2500 = vadd.f32 %v2328, %v2487
        %v2501 = vadd.f32 %v2329, %v2491
        %v2502 = vadd.f32 %v2330, %v2493
        %s2503 = scalar_lea.vmem %s12, 128
        %v2504 = vld [vmem:[%s2503] sm:$0xff]
        %v2505 = vld [vmem:[%s2503 + $0x8] sm:$0xff]
        %v2506 = vld [vmem:[%s2503 + $0x10] sm:$0xff]
        %v2507 = vld [vmem:[%s2503 + $0x18] sm:$0xff]
        %v2509 = vsel %vm1944, %v2504, 0
        %v2512 = vsel %vm1944, %v2505, 0
        %v2515 = vsel %vm1944, %v2506, 0
        %v2518 = vsel %vm1944, %v2507, 0
        %v2521 = vsel %vm872, %v903, 0
        %v2524 = vsel %vm872, %v904, 0
        %2526 = vmatprep.subr.mxu0 %v896
        %2527 = vmatpush1.msra.mxu0 %v895
        %2528 = vmatprep.subr.mxu0 %v898
        %2529 = vmatpush1.msra.mxu0 %v897
        %2530 = vmatprep.subr.mxu0 %v900
        %2531 = vmatpush1.msra.mxu0 %v899
        %2532 = vmatprep.subr.mxu0 %v902
        %2533 = vmatpush1.msra.mxu0 %v901
        %2534 = vmatprep.subr.mxu0 %v2524
        %2535 = vmatpush1.msra.mxu0 %v2521
        %2536 = vmatprep.subr.mxu0 0.0
        %2537 = vmatpush1.msra.mxu0 0.0
        %2538 = vmatprep.subr.mxu0 0.0
        %2539 = vmatpush1.msra.mxu0 0.0
        %2540 = vmatprep.subr.mxu0 0.0
        %2541 = vmatpush1.msra.mxu0 0.0
        %2542 = vmatprep.subr.mxu0 0.0
        %2543 = vmatpush1.msra.mxu0 0.0
        %2544 = vmatprep.subr.mxu0 0.0
        %2545 = vmatpush1.msra.mxu0 0.0
        %2546 = vmatprep.subr.mxu0 0.0
        %2547 = vmatpush1.msra.mxu0 0.0
        %2548 = vmatprep.subr.mxu0 0.0
        %2549 = vmatpush1.msra.mxu0 0.0
        %2550 = vmatprep.subr.mxu0 0.0
        %2551 = vmatpush1.msra.mxu0 0.0
        %2552 = vmatprep.subr.mxu0 0.0
        %2553 = vmatpush1.msra.mxu0 0.0
        %2554 = vmatprep.subr.mxu0 0.0
        %2555 = vmatpush1.msra.mxu0 0.0
        %2556 = vmatprep.subr.mxu0 0.0
        %2557 = vmatpush1.msra.mxu0 0.0
        %2558 = vmatprep.subr.mxu0 0.0
        %2559 = vmatpush1.msra.mxu0 0.0
        %2560 = vmatprep.subr.mxu0 0.0
        %2561 = vmatpush1.msra.mxu0 0.0
        %2562 = vmatprep.subr.mxu0 0.0
        %2563 = vmatpush1.msra.mxu0 0.0
        %2564 = vmatprep.subr.mxu0 0.0
        %2565 = vmatpush1.msra.mxu0 0.0
        %2566 = vmatprep.subr.mxu0 0.0
        %2567 = vmatpush1.msra.mxu0 0.0
        %2568 = vmatprep.subr.mxu0 0.0
        %2569 = vmatpush1.msra.mxu0 0.0
        %2570 = vmatprep.subr.mxu0 0.0
        %2571 = vmatpush1.msra.mxu0 0.0
        %2572 = vmatprep.subr.mxu0 0.0
        %2573 = vmatpush1.msra.mxu0 0.0
        %2574 = vmatprep.subr.mxu0 0.0
        %2575 = vmatpush1.msra.mxu0 0.0
        %2576 = vmatprep.subr.mxu0 0.0
        %2577 = vmatpush1.msra.mxu0 0.0
        %2578 = vmatprep.subr.mxu0 0.0
        %2579 = vmatpush1.msra.mxu0 0.0
        %2580 = vmatprep.subr.mxu0 0.0
        %2581 = vmatpush1.msra.mxu0 0.0
        %2582 = vmatprep.subr.mxu0 0.0
        %2583 = vmatpush1.msra.mxu0 0.0
        %2584 = vmatprep.subr.mxu0 0.0
        %2585 = vmatpush1.msra.mxu0 0.0
        %2586 = vmatprep.subr.mxu0 0.0
        %2587 = vmatpush1.msra.mxu0 0.0
        %2588 = vmatprep.subr.mxu0 0.0
        %2589 = vmatpush1.msra.mxu0 0.0
        %2590 = vmatprep.mubr.f32.mxu0 0.0
        %2591 = vmatmul.mubr.f32.gmra.mrb[0].mxu0 %v2509
        %v2592 = vpop.f32.mrb[0].mxu0
        %v2593 = vadd.f32 0.0, %v2592
        %v2594 = vpop.f32.mrb[0].mxu0
        %v2595 = vadd.f32 0.0, %v2594
        %2596 = vmatprep.mubr.f32.mxu0 0.0
        %2597 = vmatmul.mubr.f32.gmra.mrb[0].mxu0 %v2512
        %v2598 = vpop.f32.mrb[0].mxu0
        %v2599 = vadd.f32 0.0, %v2598
        %v2600 = vpop.f32.mrb[0].mxu0
        %v2601 = vadd.f32 0.0, %v2600
        %2602 = vmatprep.mubr.f32.mxu0 0.0
        %2603 = vmatmul.mubr.f32.gmra.mrb[0].mxu0 %v2515
        %v2604 = vpop.f32.mrb[0].mxu0
        %v2605 = vadd.f32 0.0, %v2604
        %v2606 = vpop.f32.mrb[0].mxu0
        %v2607 = vadd.f32 0.0, %v2606
        %2608 = vmatprep.mubr.f32.mxu0 0.0
        %2609 = vmatmul.mubr.f32.gmra.mrb[0].mxu0 %v2518
        %v2610 = vpop.f32.mrb[0].mxu0
        %v2611 = vadd.f32 0.0, %v2610
        %v2612 = vpop.f32.mrb[0].mxu0
        %v2613 = vadd.f32 0.0, %v2612
        %2614 = vdwg.mxu0
        %v2615 = vadd.f32 %v2495, %v2593
        %v2616 = vadd.f32 %v2496, %v2595
        %v2617 = vadd.f32 %v2497, %v2599
        %v2618 = vadd.f32 %v2498, %v2601
        %v2619 = vadd.f32 %v2499, %v2605
        %v2620 = vadd.f32 %v2500, %v2607
        %v2621 = vadd.f32 %v2501, %v2611
        %v2622 = vadd.f32 %v2502, %v2613
        %2623 = vrot.lane.b32.xlu0 %v895, 127
        %v2624 = vpop.permute.xlu0 %2623
        %2625 = vrot.lane.b32.xlu0 %v897, 127
        %v2626 = vpop.permute.xlu0 %2625
        %2627 = vrot.lane.b32.xlu0 %v899, 127
        %v2628 = vpop.permute.xlu0 %2627
        %2629 = vrot.lane.b32.xlu0 %v901, 127
        %v2630 = vpop.permute.xlu0 %2629
        %2631 = vrot.lane.b32.xlu0 %v903, 127
        %v2632 = vpop.permute.xlu0 %2631
        %2633 = vrot.lane.b32.xlu0 %v896, 127
        %v2634 = vpop.permute.xlu0 %2633
        %2635 = vrot.lane.b32.xlu0 %v898, 127
        %v2636 = vpop.permute.xlu0 %2635
        %2637 = vrot.lane.b32.xlu0 %v900, 127
        %v2638 = vpop.permute.xlu0 %2637
        %2639 = vrot.lane.b32.xlu0 %v902, 127
        %v2640 = vpop.permute.xlu0 %2639
        %2641 = vrot.lane.b32.xlu0 %v904, 127
        %v2642 = vpop.permute.xlu0 %2641
        %vm2643 = vcmp.lt.s32.totalorder %v1850, 127
        %v2644 = vsel %vm2643, %v2624, %v2634
        %v2645 = vsel %vm2643, %v2626, %v2636
        %v2646 = vsel %vm2643, %v2628, %v2638
        %v2647 = vsel %vm2643, %v2630, %v2640
        %v2648 = vsel %vm2643, %v2632, %v2642
        %v2649 = vsel %vm2643, %v2634, %v2624
        %v2650 = vsel %vm2643, %v2636, %v2626
        %v2651 = vsel %vm2643, %v2638, %v2628
        %v2652 = vsel %vm2643, %v2640, %v2630
        %v2653 = vsel %vm2643, %v2642, %v2632
        %v2655 = vlaneseq
        %v2656 = vshrl.u32 %v2655, 7
        %v2657 = vsub.s32 0, %v2656
        %v2658 = vrot.slane %v838, %v2657
        %v2659 = vlaneseq
        %v2660 = vshrl.u32 %v2659, 7
        %v2661 = vsub.s32 1, %v2660
        %v2662 = vrot.slane %v838, %v2661
        %v2665 = vmul.f32 %v2644, %v2658
        %v2666 = vmul.f32 %v2649, %v2662
        %v2667 = vmul.f32 %v2645, %v2658
        %v2668 = vmul.f32 %v2650, %v2662
        %v2669 = vmul.f32 %v2646, %v2658
        %v2670 = vmul.f32 %v2651, %v2662
        %v2671 = vmul.f32 %v2647, %v2658
        %v2672 = vmul.f32 %v2652, %v2662
        %v2673 = vmul.f32 %v2648, %v2658
        %v2674 = vmul.f32 %v2653, %v2662
        %s2675 = scalar_lea.vmem %s12, 160
        %v2676 = vld [vmem:[%s2675] sm:$0xff]
        %v2677 = vld [vmem:[%s2675 + $0x8] sm:$0xff]
        %v2678 = vld [vmem:[%s2675 + $0x10] sm:$0xff]
        %v2679 = vld [vmem:[%s2675 + $0x18] sm:$0xff]
        %v2681 = vsel %vm1944, %v2676, 0
        %v2684 = vsel %vm1944, %v2677, 0
        %v2687 = vsel %vm1944, %v2678, 0
        %v2690 = vsel %vm1944, %v2679, 0
        %v2693 = vsel %vm872, %v2673, 0
        %v2696 = vsel %vm872, %v2674, 0
        %2698 = vmatprep.subr.mxu0 %v2666
        %2699 = vmatpush1.msra.mxu0 %v2665
        %2700 = vmatprep.subr.mxu0 %v2668
        %2701 = vmatpush1.msra.mxu0 %v2667
        %2702 = vmatprep.subr.mxu0 %v2670
        %2703 = vmatpush1.msra.mxu0 %v2669
        %2704 = vmatprep.subr.mxu0 %v2672
        %2705 = vmatpush1.msra.mxu0 %v2671
        %2706 = vmatprep.subr.mxu0 %v2696
        %2707 = vmatpush1.msra.mxu0 %v2693
        %2708 = vmatprep.subr.mxu0 0.0
        %2709 = vmatpush1.msra.mxu0 0.0
        %2710 = vmatprep.subr.mxu0 0.0
        %2711 = vmatpush1.msra.mxu0 0.0
        %2712 = vmatprep.subr.mxu0 0.0
        %2713 = vmatpush1.msra.mxu0 0.0
        %2714 = vmatprep.subr.mxu0 0.0
        %2715 = vmatpush1.msra.mxu0 0.0
        %2716 = vmatprep.subr.mxu0 0.0
        %2717 = vmatpush1.msra.mxu0 0.0
        %2718 = vmatprep.subr.mxu0 0.0
        %2719 = vmatpush1.msra.mxu0 0.0
        %2720 = vmatprep.subr.mxu0 0.0
        %2721 = vmatpush1.msra.mxu0 0.0
        %2722 = vmatprep.subr.mxu0 0.0
        %2723 = vmatpush1.msra.mxu0 0.0
        %2724 = vmatprep.subr.mxu0 0.0
        %2725 = vmatpush1.msra.mxu0 0.0
        %2726 = vmatprep.subr.mxu0 0.0
        %2727 = vmatpush1.msra.mxu0 0.0
        %2728 = vmatprep.subr.mxu0 0.0
        %2729 = vmatpush1.msra.mxu0 0.0
        %2730 = vmatprep.subr.mxu0 0.0
        %2731 = vmatpush1.msra.mxu0 0.0
        %2732 = vmatprep.subr.mxu0 0.0
        %2733 = vmatpush1.msra.mxu0 0.0
        %2734 = vmatprep.subr.mxu0 0.0
        %2735 = vmatpush1.msra.mxu0 0.0
        %2736 = vmatprep.subr.mxu0 0.0
        %2737 = vmatpush1.msra.mxu0 0.0
        %2738 = vmatprep.subr.mxu0 0.0
        %2739 = vmatpush1.msra.mxu0 0.0
        %2740 = vmatprep.subr.mxu0 0.0
        %2741 = vmatpush1.msra.mxu0 0.0
        %2742 = vmatprep.subr.mxu0 0.0
        %2743 = vmatpush1.msra.mxu0 0.0
        %2744 = vmatprep.subr.mxu0 0.0
        %2745 = vmatpush1.msra.mxu0 0.0
        %2746 = vmatprep.subr.mxu0 0.0
        %2747 = vmatpush1.msra.mxu0 0.0
        %2748 = vmatprep.subr.mxu0 0.0
        %2749 = vmatpush1.msra.mxu0 0.0
        %2750 = vmatprep.subr.mxu0 0.0
        %2751 = vmatpush1.msra.mxu0 0.0
        %2752 = vmatprep.subr.mxu0 0.0
        %2753 = vmatpush1.msra.mxu0 0.0
        %2754 = vmatprep.subr.mxu0 0.0
        %2755 = vmatpush1.msra.mxu0 0.0
        %2756 = vmatprep.subr.mxu0 0.0
        %2757 = vmatpush1.msra.mxu0 0.0
        %2758 = vmatprep.subr.mxu0 0.0
        %2759 = vmatpush1.msra.mxu0 0.0
        %2760 = vmatprep.subr.mxu0 0.0
        %2761 = vmatpush1.msra.mxu0 0.0
        %2762 = vmatprep.mubr.f32.mxu0 0.0
        %2763 = vmatmul.mubr.f32.gmra.mrb[0].mxu0 %v2681
        %v2764 = vpop.f32.mrb[0].mxu0
        %v2765 = vadd.f32 0.0, %v2764
        %v2766 = vpop.f32.mrb[0].mxu0
        %v2767 = vadd.f32 0.0, %v2766
        %2768 = vmatprep.mubr.f32.mxu0 0.0
        %2769 = vmatmul.mubr.f32.gmra.mrb[0].mxu0 %v2684
        %v2770 = vpop.f32.mrb[0].mxu0
        %v2771 = vadd.f32 0.0, %v2770
        %v2772 = vpop.f32.mrb[0].mxu0
        %v2773 = vadd.f32 0.0, %v2772
        %2774 = vmatprep.mubr.f32.mxu0 0.0
        %2775 = vmatmul.mubr.f32.gmra.mrb[0].mxu0 %v2687
        %v2776 = vpop.f32.mrb[0].mxu0
        %v2777 = vadd.f32 0.0, %v2776
        %v2778 = vpop.f32.mrb[0].mxu0
        %v2779 = vadd.f32 0.0, %v2778
        %2780 = vmatprep.mubr.f32.mxu0 0.0
        %2781 = vmatmul.mubr.f32.gmra.mrb[0].mxu0 %v2690
        %v2782 = vpop.f32.mrb[0].mxu0
        %v2783 = vadd.f32 0.0, %v2782
        %v2784 = vpop.f32.mrb[0].mxu0
        %v2785 = vadd.f32 0.0, %v2784
        %2786 = vdwg.mxu0
        %v2787 = vadd.f32 %v2615, %v2765
        %v2788 = vadd.f32 %v2616, %v2767
        %v2789 = vadd.f32 %v2617, %v2771
        %v2790 = vadd.f32 %v2618, %v2773
        %v2791 = vadd.f32 %v2619, %v2777
        %v2792 = vadd.f32 %v2620, %v2779
        %v2793 = vadd.f32 %v2621, %v2783
        %v2794 = vadd.f32 %v2622, %v2785
        %2795 = vrot.lane.b32.xlu0 %v895, 113
        %v2796 = vpop.permute.xlu0 %2795
        %2797 = vrot.lane.b32.xlu0 %v897, 113
        %v2798 = vpop.permute.xlu0 %2797
        %2799 = vrot.lane.b32.xlu0 %v899, 113
        %v2800 = vpop.permute.xlu0 %2799
        %2801 = vrot.lane.b32.xlu0 %v901, 113
        %v2802 = vpop.permute.xlu0 %2801
        %2803 = vrot.lane.b32.xlu0 %v903, 113
        %v2804 = vpop.permute.xlu0 %2803
        %2805 = vrot.lane.b32.xlu0 %v896, 113
        %v2806 = vpop.permute.xlu0 %2805
        %2807 = vrot.lane.b32.xlu0 %v898, 113
        %v2808 = vpop.permute.xlu0 %2807
        %2809 = vrot.lane.b32.xlu0 %v900, 113
        %v2810 = vpop.permute.xlu0 %2809
        %2811 = vrot.lane.b32.xlu0 %v902, 113
        %v2812 = vpop.permute.xlu0 %2811
        %2813 = vrot.lane.b32.xlu0 %v904, 113
        %v2814 = vpop.permute.xlu0 %2813
        %vm2815 = vcmp.lt.s32.totalorder %v1850, 113
        %v2816 = vsel %vm2815, %v2796, %v2806
        %v2817 = vsel %vm2815, %v2798, %v2808
        %v2818 = vsel %vm2815, %v2800, %v2810
        %v2819 = vsel %vm2815, %v2802, %v2812
        %v2820 = vsel %vm2815, %v2804, %v2814
        %v2821 = vsel %vm2815, %v2806, %v2796
        %v2822 = vsel %vm2815, %v2808, %v2798
        %v2823 = vsel %vm2815, %v2810, %v2800
        %v2824 = vsel %vm2815, %v2812, %v2802
        %v2825 = vsel %vm2815, %v2814, %v2804
        %v2827 = vlaneseq
        %v2828 = vshrl.u32 %v2827, 7
        %v2829 = vsub.s32 0, %v2828
        %v2830 = vrot.slane %v839, %v2829
        %v2831 = vlaneseq
        %v2832 = vshrl.u32 %v2831, 7
        %v2833 = vsub.s32 1, %v2832
        %v2834 = vrot.slane %v839, %v2833
        %v2837 = vmul.f32 %v2816, %v2830
        %v2838 = vmul.f32 %v2821, %v2834
        %v2839 = vmul.f32 %v2817, %v2830
        %v2840 = vmul.f32 %v2822, %v2834
        %v2841 = vmul.f32 %v2818, %v2830
        %v2842 = vmul.f32 %v2823, %v2834
        %v2843 = vmul.f32 %v2819, %v2830
        %v2844 = vmul.f32 %v2824, %v2834
        %v2845 = vmul.f32 %v2820, %v2830
        %v2846 = vmul.f32 %v2825, %v2834
        %s2847 = scalar_lea.vmem %s12, 192
        %v2848 = vld [vmem:[%s2847] sm:$0xff]
        %v2849 = vld [vmem:[%s2847 + $0x8] sm:$0xff]
        %v2850 = vld [vmem:[%s2847 + $0x10] sm:$0xff]
        %v2851 = vld [vmem:[%s2847 + $0x18] sm:$0xff]
        %v2853 = vsel %vm1944, %v2848, 0
        %v2856 = vsel %vm1944, %v2849, 0
        %v2859 = vsel %vm1944, %v2850, 0
        %v2862 = vsel %vm1944, %v2851, 0
        %v2865 = vsel %vm872, %v2845, 0
        %v2868 = vsel %vm872, %v2846, 0
        %2870 = vmatprep.subr.mxu0 %v2838
        %2871 = vmatpush1.msra.mxu0 %v2837
        %2872 = vmatprep.subr.mxu0 %v2840
        %2873 = vmatpush1.msra.mxu0 %v2839
        %2874 = vmatprep.subr.mxu0 %v2842
        %2875 = vmatpush1.msra.mxu0 %v2841
        %2876 = vmatprep.subr.mxu0 %v2844
        %2877 = vmatpush1.msra.mxu0 %v2843
        %2878 = vmatprep.subr.mxu0 %v2868
        %2879 = vmatpush1.msra.mxu0 %v2865
        %2880 = vmatprep.subr.mxu0 0.0
        %2881 = vmatpush1.msra.mxu0 0.0
        %2882 = vmatprep.subr.mxu0 0.0
        %2883 = vmatpush1.msra.mxu0 0.0
        %2884 = vmatprep.subr.mxu0 0.0
        %2885 = vmatpush1.msra.mxu0 0.0
        %2886 = vmatprep.subr.mxu0 0.0
        %2887 = vmatpush1.msra.mxu0 0.0
        %2888 = vmatprep.subr.mxu0 0.0
        %2889 = vmatpush1.msra.mxu0 0.0
        %2890 = vmatprep.subr.mxu0 0.0
        %2891 = vmatpush1.msra.mxu0 0.0
        %2892 = vmatprep.subr.mxu0 0.0
        %2893 = vmatpush1.msra.mxu0 0.0
        %2894 = vmatprep.subr.mxu0 0.0
        %2895 = vmatpush1.msra.mxu0 0.0
        %2896 = vmatprep.subr.mxu0 0.0
        %2897 = vmatpush1.msra.mxu0 0.0
        %2898 = vmatprep.subr.mxu0 0.0
        %2899 = vmatpush1.msra.mxu0 0.0
        %2900 = vmatprep.subr.mxu0 0.0
        %2901 = vmatpush1.msra.mxu0 0.0
        %2902 = vmatprep.subr.mxu0 0.0
        %2903 = vmatpush1.msra.mxu0 0.0
        %2904 = vmatprep.subr.mxu0 0.0
        %2905 = vmatpush1.msra.mxu0 0.0
        %2906 = vmatprep.subr.mxu0 0.0
        %2907 = vmatpush1.msra.mxu0 0.0
        %2908 = vmatprep.subr.mxu0 0.0
        %2909 = vmatpush1.msra.mxu0 0.0
        %2910 = vmatprep.subr.mxu0 0.0
        %2911 = vmatpush1.msra.mxu0 0.0
        %2912 = vmatprep.subr.mxu0 0.0
        %2913 = vmatpush1.msra.mxu0 0.0
        %2914 = vmatprep.subr.mxu0 0.0
        %2915 = vmatpush1.msra.mxu0 0.0
        %2916 = vmatprep.subr.mxu0 0.0
        %2917 = vmatpush1.msra.mxu0 0.0
        %2918 = vmatprep.subr.mxu0 0.0
        %2919 = vmatpush1.msra.mxu0 0.0
        %2920 = vmatprep.subr.mxu0 0.0
        %2921 = vmatpush1.msra.mxu0 0.0
        %2922 = vmatprep.subr.mxu0 0.0
        %2923 = vmatpush1.msra.mxu0 0.0
        %2924 = vmatprep.subr.mxu0 0.0
        %2925 = vmatpush1.msra.mxu0 0.0
        %2926 = vmatprep.subr.mxu0 0.0
        %2927 = vmatpush1.msra.mxu0 0.0
        %2928 = vmatprep.subr.mxu0 0.0
        %2929 = vmatpush1.msra.mxu0 0.0
        %2930 = vmatprep.subr.mxu0 0.0
        %2931 = vmatpush1.msra.mxu0 0.0
        %2932 = vmatprep.subr.mxu0 0.0
        %2933 = vmatpush1.msra.mxu0 0.0
        %2934 = vmatprep.mubr.f32.mxu0 0.0
        %2935 = vmatmul.mubr.f32.gmra.mrb[0].mxu0 %v2853
        %v2936 = vpop.f32.mrb[0].mxu0
        %v2937 = vadd.f32 0.0, %v2936
        %v2938 = vpop.f32.mrb[0].mxu0
        %v2939 = vadd.f32 0.0, %v2938
        %2940 = vmatprep.mubr.f32.mxu0 0.0
        %2941 = vmatmul.mubr.f32.gmra.mrb[0].mxu0 %v2856
        %v2942 = vpop.f32.mrb[0].mxu0
        %v2943 = vadd.f32 0.0, %v2942
        %v2944 = vpop.f32.mrb[0].mxu0
        %v2945 = vadd.f32 0.0, %v2944
        %2946 = vmatprep.mubr.f32.mxu0 0.0
        %2947 = vmatmul.mubr.f32.gmra.mrb[0].mxu0 %v2859
        %v2948 = vpop.f32.mrb[0].mxu0
        %v2949 = vadd.f32 0.0, %v2948
        %v2950 = vpop.f32.mrb[0].mxu0
        %v2951 = vadd.f32 0.0, %v2950
        %2952 = vmatprep.mubr.f32.mxu0 0.0
        %2953 = vmatmul.mubr.f32.gmra.mrb[0].mxu0 %v2862
        %v2954 = vpop.f32.mrb[0].mxu0
        %v2955 = vadd.f32 0.0, %v2954
        %v2956 = vpop.f32.mrb[0].mxu0
        %v2957 = vadd.f32 0.0, %v2956
        %2958 = vdwg.mxu0
        %v2959 = vadd.f32 %v2787, %v2937
        %v2960 = vadd.f32 %v2788, %v2939
        %v2961 = vadd.f32 %v2789, %v2943
        %v2962 = vadd.f32 %v2790, %v2945
        %v2963 = vadd.f32 %v2791, %v2949
        %v2964 = vadd.f32 %v2792, %v2951
        %v2965 = vadd.f32 %v2793, %v2955
        %v2966 = vadd.f32 %v2794, %v2957
        %2967 = vrot.lane.b32.xlu0 %v895, 112
        %v2968 = vpop.permute.xlu0 %2967
        %2969 = vrot.lane.b32.xlu0 %v897, 112
        %v2970 = vpop.permute.xlu0 %2969
        %2971 = vrot.lane.b32.xlu0 %v899, 112
        %v2972 = vpop.permute.xlu0 %2971
        %2973 = vrot.lane.b32.xlu0 %v901, 112
        %v2974 = vpop.permute.xlu0 %2973
        %2975 = vrot.lane.b32.xlu0 %v903, 112
        %v2976 = vpop.permute.xlu0 %2975
        %2977 = vrot.lane.b32.xlu0 %v896, 112
        %v2978 = vpop.permute.xlu0 %2977
        %2979 = vrot.lane.b32.xlu0 %v898, 112
        %v2980 = vpop.permute.xlu0 %2979
        %2981 = vrot.lane.b32.xlu0 %v900, 112
        %v2982 = vpop.permute.xlu0 %2981
        %2983 = vrot.lane.b32.xlu0 %v902, 112
        %v2984 = vpop.permute.xlu0 %2983
        %2985 = vrot.lane.b32.xlu0 %v904, 112
        %v2986 = vpop.permute.xlu0 %2985
        %vm2987 = vcmp.lt.s32.totalorder %v1850, 112
        %v2988 = vsel %vm2987, %v2968, %v2978
        %v2989 = vsel %vm2987, %v2970, %v2980
        %v2990 = vsel %vm2987, %v2972, %v2982
        %v2991 = vsel %vm2987, %v2974, %v2984
        %v2992 = vsel %vm2987, %v2976, %v2986
        %v2993 = vsel %vm2987, %v2978, %v2968
        %v2994 = vsel %vm2987, %v2980, %v2970
        %v2995 = vsel %vm2987, %v2982, %v2972
        %v2996 = vsel %vm2987, %v2984, %v2974
        %v2997 = vsel %vm2987, %v2986, %v2976
        %v2999 = vlaneseq
        %v3000 = vshrl.u32 %v2999, 7
        %v3001 = vsub.s32 0, %v3000
        %v3002 = vrot.slane %v840, %v3001
        %v3003 = vlaneseq
        %v3004 = vshrl.u32 %v3003, 7
        %v3005 = vsub.s32 1, %v3004
        %v3006 = vrot.slane %v840, %v3005
        %v3009 = vmul.f32 %v2988, %v3002
        %v3010 = vmul.f32 %v2993, %v3006
        %v3011 = vmul.f32 %v2989, %v3002
        %v3012 = vmul.f32 %v2994, %v3006
        %v3013 = vmul.f32 %v2990, %v3002
        %v3014 = vmul.f32 %v2995, %v3006
        %v3015 = vmul.f32 %v2991, %v3002
        %v3016 = vmul.f32 %v2996, %v3006
        %v3017 = vmul.f32 %v2992, %v3002
        %v3018 = vmul.f32 %v2997, %v3006
        %s3019 = scalar_lea.vmem %s12, 224
        %v3020 = vld [vmem:[%s3019] sm:$0xff]
        %v3021 = vld [vmem:[%s3019 + $0x8] sm:$0xff]
        %v3022 = vld [vmem:[%s3019 + $0x10] sm:$0xff]
        %v3023 = vld [vmem:[%s3019 + $0x18] sm:$0xff]
        %v3025 = vsel %vm1944, %v3020, 0
        %v3028 = vsel %vm1944, %v3021, 0
        %v3031 = vsel %vm1944, %v3022, 0
        %v3034 = vsel %vm1944, %v3023, 0
        %v3037 = vsel %vm872, %v3017, 0
        %v3040 = vsel %vm872, %v3018, 0
        %3042 = vmatprep.subr.mxu0 %v3010
        %3043 = vmatpush1.msra.mxu0 %v3009
        %3044 = vmatprep.subr.mxu0 %v3012
        %3045 = vmatpush1.msra.mxu0 %v3011
        %3046 = vmatprep.subr.mxu0 %v3014
        %3047 = vmatpush1.msra.mxu0 %v3013
        %3048 = vmatprep.subr.mxu0 %v3016
        %3049 = vmatpush1.msra.mxu0 %v3015
        %3050 = vmatprep.subr.mxu0 %v3040
        %3051 = vmatpush1.msra.mxu0 %v3037
        %3052 = vmatprep.subr.mxu0 0.0
        %3053 = vmatpush1.msra.mxu0 0.0
        %3054 = vmatprep.subr.mxu0 0.0
        %3055 = vmatpush1.msra.mxu0 0.0
        %3056 = vmatprep.subr.mxu0 0.0
        %3057 = vmatpush1.msra.mxu0 0.0
        %3058 = vmatprep.subr.mxu0 0.0
        %3059 = vmatpush1.msra.mxu0 0.0
        %3060 = vmatprep.subr.mxu0 0.0
        %3061 = vmatpush1.msra.mxu0 0.0
        %3062 = vmatprep.subr.mxu0 0.0
        %3063 = vmatpush1.msra.mxu0 0.0
        %3064 = vmatprep.subr.mxu0 0.0
        %3065 = vmatpush1.msra.mxu0 0.0
        %3066 = vmatprep.subr.mxu0 0.0
        %3067 = vmatpush1.msra.mxu0 0.0
        %3068 = vmatprep.subr.mxu0 0.0
        %3069 = vmatpush1.msra.mxu0 0.0
        %3070 = vmatprep.subr.mxu0 0.0
        %3071 = vmatpush1.msra.mxu0 0.0
        %3072 = vmatprep.subr.mxu0 0.0
        %3073 = vmatpush1.msra.mxu0 0.0
        %3074 = vmatprep.subr.mxu0 0.0
        %3075 = vmatpush1.msra.mxu0 0.0
        %3076 = vmatprep.subr.mxu0 0.0
        %3077 = vmatpush1.msra.mxu0 0.0
        %3078 = vmatprep.subr.mxu0 0.0
        %3079 = vmatpush1.msra.mxu0 0.0
        %3080 = vmatprep.subr.mxu0 0.0
        %3081 = vmatpush1.msra.mxu0 0.0
        %3082 = vmatprep.subr.mxu0 0.0
        %3083 = vmatpush1.msra.mxu0 0.0
        %3084 = vmatprep.subr.mxu0 0.0
        %3085 = vmatpush1.msra.mxu0 0.0
        %3086 = vmatprep.subr.mxu0 0.0
        %3087 = vmatpush1.msra.mxu0 0.0
        %3088 = vmatprep.subr.mxu0 0.0
        %3089 = vmatpush1.msra.mxu0 0.0
        %3090 = vmatprep.subr.mxu0 0.0
        %3091 = vmatpush1.msra.mxu0 0.0
        %3092 = vmatprep.subr.mxu0 0.0
        %3093 = vmatpush1.msra.mxu0 0.0
        %3094 = vmatprep.subr.mxu0 0.0
        %3095 = vmatpush1.msra.mxu0 0.0
        %3096 = vmatprep.subr.mxu0 0.0
        %3097 = vmatpush1.msra.mxu0 0.0
        %3098 = vmatprep.subr.mxu0 0.0
        %3099 = vmatpush1.msra.mxu0 0.0
        %3100 = vmatprep.subr.mxu0 0.0
        %3101 = vmatpush1.msra.mxu0 0.0
        %3102 = vmatprep.subr.mxu0 0.0
        %3103 = vmatpush1.msra.mxu0 0.0
        %3104 = vmatprep.subr.mxu0 0.0
        %3105 = vmatpush1.msra.mxu0 0.0
        %3106 = vmatprep.mubr.f32.mxu0 0.0
        %3107 = vmatmul.mubr.f32.gmra.mrb[0].mxu0 %v3025
        %v3108 = vpop.f32.mrb[0].mxu0
        %v3109 = vadd.f32 0.0, %v3108
        %v3110 = vpop.f32.mrb[0].mxu0
        %v3111 = vadd.f32 0.0, %v3110
        %3112 = vmatprep.mubr.f32.mxu0 0.0
        %3113 = vmatmul.mubr.f32.gmra.mrb[0].mxu0 %v3028
        %v3114 = vpop.f32.mrb[0].mxu0
        %v3115 = vadd.f32 0.0, %v3114
        %v3116 = vpop.f32.mrb[0].mxu0
        %v3117 = vadd.f32 0.0, %v3116
        %3118 = vmatprep.mubr.f32.mxu0 0.0
        %3119 = vmatmul.mubr.f32.gmra.mrb[0].mxu0 %v3031
        %v3120 = vpop.f32.mrb[0].mxu0
        %v3121 = vadd.f32 0.0, %v3120
        %v3122 = vpop.f32.mrb[0].mxu0
        %v3123 = vadd.f32 0.0, %v3122
        %3124 = vmatprep.mubr.f32.mxu0 0.0
        %3125 = vmatmul.mubr.f32.gmra.mrb[0].mxu0 %v3034
        %v3126 = vpop.f32.mrb[0].mxu0
        %v3127 = vadd.f32 0.0, %v3126
        %v3128 = vpop.f32.mrb[0].mxu0
        %v3129 = vadd.f32 0.0, %v3128
        %3130 = vdwg.mxu0
        %v3131 = vadd.f32 %v2959, %v3109
        %v3132 = vadd.f32 %v2960, %v3111
        %v3133 = vadd.f32 %v2961, %v3115
        %v3134 = vadd.f32 %v2962, %v3117
        %v3135 = vadd.f32 %v2963, %v3121
        %v3136 = vadd.f32 %v2964, %v3123
        %v3137 = vadd.f32 %v2965, %v3127
        %v3138 = vadd.f32 %v2966, %v3129
        %3139 = vrot.lane.b32.xlu0 %v895, 111
        %v3140 = vpop.permute.xlu0 %3139
        %3141 = vrot.lane.b32.xlu0 %v897, 111
        %v3142 = vpop.permute.xlu0 %3141
        %3143 = vrot.lane.b32.xlu0 %v899, 111
        %v3144 = vpop.permute.xlu0 %3143
        %3145 = vrot.lane.b32.xlu0 %v901, 111
        %v3146 = vpop.permute.xlu0 %3145
        %3147 = vrot.lane.b32.xlu0 %v903, 111
        %v3148 = vpop.permute.xlu0 %3147
        %3149 = vrot.lane.b32.xlu0 %v896, 111
        %v3150 = vpop.permute.xlu0 %3149
        %3151 = vrot.lane.b32.xlu0 %v898, 111
        %v3152 = vpop.permute.xlu0 %3151
        %3153 = vrot.lane.b32.xlu0 %v900, 111
        %v3154 = vpop.permute.xlu0 %3153
        %3155 = vrot.lane.b32.xlu0 %v902, 111
        %v3156 = vpop.permute.xlu0 %3155
        %3157 = vrot.lane.b32.xlu0 %v904, 111
        %v3158 = vpop.permute.xlu0 %3157
        %vm3159 = vcmp.lt.s32.totalorder %v1850, 111
        %v3160 = vsel %vm3159, %v3140, %v3150
        %v3161 = vsel %vm3159, %v3142, %v3152
        %v3162 = vsel %vm3159, %v3144, %v3154
        %v3163 = vsel %vm3159, %v3146, %v3156
        %v3164 = vsel %vm3159, %v3148, %v3158
        %v3165 = vsel %vm3159, %v3150, %v3140
        %v3166 = vsel %vm3159, %v3152, %v3142
        %v3167 = vsel %vm3159, %v3154, %v3144
        %v3168 = vsel %vm3159, %v3156, %v3146
        %v3169 = vsel %vm3159, %v3158, %v3148
        %v3171 = vlaneseq
        %v3172 = vshrl.u32 %v3171, 7
        %v3173 = vsub.s32 0, %v3172
        %v3174 = vrot.slane %v841, %v3173
        %v3175 = vlaneseq
        %v3176 = vshrl.u32 %v3175, 7
        %v3177 = vsub.s32 1, %v3176
        %v3178 = vrot.slane %v841, %v3177
        %v3181 = vmul.f32 %v3160, %v3174
        %v3182 = vmul.f32 %v3165, %v3178
        %v3183 = vmul.f32 %v3161, %v3174
        %v3184 = vmul.f32 %v3166, %v3178
        %v3185 = vmul.f32 %v3162, %v3174
        %v3186 = vmul.f32 %v3167, %v3178
        %v3187 = vmul.f32 %v3163, %v3174
        %v3188 = vmul.f32 %v3168, %v3178
        %v3189 = vmul.f32 %v3164, %v3174
        %v3190 = vmul.f32 %v3169, %v3178
        %s3191 = scalar_lea.vmem %s12, 256
        %v3192 = vld [vmem:[%s3191] sm:$0xff]
        %v3193 = vld [vmem:[%s3191 + $0x8] sm:$0xff]
        %v3194 = vld [vmem:[%s3191 + $0x10] sm:$0xff]
        %v3195 = vld [vmem:[%s3191 + $0x18] sm:$0xff]
        %v3197 = vsel %vm1944, %v3192, 0
        %v3200 = vsel %vm1944, %v3193, 0
        %v3203 = vsel %vm1944, %v3194, 0
        %v3206 = vsel %vm1944, %v3195, 0
        %v3209 = vsel %vm872, %v3189, 0
        %v3212 = vsel %vm872, %v3190, 0
        %3214 = vmatprep.subr.mxu0 %v3182
        %3215 = vmatpush1.msra.mxu0 %v3181
        %3216 = vmatprep.subr.mxu0 %v3184
        %3217 = vmatpush1.msra.mxu0 %v3183
        %3218 = vmatprep.subr.mxu0 %v3186
        %3219 = vmatpush1.msra.mxu0 %v3185
        %3220 = vmatprep.subr.mxu0 %v3188
        %3221 = vmatpush1.msra.mxu0 %v3187
        %3222 = vmatprep.subr.mxu0 %v3212
        %3223 = vmatpush1.msra.mxu0 %v3209
        %3224 = vmatprep.subr.mxu0 0.0
        %3225 = vmatpush1.msra.mxu0 0.0
        %3226 = vmatprep.subr.mxu0 0.0
        %3227 = vmatpush1.msra.mxu0 0.0
        %3228 = vmatprep.subr.mxu0 0.0
        %3229 = vmatpush1.msra.mxu0 0.0
        %3230 = vmatprep.subr.mxu0 0.0
        %3231 = vmatpush1.msra.mxu0 0.0
        %3232 = vmatprep.subr.mxu0 0.0
        %3233 = vmatpush1.msra.mxu0 0.0
        %3234 = vmatprep.subr.mxu0 0.0
        %3235 = vmatpush1.msra.mxu0 0.0
        %3236 = vmatprep.subr.mxu0 0.0
        %3237 = vmatpush1.msra.mxu0 0.0
        %3238 = vmatprep.subr.mxu0 0.0
        %3239 = vmatpush1.msra.mxu0 0.0
        %3240 = vmatprep.subr.mxu0 0.0
        %3241 = vmatpush1.msra.mxu0 0.0
        %3242 = vmatprep.subr.mxu0 0.0
        %3243 = vmatpush1.msra.mxu0 0.0
        %3244 = vmatprep.subr.mxu0 0.0
        %3245 = vmatpush1.msra.mxu0 0.0
        %3246 = vmatprep.subr.mxu0 0.0
        %3247 = vmatpush1.msra.mxu0 0.0
        %3248 = vmatprep.subr.mxu0 0.0
        %3249 = vmatpush1.msra.mxu0 0.0
        %3250 = vmatprep.subr.mxu0 0.0
        %3251 = vmatpush1.msra.mxu0 0.0
        %3252 = vmatprep.subr.mxu0 0.0
        %3253 = vmatpush1.msra.mxu0 0.0
        %3254 = vmatprep.subr.mxu0 0.0
        %3255 = vmatpush1.msra.mxu0 0.0
        %3256 = vmatprep.subr.mxu0 0.0
        %3257 = vmatpush1.msra.mxu0 0.0
        %3258 = vmatprep.subr.mxu0 0.0
        %3259 = vmatpush1.msra.mxu0 0.0
        %3260 = vmatprep.subr.mxu0 0.0
        %3261 = vmatpush1.msra.mxu0 0.0
        %3262 = vmatprep.subr.mxu0 0.0
        %3263 = vmatpush1.msra.mxu0 0.0
        %3264 = vmatprep.subr.mxu0 0.0
        %3265 = vmatpush1.msra.mxu0 0.0
        %3266 = vmatprep.subr.mxu0 0.0
        %3267 = vmatpush1.msra.mxu0 0.0
        %3268 = vmatprep.subr.mxu0 0.0
        %3269 = vmatpush1.msra.mxu0 0.0
        %3270 = vmatprep.subr.mxu0 0.0
        %3271 = vmatpush1.msra.mxu0 0.0
        %3272 = vmatprep.subr.mxu0 0.0
        %3273 = vmatpush1.msra.mxu0 0.0
        %3274 = vmatprep.subr.mxu0 0.0
        %3275 = vmatpush1.msra.mxu0 0.0
        %3276 = vmatprep.subr.mxu0 0.0
        %3277 = vmatpush1.msra.mxu0 0.0
        %3278 = vmatprep.mubr.f32.mxu0 0.0
        %3279 = vmatmul.mubr.f32.gmra.mrb[0].mxu0 %v3197
        %v3280 = vpop.f32.mrb[0].mxu0
        %v3281 = vadd.f32 0.0, %v3280
        %v3282 = vpop.f32.mrb[0].mxu0
        %v3283 = vadd.f32 0.0, %v3282
        %3284 = vmatprep.mubr.f32.mxu0 0.0
        %3285 = vmatmul.mubr.f32.gmra.mrb[0].mxu0 %v3200
        %v3286 = vpop.f32.mrb[0].mxu0
        %v3287 = vadd.f32 0.0, %v3286
        %v3288 = vpop.f32.mrb[0].mxu0
        %v3289 = vadd.f32 0.0, %v3288
        %3290 = vmatprep.mubr.f32.mxu0 0.0
        %3291 = vmatmul.mubr.f32.gmra.mrb[0].mxu0 %v3203
        %v3292 = vpop.f32.mrb[0].mxu0
        %v3293 = vadd.f32 0.0, %v3292
        %v3294 = vpop.f32.mrb[0].mxu0
        %v3295 = vadd.f32 0.0, %v3294
        %3296 = vmatprep.mubr.f32.mxu0 0.0
        %3297 = vmatmul.mubr.f32.gmra.mrb[0].mxu0 %v3206
        %v3298 = vpop.f32.mrb[0].mxu0
        %v3299 = vadd.f32 0.0, %v3298
        %v3300 = vpop.f32.mrb[0].mxu0
        %v3301 = vadd.f32 0.0, %v3300
        %3302 = vdwg.mxu0
        %v3303 = vadd.f32 %v3131, %v3281
        %v3304 = vadd.f32 %v3132, %v3283
        %v3305 = vadd.f32 %v3133, %v3287
        %v3306 = vadd.f32 %v3134, %v3289
        %v3307 = vadd.f32 %v3135, %v3293
        %v3308 = vadd.f32 %v3136, %v3295
        %v3309 = vadd.f32 %v3137, %v3299
        %v3310 = vadd.f32 %v3138, %v3301
        %v3311 = vld [vmem:[%s13] sm:$0xff]
        %v3312 = vld [vmem:[%s13 + $0x8] sm:$0xff]
        %v3313 = vld [vmem:[%s13 + $0x10] sm:$0xff]
        %v3314 = vld [vmem:[%s13 + $0x18] sm:$0xff]
        %3316 = vset.pattern.permute.xlu0 0
        %3317 = vperm.xlu0 %3316, %v3311
        %v3318 = vpop.permute.xlu0 %3317
        %3321 = vset.pattern.permute.xlu0 0
        %3322 = vperm.xlu0 %3321, %v3312
        %v3323 = vpop.permute.xlu0 %3322
        %3326 = vset.pattern.permute.xlu0 0
        %3327 = vperm.xlu0 %3326, %v3313
        %v3328 = vpop.permute.xlu0 %3327
        %3331 = vset.pattern.permute.xlu0 0
        %3332 = vperm.xlu0 %3331, %v3314
        %v3333 = vpop.permute.xlu0 %3332
        %v3335 = vadd.f32 %v3303, %v3318
        %v3336 = vadd.f32 %v3304, %v3318
        %v3337 = vadd.f32 %v3305, %v3323
        %v3338 = vadd.f32 %v3306, %v3323
        %v3339 = vadd.f32 %v3307, %v3328
        %v3340 = vadd.f32 %v3308, %v3328
        %v3341 = vadd.f32 %v3309, %v3333
        %v3342 = vadd.f32 %v3310, %v3333
        %v3344 = vsel %vm1041, %v842, 0
        %v3347 = vsel %vm1041, %v843, 0
        %v3350 = vsel %vm1041, %v844, 0
        %v3353 = vsel %vm1041, %v845, 0
        %3355 = vmatprep.subr.mxu0 %v3336
        %3356 = vmatpush1.msra.mxu0 %v3335
        %3357 = vmatprep.subr.mxu0 %v3338
        %3358 = vmatpush1.msra.mxu0 %v3337
        %3359 = vmatprep.subr.mxu0 %v3340
        %3360 = vmatpush1.msra.mxu0 %v3339
        %3361 = vmatprep.subr.mxu0 %v3342
        %3362 = vmatpush1.msra.mxu0 %v3341
        %3363 = vmatprep.subr.mxu0 0.0
        %3364 = vmatpush1.msra.mxu0 0.0
        %3365 = vmatprep.subr.mxu0 0.0
        %3366 = vmatpush1.msra.mxu0 0.0
        %3367 = vmatprep.subr.mxu0 0.0
        %3368 = vmatpush1.msra.mxu0 0.0
        %3369 = vmatprep.subr.mxu0 0.0
        %3370 = vmatpush1.msra.mxu0 0.0
        %3371 = vmatprep.subr.mxu0 0.0
        %3372 = vmatpush1.msra.mxu0 0.0
        %3373 = vmatprep.subr.mxu0 0.0
        %3374 = vmatpush1.msra.mxu0 0.0
        %3375 = vmatprep.subr.mxu0 0.0
        %3376 = vmatpush1.msra.mxu0 0.0
        %3377 = vmatprep.subr.mxu0 0.0
        %3378 = vmatpush1.msra.mxu0 0.0
        %3379 = vmatprep.subr.mxu0 0.0
        %3380 = vmatpush1.msra.mxu0 0.0
        %3381 = vmatprep.subr.mxu0 0.0
        %3382 = vmatpush1.msra.mxu0 0.0
        %3383 = vmatprep.subr.mxu0 0.0
        %3384 = vmatpush1.msra.mxu0 0.0
        %3385 = vmatprep.subr.mxu0 0.0
        %3386 = vmatpush1.msra.mxu0 0.0
        %3387 = vmatprep.subr.mxu0 0.0
        %3388 = vmatpush1.msra.mxu0 0.0
        %3389 = vmatprep.subr.mxu0 0.0
        %3390 = vmatpush1.msra.mxu0 0.0
        %3391 = vmatprep.subr.mxu0 0.0
        %3392 = vmatpush1.msra.mxu0 0.0
        %3393 = vmatprep.subr.mxu0 0.0
        %3394 = vmatpush1.msra.mxu0 0.0
        %3395 = vmatprep.subr.mxu0 0.0
        %3396 = vmatpush1.msra.mxu0 0.0
        %3397 = vmatprep.subr.mxu0 0.0
        %3398 = vmatpush1.msra.mxu0 0.0
        %3399 = vmatprep.subr.mxu0 0.0
        %3400 = vmatpush1.msra.mxu0 0.0
        %3401 = vmatprep.subr.mxu0 0.0
        %3402 = vmatpush1.msra.mxu0 0.0
        %3403 = vmatprep.subr.mxu0 0.0
        %3404 = vmatpush1.msra.mxu0 0.0
        %3405 = vmatprep.subr.mxu0 0.0
        %3406 = vmatpush1.msra.mxu0 0.0
        %3407 = vmatprep.subr.mxu0 0.0
        %3408 = vmatpush1.msra.mxu0 0.0
        %3409 = vmatprep.subr.mxu0 0.0
        %3410 = vmatpush1.msra.mxu0 0.0
        %3411 = vmatprep.subr.mxu0 0.0
        %3412 = vmatpush1.msra.mxu0 0.0
        %3413 = vmatprep.subr.mxu0 0.0
        %3414 = vmatpush1.msra.mxu0 0.0
        %3415 = vmatprep.subr.mxu0 0.0
        %3416 = vmatpush1.msra.mxu0 0.0
        %3417 = vmatprep.subr.mxu0 0.0
        %3418 = vmatpush1.msra.mxu0 0.0
        %3419 = vmatprep.mubr.f32.mxu0 0.0
        %3420 = vmatmul.mubr.f32.gmra.mrb[0].mxu0 %v3344
        %v3421 = vpop.f32.mrb[0].mxu0
        %v3422 = vadd.f32 0.0, %v3421
        %v3423 = vpop.f32.mrb[0].mxu0
        %v3424 = vadd.f32 0.0, %v3423
        %3425 = vmatprep.mubr.f32.mxu0 0.0
        %3426 = vmatmul.mubr.f32.gmra.mrb[0].mxu0 %v3347
        %v3427 = vpop.f32.mrb[0].mxu0
        %v3428 = vadd.f32 0.0, %v3427
        %v3429 = vpop.f32.mrb[0].mxu0
        %v3430 = vadd.f32 0.0, %v3429
        %3431 = vmatprep.mubr.f32.mxu0 0.0
        %3432 = vmatmul.mubr.f32.gmra.mrb[0].mxu0 %v3350
        %v3433 = vpop.f32.mrb[0].mxu0
        %v3434 = vadd.f32 0.0, %v3433
        %v3435 = vpop.f32.mrb[0].mxu0
        %v3436 = vadd.f32 0.0, %v3435
        %3437 = vmatprep.mubr.f32.mxu0 0.0
        %3438 = vmatmul.mubr.f32.gmra.mrb[0].mxu0 %v3353
        %v3439 = vpop.f32.mrb[0].mxu0
        %v3440 = vadd.f32 0.0, %v3439
        %v3441 = vpop.f32.mrb[0].mxu0
        %v3442 = vadd.f32 0.0, %v3441
        %3443 = vdwg.mxu0
        %v3444 = vadd.f32 %v3422, %v3424
        %3445 = vadd.xlane.f32.xlu0 %v3444
        %v3446 = vpop.xlane.xlu0 %3445
        %v3447 = vadd.f32 %v3428, %v3430
        %3448 = vadd.xlane.f32.xlu0 %v3447
        %v3449 = vpop.xlane.xlu0 %3448
        %v3450 = vadd.f32 %v3434, %v3436
        %3451 = vadd.xlane.f32.xlu0 %v3450
        %v3452 = vpop.xlane.xlu0 %3451
        %v3453 = vadd.f32 %v3440, %v3442
        %3454 = vadd.xlane.f32.xlu0 %v3453
        %v3455 = vpop.xlane.xlu0 %3454
        %v3456 = vmul.f32 %v3446, 0.0009765625
        %v3457 = vmul.f32 %v3449, 0.0009765625
        %v3458 = vmul.f32 %v3452, 0.0009765625
        %v3459 = vmul.f32 %v3455, 0.0009765625
        %v3460 = vsub.f32 %v3335, %v3456
        %v3461 = vsub.f32 %v3336, %v3456
        %v3462 = vsub.f32 %v3337, %v3457
        %v3463 = vsub.f32 %v3338, %v3457
        %v3464 = vsub.f32 %v3339, %v3458
        %v3465 = vsub.f32 %v3340, %v3458
        %v3466 = vsub.f32 %v3341, %v3459
        %v3467 = vsub.f32 %v3342, %v3459
        %v3468 = vmul.f32 %v3460, %v3460
        %v3469 = vmul.f32 %v3461, %v3461
        %v3470 = vmul.f32 %v3462, %v3462
        %v3471 = vmul.f32 %v3463, %v3463
        %v3472 = vmul.f32 %v3464, %v3464
        %v3473 = vmul.f32 %v3465, %v3465
        %v3474 = vmul.f32 %v3466, %v3466
        %v3475 = vmul.f32 %v3467, %v3467
        %3476 = vmatprep.subr.mxu0 %v3469
        %3477 = vmatpush1.msra.mxu0 %v3468
        %3478 = vmatprep.subr.mxu0 %v3471
        %3479 = vmatpush1.msra.mxu0 %v3470
        %3480 = vmatprep.subr.mxu0 %v3473
        %3481 = vmatpush1.msra.mxu0 %v3472
        %3482 = vmatprep.subr.mxu0 %v3475
        %3483 = vmatpush1.msra.mxu0 %v3474
        %3484 = vmatprep.subr.mxu0 0.0
        %3485 = vmatpush1.msra.mxu0 0.0
        %3486 = vmatprep.subr.mxu0 0.0
        %3487 = vmatpush1.msra.mxu0 0.0
        %3488 = vmatprep.subr.mxu0 0.0
        %3489 = vmatpush1.msra.mxu0 0.0
        %3490 = vmatprep.subr.mxu0 0.0
        %3491 = vmatpush1.msra.mxu0 0.0
        %3492 = vmatprep.subr.mxu0 0.0
        %3493 = vmatpush1.msra.mxu0 0.0
        %3494 = vmatprep.subr.mxu0 0.0
        %3495 = vmatpush1.msra.mxu0 0.0
        %3496 = vmatprep.subr.mxu0 0.0
        %3497 = vmatpush1.msra.mxu0 0.0
        %3498 = vmatprep.subr.mxu0 0.0
        %3499 = vmatpush1.msra.mxu0 0.0
        %3500 = vmatprep.subr.mxu0 0.0
        %3501 = vmatpush1.msra.mxu0 0.0
        %3502 = vmatprep.subr.mxu0 0.0
        %3503 = vmatpush1.msra.mxu0 0.0
        %3504 = vmatprep.subr.mxu0 0.0
        %3505 = vmatpush1.msra.mxu0 0.0
        %3506 = vmatprep.subr.mxu0 0.0
        %3507 = vmatpush1.msra.mxu0 0.0
        %3508 = vmatprep.subr.mxu0 0.0
        %3509 = vmatpush1.msra.mxu0 0.0
        %3510 = vmatprep.subr.mxu0 0.0
        %3511 = vmatpush1.msra.mxu0 0.0
        %3512 = vmatprep.subr.mxu0 0.0
        %3513 = vmatpush1.msra.mxu0 0.0
        %3514 = vmatprep.subr.mxu0 0.0
        %3515 = vmatpush1.msra.mxu0 0.0
        %3516 = vmatprep.subr.mxu0 0.0
        %3517 = vmatpush1.msra.mxu0 0.0
        %3518 = vmatprep.subr.mxu0 0.0
        %3519 = vmatpush1.msra.mxu0 0.0
        %3520 = vmatprep.subr.mxu0 0.0
        %3521 = vmatpush1.msra.mxu0 0.0
        %3522 = vmatprep.subr.mxu0 0.0
        %3523 = vmatpush1.msra.mxu0 0.0
        %3524 = vmatprep.subr.mxu0 0.0
        %3525 = vmatpush1.msra.mxu0 0.0
        %3526 = vmatprep.subr.mxu0 0.0
        %3527 = vmatpush1.msra.mxu0 0.0
        %3528 = vmatprep.subr.mxu0 0.0
        %3529 = vmatpush1.msra.mxu0 0.0
        %3530 = vmatprep.subr.mxu0 0.0
        %3531 = vmatpush1.msra.mxu0 0.0
        %3532 = vmatprep.subr.mxu0 0.0
        %3533 = vmatpush1.msra.mxu0 0.0
        %3534 = vmatprep.subr.mxu0 0.0
        %3535 = vmatpush1.msra.mxu0 0.0
        %3536 = vmatprep.subr.mxu0 0.0
        %3537 = vmatpush1.msra.mxu0 0.0
        %3538 = vmatprep.subr.mxu0 0.0
        %3539 = vmatpush1.msra.mxu0 0.0
        %3540 = vmatprep.mubr.f32.mxu0 0.0
        %3541 = vmatmul.mubr.f32.gmra.mrb[0].mxu0 %v3344
        %v3542 = vpop.f32.mrb[0].mxu0
        %v3543 = vadd.f32 0.0, %v3542
        %v3544 = vpop.f32.mrb[0].mxu0
        %v3545 = vadd.f32 0.0, %v3544
        %3546 = vmatprep.mubr.f32.mxu0 0.0
        %3547 = vmatmul.mubr.f32.gmra.mrb[0].mxu0 %v3347
        %v3548 = vpop.f32.mrb[0].mxu0
        %v3549 = vadd.f32 0.0, %v3548
        %v3550 = vpop.f32.mrb[0].mxu0
        %v3551 = vadd.f32 0.0, %v3550
        %3552 = vmatprep.mubr.f32.mxu0 0.0
        %3553 = vmatmul.mubr.f32.gmra.mrb[0].mxu0 %v3350
        %v3554 = vpop.f32.mrb[0].mxu0
        %v3555 = vadd.f32 0.0, %v3554
        %v3556 = vpop.f32.mrb[0].mxu0
        %v3557 = vadd.f32 0.0, %v3556
        %3558 = vmatprep.mubr.f32.mxu0 0.0
        %3559 = vmatmul.mubr.f32.gmra.mrb[0].mxu0 %v3353
        %v3560 = vpop.f32.mrb[0].mxu0
        %v3561 = vadd.f32 0.0, %v3560
        %v3562 = vpop.f32.mrb[0].mxu0
        %v3563 = vadd.f32 0.0, %v3562
        %3564 = vdwg.mxu0
        %v3565 = vadd.f32 %v3543, %v3545
        %3566 = vadd.xlane.f32.xlu0 %v3565
        %v3567 = vpop.xlane.xlu0 %3566
        %v3568 = vadd.f32 %v3549, %v3551
        %3569 = vadd.xlane.f32.xlu0 %v3568
        %v3570 = vpop.xlane.xlu0 %3569
        %v3571 = vadd.f32 %v3555, %v3557
        %3572 = vadd.xlane.f32.xlu0 %v3571
        %v3573 = vpop.xlane.xlu0 %3572
        %v3574 = vadd.f32 %v3561, %v3563
        %3575 = vadd.xlane.f32.xlu0 %v3574
        %v3576 = vpop.xlane.xlu0 %3575
        %v3577 = vmul.f32 %v3567, 0.0009765625
        %v3578 = vmul.f32 %v3570, 0.0009765625
        %v3579 = vmul.f32 %v3573, 0.0009765625
        %v3580 = vmul.f32 %v3576, 0.0009765625
        %v3581 = vadd.f32 %v3577, 1e-05
        %v3582 = vadd.f32 %v3578, 1e-05
        %v3583 = vadd.f32 %v3579, 1e-05
        %v3584 = vadd.f32 %v3580, 1e-05
        %v3585 = vrsqrt.pop %v3581
        %v3586 = vrsqrt.pop %v3582
        %v3587 = vrsqrt.pop %v3583
        %v3588 = vrsqrt.pop %v3584
        %v3589 = vmul.f32 %v3460, %v3585
        %v3590 = vmul.f32 %v3461, %v3585
        %v3591 = vmul.f32 %v3462, %v3586
        %v3592 = vmul.f32 %v3463, %v3586
        %v3593 = vmul.f32 %v3464, %v3587
        %v3594 = vmul.f32 %v3465, %v3587
        %v3595 = vmul.f32 %v3466, %v3588
        %v3596 = vmul.f32 %v3467, %v3588
        %v3597 = vld [vmem:[%s14] sm:$0xff]
        %v3598 = vld [vmem:[%s14 + $0x8] sm:$0xff]
        %v3599 = vld [vmem:[%s14 + $0x10] sm:$0xff]
        %v3600 = vld [vmem:[%s14 + $0x18] sm:$0xff]
        %3602 = vset.pattern.permute.xlu0 0
        %3603 = vperm.xlu0 %3602, %v3597
        %v3604 = vpop.permute.xlu0 %3603
        %3607 = vset.pattern.permute.xlu0 0
        %3608 = vperm.xlu0 %3607, %v3598
        %v3609 = vpop.permute.xlu0 %3608
        %3612 = vset.pattern.permute.xlu0 0
        %3613 = vperm.xlu0 %3612, %v3599
        %v3614 = vpop.permute.xlu0 %3613
        %3617 = vset.pattern.permute.xlu0 0
        %3618 = vperm.xlu0 %3617, %v3600
        %v3619 = vpop.permute.xlu0 %3618
        %v3621 = vmul.f32 %v3589, %v3604
        %v3622 = vmul.f32 %v3590, %v3604
        %v3623 = vmul.f32 %v3591, %v3609
        %v3624 = vmul.f32 %v3592, %v3609
        %v3625 = vmul.f32 %v3593, %v3614
        %v3626 = vmul.f32 %v3594, %v3614
        %v3627 = vmul.f32 %v3595, %v3619
        %v3628 = vmul.f32 %v3596, %v3619
        %v3629 = vld [vmem:[%s15] sm:$0xff]
        %v3630 = vld [vmem:[%s15 + $0x8] sm:$0xff]
        %v3631 = vld [vmem:[%s15 + $0x10] sm:$0xff]
        %v3632 = vld [vmem:[%s15 + $0x18] sm:$0xff]
        %3634 = vset.pattern.permute.xlu0 0
        %3635 = vperm.xlu0 %3634, %v3629
        %v3636 = vpop.permute.xlu0 %3635
        %3639 = vset.pattern.permute.xlu0 0
        %3640 = vperm.xlu0 %3639, %v3630
        %v3641 = vpop.permute.xlu0 %3640
        %3644 = vset.pattern.permute.xlu0 0
        %3645 = vperm.xlu0 %3644, %v3631
        %v3646 = vpop.permute.xlu0 %3645
        %3649 = vset.pattern.permute.xlu0 0
        %3650 = vperm.xlu0 %3649, %v3632
        %v3651 = vpop.permute.xlu0 %3650
        %v3653 = vadd.f32 %v3621, %v3636
        %v3654 = vadd.f32 %v3622, %v3636
        %v3655 = vadd.f32 %v3623, %v3641
        %v3656 = vadd.f32 %v3624, %v3641
        %v3657 = vadd.f32 %v3625, %v3646
        %v3658 = vadd.f32 %v3626, %v3646
        %v3659 = vadd.f32 %v3627, %v3651
        %v3660 = vadd.f32 %v3628, %v3651
        %v3661 = vxor.u32 %v3653, 2147483648
        %v3662 = vxor.u32 %v3654, 2147483648
        %v3663 = vxor.u32 %v3655, 2147483648
        %v3664 = vxor.u32 %v3656, 2147483648
        %v3665 = vxor.u32 %v3657, 2147483648
        %v3666 = vxor.u32 %v3658, 2147483648
        %v3667 = vxor.u32 %v3659, 2147483648
        %v3668 = vxor.u32 %v3660, 2147483648
        %v3669 = vmul.f32 %v3661, 1.442695
        %v3670 = vpow.pop %v3669
        %v3671 = vmul.f32 %v3662, 1.442695
        %v3672 = vpow.pop %v3671
        %v3673 = vmul.f32 %v3663, 1.442695
        %v3674 = vpow.pop %v3673
        %v3675 = vmul.f32 %v3664, 1.442695
        %v3676 = vpow.pop %v3675
        %v3677 = vmul.f32 %v3665, 1.442695
        %v3678 = vpow.pop %v3677
        %v3679 = vmul.f32 %v3666, 1.442695
        %v3680 = vpow.pop %v3679
        %v3681 = vmul.f32 %v3667, 1.442695
        %v3682 = vpow.pop %v3681
        %v3683 = vmul.f32 %v3668, 1.442695
        %v3684 = vpow.pop %v3683
        %v3685 = vadd.f32 %v3670, 1.0
        %v3686 = vadd.f32 %v3672, 1.0
        %v3687 = vadd.f32 %v3674, 1.0
        %v3688 = vadd.f32 %v3676, 1.0
        %v3689 = vadd.f32 %v3678, 1.0
        %v3690 = vadd.f32 %v3680, 1.0
        %v3691 = vadd.f32 %v3682, 1.0
        %v3692 = vadd.f32 %v3684, 1.0
        %v3693 = vrcp.pop %v3685
        %v3694 = vmul.f32 1.0, %v3693
        %v3695 = vrcp.pop %v3686
        %v3696 = vmul.f32 1.0, %v3695
        %v3697 = vrcp.pop %v3687
        %v3698 = vmul.f32 1.0, %v3697
        %v3699 = vrcp.pop %v3688
        %v3700 = vmul.f32 1.0, %v3699
        %v3701 = vrcp.pop %v3689
        %v3702 = vmul.f32 1.0, %v3701
        %v3703 = vrcp.pop %v3690
        %v3704 = vmul.f32 1.0, %v3703
        %v3705 = vrcp.pop %v3691
        %v3706 = vmul.f32 1.0, %v3705
        %v3707 = vrcp.pop %v3692
        %v3708 = vmul.f32 1.0, %v3707
        %v3709 = vmul.f32 %v3653, %v3694
        %v3710 = vmul.f32 %v3654, %v3696
        %v3711 = vmul.f32 %v3655, %v3698
        %v3712 = vmul.f32 %v3656, %v3700
        %v3713 = vmul.f32 %v3657, %v3702
        %v3714 = vmul.f32 %v3658, %v3704
        %v3715 = vmul.f32 %v3659, %v3706
        %v3716 = vmul.f32 %v3660, %v3708
        %3717 = vrot.lane.b32.xlu0 %v3709, 17
        %v3718 = vpop.permute.xlu0 %3717
        %3719 = vrot.lane.b32.xlu0 %v3711, 17
        %v3720 = vpop.permute.xlu0 %3719
        %3721 = vrot.lane.b32.xlu0 %v3713, 17
        %v3722 = vpop.permute.xlu0 %3721
        %3723 = vrot.lane.b32.xlu0 %v3715, 17
        %v3724 = vpop.permute.xlu0 %3723
        %3725 = vrot.lane.b32.xlu0 %v3710, 17
        %v3726 = vpop.permute.xlu0 %3725
        %3727 = vrot.lane.b32.xlu0 %v3712, 17
        %v3728 = vpop.permute.xlu0 %3727
        %3729 = vrot.lane.b32.xlu0 %v3714, 17
        %v3730 = vpop.permute.xlu0 %3729
        %3731 = vrot.lane.b32.xlu0 %v3716, 17
        %v3732 = vpop.permute.xlu0 %3731
        %v3733 = vsel %vm1851, %v3718, %v3726
        %v3734 = vsel %vm1851, %v3720, %v3728
        %v3735 = vsel %vm1851, %v3722, %v3730
        %v3736 = vsel %vm1851, %v3724, %v3732
        %v3737 = vsel %vm1851, %v3726, %v3718
        %v3738 = vsel %vm1851, %v3728, %v3720
        %v3739 = vsel %vm1851, %v3730, %v3722
        %v3740 = vsel %vm1851, %v3732, %v3724
        %v3741 = vmul.f32 %v3737, %v1866
        %v3742 = vmul.f32 %v3733, %v1870
        %v3743 = vmul.f32 %v3738, %v1866
        %v3744 = vmul.f32 %v3734, %v1870
        %v3745 = vmul.f32 %v3739, %v1866
        %v3746 = vmul.f32 %v3735, %v1870
        %v3747 = vmul.f32 %v3740, %v1866
        %v3748 = vmul.f32 %v3736, %v1870
        %v3749 = vld [vmem:[%s16] sm:$0xff]
        %v3750 = vld [vmem:[%s16 + $0x8] sm:$0xff]
        %v3751 = vld [vmem:[%s16 + $0x10] sm:$0xff]
        %v3752 = vld [vmem:[%s16 + $0x18] sm:$0xff]
        %3753 = vrot.lane.b32.xlu0 %v3709, 16
        %v3754 = vpop.permute.xlu0 %3753
        %3755 = vrot.lane.b32.xlu0 %v3711, 16
        %v3756 = vpop.permute.xlu0 %3755
        %3757 = vrot.lane.b32.xlu0 %v3713, 16
        %v3758 = vpop.permute.xlu0 %3757
        %3759 = vrot.lane.b32.xlu0 %v3715, 16
        %v3760 = vpop.permute.xlu0 %3759
        %3761 = vrot.lane.b32.xlu0 %v3710, 16
        %v3762 = vpop.permute.xlu0 %3761
        %3763 = vrot.lane.b32.xlu0 %v3712, 16
        %v3764 = vpop.permute.xlu0 %3763
        %3765 = vrot.lane.b32.xlu0 %v3714, 16
        %v3766 = vpop.permute.xlu0 %3765
        %3767 = vrot.lane.b32.xlu0 %v3716, 16
        %v3768 = vpop.permute.xlu0 %3767
        %v3769 = vsel %vm1907, %v3754, %v3762
        %v3770 = vsel %vm1907, %v3756, %v3764
        %v3771 = vsel %vm1907, %v3758, %v3766
        %v3772 = vsel %vm1907, %v3760, %v3768
        %v3773 = vsel %vm1907, %v3762, %v3754
        %v3774 = vsel %vm1907, %v3764, %v3756
        %v3775 = vsel %vm1907, %v3766, %v3758
        %v3776 = vsel %vm1907, %v3768, %v3760
        %v3777 = vmul.f32 %v3773, %v1922
        %v3778 = vmul.f32 %v3769, %v1926
        %v3779 = vmul.f32 %v3774, %v1922
        %v3780 = vmul.f32 %v3770, %v1926
        %v3781 = vmul.f32 %v3775, %v1922
        %v3782 = vmul.f32 %v3771, %v1926
        %v3783 = vmul.f32 %v3776, %v1922
        %v3784 = vmul.f32 %v3772, %v1926
        %s3785 = scalar_lea.vmem %s16, 32
        %v3786 = vld [vmem:[%s3785] sm:$0xff]
        %v3787 = vld [vmem:[%s3785 + $0x8] sm:$0xff]
        %v3788 = vld [vmem:[%s3785 + $0x10] sm:$0xff]
        %v3789 = vld [vmem:[%s3785 + $0x18] sm:$0xff]
        %v3791 = vsel %vm1041, %v3786, 0
        %v3794 = vsel %vm1041, %v3787, 0
        %v3797 = vsel %vm1041, %v3788, 0
        %v3800 = vsel %vm1041, %v3789, 0
        %3802 = vmatprep.subr.mxu0 %v3778
        %3803 = vmatpush1.msra.mxu0 %v3777
        %3804 = vmatprep.subr.mxu0 %v3780
        %3805 = vmatpush1.msra.mxu0 %v3779
        %3806 = vmatprep.subr.mxu0 %v3782
        %3807 = vmatpush1.msra.mxu0 %v3781
        %3808 = vmatprep.subr.mxu0 %v3784
        %3809 = vmatpush1.msra.mxu0 %v3783
        %3810 = vmatprep.subr.mxu0 0.0
        %3811 = vmatpush1.msra.mxu0 0.0
        %3812 = vmatprep.subr.mxu0 0.0
        %3813 = vmatpush1.msra.mxu0 0.0
        %3814 = vmatprep.subr.mxu0 0.0
        %3815 = vmatpush1.msra.mxu0 0.0
        %3816 = vmatprep.subr.mxu0 0.0
        %3817 = vmatpush1.msra.mxu0 0.0
        %3818 = vmatprep.subr.mxu0 0.0
        %3819 = vmatpush1.msra.mxu0 0.0
        %3820 = vmatprep.subr.mxu0 0.0
        %3821 = vmatpush1.msra.mxu0 0.0
        %3822 = vmatprep.subr.mxu0 0.0
        %3823 = vmatpush1.msra.mxu0 0.0
        %3824 = vmatprep.subr.mxu0 0.0
        %3825 = vmatpush1.msra.mxu0 0.0
        %3826 = vmatprep.subr.mxu0 0.0
        %3827 = vmatpush1.msra.mxu0 0.0
        %3828 = vmatprep.subr.mxu0 0.0
        %3829 = vmatpush1.msra.mxu0 0.0
        %3830 = vmatprep.subr.mxu0 0.0
        %3831 = vmatpush1.msra.mxu0 0.0
        %3832 = vmatprep.subr.mxu0 0.0
        %3833 = vmatpush1.msra.mxu0 0.0
        %3834 = vmatprep.subr.mxu0 0.0
        %3835 = vmatpush1.msra.mxu0 0.0
        %3836 = vmatprep.subr.mxu0 0.0
        %3837 = vmatpush1.msra.mxu0 0.0
        %3838 = vmatprep.subr.mxu0 0.0
        %3839 = vmatpush1.msra.mxu0 0.0
        %3840 = vmatprep.subr.mxu0 0.0
        %3841 = vmatpush1.msra.mxu0 0.0
        %3842 = vmatprep.subr.mxu0 0.0
        %3843 = vmatpush1.msra.mxu0 0.0
        %3844 = vmatprep.subr.mxu0 0.0
        %3845 = vmatpush1.msra.mxu0 0.0
        %3846 = vmatprep.subr.mxu0 0.0
        %3847 = vmatpush1.msra.mxu0 0.0
        %3848 = vmatprep.subr.mxu0 0.0
        %3849 = vmatpush1.msra.mxu0 0.0
        %3850 = vmatprep.subr.mxu0 0.0
        %3851 = vmatpush1.msra.mxu0 0.0
        %3852 = vmatprep.subr.mxu0 0.0
        %3853 = vmatpush1.msra.mxu0 0.0
        %3854 = vmatprep.subr.mxu0 0.0
        %3855 = vmatpush1.msra.mxu0 0.0
        %3856 = vmatprep.subr.mxu0 0.0
        %3857 = vmatpush1.msra.mxu0 0.0
        %3858 = vmatprep.subr.mxu0 0.0
        %3859 = vmatpush1.msra.mxu0 0.0
        %3860 = vmatprep.subr.mxu0 0.0
        %3861 = vmatpush1.msra.mxu0 0.0
        %3862 = vmatprep.subr.mxu0 0.0
        %3863 = vmatpush1.msra.mxu0 0.0
        %3864 = vmatprep.subr.mxu0 0.0
        %3865 = vmatpush1.msra.mxu0 0.0
        %3866 = vmatprep.mubr.f32.mxu0 0.0
        %3867 = vmatmul.mubr.f32.gmra.mrb[0].mxu0 %v3791
        %v3868 = vpop.f32.mrb[0].mxu0
        %v3869 = vadd.f32 0.0, %v3868
        %v3870 = vpop.f32.mrb[0].mxu0
        %v3871 = vadd.f32 0.0, %v3870
        %3872 = vmatprep.mubr.f32.mxu0 0.0
        %3873 = vmatmul.mubr.f32.gmra.mrb[0].mxu0 %v3794
        %v3874 = vpop.f32.mrb[0].mxu0
        %v3875 = vadd.f32 0.0, %v3874
        %v3876 = vpop.f32.mrb[0].mxu0
        %v3877 = vadd.f32 0.0, %v3876
        %3878 = vmatprep.mubr.f32.mxu0 0.0
        %3879 = vmatmul.mubr.f32.gmra.mrb[0].mxu0 %v3797
        %v3880 = vpop.f32.mrb[0].mxu0
        %v3881 = vadd.f32 0.0, %v3880
        %v3882 = vpop.f32.mrb[0].mxu0
        %v3883 = vadd.f32 0.0, %v3882
        %3884 = vmatprep.mubr.f32.mxu0 0.0
        %3885 = vmatmul.mubr.f32.gmra.mrb[0].mxu0 %v3800
        %v3886 = vpop.f32.mrb[0].mxu0
        %v3887 = vadd.f32 0.0, %v3886
        %v3888 = vpop.f32.mrb[0].mxu0
        %v3889 = vadd.f32 0.0, %v3888
        %3890 = vdwg.mxu0
        %v3892 = vsel %vm1041, %v3749, 0
        %v3895 = vsel %vm1041, %v3750, 0
        %v3898 = vsel %vm1041, %v3751, 0
        %v3901 = vsel %vm1041, %v3752, 0
        %3903 = vmatprep.subr.mxu0 %v3742
        %3904 = vmatpush1.msra.mxu0 %v3741
        %3905 = vmatprep.subr.mxu0 %v3744
        %3906 = vmatpush1.msra.mxu0 %v3743
        %3907 = vmatprep.subr.mxu0 %v3746
        %3908 = vmatpush1.msra.mxu0 %v3745
        %3909 = vmatprep.subr.mxu0 %v3748
        %3910 = vmatpush1.msra.mxu0 %v3747
        %3911 = vmatprep.subr.mxu0 0.0
        %3912 = vmatpush1.msra.mxu0 0.0
        %3913 = vmatprep.subr.mxu0 0.0
        %3914 = vmatpush1.msra.mxu0 0.0
        %3915 = vmatprep.subr.mxu0 0.0
        %3916 = vmatpush1.msra.mxu0 0.0
        %3917 = vmatprep.subr.mxu0 0.0
        %3918 = vmatpush1.msra.mxu0 0.0
        %3919 = vmatprep.subr.mxu0 0.0
        %3920 = vmatpush1.msra.mxu0 0.0
        %3921 = vmatprep.subr.mxu0 0.0
        %3922 = vmatpush1.msra.mxu0 0.0
        %3923 = vmatprep.subr.mxu0 0.0
        %3924 = vmatpush1.msra.mxu0 0.0
        %3925 = vmatprep.subr.mxu0 0.0
        %3926 = vmatpush1.msra.mxu0 0.0
        %3927 = vmatprep.subr.mxu0 0.0
        %3928 = vmatpush1.msra.mxu0 0.0
        %3929 = vmatprep.subr.mxu0 0.0
        %3930 = vmatpush1.msra.mxu0 0.0
        %3931 = vmatprep.subr.mxu0 0.0
        %3932 = vmatpush1.msra.mxu0 0.0
        %3933 = vmatprep.subr.mxu0 0.0
        %3934 = vmatpush1.msra.mxu0 0.0
        %3935 = vmatprep.subr.mxu0 0.0
        %3936 = vmatpush1.msra.mxu0 0.0
        %3937 = vmatprep.subr.mxu0 0.0
        %3938 = vmatpush1.msra.mxu0 0.0
        %3939 = vmatprep.subr.mxu0 0.0
        %3940 = vmatpush1.msra.mxu0 0.0
        %3941 = vmatprep.subr.mxu0 0.0
        %3942 = vmatpush1.msra.mxu0 0.0
        %3943 = vmatprep.subr.mxu0 0.0
        %3944 = vmatpush1.msra.mxu0 0.0
        %3945 = vmatprep.subr.mxu0 0.0
        %3946 = vmatpush1.msra.mxu0 0.0
        %3947 = vmatprep.subr.mxu0 0.0
        %3948 = vmatpush1.msra.mxu0 0.0
        %3949 = vmatprep.subr.mxu0 0.0
        %3950 = vmatpush1.msra.mxu0 0.0
        %3951 = vmatprep.subr.mxu0 0.0
        %3952 = vmatpush1.msra.mxu0 0.0
        %3953 = vmatprep.subr.mxu0 0.0
        %3954 = vmatpush1.msra.mxu0 0.0
        %3955 = vmatprep.subr.mxu0 0.0
        %3956 = vmatpush1.msra.mxu0 0.0
        %3957 = vmatprep.subr.mxu0 0.0
        %3958 = vmatpush1.msra.mxu0 0.0
        %3959 = vmatprep.subr.mxu0 0.0
        %3960 = vmatpush1.msra.mxu0 0.0
        %3961 = vmatprep.subr.mxu0 0.0
        %3962 = vmatpush1.msra.mxu0 0.0
        %3963 = vmatprep.subr.mxu0 0.0
        %3964 = vmatpush1.msra.mxu0 0.0
        %3965 = vmatprep.subr.mxu0 0.0
        %3966 = vmatpush1.msra.mxu0 0.0
        %3967 = vmatprep.mubr.f32.mxu0 0.0
        %3968 = vmatmul.mubr.f32.gmra.mrb[0].mxu0 %v3892
        %v3969 = vpop.f32.mrb[0].mxu0
        %v3970 = vadd.f32 %v3869, %v3969
        %v3971 = vpop.f32.mrb[0].mxu0
        %v3972 = vadd.f32 %v3871, %v3971
        %3973 = vmatprep.mubr.f32.mxu0 0.0
        %3974 = vmatmul.mubr.f32.gmra.mrb[0].mxu0 %v3895
        %v3975 = vpop.f32.mrb[0].mxu0
        %v3976 = vadd.f32 %v3875, %v3975
        %v3977 = vpop.f32.mrb[0].mxu0
        %v3978 = vadd.f32 %v3877, %v3977
        %3979 = vmatprep.mubr.f32.mxu0 0.0
        %3980 = vmatmul.mubr.f32.gmra.mrb[0].mxu0 %v3898
        %v3981 = vpop.f32.mrb[0].mxu0
        %v3982 = vadd.f32 %v3881, %v3981
        %v3983 = vpop.f32.mrb[0].mxu0
        %v3984 = vadd.f32 %v3883, %v3983
        %3985 = vmatprep.mubr.f32.mxu0 0.0
        %3986 = vmatmul.mubr.f32.gmra.mrb[0].mxu0 %v3901
        %v3987 = vpop.f32.mrb[0].mxu0
        %v3988 = vadd.f32 %v3887, %v3987
        %v3989 = vpop.f32.mrb[0].mxu0
        %v3990 = vadd.f32 %v3889, %v3989
        %3991 = vdwg.mxu0
        %3992 = vrot.lane.b32.xlu0 %v3709, 15
        %v3993 = vpop.permute.xlu0 %3992
        %3994 = vrot.lane.b32.xlu0 %v3711, 15
        %v3995 = vpop.permute.xlu0 %3994
        %3996 = vrot.lane.b32.xlu0 %v3713, 15
        %v3997 = vpop.permute.xlu0 %3996
        %3998 = vrot.lane.b32.xlu0 %v3715, 15
        %v3999 = vpop.permute.xlu0 %3998
        %4000 = vrot.lane.b32.xlu0 %v3710, 15
        %v4001 = vpop.permute.xlu0 %4000
        %4002 = vrot.lane.b32.xlu0 %v3712, 15
        %v4003 = vpop.permute.xlu0 %4002
        %4004 = vrot.lane.b32.xlu0 %v3714, 15
        %v4005 = vpop.permute.xlu0 %4004
        %4006 = vrot.lane.b32.xlu0 %v3716, 15
        %v4007 = vpop.permute.xlu0 %4006
        %v4008 = vsel %vm2179, %v3993, %v4001
        %v4009 = vsel %vm2179, %v3995, %v4003
        %v4010 = vsel %vm2179, %v3997, %v4005
        %v4011 = vsel %vm2179, %v3999, %v4007
        %v4012 = vsel %vm2179, %v4001, %v3993
        %v4013 = vsel %vm2179, %v4003, %v3995
        %v4014 = vsel %vm2179, %v4005, %v3997
        %v4015 = vsel %vm2179, %v4007, %v3999
        %v4016 = vmul.f32 %v4012, %v2194
        %v4017 = vmul.f32 %v4008, %v2198
        %v4018 = vmul.f32 %v4013, %v2194
        %v4019 = vmul.f32 %v4009, %v2198
        %v4020 = vmul.f32 %v4014, %v2194
        %v4021 = vmul.f32 %v4010, %v2198
        %v4022 = vmul.f32 %v4015, %v2194
        %v4023 = vmul.f32 %v4011, %v2198
        %s4024 = scalar_lea.vmem %s16, 64
        %v4025 = vld [vmem:[%s4024] sm:$0xff]
        %v4026 = vld [vmem:[%s4024 + $0x8] sm:$0xff]
        %v4027 = vld [vmem:[%s4024 + $0x10] sm:$0xff]
        %v4028 = vld [vmem:[%s4024 + $0x18] sm:$0xff]
        %v4030 = vsel %vm1041, %v4025, 0
        %v4033 = vsel %vm1041, %v4026, 0
        %v4036 = vsel %vm1041, %v4027, 0
        %v4039 = vsel %vm1041, %v4028, 0
        %4041 = vmatprep.subr.mxu0 %v4017
        %4042 = vmatpush1.msra.mxu0 %v4016
        %4043 = vmatprep.subr.mxu0 %v4019
        %4044 = vmatpush1.msra.mxu0 %v4018
        %4045 = vmatprep.subr.mxu0 %v4021
        %4046 = vmatpush1.msra.mxu0 %v4020
        %4047 = vmatprep.subr.mxu0 %v4023
        %4048 = vmatpush1.msra.mxu0 %v4022
        %4049 = vmatprep.subr.mxu0 0.0
        %4050 = vmatpush1.msra.mxu0 0.0
        %4051 = vmatprep.subr.mxu0 0.0
        %4052 = vmatpush1.msra.mxu0 0.0
        %4053 = vmatprep.subr.mxu0 0.0
        %4054 = vmatpush1.msra.mxu0 0.0
        %4055 = vmatprep.subr.mxu0 0.0
        %4056 = vmatpush1.msra.mxu0 0.0
        %4057 = vmatprep.subr.mxu0 0.0
        %4058 = vmatpush1.msra.mxu0 0.0
        %4059 = vmatprep.subr.mxu0 0.0
        %4060 = vmatpush1.msra.mxu0 0.0
        %4061 = vmatprep.subr.mxu0 0.0
        %4062 = vmatpush1.msra.mxu0 0.0
        %4063 = vmatprep.subr.mxu0 0.0
        %4064 = vmatpush1.msra.mxu0 0.0
        %4065 = vmatprep.subr.mxu0 0.0
        %4066 = vmatpush1.msra.mxu0 0.0
        %4067 = vmatprep.subr.mxu0 0.0
        %4068 = vmatpush1.msra.mxu0 0.0
        %4069 = vmatprep.subr.mxu0 0.0
        %4070 = vmatpush1.msra.mxu0 0.0
        %4071 = vmatprep.subr.mxu0 0.0
        %4072 = vmatpush1.msra.mxu0 0.0
        %4073 = vmatprep.subr.mxu0 0.0
        %4074 = vmatpush1.msra.mxu0 0.0
        %4075 = vmatprep.subr.mxu0 0.0
        %4076 = vmatpush1.msra.mxu0 0.0
        %4077 = vmatprep.subr.mxu0 0.0
        %4078 = vmatpush1.msra.mxu0 0.0
        %4079 = vmatprep.subr.mxu0 0.0
        %4080 = vmatpush1.msra.mxu0 0.0
        %4081 = vmatprep.subr.mxu0 0.0
        %4082 = vmatpush1.msra.mxu0 0.0
        %4083 = vmatprep.subr.mxu0 0.0
        %4084 = vmatpush1.msra.mxu0 0.0
        %4085 = vmatprep.subr.mxu0 0.0
        %4086 = vmatpush1.msra.mxu0 0.0
        %4087 = vmatprep.subr.mxu0 0.0
        %4088 = vmatpush1.msra.mxu0 0.0
        %4089 = vmatprep.subr.mxu0 0.0
        %4090 = vmatpush1.msra.mxu0 0.0
        %4091 = vmatprep.subr.mxu0 0.0
        %4092 = vmatpush1.msra.mxu0 0.0
        %4093 = vmatprep.subr.mxu0 0.0
        %4094 = vmatpush1.msra.mxu0 0.0
        %4095 = vmatprep.subr.mxu0 0.0
        %4096 = vmatpush1.msra.mxu0 0.0
        %4097 = vmatprep.subr.mxu0 0.0
        %4098 = vmatpush1.msra.mxu0 0.0
        %4099 = vmatprep.subr.mxu0 0.0
        %4100 = vmatpush1.msra.mxu0 0.0
        %4101 = vmatprep.subr.mxu0 0.0
        %4102 = vmatpush1.msra.mxu0 0.0
        %4103 = vmatprep.subr.mxu0 0.0
        %4104 = vmatpush1.msra.mxu0 0.0
        %4105 = vmatprep.mubr.f32.mxu0 0.0
        %4106 = vmatmul.mubr.f32.gmra.mrb[0].mxu0 %v4030
        %v4107 = vpop.f32.mrb[0].mxu0
        %v4108 = vadd.f32 0.0, %v4107
        %v4109 = vpop.f32.mrb[0].mxu0
        %v4110 = vadd.f32 0.0, %v4109
        %4111 = vmatprep.mubr.f32.mxu0 0.0
        %4112 = vmatmul.mubr.f32.gmra.mrb[0].mxu0 %v4033
        %v4113 = vpop.f32.mrb[0].mxu0
        %v4114 = vadd.f32 0.0, %v4113
        %v4115 = vpop.f32.mrb[0].mxu0
        %v4116 = vadd.f32 0.0, %v4115
        %4117 = vmatprep.mubr.f32.mxu0 0.0
        %4118 = vmatmul.mubr.f32.gmra.mrb[0].mxu0 %v4036
        %v4119 = vpop.f32.mrb[0].mxu0
        %v4120 = vadd.f32 0.0, %v4119
        %v4121 = vpop.f32.mrb[0].mxu0
        %v4122 = vadd.f32 0.0, %v4121
        %4123 = vmatprep.mubr.f32.mxu0 0.0
        %4124 = vmatmul.mubr.f32.gmra.mrb[0].mxu0 %v4039
        %v4125 = vpop.f32.mrb[0].mxu0
        %v4126 = vadd.f32 0.0, %v4125
        %v4127 = vpop.f32.mrb[0].mxu0
        %v4128 = vadd.f32 0.0, %v4127
        %4129 = vdwg.mxu0
        %v4130 = vadd.f32 %v3970, %v4108
        %v4131 = vadd.f32 %v3972, %v4110
        %v4132 = vadd.f32 %v3976, %v4114
        %v4133 = vadd.f32 %v3978, %v4116
        %v4134 = vadd.f32 %v3982, %v4120
        %v4135 = vadd.f32 %v3984, %v4122
        %v4136 = vadd.f32 %v3988, %v4126
        %v4137 = vadd.f32 %v3990, %v4128
        %4138 = vrot.lane.b32.xlu0 %v3709, 1
        %v4139 = vpop.permute.xlu0 %4138
        %4140 = vrot.lane.b32.xlu0 %v3711, 1
        %v4141 = vpop.permute.xlu0 %4140
        %4142 = vrot.lane.b32.xlu0 %v3713, 1
        %v4143 = vpop.permute.xlu0 %4142
        %4144 = vrot.lane.b32.xlu0 %v3715, 1
        %v4145 = vpop.permute.xlu0 %4144
        %4146 = vrot.lane.b32.xlu0 %v3710, 1
        %v4147 = vpop.permute.xlu0 %4146
        %4148 = vrot.lane.b32.xlu0 %v3712, 1
        %v4149 = vpop.permute.xlu0 %4148
        %4150 = vrot.lane.b32.xlu0 %v3714, 1
        %v4151 = vpop.permute.xlu0 %4150
        %4152 = vrot.lane.b32.xlu0 %v3716, 1
        %v4153 = vpop.permute.xlu0 %4152
        %v4154 = vsel %vm2351, %v4139, %v4147
        %v4155 = vsel %vm2351, %v4141, %v4149
        %v4156 = vsel %vm2351, %v4143, %v4151
        %v4157 = vsel %vm2351, %v4145, %v4153
        %v4158 = vsel %vm2351, %v4147, %v4139
        %v4159 = vsel %vm2351, %v4149, %v4141
        %v4160 = vsel %vm2351, %v4151, %v4143
        %v4161 = vsel %vm2351, %v4153, %v4145
        %v4162 = vmul.f32 %v4158, %v2366
        %v4163 = vmul.f32 %v4154, %v2370
        %v4164 = vmul.f32 %v4159, %v2366
        %v4165 = vmul.f32 %v4155, %v2370
        %v4166 = vmul.f32 %v4160, %v2366
        %v4167 = vmul.f32 %v4156, %v2370
        %v4168 = vmul.f32 %v4161, %v2366
        %v4169 = vmul.f32 %v4157, %v2370
        %s4170 = scalar_lea.vmem %s16, 96
        %v4171 = vld [vmem:[%s4170] sm:$0xff]
        %v4172 = vld [vmem:[%s4170 + $0x8] sm:$0xff]
        %v4173 = vld [vmem:[%s4170 + $0x10] sm:$0xff]
        %v4174 = vld [vmem:[%s4170 + $0x18] sm:$0xff]
        %v4176 = vsel %vm1041, %v4171, 0
        %v4179 = vsel %vm1041, %v4172, 0
        %v4182 = vsel %vm1041, %v4173, 0
        %v4185 = vsel %vm1041, %v4174, 0
        %4187 = vmatprep.subr.mxu0 %v4163
        %4188 = vmatpush1.msra.mxu0 %v4162
        %4189 = vmatprep.subr.mxu0 %v4165
        %4190 = vmatpush1.msra.mxu0 %v4164
        %4191 = vmatprep.subr.mxu0 %v4167
        %4192 = vmatpush1.msra.mxu0 %v4166
        %4193 = vmatprep.subr.mxu0 %v4169
        %4194 = vmatpush1.msra.mxu0 %v4168
        %4195 = vmatprep.subr.mxu0 0.0
        %4196 = vmatpush1.msra.mxu0 0.0
        %4197 = vmatprep.subr.mxu0 0.0
        %4198 = vmatpush1.msra.mxu0 0.0
        %4199 = vmatprep.subr.mxu0 0.0
        %4200 = vmatpush1.msra.mxu0 0.0
        %4201 = vmatprep.subr.mxu0 0.0
        %4202 = vmatpush1.msra.mxu0 0.0
        %4203 = vmatprep.subr.mxu0 0.0
        %4204 = vmatpush1.msra.mxu0 0.0
        %4205 = vmatprep.subr.mxu0 0.0
        %4206 = vmatpush1.msra.mxu0 0.0
        %4207 = vmatprep.subr.mxu0 0.0
        %4208 = vmatpush1.msra.mxu0 0.0
        %4209 = vmatprep.subr.mxu0 0.0
        %4210 = vmatpush1.msra.mxu0 0.0
        %4211 = vmatprep.subr.mxu0 0.0
        %4212 = vmatpush1.msra.mxu0 0.0
        %4213 = vmatprep.subr.mxu0 0.0
        %4214 = vmatpush1.msra.mxu0 0.0
        %4215 = vmatprep.subr.mxu0 0.0
        %4216 = vmatpush1.msra.mxu0 0.0
        %4217 = vmatprep.subr.mxu0 0.0
        %4218 = vmatpush1.msra.mxu0 0.0
        %4219 = vmatprep.subr.mxu0 0.0
        %4220 = vmatpush1.msra.mxu0 0.0
        %4221 = vmatprep.subr.mxu0 0.0
        %4222 = vmatpush1.msra.mxu0 0.0
        %4223 = vmatprep.subr.mxu0 0.0
        %4224 = vmatpush1.msra.mxu0 0.0
        %4225 = vmatprep.subr.mxu0 0.0
        %4226 = vmatpush1.msra.mxu0 0.0
        %4227 = vmatprep.subr.mxu0 0.0
        %4228 = vmatpush1.msra.mxu0 0.0
        %4229 = vmatprep.subr.mxu0 0.0
        %4230 = vmatpush1.msra.mxu0 0.0
        %4231 = vmatprep.subr.mxu0 0.0
        %4232 = vmatpush1.msra.mxu0 0.0
        %4233 = vmatprep.subr.mxu0 0.0
        %4234 = vmatpush1.msra.mxu0 0.0
        %4235 = vmatprep.subr.mxu0 0.0
        %4236 = vmatpush1.msra.mxu0 0.0
        %4237 = vmatprep.subr.mxu0 0.0
        %4238 = vmatpush1.msra.mxu0 0.0
        %4239 = vmatprep.subr.mxu0 0.0
        %4240 = vmatpush1.msra.mxu0 0.0
        %4241 = vmatprep.subr.mxu0 0.0
        %4242 = vmatpush1.msra.mxu0 0.0
        %4243 = vmatprep.subr.mxu0 0.0
        %4244 = vmatpush1.msra.mxu0 0.0
        %4245 = vmatprep.subr.mxu0 0.0
        %4246 = vmatpush1.msra.mxu0 0.0
        %4247 = vmatprep.subr.mxu0 0.0
        %4248 = vmatpush1.msra.mxu0 0.0
        %4249 = vmatprep.subr.mxu0 0.0
        %4250 = vmatpush1.msra.mxu0 0.0
        %4251 = vmatprep.mubr.f32.mxu0 0.0
        %4252 = vmatmul.mubr.f32.gmra.mrb[0].mxu0 %v4176
        %v4253 = vpop.f32.mrb[0].mxu0
        %v4254 = vadd.f32 0.0, %v4253
        %v4255 = vpop.f32.mrb[0].mxu0
        %v4256 = vadd.f32 0.0, %v4255
        %4257 = vmatprep.mubr.f32.mxu0 0.0
        %4258 = vmatmul.mubr.f32.gmra.mrb[0].mxu0 %v4179
        %v4259 = vpop.f32.mrb[0].mxu0
        %v4260 = vadd.f32 0.0, %v4259
        %v4261 = vpop.f32.mrb[0].mxu0
        %v4262 = vadd.f32 0.0, %v4261
        %4263 = vmatprep.mubr.f32.mxu0 0.0
        %4264 = vmatmul.mubr.f32.gmra.mrb[0].mxu0 %v4182
        %v4265 = vpop.f32.mrb[0].mxu0
        %v4266 = vadd.f32 0.0, %v4265
        %v4267 = vpop.f32.mrb[0].mxu0
        %v4268 = vadd.f32 0.0, %v4267
        %4269 = vmatprep.mubr.f32.mxu0 0.0
        %4270 = vmatmul.mubr.f32.gmra.mrb[0].mxu0 %v4185
        %v4271 = vpop.f32.mrb[0].mxu0
        %v4272 = vadd.f32 0.0, %v4271
        %v4273 = vpop.f32.mrb[0].mxu0
        %v4274 = vadd.f32 0.0, %v4273
        %4275 = vdwg.mxu0
        %v4276 = vadd.f32 %v4130, %v4254
        %v4277 = vadd.f32 %v4131, %v4256
        %v4278 = vadd.f32 %v4132, %v4260
        %v4279 = vadd.f32 %v4133, %v4262
        %v4280 = vadd.f32 %v4134, %v4266
        %v4281 = vadd.f32 %v4135, %v4268
        %v4282 = vadd.f32 %v4136, %v4272
        %v4283 = vadd.f32 %v4137, %v4274
        %s4284 = scalar_lea.vmem %s16, 128
        %v4285 = vld [vmem:[%s4284] sm:$0xff]
        %v4286 = vld [vmem:[%s4284 + $0x8] sm:$0xff]
        %v4287 = vld [vmem:[%s4284 + $0x10] sm:$0xff]
        %v4288 = vld [vmem:[%s4284 + $0x18] sm:$0xff]
        %v4290 = vsel %vm1041, %v4285, 0
        %v4293 = vsel %vm1041, %v4286, 0
        %v4296 = vsel %vm1041, %v4287, 0
        %v4299 = vsel %vm1041, %v4288, 0
        %4301 = vmatprep.subr.mxu0 %v3710
        %4302 = vmatpush1.msra.mxu0 %v3709
        %4303 = vmatprep.subr.mxu0 %v3712
        %4304 = vmatpush1.msra.mxu0 %v3711
        %4305 = vmatprep.subr.mxu0 %v3714
        %4306 = vmatpush1.msra.mxu0 %v3713
        %4307 = vmatprep.subr.mxu0 %v3716
        %4308 = vmatpush1.msra.mxu0 %v3715
        %4309 = vmatprep.subr.mxu0 0.0
        %4310 = vmatpush1.msra.mxu0 0.0
        %4311 = vmatprep.subr.mxu0 0.0
        %4312 = vmatpush1.msra.mxu0 0.0
        %4313 = vmatprep.subr.mxu0 0.0
        %4314 = vmatpush1.msra.mxu0 0.0
        %4315 = vmatprep.subr.mxu0 0.0
        %4316 = vmatpush1.msra.mxu0 0.0
        %4317 = vmatprep.subr.mxu0 0.0
        %4318 = vmatpush1.msra.mxu0 0.0
        %4319 = vmatprep.subr.mxu0 0.0
        %4320 = vmatpush1.msra.mxu0 0.0
        %4321 = vmatprep.subr.mxu0 0.0
        %4322 = vmatpush1.msra.mxu0 0.0
        %4323 = vmatprep.subr.mxu0 0.0
        %4324 = vmatpush1.msra.mxu0 0.0
        %4325 = vmatprep.subr.mxu0 0.0
        %4326 = vmatpush1.msra.mxu0 0.0
        %4327 = vmatprep.subr.mxu0 0.0
        %4328 = vmatpush1.msra.mxu0 0.0
        %4329 = vmatprep.subr.mxu0 0.0
        %4330 = vmatpush1.msra.mxu0 0.0
        %4331 = vmatprep.subr.mxu0 0.0
        %4332 = vmatpush1.msra.mxu0 0.0
        %4333 = vmatprep.subr.mxu0 0.0
        %4334 = vmatpush1.msra.mxu0 0.0
        %4335 = vmatprep.subr.mxu0 0.0
        %4336 = vmatpush1.msra.mxu0 0.0
        %4337 = vmatprep.subr.mxu0 0.0
        %4338 = vmatpush1.msra.mxu0 0.0
        %4339 = vmatprep.subr.mxu0 0.0
        %4340 = vmatpush1.msra.mxu0 0.0
        %4341 = vmatprep.subr.mxu0 0.0
        %4342 = vmatpush1.msra.mxu0 0.0
        %4343 = vmatprep.subr.mxu0 0.0
        %4344 = vmatpush1.msra.mxu0 0.0
        %4345 = vmatprep.subr.mxu0 0.0
        %4346 = vmatpush1.msra.mxu0 0.0
        %4347 = vmatprep.subr.mxu0 0.0
        %4348 = vmatpush1.msra.mxu0 0.0
        %4349 = vmatprep.subr.mxu0 0.0
        %4350 = vmatpush1.msra.mxu0 0.0
        %4351 = vmatprep.subr.mxu0 0.0
        %4352 = vmatpush1.msra.mxu0 0.0
        %4353 = vmatprep.subr.mxu0 0.0
        %4354 = vmatpush1.msra.mxu0 0.0
        %4355 = vmatprep.subr.mxu0 0.0
        %4356 = vmatpush1.msra.mxu0 0.0
        %4357 = vmatprep.subr.mxu0 0.0
        %4358 = vmatpush1.msra.mxu0 0.0
        %4359 = vmatprep.subr.mxu0 0.0
        %4360 = vmatpush1.msra.mxu0 0.0
        %4361 = vmatprep.subr.mxu0 0.0
        %4362 = vmatpush1.msra.mxu0 0.0
        %4363 = vmatprep.subr.mxu0 0.0
        %4364 = vmatpush1.msra.mxu0 0.0
        %4365 = vmatprep.mubr.f32.mxu0 0.0
        %4366 = vmatmul.mubr.f32.gmra.mrb[0].mxu0 %v4290
        %v4367 = vpop.f32.mrb[0].mxu0
        %v4368 = vadd.f32 0.0, %v4367
        %v4369 = vpop.f32.mrb[0].mxu0
        %v4370 = vadd.f32 0.0, %v4369
        %4371 = vmatprep.mubr.f32.mxu0 0.0
        %4372 = vmatmul.mubr.f32.gmra.mrb[0].mxu0 %v4293
        %v4373 = vpop.f32.mrb[0].mxu0
        %v4374 = vadd.f32 0.0, %v4373
        %v4375 = vpop.f32.mrb[0].mxu0
        %v4376 = vadd.f32 0.0, %v4375
        %4377 = vmatprep.mubr.f32.mxu0 0.0
        %4378 = vmatmul.mubr.f32.gmra.mrb[0].mxu0 %v4296
        %v4379 = vpop.f32.mrb[0].mxu0
        %v4380 = vadd.f32 0.0, %v4379
        %v4381 = vpop.f32.mrb[0].mxu0
        %v4382 = vadd.f32 0.0, %v4381
        %4383 = vmatprep.mubr.f32.mxu0 0.0
        %4384 = vmatmul.mubr.f32.gmra.mrb[0].mxu0 %v4299
        %v4385 = vpop.f32.mrb[0].mxu0
        %v4386 = vadd.f32 0.0, %v4385
        %v4387 = vpop.f32.mrb[0].mxu0
        %v4388 = vadd.f32 0.0, %v4387
        %4389 = vdwg.mxu0
        %v4390 = vadd.f32 %v4276, %v4368
        %v4391 = vadd.f32 %v4277, %v4370
        %v4392 = vadd.f32 %v4278, %v4374
        %v4393 = vadd.f32 %v4279, %v4376
        %v4394 = vadd.f32 %v4280, %v4380
        %v4395 = vadd.f32 %v4281, %v4382
        %v4396 = vadd.f32 %v4282, %v4386
        %v4397 = vadd.f32 %v4283, %v4388
        %4398 = vrot.lane.b32.xlu0 %v3709, 127
        %v4399 = vpop.permute.xlu0 %4398
        %4400 = vrot.lane.b32.xlu0 %v3711, 127
        %v4401 = vpop.permute.xlu0 %4400
        %4402 = vrot.lane.b32.xlu0 %v3713, 127
        %v4403 = vpop.permute.xlu0 %4402
        %4404 = vrot.lane.b32.xlu0 %v3715, 127
        %v4405 = vpop.permute.xlu0 %4404
        %4406 = vrot.lane.b32.xlu0 %v3710, 127
        %v4407 = vpop.permute.xlu0 %4406
        %4408 = vrot.lane.b32.xlu0 %v3712, 127
        %v4409 = vpop.permute.xlu0 %4408
        %4410 = vrot.lane.b32.xlu0 %v3714, 127
        %v4411 = vpop.permute.xlu0 %4410
        %4412 = vrot.lane.b32.xlu0 %v3716, 127
        %v4413 = vpop.permute.xlu0 %4412
        %v4414 = vsel %vm2643, %v4399, %v4407
        %v4415 = vsel %vm2643, %v4401, %v4409
        %v4416 = vsel %vm2643, %v4403, %v4411
        %v4417 = vsel %vm2643, %v4405, %v4413
        %v4418 = vsel %vm2643, %v4407, %v4399
        %v4419 = vsel %vm2643, %v4409, %v4401
        %v4420 = vsel %vm2643, %v4411, %v4403
        %v4421 = vsel %vm2643, %v4413, %v4405
        %v4422 = vmul.f32 %v4414, %v2658
        %v4423 = vmul.f32 %v4418, %v2662
        %v4424 = vmul.f32 %v4415, %v2658
        %v4425 = vmul.f32 %v4419, %v2662
        %v4426 = vmul.f32 %v4416, %v2658
        %v4427 = vmul.f32 %v4420, %v2662
        %v4428 = vmul.f32 %v4417, %v2658
        %v4429 = vmul.f32 %v4421, %v2662
        %s4430 = scalar_lea.vmem %s16, 160
        %v4431 = vld [vmem:[%s4430] sm:$0xff]
        %v4432 = vld [vmem:[%s4430 + $0x8] sm:$0xff]
        %v4433 = vld [vmem:[%s4430 + $0x10] sm:$0xff]
        %v4434 = vld [vmem:[%s4430 + $0x18] sm:$0xff]
        %v4436 = vsel %vm1041, %v4431, 0
        %v4439 = vsel %vm1041, %v4432, 0
        %v4442 = vsel %vm1041, %v4433, 0
        %v4445 = vsel %vm1041, %v4434, 0
        %4447 = vmatprep.subr.mxu0 %v4423
        %4448 = vmatpush1.msra.mxu0 %v4422
        %4449 = vmatprep.subr.mxu0 %v4425
        %4450 = vmatpush1.msra.mxu0 %v4424
        %4451 = vmatprep.subr.mxu0 %v4427
        %4452 = vmatpush1.msra.mxu0 %v4426
        %4453 = vmatprep.subr.mxu0 %v4429
        %4454 = vmatpush1.msra.mxu0 %v4428
        %4455 = vmatprep.subr.mxu0 0.0
        %4456 = vmatpush1.msra.mxu0 0.0
        %4457 = vmatprep.subr.mxu0 0.0
        %4458 = vmatpush1.msra.mxu0 0.0
        %4459 = vmatprep.subr.mxu0 0.0
        %4460 = vmatpush1.msra.mxu0 0.0
        %4461 = vmatprep.subr.mxu0 0.0
        %4462 = vmatpush1.msra.mxu0 0.0
        %4463 = vmatprep.subr.mxu0 0.0
        %4464 = vmatpush1.msra.mxu0 0.0
        %4465 = vmatprep.subr.mxu0 0.0
        %4466 = vmatpush1.msra.mxu0 0.0
        %4467 = vmatprep.subr.mxu0 0.0
        %4468 = vmatpush1.msra.mxu0 0.0
        %4469 = vmatprep.subr.mxu0 0.0
        %4470 = vmatpush1.msra.mxu0 0.0
        %4471 = vmatprep.subr.mxu0 0.0
        %4472 = vmatpush1.msra.mxu0 0.0
        %4473 = vmatprep.subr.mxu0 0.0
        %4474 = vmatpush1.msra.mxu0 0.0
        %4475 = vmatprep.subr.mxu0 0.0
        %4476 = vmatpush1.msra.mxu0 0.0
        %4477 = vmatprep.subr.mxu0 0.0
        %4478 = vmatpush1.msra.mxu0 0.0
        %4479 = vmatprep.subr.mxu0 0.0
        %4480 = vmatpush1.msra.mxu0 0.0
        %4481 = vmatprep.subr.mxu0 0.0
        %4482 = vmatpush1.msra.mxu0 0.0
        %4483 = vmatprep.subr.mxu0 0.0
        %4484 = vmatpush1.msra.mxu0 0.0
        %4485 = vmatprep.subr.mxu0 0.0
        %4486 = vmatpush1.msra.mxu0 0.0
        %4487 = vmatprep.subr.mxu0 0.0
        %4488 = vmatpush1.msra.mxu0 0.0
        %4489 = vmatprep.subr.mxu0 0.0
        %4490 = vmatpush1.msra.mxu0 0.0
        %4491 = vmatprep.subr.mxu0 0.0
        %4492 = vmatpush1.msra.mxu0 0.0
        %4493 = vmatprep.subr.mxu0 0.0
        %4494 = vmatpush1.msra.mxu0 0.0
        %4495 = vmatprep.subr.mxu0 0.0
        %4496 = vmatpush1.msra.mxu0 0.0
        %4497 = vmatprep.subr.mxu0 0.0
        %4498 = vmatpush1.msra.mxu0 0.0
        %4499 = vmatprep.subr.mxu0 0.0
        %4500 = vmatpush1.msra.mxu0 0.0
        %4501 = vmatprep.subr.mxu0 0.0
        %4502 = vmatpush1.msra.mxu0 0.0
        %4503 = vmatprep.subr.mxu0 0.0
        %4504 = vmatpush1.msra.mxu0 0.0
        %4505 = vmatprep.subr.mxu0 0.0
        %4506 = vmatpush1.msra.mxu0 0.0
        %4507 = vmatprep.subr.mxu0 0.0
        %4508 = vmatpush1.msra.mxu0 0.0
        %4509 = vmatprep.subr.mxu0 0.0
        %4510 = vmatpush1.msra.mxu0 0.0
        %4511 = vmatprep.mubr.f32.mxu0 0.0
        %4512 = vmatmul.mubr.f32.gmra.mrb[0].mxu0 %v4436
        %v4513 = vpop.f32.mrb[0].mxu0
        %v4514 = vadd.f32 0.0, %v4513
        %v4515 = vpop.f32.mrb[0].mxu0
        %v4516 = vadd.f32 0.0, %v4515
        %4517 = vmatprep.mubr.f32.mxu0 0.0
        %4518 = vmatmul.mubr.f32.gmra.mrb[0].mxu0 %v4439
        %v4519 = vpop.f32.mrb[0].mxu0
        %v4520 = vadd.f32 0.0, %v4519
        %v4521 = vpop.f32.mrb[0].mxu0
        %v4522 = vadd.f32 0.0, %v4521
        %4523 = vmatprep.mubr.f32.mxu0 0.0
        %4524 = vmatmul.mubr.f32.gmra.mrb[0].mxu0 %v4442
        %v4525 = vpop.f32.mrb[0].mxu0
        %v4526 = vadd.f32 0.0, %v4525
        %v4527 = vpop.f32.mrb[0].mxu0
        %v4528 = vadd.f32 0.0, %v4527
        %4529 = vmatprep.mubr.f32.mxu0 0.0
        %4530 = vmatmul.mubr.f32.gmra.mrb[0].mxu0 %v4445
        %v4531 = vpop.f32.mrb[0].mxu0
        %v4532 = vadd.f32 0.0, %v4531
        %v4533 = vpop.f32.mrb[0].mxu0
        %v4534 = vadd.f32 0.0, %v4533
        %4535 = vdwg.mxu0
        %v4536 = vadd.f32 %v4390, %v4514
        %v4537 = vadd.f32 %v4391, %v4516
        %v4538 = vadd.f32 %v4392, %v4520
        %v4539 = vadd.f32 %v4393, %v4522
        %v4540 = vadd.f32 %v4394, %v4526
        %v4541 = vadd.f32 %v4395, %v4528
        %v4542 = vadd.f32 %v4396, %v4532
        %v4543 = vadd.f32 %v4397, %v4534
        %4544 = vrot.lane.b32.xlu0 %v3709, 113
        %v4545 = vpop.permute.xlu0 %4544
        %4546 = vrot.lane.b32.xlu0 %v3711, 113
        %v4547 = vpop.permute.xlu0 %4546
        %4548 = vrot.lane.b32.xlu0 %v3713, 113
        %v4549 = vpop.permute.xlu0 %4548
        %4550 = vrot.lane.b32.xlu0 %v3715, 113
        %v4551 = vpop.permute.xlu0 %4550
        %4552 = vrot.lane.b32.xlu0 %v3710, 113
        %v4553 = vpop.permute.xlu0 %4552
        %4554 = vrot.lane.b32.xlu0 %v3712, 113
        %v4555 = vpop.permute.xlu0 %4554
        %4556 = vrot.lane.b32.xlu0 %v3714, 113
        %v4557 = vpop.permute.xlu0 %4556
        %4558 = vrot.lane.b32.xlu0 %v3716, 113
        %v4559 = vpop.permute.xlu0 %4558
        %v4560 = vsel %vm2815, %v4545, %v4553
        %v4561 = vsel %vm2815, %v4547, %v4555
        %v4562 = vsel %vm2815, %v4549, %v4557
        %v4563 = vsel %vm2815, %v4551, %v4559
        %v4564 = vsel %vm2815, %v4553, %v4545
        %v4565 = vsel %vm2815, %v4555, %v4547
        %v4566 = vsel %vm2815, %v4557, %v4549
        %v4567 = vsel %vm2815, %v4559, %v4551
        %v4568 = vmul.f32 %v4560, %v2830
        %v4569 = vmul.f32 %v4564, %v2834
        %v4570 = vmul.f32 %v4561, %v2830
        %v4571 = vmul.f32 %v4565, %v2834
        %v4572 = vmul.f32 %v4562, %v2830
        %v4573 = vmul.f32 %v4566, %v2834
        %v4574 = vmul.f32 %v4563, %v2830
        %v4575 = vmul.f32 %v4567, %v2834
        %s4576 = scalar_lea.vmem %s16, 192
        %v4577 = vld [vmem:[%s4576] sm:$0xff]
        %v4578 = vld [vmem:[%s4576 + $0x8] sm:$0xff]
        %v4579 = vld [vmem:[%s4576 + $0x10] sm:$0xff]
        %v4580 = vld [vmem:[%s4576 + $0x18] sm:$0xff]
        %v4582 = vsel %vm1041, %v4577, 0
        %v4585 = vsel %vm1041, %v4578, 0
        %v4588 = vsel %vm1041, %v4579, 0
        %v4591 = vsel %vm1041, %v4580, 0
        %4593 = vmatprep.subr.mxu0 %v4569
        %4594 = vmatpush1.msra.mxu0 %v4568
        %4595 = vmatprep.subr.mxu0 %v4571
        %4596 = vmatpush1.msra.mxu0 %v4570
        %4597 = vmatprep.subr.mxu0 %v4573
        %4598 = vmatpush1.msra.mxu0 %v4572
        %4599 = vmatprep.subr.mxu0 %v4575
        %4600 = vmatpush1.msra.mxu0 %v4574
        %4601 = vmatprep.subr.mxu0 0.0
        %4602 = vmatpush1.msra.mxu0 0.0
        %4603 = vmatprep.subr.mxu0 0.0
        %4604 = vmatpush1.msra.mxu0 0.0
        %4605 = vmatprep.subr.mxu0 0.0
        %4606 = vmatpush1.msra.mxu0 0.0
        %4607 = vmatprep.subr.mxu0 0.0
        %4608 = vmatpush1.msra.mxu0 0.0
        %4609 = vmatprep.subr.mxu0 0.0
        %4610 = vmatpush1.msra.mxu0 0.0
        %4611 = vmatprep.subr.mxu0 0.0
        %4612 = vmatpush1.msra.mxu0 0.0
        %4613 = vmatprep.subr.mxu0 0.0
        %4614 = vmatpush1.msra.mxu0 0.0
        %4615 = vmatprep.subr.mxu0 0.0
        %4616 = vmatpush1.msra.mxu0 0.0
        %4617 = vmatprep.subr.mxu0 0.0
        %4618 = vmatpush1.msra.mxu0 0.0
        %4619 = vmatprep.subr.mxu0 0.0
        %4620 = vmatpush1.msra.mxu0 0.0
        %4621 = vmatprep.subr.mxu0 0.0
        %4622 = vmatpush1.msra.mxu0 0.0
        %4623 = vmatprep.subr.mxu0 0.0
        %4624 = vmatpush1.msra.mxu0 0.0
        %4625 = vmatprep.subr.mxu0 0.0
        %4626 = vmatpush1.msra.mxu0 0.0
        %4627 = vmatprep.subr.mxu0 0.0
        %4628 = vmatpush1.msra.mxu0 0.0
        %4629 = vmatprep.subr.mxu0 0.0
        %4630 = vmatpush1.msra.mxu0 0.0
        %4631 = vmatprep.subr.mxu0 0.0
        %4632 = vmatpush1.msra.mxu0 0.0
        %4633 = vmatprep.subr.mxu0 0.0
        %4634 = vmatpush1.msra.mxu0 0.0
        %4635 = vmatprep.subr.mxu0 0.0
        %4636 = vmatpush1.msra.mxu0 0.0
        %4637 = vmatprep.subr.mxu0 0.0
        %4638 = vmatpush1.msra.mxu0 0.0
        %4639 = vmatprep.subr.mxu0 0.0
        %4640 = vmatpush1.msra.mxu0 0.0
        %4641 = vmatprep.subr.mxu0 0.0
        %4642 = vmatpush1.msra.mxu0 0.0
        %4643 = vmatprep.subr.mxu0 0.0
        %4644 = vmatpush1.msra.mxu0 0.0
        %4645 = vmatprep.subr.mxu0 0.0
        %4646 = vmatpush1.msra.mxu0 0.0
        %4647 = vmatprep.subr.mxu0 0.0
        %4648 = vmatpush1.msra.mxu0 0.0
        %4649 = vmatprep.subr.mxu0 0.0
        %4650 = vmatpush1.msra.mxu0 0.0
        %4651 = vmatprep.subr.mxu0 0.0
        %4652 = vmatpush1.msra.mxu0 0.0
        %4653 = vmatprep.subr.mxu0 0.0
        %4654 = vmatpush1.msra.mxu0 0.0
        %4655 = vmatprep.subr.mxu0 0.0
        %4656 = vmatpush1.msra.mxu0 0.0
        %4657 = vmatprep.mubr.f32.mxu0 0.0
        %4658 = vmatmul.mubr.f32.gmra.mrb[0].mxu0 %v4582
        %v4659 = vpop.f32.mrb[0].mxu0
        %v4660 = vadd.f32 0.0, %v4659
        %v4661 = vpop.f32.mrb[0].mxu0
        %v4662 = vadd.f32 0.0, %v4661
        %4663 = vmatprep.mubr.f32.mxu0 0.0
        %4664 = vmatmul.mubr.f32.gmra.mrb[0].mxu0 %v4585
        %v4665 = vpop.f32.mrb[0].mxu0
        %v4666 = vadd.f32 0.0, %v4665
        %v4667 = vpop.f32.mrb[0].mxu0
        %v4668 = vadd.f32 0.0, %v4667
        %4669 = vmatprep.mubr.f32.mxu0 0.0
        %4670 = vmatmul.mubr.f32.gmra.mrb[0].mxu0 %v4588
        %v4671 = vpop.f32.mrb[0].mxu0
        %v4672 = vadd.f32 0.0, %v4671
        %v4673 = vpop.f32.mrb[0].mxu0
        %v4674 = vadd.f32 0.0, %v4673
        %4675 = vmatprep.mubr.f32.mxu0 0.0
        %4676 = vmatmul.mubr.f32.gmra.mrb[0].mxu0 %v4591
        %v4677 = vpop.f32.mrb[0].mxu0
        %v4678 = vadd.f32 0.0, %v4677
        %v4679 = vpop.f32.mrb[0].mxu0
        %v4680 = vadd.f32 0.0, %v4679
        %4681 = vdwg.mxu0
        %v4682 = vadd.f32 %v4536, %v4660
        %v4683 = vadd.f32 %v4537, %v4662
        %v4684 = vadd.f32 %v4538, %v4666
        %v4685 = vadd.f32 %v4539, %v4668
        %v4686 = vadd.f32 %v4540, %v4672
        %v4687 = vadd.f32 %v4541, %v4674
        %v4688 = vadd.f32 %v4542, %v4678
        %v4689 = vadd.f32 %v4543, %v4680
        %4690 = vrot.lane.b32.xlu0 %v3709, 112
        %v4691 = vpop.permute.xlu0 %4690
        %4692 = vrot.lane.b32.xlu0 %v3711, 112
        %v4693 = vpop.permute.xlu0 %4692
        %4694 = vrot.lane.b32.xlu0 %v3713, 112
        %v4695 = vpop.permute.xlu0 %4694
        %4696 = vrot.lane.b32.xlu0 %v3715, 112
        %v4697 = vpop.permute.xlu0 %4696
        %4698 = vrot.lane.b32.xlu0 %v3710, 112
        %v4699 = vpop.permute.xlu0 %4698
        %4700 = vrot.lane.b32.xlu0 %v3712, 112
        %v4701 = vpop.permute.xlu0 %4700
        %4702 = vrot.lane.b32.xlu0 %v3714, 112
        %v4703 = vpop.permute.xlu0 %4702
        %4704 = vrot.lane.b32.xlu0 %v3716, 112
        %v4705 = vpop.permute.xlu0 %4704
        %v4706 = vsel %vm2987, %v4691, %v4699
        %v4707 = vsel %vm2987, %v4693, %v4701
        %v4708 = vsel %vm2987, %v4695, %v4703
        %v4709 = vsel %vm2987, %v4697, %v4705
        %v4710 = vsel %vm2987, %v4699, %v4691
        %v4711 = vsel %vm2987, %v4701, %v4693
        %v4712 = vsel %vm2987, %v4703, %v4695
        %v4713 = vsel %vm2987, %v4705, %v4697
        %v4714 = vmul.f32 %v4706, %v3002
        %v4715 = vmul.f32 %v4710, %v3006
        %v4716 = vmul.f32 %v4707, %v3002
        %v4717 = vmul.f32 %v4711, %v3006
        %v4718 = vmul.f32 %v4708, %v3002
        %v4719 = vmul.f32 %v4712, %v3006
        %v4720 = vmul.f32 %v4709, %v3002
        %v4721 = vmul.f32 %v4713, %v3006
        %s4722 = scalar_lea.vmem %s16, 224
        %v4723 = vld [vmem:[%s4722] sm:$0xff]
        %v4724 = vld [vmem:[%s4722 + $0x8] sm:$0xff]
        %v4725 = vld [vmem:[%s4722 + $0x10] sm:$0xff]
        %v4726 = vld [vmem:[%s4722 + $0x18] sm:$0xff]
        %v4728 = vsel %vm1041, %v4723, 0
        %v4731 = vsel %vm1041, %v4724, 0
        %v4734 = vsel %vm1041, %v4725, 0
        %v4737 = vsel %vm1041, %v4726, 0
        %4739 = vmatprep.subr.mxu0 %v4715
        %4740 = vmatpush1.msra.mxu0 %v4714
        %4741 = vmatprep.subr.mxu0 %v4717
        %4742 = vmatpush1.msra.mxu0 %v4716
        %4743 = vmatprep.subr.mxu0 %v4719
        %4744 = vmatpush1.msra.mxu0 %v4718
        %4745 = vmatprep.subr.mxu0 %v4721
        %4746 = vmatpush1.msra.mxu0 %v4720
        %4747 = vmatprep.subr.mxu0 0.0
        %4748 = vmatpush1.msra.mxu0 0.0
        %4749 = vmatprep.subr.mxu0 0.0
        %4750 = vmatpush1.msra.mxu0 0.0
        %4751 = vmatprep.subr.mxu0 0.0
        %4752 = vmatpush1.msra.mxu0 0.0
        %4753 = vmatprep.subr.mxu0 0.0
        %4754 = vmatpush1.msra.mxu0 0.0
        %4755 = vmatprep.subr.mxu0 0.0
        %4756 = vmatpush1.msra.mxu0 0.0
        %4757 = vmatprep.subr.mxu0 0.0
        %4758 = vmatpush1.msra.mxu0 0.0
        %4759 = vmatprep.subr.mxu0 0.0
        %4760 = vmatpush1.msra.mxu0 0.0
        %4761 = vmatprep.subr.mxu0 0.0
        %4762 = vmatpush1.msra.mxu0 0.0
        %4763 = vmatprep.subr.mxu0 0.0
        %4764 = vmatpush1.msra.mxu0 0.0
        %4765 = vmatprep.subr.mxu0 0.0
        %4766 = vmatpush1.msra.mxu0 0.0
        %4767 = vmatprep.subr.mxu0 0.0
        %4768 = vmatpush1.msra.mxu0 0.0
        %4769 = vmatprep.subr.mxu0 0.0
        %4770 = vmatpush1.msra.mxu0 0.0
        %4771 = vmatprep.subr.mxu0 0.0
        %4772 = vmatpush1.msra.mxu0 0.0
        %4773 = vmatprep.subr.mxu0 0.0
        %4774 = vmatpush1.msra.mxu0 0.0
        %4775 = vmatprep.subr.mxu0 0.0
        %4776 = vmatpush1.msra.mxu0 0.0
        %4777 = vmatprep.subr.mxu0 0.0
        %4778 = vmatpush1.msra.mxu0 0.0
        %4779 = vmatprep.subr.mxu0 0.0
        %4780 = vmatpush1.msra.mxu0 0.0
        %4781 = vmatprep.subr.mxu0 0.0
        %4782 = vmatpush1.msra.mxu0 0.0
        %4783 = vmatprep.subr.mxu0 0.0
        %4784 = vmatpush1.msra.mxu0 0.0
        %4785 = vmatprep.subr.mxu0 0.0
        %4786 = vmatpush1.msra.mxu0 0.0
        %4787 = vmatprep.subr.mxu0 0.0
        %4788 = vmatpush1.msra.mxu0 0.0
        %4789 = vmatprep.subr.mxu0 0.0
        %4790 = vmatpush1.msra.mxu0 0.0
        %4791 = vmatprep.subr.mxu0 0.0
        %4792 = vmatpush1.msra.mxu0 0.0
        %4793 = vmatprep.subr.mxu0 0.0
        %4794 = vmatpush1.msra.mxu0 0.0
        %4795 = vmatprep.subr.mxu0 0.0
        %4796 = vmatpush1.msra.mxu0 0.0
        %4797 = vmatprep.subr.mxu0 0.0
        %4798 = vmatpush1.msra.mxu0 0.0
        %4799 = vmatprep.subr.mxu0 0.0
        %4800 = vmatpush1.msra.mxu0 0.0
        %4801 = vmatprep.subr.mxu0 0.0
        %4802 = vmatpush1.msra.mxu0 0.0
        %4803 = vmatprep.mubr.f32.mxu0 0.0
        %4804 = vmatmul.mubr.f32.gmra.mrb[0].mxu0 %v4728
        %v4805 = vpop.f32.mrb[0].mxu0
        %v4806 = vadd.f32 0.0, %v4805
        %v4807 = vpop.f32.mrb[0].mxu0
        %v4808 = vadd.f32 0.0, %v4807
        %4809 = vmatprep.mubr.f32.mxu0 0.0
        %4810 = vmatmul.mubr.f32.gmra.mrb[0].mxu0 %v4731
        %v4811 = vpop.f32.mrb[0].mxu0
        %v4812 = vadd.f32 0.0, %v4811
        %v4813 = vpop.f32.mrb[0].mxu0
        %v4814 = vadd.f32 0.0, %v4813
        %4815 = vmatprep.mubr.f32.mxu0 0.0
        %4816 = vmatmul.mubr.f32.gmra.mrb[0].mxu0 %v4734
        %v4817 = vpop.f32.mrb[0].mxu0
        %v4818 = vadd.f32 0.0, %v4817
        %v4819 = vpop.f32.mrb[0].mxu0
        %v4820 = vadd.f32 0.0, %v4819
        %4821 = vmatprep.mubr.f32.mxu0 0.0
        %4822 = vmatmul.mubr.f32.gmra.mrb[0].mxu0 %v4737
        %v4823 = vpop.f32.mrb[0].mxu0
        %v4824 = vadd.f32 0.0, %v4823
        %v4825 = vpop.f32.mrb[0].mxu0
        %v4826 = vadd.f32 0.0, %v4825
        %4827 = vdwg.mxu0
        %v4828 = vadd.f32 %v4682, %v4806
        %v4829 = vadd.f32 %v4683, %v4808
        %v4830 = vadd.f32 %v4684, %v4812
        %v4831 = vadd.f32 %v4685, %v4814
        %v4832 = vadd.f32 %v4686, %v4818
        %v4833 = vadd.f32 %v4687, %v4820
        %v4834 = vadd.f32 %v4688, %v4824
        %v4835 = vadd.f32 %v4689, %v4826
        %4836 = vrot.lane.b32.xlu0 %v3709, 111
        %v4837 = vpop.permute.xlu0 %4836
        %4838 = vrot.lane.b32.xlu0 %v3711, 111
        %v4839 = vpop.permute.xlu0 %4838
        %4840 = vrot.lane.b32.xlu0 %v3713, 111
        %v4841 = vpop.permute.xlu0 %4840
        %4842 = vrot.lane.b32.xlu0 %v3715, 111
        %v4843 = vpop.permute.xlu0 %4842
        %4844 = vrot.lane.b32.xlu0 %v3710, 111
        %v4845 = vpop.permute.xlu0 %4844
        %4846 = vrot.lane.b32.xlu0 %v3712, 111
        %v4847 = vpop.permute.xlu0 %4846
        %4848 = vrot.lane.b32.xlu0 %v3714, 111
        %v4849 = vpop.permute.xlu0 %4848
        %4850 = vrot.lane.b32.xlu0 %v3716, 111
        %v4851 = vpop.permute.xlu0 %4850
        %v4852 = vsel %vm3159, %v4837, %v4845
        %v4853 = vsel %vm3159, %v4839, %v4847
        %v4854 = vsel %vm3159, %v4841, %v4849
        %v4855 = vsel %vm3159, %v4843, %v4851
        %v4856 = vsel %vm3159, %v4845, %v4837
        %v4857 = vsel %vm3159, %v4847, %v4839
        %v4858 = vsel %vm3159, %v4849, %v4841
        %v4859 = vsel %vm3159, %v4851, %v4843
        %v4860 = vmul.f32 %v4852, %v3174
        %v4861 = vmul.f32 %v4856, %v3178
        %v4862 = vmul.f32 %v4853, %v3174
        %v4863 = vmul.f32 %v4857, %v3178
        %v4864 = vmul.f32 %v4854, %v3174
        %v4865 = vmul.f32 %v4858, %v3178
        %v4866 = vmul.f32 %v4855, %v3174
        %v4867 = vmul.f32 %v4859, %v3178
        %s4868 = scalar_lea.vmem %s16, 256
        %v4869 = vld [vmem:[%s4868] sm:$0xff]
        %v4870 = vld [vmem:[%s4868 + $0x8] sm:$0xff]
        %v4871 = vld [vmem:[%s4868 + $0x10] sm:$0xff]
        %v4872 = vld [vmem:[%s4868 + $0x18] sm:$0xff]
        %v4874 = vsel %vm1041, %v4869, 0
        %v4877 = vsel %vm1041, %v4870, 0
        %v4880 = vsel %vm1041, %v4871, 0
        %v4883 = vsel %vm1041, %v4872, 0
        %4885 = vmatprep.subr.mxu0 %v4861
        %4886 = vmatpush1.msra.mxu0 %v4860
        %4887 = vmatprep.subr.mxu0 %v4863
        %4888 = vmatpush1.msra.mxu0 %v4862
        %4889 = vmatprep.subr.mxu0 %v4865
        %4890 = vmatpush1.msra.mxu0 %v4864
        %4891 = vmatprep.subr.mxu0 %v4867
        %4892 = vmatpush1.msra.mxu0 %v4866
        %4893 = vmatprep.subr.mxu0 0.0
        %4894 = vmatpush1.msra.mxu0 0.0
        %4895 = vmatprep.subr.mxu0 0.0
        %4896 = vmatpush1.msra.mxu0 0.0
        %4897 = vmatprep.subr.mxu0 0.0
        %4898 = vmatpush1.msra.mxu0 0.0
        %4899 = vmatprep.subr.mxu0 0.0
        %4900 = vmatpush1.msra.mxu0 0.0
        %4901 = vmatprep.subr.mxu0 0.0
        %4902 = vmatpush1.msra.mxu0 0.0
        %4903 = vmatprep.subr.mxu0 0.0
        %4904 = vmatpush1.msra.mxu0 0.0
        %4905 = vmatprep.subr.mxu0 0.0
        %4906 = vmatpush1.msra.mxu0 0.0
        %4907 = vmatprep.subr.mxu0 0.0
        %4908 = vmatpush1.msra.mxu0 0.0
        %4909 = vmatprep.subr.mxu0 0.0
        %4910 = vmatpush1.msra.mxu0 0.0
        %4911 = vmatprep.subr.mxu0 0.0
        %4912 = vmatpush1.msra.mxu0 0.0
        %4913 = vmatprep.subr.mxu0 0.0
        %4914 = vmatpush1.msra.mxu0 0.0
        %4915 = vmatprep.subr.mxu0 0.0
        %4916 = vmatpush1.msra.mxu0 0.0
        %4917 = vmatprep.subr.mxu0 0.0
        %4918 = vmatpush1.msra.mxu0 0.0
        %4919 = vmatprep.subr.mxu0 0.0
        %4920 = vmatpush1.msra.mxu0 0.0
        %4921 = vmatprep.subr.mxu0 0.0
        %4922 = vmatpush1.msra.mxu0 0.0
        %4923 = vmatprep.subr.mxu0 0.0
        %4924 = vmatpush1.msra.mxu0 0.0
        %4925 = vmatprep.subr.mxu0 0.0
        %4926 = vmatpush1.msra.mxu0 0.0
        %4927 = vmatprep.subr.mxu0 0.0
        %4928 = vmatpush1.msra.mxu0 0.0
        %4929 = vmatprep.subr.mxu0 0.0
        %4930 = vmatpush1.msra.mxu0 0.0
        %4931 = vmatprep.subr.mxu0 0.0
        %4932 = vmatpush1.msra.mxu0 0.0
        %4933 = vmatprep.subr.mxu0 0.0
        %4934 = vmatpush1.msra.mxu0 0.0
        %4935 = vmatprep.subr.mxu0 0.0
        %4936 = vmatpush1.msra.mxu0 0.0
        %4937 = vmatprep.subr.mxu0 0.0
        %4938 = vmatpush1.msra.mxu0 0.0
        %4939 = vmatprep.subr.mxu0 0.0
        %4940 = vmatpush1.msra.mxu0 0.0
        %4941 = vmatprep.subr.mxu0 0.0
        %4942 = vmatpush1.msra.mxu0 0.0
        %4943 = vmatprep.subr.mxu0 0.0
        %4944 = vmatpush1.msra.mxu0 0.0
        %4945 = vmatprep.subr.mxu0 0.0
        %4946 = vmatpush1.msra.mxu0 0.0
        %4947 = vmatprep.subr.mxu0 0.0
        %4948 = vmatpush1.msra.mxu0 0.0
        %4949 = vmatprep.mubr.f32.mxu0 0.0
        %4950 = vmatmul.mubr.f32.gmra.mrb[0].mxu0 %v4874
        %v4951 = vpop.f32.mrb[0].mxu0
        %v4952 = vadd.f32 0.0, %v4951
        %v4953 = vpop.f32.mrb[0].mxu0
        %v4954 = vadd.f32 0.0, %v4953
        %4955 = vmatprep.mubr.f32.mxu0 0.0
        %4956 = vmatmul.mubr.f32.gmra.mrb[0].mxu0 %v4877
        %v4957 = vpop.f32.mrb[0].mxu0
        %v4958 = vadd.f32 0.0, %v4957
        %v4959 = vpop.f32.mrb[0].mxu0
        %v4960 = vadd.f32 0.0, %v4959
        %4961 = vmatprep.mubr.f32.mxu0 0.0
        %4962 = vmatmul.mubr.f32.gmra.mrb[0].mxu0 %v4880
        %v4963 = vpop.f32.mrb[0].mxu0
        %v4964 = vadd.f32 0.0, %v4963
        %v4965 = vpop.f32.mrb[0].mxu0
        %v4966 = vadd.f32 0.0, %v4965
        %4967 = vmatprep.mubr.f32.mxu0 0.0
        %4968 = vmatmul.mubr.f32.gmra.mrb[0].mxu0 %v4883
        %v4969 = vpop.f32.mrb[0].mxu0
        %v4970 = vadd.f32 0.0, %v4969
        %v4971 = vpop.f32.mrb[0].mxu0
        %v4972 = vadd.f32 0.0, %v4971
        %4973 = vdwg.mxu0
        %v4974 = vadd.f32 %v4828, %v4952
        %v4975 = vadd.f32 %v4829, %v4954
        %v4976 = vadd.f32 %v4830, %v4958
        %v4977 = vadd.f32 %v4831, %v4960
        %v4978 = vadd.f32 %v4832, %v4964
        %v4979 = vadd.f32 %v4833, %v4966
        %v4980 = vadd.f32 %v4834, %v4970
        %v4981 = vadd.f32 %v4835, %v4972
        %v4982 = vld [vmem:[%s17] sm:$0xff]
        %v4983 = vld [vmem:[%s17 + $0x8] sm:$0xff]
        %v4984 = vld [vmem:[%s17 + $0x10] sm:$0xff]
        %v4985 = vld [vmem:[%s17 + $0x18] sm:$0xff]
        %4987 = vset.pattern.permute.xlu0 0
        %4988 = vperm.xlu0 %4987, %v4982
        %v4989 = vpop.permute.xlu0 %4988
        %4992 = vset.pattern.permute.xlu0 0
        %4993 = vperm.xlu0 %4992, %v4983
        %v4994 = vpop.permute.xlu0 %4993
        %4997 = vset.pattern.permute.xlu0 0
        %4998 = vperm.xlu0 %4997, %v4984
        %v4999 = vpop.permute.xlu0 %4998
        %5002 = vset.pattern.permute.xlu0 0
        %5003 = vperm.xlu0 %5002, %v4985
        %v5004 = vpop.permute.xlu0 %5003
        %v5006 = vadd.f32 %v4974, %v4989
        %v5007 = vadd.f32 %v4975, %v4989
        %v5008 = vadd.f32 %v4976, %v4994
        %v5009 = vadd.f32 %v4977, %v4994
        %v5010 = vadd.f32 %v4978, %v4999
        %v5011 = vadd.f32 %v4979, %v4999
        %v5012 = vadd.f32 %v4980, %v5004
        %v5013 = vadd.f32 %v4981, %v5004
        %5015 = vset.pattern.permute.xlu0 0
        %5016 = vperm.xlu0 %5015, %v1811
        %v5017 = vpop.permute.xlu0 %5016
        %5020 = vset.pattern.permute.xlu0 0
        %5021 = vperm.xlu0 %5020, %v1816
        %v5022 = vpop.permute.xlu0 %5021
        %5025 = vset.pattern.permute.xlu0 0
        %5026 = vperm.xlu0 %5025, %v1821
        %v5027 = vpop.permute.xlu0 %5026
        %5030 = vset.pattern.permute.xlu0 0
        %5031 = vperm.xlu0 %5030, %v1826
        %v5032 = vpop.permute.xlu0 %5031
        %v5034 = vadd.f32 %v5006, %v5017
        %v5035 = vadd.f32 %v5007, %v5017
        %v5036 = vadd.f32 %v5008, %v5022
        %v5037 = vadd.f32 %v5009, %v5022
        %v5038 = vadd.f32 %v5010, %v5027
        %v5039 = vadd.f32 %v5011, %v5027
        %v5040 = vadd.f32 %v5012, %v5032
        %v5041 = vadd.f32 %v5013, %v5032
        %5042 = vmatprep.subr.mxu0 %v5035
        %5043 = vmatpush1.msra.mxu0 %v5034
        %5044 = vmatprep.subr.mxu0 %v5037
        %5045 = vmatpush1.msra.mxu0 %v5036
        %5046 = vmatprep.subr.mxu0 %v5039
        %5047 = vmatpush1.msra.mxu0 %v5038
        %5048 = vmatprep.subr.mxu0 %v5041
        %5049 = vmatpush1.msra.mxu0 %v5040
        %5050 = vmatprep.subr.mxu0 0.0
        %5051 = vmatpush1.msra.mxu0 0.0
        %5052 = vmatprep.subr.mxu0 0.0
        %5053 = vmatpush1.msra.mxu0 0.0
        %5054 = vmatprep.subr.mxu0 0.0
        %5055 = vmatpush1.msra.mxu0 0.0
        %5056 = vmatprep.subr.mxu0 0.0
        %5057 = vmatpush1.msra.mxu0 0.0
        %5058 = vmatprep.subr.mxu0 0.0
        %5059 = vmatpush1.msra.mxu0 0.0
        %5060 = vmatprep.subr.mxu0 0.0
        %5061 = vmatpush1.msra.mxu0 0.0
        %5062 = vmatprep.subr.mxu0 0.0
        %5063 = vmatpush1.msra.mxu0 0.0
        %5064 = vmatprep.subr.mxu0 0.0
        %5065 = vmatpush1.msra.mxu0 0.0
        %5066 = vmatprep.subr.mxu0 0.0
        %5067 = vmatpush1.msra.mxu0 0.0
        %5068 = vmatprep.subr.mxu0 0.0
        %5069 = vmatpush1.msra.mxu0 0.0
        %5070 = vmatprep.subr.mxu0 0.0
        %5071 = vmatpush1.msra.mxu0 0.0
        %5072 = vmatprep.subr.mxu0 0.0
        %5073 = vmatpush1.msra.mxu0 0.0
        %5074 = vmatprep.subr.mxu0 0.0
        %5075 = vmatpush1.msra.mxu0 0.0
        %5076 = vmatprep.subr.mxu0 0.0
        %5077 = vmatpush1.msra.mxu0 0.0
        %5078 = vmatprep.subr.mxu0 0.0
        %5079 = vmatpush1.msra.mxu0 0.0
        %5080 = vmatprep.subr.mxu0 0.0
        %5081 = vmatpush1.msra.mxu0 0.0
        %5082 = vmatprep.subr.mxu0 0.0
        %5083 = vmatpush1.msra.mxu0 0.0
        %5084 = vmatprep.subr.mxu0 0.0
        %5085 = vmatpush1.msra.mxu0 0.0
        %5086 = vmatprep.subr.mxu0 0.0
        %5087 = vmatpush1.msra.mxu0 0.0
        %5088 = vmatprep.subr.mxu0 0.0
        %5089 = vmatpush1.msra.mxu0 0.0
        %5090 = vmatprep.subr.mxu0 0.0
        %5091 = vmatpush1.msra.mxu0 0.0
        %5092 = vmatprep.subr.mxu0 0.0
        %5093 = vmatpush1.msra.mxu0 0.0
        %5094 = vmatprep.subr.mxu0 0.0
        %5095 = vmatpush1.msra.mxu0 0.0
        %5096 = vmatprep.subr.mxu0 0.0
        %5097 = vmatpush1.msra.mxu0 0.0
        %5098 = vmatprep.subr.mxu0 0.0
        %5099 = vmatpush1.msra.mxu0 0.0
        %5100 = vmatprep.subr.mxu0 0.0
        %5101 = vmatpush1.msra.mxu0 0.0
        %5102 = vmatprep.subr.mxu0 0.0
        %5103 = vmatpush1.msra.mxu0 0.0
        %5104 = vmatprep.subr.mxu0 0.0
        %5105 = vmatpush1.msra.mxu0 0.0
        %5106 = vmatprep.mubr.f32.mxu0 0.0
        %5107 = vmatmul.mubr.f32.gmra.mrb[0].mxu0 %v3344
        %v5108 = vpop.f32.mrb[0].mxu0
        %v5109 = vadd.f32 0.0, %v5108
        %v5110 = vpop.f32.mrb[0].mxu0
        %v5111 = vadd.f32 0.0, %v5110
        %5112 = vmatprep.mubr.f32.mxu0 0.0
        %5113 = vmatmul.mubr.f32.gmra.mrb[0].mxu0 %v3347
        %v5114 = vpop.f32.mrb[0].mxu0
        %v5115 = vadd.f32 0.0, %v5114
        %v5116 = vpop.f32.mrb[0].mxu0
        %v5117 = vadd.f32 0.0, %v5116
        %5118 = vmatprep.mubr.f32.mxu0 0.0
        %5119 = vmatmul.mubr.f32.gmra.mrb[0].mxu0 %v3350
        %v5120 = vpop.f32.mrb[0].mxu0
        %v5121 = vadd.f32 0.0, %v5120
        %v5122 = vpop.f32.mrb[0].mxu0
        %v5123 = vadd.f32 0.0, %v5122
        %5124 = vmatprep.mubr.f32.mxu0 0.0
        %5125 = vmatmul.mubr.f32.gmra.mrb[0].mxu0 %v3353
        %v5126 = vpop.f32.mrb[0].mxu0
        %v5127 = vadd.f32 0.0, %v5126
        %v5128 = vpop.f32.mrb[0].mxu0
        %v5129 = vadd.f32 0.0, %v5128
        %5130 = vdwg.mxu0
        %v5131 = vadd.f32 %v5109, %v5111
        %5132 = vadd.xlane.f32.xlu0 %v5131
        %v5133 = vpop.xlane.xlu0 %5132
        %v5134 = vadd.f32 %v5115, %v5117
        %5135 = vadd.xlane.f32.xlu0 %v5134
        %v5136 = vpop.xlane.xlu0 %5135
        %v5137 = vadd.f32 %v5121, %v5123
        %5138 = vadd.xlane.f32.xlu0 %v5137
        %v5139 = vpop.xlane.xlu0 %5138
        %v5140 = vadd.f32 %v5127, %v5129
        %5141 = vadd.xlane.f32.xlu0 %v5140
        %v5142 = vpop.xlane.xlu0 %5141
        %v5143 = vmul.f32 %v5133, 0.0009765625
        %v5144 = vmul.f32 %v5136, 0.0009765625
        %v5145 = vmul.f32 %v5139, 0.0009765625
        %v5146 = vmul.f32 %v5142, 0.0009765625
        %v5147 = vsub.f32 %v5034, %v5143
        %v5148 = vsub.f32 %v5035, %v5143
        %v5149 = vsub.f32 %v5036, %v5144
        %v5150 = vsub.f32 %v5037, %v5144
        %v5151 = vsub.f32 %v5038, %v5145
        %v5152 = vsub.f32 %v5039, %v5145
        %v5153 = vsub.f32 %v5040, %v5146
        %v5154 = vsub.f32 %v5041, %v5146
        %v5155 = vmul.f32 %v5147, %v5147
        %v5156 = vmul.f32 %v5148, %v5148
        %v5157 = vmul.f32 %v5149, %v5149
        %v5158 = vmul.f32 %v5150, %v5150
        %v5159 = vmul.f32 %v5151, %v5151
        %v5160 = vmul.f32 %v5152, %v5152
        %v5161 = vmul.f32 %v5153, %v5153
        %v5162 = vmul.f32 %v5154, %v5154
        %5163 = vmatprep.subr.mxu0 %v5156
        %5164 = vmatpush1.msra.mxu0 %v5155
        %5165 = vmatprep.subr.mxu0 %v5158
        %5166 = vmatpush1.msra.mxu0 %v5157
        %5167 = vmatprep.subr.mxu0 %v5160
        %5168 = vmatpush1.msra.mxu0 %v5159
        %5169 = vmatprep.subr.mxu0 %v5162
        %5170 = vmatpush1.msra.mxu0 %v5161
        %5171 = vmatprep.subr.mxu0 0.0
        %5172 = vmatpush1.msra.mxu0 0.0
        %5173 = vmatprep.subr.mxu0 0.0
        %5174 = vmatpush1.msra.mxu0 0.0
        %5175 = vmatprep.subr.mxu0 0.0
        %5176 = vmatpush1.msra.mxu0 0.0
        %5177 = vmatprep.subr.mxu0 0.0
        %5178 = vmatpush1.msra.mxu0 0.0
        %5179 = vmatprep.subr.mxu0 0.0
        %5180 = vmatpush1.msra.mxu0 0.0
        %5181 = vmatprep.subr.mxu0 0.0
        %5182 = vmatpush1.msra.mxu0 0.0
        %5183 = vmatprep.subr.mxu0 0.0
        %5184 = vmatpush1.msra.mxu0 0.0
        %5185 = vmatprep.subr.mxu0 0.0
        %5186 = vmatpush1.msra.mxu0 0.0
        %5187 = vmatprep.subr.mxu0 0.0
        %5188 = vmatpush1.msra.mxu0 0.0
        %5189 = vmatprep.subr.mxu0 0.0
        %5190 = vmatpush1.msra.mxu0 0.0
        %5191 = vmatprep.subr.mxu0 0.0
        %5192 = vmatpush1.msra.mxu0 0.0
        %5193 = vmatprep.subr.mxu0 0.0
        %5194 = vmatpush1.msra.mxu0 0.0
        %5195 = vmatprep.subr.mxu0 0.0
        %5196 = vmatpush1.msra.mxu0 0.0
        %5197 = vmatprep.subr.mxu0 0.0
        %5198 = vmatpush1.msra.mxu0 0.0
        %5199 = vmatprep.subr.mxu0 0.0
        %5200 = vmatpush1.msra.mxu0 0.0
        %5201 = vmatprep.subr.mxu0 0.0
        %5202 = vmatpush1.msra.mxu0 0.0
        %5203 = vmatprep.subr.mxu0 0.0
        %5204 = vmatpush1.msra.mxu0 0.0
        %5205 = vmatprep.subr.mxu0 0.0
        %5206 = vmatpush1.msra.mxu0 0.0
        %5207 = vmatprep.subr.mxu0 0.0
        %5208 = vmatpush1.msra.mxu0 0.0
        %5209 = vmatprep.subr.mxu0 0.0
        %5210 = vmatpush1.msra.mxu0 0.0
        %5211 = vmatprep.subr.mxu0 0.0
        %5212 = vmatpush1.msra.mxu0 0.0
        %5213 = vmatprep.subr.mxu0 0.0
        %5214 = vmatpush1.msra.mxu0 0.0
        %5215 = vmatprep.subr.mxu0 0.0
        %5216 = vmatpush1.msra.mxu0 0.0
        %5217 = vmatprep.subr.mxu0 0.0
        %5218 = vmatpush1.msra.mxu0 0.0
        %5219 = vmatprep.subr.mxu0 0.0
        %5220 = vmatpush1.msra.mxu0 0.0
        %5221 = vmatprep.subr.mxu0 0.0
        %5222 = vmatpush1.msra.mxu0 0.0
        %5223 = vmatprep.subr.mxu0 0.0
        %5224 = vmatpush1.msra.mxu0 0.0
        %5225 = vmatprep.subr.mxu0 0.0
        %5226 = vmatpush1.msra.mxu0 0.0
        %5227 = vmatprep.mubr.f32.mxu0 0.0
        %5228 = vmatmul.mubr.f32.gmra.mrb[0].mxu0 %v3344
        %v5229 = vpop.f32.mrb[0].mxu0
        %v5230 = vadd.f32 0.0, %v5229
        %v5231 = vpop.f32.mrb[0].mxu0
        %v5232 = vadd.f32 0.0, %v5231
        %5233 = vmatprep.mubr.f32.mxu0 0.0
        %5234 = vmatmul.mubr.f32.gmra.mrb[0].mxu0 %v3347
        %v5235 = vpop.f32.mrb[0].mxu0
        %v5236 = vadd.f32 0.0, %v5235
        %v5237 = vpop.f32.mrb[0].mxu0
        %v5238 = vadd.f32 0.0, %v5237
        %5239 = vmatprep.mubr.f32.mxu0 0.0
        %5240 = vmatmul.mubr.f32.gmra.mrb[0].mxu0 %v3350
        %v5241 = vpop.f32.mrb[0].mxu0
        %v5242 = vadd.f32 0.0, %v5241
        %v5243 = vpop.f32.mrb[0].mxu0
        %v5244 = vadd.f32 0.0, %v5243
        %5245 = vmatprep.mubr.f32.mxu0 0.0
        %5246 = vmatmul.mubr.f32.gmra.mrb[0].mxu0 %v3353
        %v5247 = vpop.f32.mrb[0].mxu0
        %v5248 = vadd.f32 0.0, %v5247
        %v5249 = vpop.f32.mrb[0].mxu0
        %v5250 = vadd.f32 0.0, %v5249
        %5251 = vdwg.mxu0
        %v5252 = vadd.f32 %v5230, %v5232
        %5253 = vadd.xlane.f32.xlu0 %v5252
        %v5254 = vpop.xlane.xlu0 %5253
        %v5255 = vadd.f32 %v5236, %v5238
        %5256 = vadd.xlane.f32.xlu0 %v5255
        %v5257 = vpop.xlane.xlu0 %5256
        %v5258 = vadd.f32 %v5242, %v5244
        %5259 = vadd.xlane.f32.xlu0 %v5258
        %v5260 = vpop.xlane.xlu0 %5259
        %v5261 = vadd.f32 %v5248, %v5250
        %5262 = vadd.xlane.f32.xlu0 %v5261
        %v5263 = vpop.xlane.xlu0 %5262
        %v5264 = vmul.f32 %v5254, 0.0009765625
        %v5265 = vmul.f32 %v5257, 0.0009765625
        %v5266 = vmul.f32 %v5260, 0.0009765625
        %v5267 = vmul.f32 %v5263, 0.0009765625
        %v5268 = vadd.f32 %v5264, 1e-05
        %v5269 = vadd.f32 %v5265, 1e-05
        %v5270 = vadd.f32 %v5266, 1e-05
        %v5271 = vadd.f32 %v5267, 1e-05
        %v5272 = vrsqrt.pop %v5268
        %v5273 = vrsqrt.pop %v5269
        %v5274 = vrsqrt.pop %v5270
        %v5275 = vrsqrt.pop %v5271
        %v5276 = vmul.f32 %v5147, %v5272
        %v5277 = vmul.f32 %v5148, %v5272
        %v5278 = vmul.f32 %v5149, %v5273
        %v5279 = vmul.f32 %v5150, %v5273
        %v5280 = vmul.f32 %v5151, %v5274
        %v5281 = vmul.f32 %v5152, %v5274
        %v5282 = vmul.f32 %v5153, %v5275
        %v5283 = vmul.f32 %v5154, %v5275
        %v5284 = vld [vmem:[%s18] sm:$0xff]
        %v5285 = vld [vmem:[%s18 + $0x8] sm:$0xff]
        %v5286 = vld [vmem:[%s18 + $0x10] sm:$0xff]
        %v5287 = vld [vmem:[%s18 + $0x18] sm:$0xff]
        %5289 = vset.pattern.permute.xlu0 0
        %5290 = vperm.xlu0 %5289, %v5284
        %v5291 = vpop.permute.xlu0 %5290
        %5294 = vset.pattern.permute.xlu0 0
        %5295 = vperm.xlu0 %5294, %v5285
        %v5296 = vpop.permute.xlu0 %5295
        %5299 = vset.pattern.permute.xlu0 0
        %5300 = vperm.xlu0 %5299, %v5286
        %v5301 = vpop.permute.xlu0 %5300
        %5304 = vset.pattern.permute.xlu0 0
        %5305 = vperm.xlu0 %5304, %v5287
        %v5306 = vpop.permute.xlu0 %5305
        %v5308 = vmul.f32 %v5276, %v5291
        %v5309 = vmul.f32 %v5277, %v5291
        %v5310 = vmul.f32 %v5278, %v5296
        %v5311 = vmul.f32 %v5279, %v5296
        %v5312 = vmul.f32 %v5280, %v5301
        %v5313 = vmul.f32 %v5281, %v5301
        %v5314 = vmul.f32 %v5282, %v5306
        %v5315 = vmul.f32 %v5283, %v5306
        %v5316 = vld [vmem:[%s19] sm:$0xff]
        %v5317 = vld [vmem:[%s19 + $0x8] sm:$0xff]
        %v5318 = vld [vmem:[%s19 + $0x10] sm:$0xff]
        %v5319 = vld [vmem:[%s19 + $0x18] sm:$0xff]
        %5321 = vset.pattern.permute.xlu0 0
        %5322 = vperm.xlu0 %5321, %v5316
        %v5323 = vpop.permute.xlu0 %5322
        %5326 = vset.pattern.permute.xlu0 0
        %5327 = vperm.xlu0 %5326, %v5317
        %v5328 = vpop.permute.xlu0 %5327
        %5331 = vset.pattern.permute.xlu0 0
        %5332 = vperm.xlu0 %5331, %v5318
        %v5333 = vpop.permute.xlu0 %5332
        %5336 = vset.pattern.permute.xlu0 0
        %5337 = vperm.xlu0 %5336, %v5319
        %v5338 = vpop.permute.xlu0 %5337
        %v5340 = vadd.f32 %v5308, %v5323
        %v5341 = vadd.f32 %v5309, %v5323
        %v5342 = vadd.f32 %v5310, %v5328
        %v5343 = vadd.f32 %v5311, %v5328
        %v5344 = vadd.f32 %v5312, %v5333
        %v5345 = vadd.f32 %v5313, %v5333
        %v5346 = vadd.f32 %v5314, %v5338
        %v5347 = vadd.f32 %v5315, %v5338
        %v5348 = vxor.u32 %v5340, 2147483648
        %v5349 = vxor.u32 %v5341, 2147483648
        %v5350 = vxor.u32 %v5342, 2147483648
        %v5351 = vxor.u32 %v5343, 2147483648
        %v5352 = vxor.u32 %v5344, 2147483648
        %v5353 = vxor.u32 %v5345, 2147483648
        %v5354 = vxor.u32 %v5346, 2147483648
        %v5355 = vxor.u32 %v5347, 2147483648
        %v5356 = vmul.f32 %v5348, 1.442695
        %v5357 = vpow.pop %v5356
        %v5358 = vmul.f32 %v5349, 1.442695
        %v5359 = vpow.pop %v5358
        %v5360 = vmul.f32 %v5350, 1.442695
        %v5361 = vpow.pop %v5360
        %v5362 = vmul.f32 %v5351, 1.442695
        %v5363 = vpow.pop %v5362
        %v5364 = vmul.f32 %v5352, 1.442695
        %v5365 = vpow.pop %v5364
        %v5366 = vmul.f32 %v5353, 1.442695
        %v5367 = vpow.pop %v5366
        %v5368 = vmul.f32 %v5354, 1.442695
        %v5369 = vpow.pop %v5368
        %v5370 = vmul.f32 %v5355, 1.442695
        %v5371 = vpow.pop %v5370
        %v5372 = vadd.f32 %v5357, 1.0
        %v5373 = vadd.f32 %v5359, 1.0
        %v5374 = vadd.f32 %v5361, 1.0
        %v5375 = vadd.f32 %v5363, 1.0
        %v5376 = vadd.f32 %v5365, 1.0
        %v5377 = vadd.f32 %v5367, 1.0
        %v5378 = vadd.f32 %v5369, 1.0
        %v5379 = vadd.f32 %v5371, 1.0
        %v5380 = vrcp.pop %v5372
        %v5381 = vmul.f32 1.0, %v5380
        %v5382 = vrcp.pop %v5373
        %v5383 = vmul.f32 1.0, %v5382
        %v5384 = vrcp.pop %v5374
        %v5385 = vmul.f32 1.0, %v5384
        %v5386 = vrcp.pop %v5375
        %v5387 = vmul.f32 1.0, %v5386
        %v5388 = vrcp.pop %v5376
        %v5389 = vmul.f32 1.0, %v5388
        %v5390 = vrcp.pop %v5377
        %v5391 = vmul.f32 1.0, %v5390
        %v5392 = vrcp.pop %v5378
        %v5393 = vmul.f32 1.0, %v5392
        %v5394 = vrcp.pop %v5379
        %v5395 = vmul.f32 1.0, %v5394
        %v5396 = vmul.f32 %v5340, %v5381
        %v5397 = vmul.f32 %v5341, %v5383
        %v5398 = vmul.f32 %v5342, %v5385
        %v5399 = vmul.f32 %v5343, %v5387
        %v5400 = vmul.f32 %v5344, %v5389
        %v5401 = vmul.f32 %v5345, %v5391
        %v5402 = vmul.f32 %v5346, %v5393
        %v5403 = vmul.f32 %v5347, %v5395
        %5404 = vrot.lane.b32.xlu0 %v5396, 17
        %v5405 = vpop.permute.xlu0 %5404
        %5406 = vrot.lane.b32.xlu0 %v5398, 17
        %v5407 = vpop.permute.xlu0 %5406
        %5408 = vrot.lane.b32.xlu0 %v5400, 17
        %v5409 = vpop.permute.xlu0 %5408
        %5410 = vrot.lane.b32.xlu0 %v5402, 17
        %v5411 = vpop.permute.xlu0 %5410
        %5412 = vrot.lane.b32.xlu0 %v5397, 17
        %v5413 = vpop.permute.xlu0 %5412
        %5414 = vrot.lane.b32.xlu0 %v5399, 17
        %v5415 = vpop.permute.xlu0 %5414
        %5416 = vrot.lane.b32.xlu0 %v5401, 17
        %v5417 = vpop.permute.xlu0 %5416
        %5418 = vrot.lane.b32.xlu0 %v5403, 17
        %v5419 = vpop.permute.xlu0 %5418
        %v5420 = vsel %vm1851, %v5405, %v5413
        %v5421 = vsel %vm1851, %v5407, %v5415
        %v5422 = vsel %vm1851, %v5409, %v5417
        %v5423 = vsel %vm1851, %v5411, %v5419
        %v5424 = vsel %vm1851, %v5413, %v5405
        %v5425 = vsel %vm1851, %v5415, %v5407
        %v5426 = vsel %vm1851, %v5417, %v5409
        %v5427 = vsel %vm1851, %v5419, %v5411
        %v5428 = vmul.f32 %v5424, %v1866
        %v5429 = vmul.f32 %v5420, %v1870
        %v5430 = vmul.f32 %v5425, %v1866
        %v5431 = vmul.f32 %v5421, %v1870
        %v5432 = vmul.f32 %v5426, %v1866
        %v5433 = vmul.f32 %v5422, %v1870
        %v5434 = vmul.f32 %v5427, %v1866
        %v5435 = vmul.f32 %v5423, %v1870
        %v5436 = vld [vmem:[%s20] sm:$0xff]
        %v5437 = vld [vmem:[%s20 + $0x8] sm:$0xff]
        %v5438 = vld [vmem:[%s20 + $0x10] sm:$0xff]
        %v5439 = vld [vmem:[%s20 + $0x18] sm:$0xff]
        %5440 = vrot.lane.b32.xlu0 %v5396, 16
        %v5441 = vpop.permute.xlu0 %5440
        %5442 = vrot.lane.b32.xlu0 %v5398, 16
        %v5443 = vpop.permute.xlu0 %5442
        %5444 = vrot.lane.b32.xlu0 %v5400, 16
        %v5445 = vpop.permute.xlu0 %5444
        %5446 = vrot.lane.b32.xlu0 %v5402, 16
        %v5447 = vpop.permute.xlu0 %5446
        %5448 = vrot.lane.b32.xlu0 %v5397, 16
        %v5449 = vpop.permute.xlu0 %5448
        %5450 = vrot.lane.b32.xlu0 %v5399, 16
        %v5451 = vpop.permute.xlu0 %5450
        %5452 = vrot.lane.b32.xlu0 %v5401, 16
        %v5453 = vpop.permute.xlu0 %5452
        %5454 = vrot.lane.b32.xlu0 %v5403, 16
        %v5455 = vpop.permute.xlu0 %5454
        %v5456 = vsel %vm1907, %v5441, %v5449
        %v5457 = vsel %vm1907, %v5443, %v5451
        %v5458 = vsel %vm1907, %v5445, %v5453
        %v5459 = vsel %vm1907, %v5447, %v5455
        %v5460 = vsel %vm1907, %v5449, %v5441
        %v5461 = vsel %vm1907, %v5451, %v5443
        %v5462 = vsel %vm1907, %v5453, %v5445
        %v5463 = vsel %vm1907, %v5455, %v5447
        %v5464 = vmul.f32 %v5460, %v1922
        %v5465 = vmul.f32 %v5456, %v1926
        %v5466 = vmul.f32 %v5461, %v1922
        %v5467 = vmul.f32 %v5457, %v1926
        %v5468 = vmul.f32 %v5462, %v1922
        %v5469 = vmul.f32 %v5458, %v1926
        %v5470 = vmul.f32 %v5463, %v1922
        %v5471 = vmul.f32 %v5459, %v1926
        %s5472 = scalar_lea.vmem %s20, 32
        %v5473 = vld [vmem:[%s5472] sm:$0xff]
        %v5474 = vld [vmem:[%s5472 + $0x8] sm:$0xff]
        %v5475 = vld [vmem:[%s5472 + $0x10] sm:$0xff]
        %v5476 = vld [vmem:[%s5472 + $0x18] sm:$0xff]
        %v5478 = vsel %vm1041, %v5473, 0
        %v5481 = vsel %vm1041, %v5474, 0
        %v5484 = vsel %vm1041, %v5475, 0
        %v5487 = vsel %vm1041, %v5476, 0
        %5489 = vmatprep.subr.mxu0 %v5465
        %5490 = vmatpush1.msra.mxu0 %v5464
        %5491 = vmatprep.subr.mxu0 %v5467
        %5492 = vmatpush1.msra.mxu0 %v5466
        %5493 = vmatprep.subr.mxu0 %v5469
        %5494 = vmatpush1.msra.mxu0 %v5468
        %5495 = vmatprep.subr.mxu0 %v5471
        %5496 = vmatpush1.msra.mxu0 %v5470
        %5497 = vmatprep.subr.mxu0 0.0
        %5498 = vmatpush1.msra.mxu0 0.0
        %5499 = vmatprep.subr.mxu0 0.0
        %5500 = vmatpush1.msra.mxu0 0.0
        %5501 = vmatprep.subr.mxu0 0.0
        %5502 = vmatpush1.msra.mxu0 0.0
        %5503 = vmatprep.subr.mxu0 0.0
        %5504 = vmatpush1.msra.mxu0 0.0
        %5505 = vmatprep.subr.mxu0 0.0
        %5506 = vmatpush1.msra.mxu0 0.0
        %5507 = vmatprep.subr.mxu0 0.0
        %5508 = vmatpush1.msra.mxu0 0.0
        %5509 = vmatprep.subr.mxu0 0.0
        %5510 = vmatpush1.msra.mxu0 0.0
        %5511 = vmatprep.subr.mxu0 0.0
        %5512 = vmatpush1.msra.mxu0 0.0
        %5513 = vmatprep.subr.mxu0 0.0
        %5514 = vmatpush1.msra.mxu0 0.0
        %5515 = vmatprep.subr.mxu0 0.0
        %5516 = vmatpush1.msra.mxu0 0.0
        %5517 = vmatprep.subr.mxu0 0.0
        %5518 = vmatpush1.msra.mxu0 0.0
        %5519 = vmatprep.subr.mxu0 0.0
        %5520 = vmatpush1.msra.mxu0 0.0
        %5521 = vmatprep.subr.mxu0 0.0
        %5522 = vmatpush1.msra.mxu0 0.0
        %5523 = vmatprep.subr.mxu0 0.0
        %5524 = vmatpush1.msra.mxu0 0.0
        %5525 = vmatprep.subr.mxu0 0.0
        %5526 = vmatpush1.msra.mxu0 0.0
        %5527 = vmatprep.subr.mxu0 0.0
        %5528 = vmatpush1.msra.mxu0 0.0
        %5529 = vmatprep.subr.mxu0 0.0
        %5530 = vmatpush1.msra.mxu0 0.0
        %5531 = vmatprep.subr.mxu0 0.0
        %5532 = vmatpush1.msra.mxu0 0.0
        %5533 = vmatprep.subr.mxu0 0.0
        %5534 = vmatpush1.msra.mxu0 0.0
        %5535 = vmatprep.subr.mxu0 0.0
        %5536 = vmatpush1.msra.mxu0 0.0
        %5537 = vmatprep.subr.mxu0 0.0
        %5538 = vmatpush1.msra.mxu0 0.0
        %5539 = vmatprep.subr.mxu0 0.0
        %5540 = vmatpush1.msra.mxu0 0.0
        %5541 = vmatprep.subr.mxu0 0.0
        %5542 = vmatpush1.msra.mxu0 0.0
        %5543 = vmatprep.subr.mxu0 0.0
        %5544 = vmatpush1.msra.mxu0 0.0
        %5545 = vmatprep.subr.mxu0 0.0
        %5546 = vmatpush1.msra.mxu0 0.0
        %5547 = vmatprep.subr.mxu0 0.0
        %5548 = vmatpush1.msra.mxu0 0.0
        %5549 = vmatprep.subr.mxu0 0.0
        %5550 = vmatpush1.msra.mxu0 0.0
        %5551 = vmatprep.subr.mxu0 0.0
        %5552 = vmatpush1.msra.mxu0 0.0
        %5553 = vmatprep.mubr.f32.mxu0 0.0
        %5554 = vmatmul.mubr.f32.gmra.mrb[0].mxu0 %v5478
        %v5555 = vpop.f32.mrb[0].mxu0
        %v5556 = vadd.f32 0.0, %v5555
        %v5557 = vpop.f32.mrb[0].mxu0
        %v5558 = vadd.f32 0.0, %v5557
        %5559 = vmatprep.mubr.f32.mxu0 0.0
        %5560 = vmatmul.mubr.f32.gmra.mrb[0].mxu0 %v5481
        %v5561 = vpop.f32.mrb[0].mxu0
        %v5562 = vadd.f32 0.0, %v5561
        %v5563 = vpop.f32.mrb[0].mxu0
        %v5564 = vadd.f32 0.0, %v5563
        %5565 = vmatprep.mubr.f32.mxu0 0.0
        %5566 = vmatmul.mubr.f32.gmra.mrb[0].mxu0 %v5484
        %v5567 = vpop.f32.mrb[0].mxu0
        %v5568 = vadd.f32 0.0, %v5567
        %v5569 = vpop.f32.mrb[0].mxu0
        %v5570 = vadd.f32 0.0, %v5569
        %5571 = vmatprep.mubr.f32.mxu0 0.0
        %5572 = vmatmul.mubr.f32.gmra.mrb[0].mxu0 %v5487
        %v5573 = vpop.f32.mrb[0].mxu0
        %v5574 = vadd.f32 0.0, %v5573
        %v5575 = vpop.f32.mrb[0].mxu0
        %v5576 = vadd.f32 0.0, %v5575
        %5577 = vdwg.mxu0
        %v5579 = vsel %vm1041, %v5436, 0
        %v5582 = vsel %vm1041, %v5437, 0
        %v5585 = vsel %vm1041, %v5438, 0
        %v5588 = vsel %vm1041, %v5439, 0
        %5590 = vmatprep.subr.mxu0 %v5429
        %5591 = vmatpush1.msra.mxu0 %v5428
        %5592 = vmatprep.subr.mxu0 %v5431
        %5593 = vmatpush1.msra.mxu0 %v5430
        %5594 = vmatprep.subr.mxu0 %v5433
        %5595 = vmatpush1.msra.mxu0 %v5432
        %5596 = vmatprep.subr.mxu0 %v5435
        %5597 = vmatpush1.msra.mxu0 %v5434
        %5598 = vmatprep.subr.mxu0 0.0
        %5599 = vmatpush1.msra.mxu0 0.0
        %5600 = vmatprep.subr.mxu0 0.0
        %5601 = vmatpush1.msra.mxu0 0.0
        %5602 = vmatprep.subr.mxu0 0.0
        %5603 = vmatpush1.msra.mxu0 0.0
        %5604 = vmatprep.subr.mxu0 0.0
        %5605 = vmatpush1.msra.mxu0 0.0
        %5606 = vmatprep.subr.mxu0 0.0
        %5607 = vmatpush1.msra.mxu0 0.0
        %5608 = vmatprep.subr.mxu0 0.0
        %5609 = vmatpush1.msra.mxu0 0.0
        %5610 = vmatprep.subr.mxu0 0.0
        %5611 = vmatpush1.msra.mxu0 0.0
        %5612 = vmatprep.subr.mxu0 0.0
        %5613 = vmatpush1.msra.mxu0 0.0
        %5614 = vmatprep.subr.mxu0 0.0
        %5615 = vmatpush1.msra.mxu0 0.0
        %5616 = vmatprep.subr.mxu0 0.0
        %5617 = vmatpush1.msra.mxu0 0.0
        %5618 = vmatprep.subr.mxu0 0.0
        %5619 = vmatpush1.msra.mxu0 0.0
        %5620 = vmatprep.subr.mxu0 0.0
        %5621 = vmatpush1.msra.mxu0 0.0
        %5622 = vmatprep.subr.mxu0 0.0
        %5623 = vmatpush1.msra.mxu0 0.0
        %5624 = vmatprep.subr.mxu0 0.0
        %5625 = vmatpush1.msra.mxu0 0.0
        %5626 = vmatprep.subr.mxu0 0.0
        %5627 = vmatpush1.msra.mxu0 0.0
        %5628 = vmatprep.subr.mxu0 0.0
        %5629 = vmatpush1.msra.mxu0 0.0
        %5630 = vmatprep.subr.mxu0 0.0
        %5631 = vmatpush1.msra.mxu0 0.0
        %5632 = vmatprep.subr.mxu0 0.0
        %5633 = vmatpush1.msra.mxu0 0.0
        %5634 = vmatprep.subr.mxu0 0.0
        %5635 = vmatpush1.msra.mxu0 0.0
        %5636 = vmatprep.subr.mxu0 0.0
        %5637 = vmatpush1.msra.mxu0 0.0
        %5638 = vmatprep.subr.mxu0 0.0
        %5639 = vmatpush1.msra.mxu0 0.0
        %5640 = vmatprep.subr.mxu0 0.0
        %5641 = vmatpush1.msra.mxu0 0.0
        %5642 = vmatprep.subr.mxu0 0.0
        %5643 = vmatpush1.msra.mxu0 0.0
        %5644 = vmatprep.subr.mxu0 0.0
        %5645 = vmatpush1.msra.mxu0 0.0
        %5646 = vmatprep.subr.mxu0 0.0
        %5647 = vmatpush1.msra.mxu0 0.0
        %5648 = vmatprep.subr.mxu0 0.0
        %5649 = vmatpush1.msra.mxu0 0.0
        %5650 = vmatprep.subr.mxu0 0.0
        %5651 = vmatpush1.msra.mxu0 0.0
        %5652 = vmatprep.subr.mxu0 0.0
        %5653 = vmatpush1.msra.mxu0 0.0
        %5654 = vmatprep.mubr.f32.mxu0 0.0
        %5655 = vmatmul.mubr.f32.gmra.mrb[0].mxu0 %v5579
        %v5656 = vpop.f32.mrb[0].mxu0
        %v5657 = vadd.f32 %v5556, %v5656
        %v5658 = vpop.f32.mrb[0].mxu0
        %v5659 = vadd.f32 %v5558, %v5658
        %5660 = vmatprep.mubr.f32.mxu0 0.0
        %5661 = vmatmul.mubr.f32.gmra.mrb[0].mxu0 %v5582
        %v5662 = vpop.f32.mrb[0].mxu0
        %v5663 = vadd.f32 %v5562, %v5662
        %v5664 = vpop.f32.mrb[0].mxu0
        %v5665 = vadd.f32 %v5564, %v5664
        %5666 = vmatprep.mubr.f32.mxu0 0.0
        %5667 = vmatmul.mubr.f32.gmra.mrb[0].mxu0 %v5585
        %v5668 = vpop.f32.mrb[0].mxu0
        %v5669 = vadd.f32 %v5568, %v5668
        %v5670 = vpop.f32.mrb[0].mxu0
        %v5671 = vadd.f32 %v5570, %v5670
        %5672 = vmatprep.mubr.f32.mxu0 0.0
        %5673 = vmatmul.mubr.f32.gmra.mrb[0].mxu0 %v5588
        %v5674 = vpop.f32.mrb[0].mxu0
        %v5675 = vadd.f32 %v5574, %v5674
        %v5676 = vpop.f32.mrb[0].mxu0
        %v5677 = vadd.f32 %v5576, %v5676
        %5678 = vdwg.mxu0
        %5679 = vrot.lane.b32.xlu0 %v5396, 15
        %v5680 = vpop.permute.xlu0 %5679
        %5681 = vrot.lane.b32.xlu0 %v5398, 15
        %v5682 = vpop.permute.xlu0 %5681
        %5683 = vrot.lane.b32.xlu0 %v5400, 15
        %v5684 = vpop.permute.xlu0 %5683
        %5685 = vrot.lane.b32.xlu0 %v5402, 15
        %v5686 = vpop.permute.xlu0 %5685
        %5687 = vrot.lane.b32.xlu0 %v5397, 15
        %v5688 = vpop.permute.xlu0 %5687
        %5689 = vrot.lane.b32.xlu0 %v5399, 15
        %v5690 = vpop.permute.xlu0 %5689
        %5691 = vrot.lane.b32.xlu0 %v5401, 15
        %v5692 = vpop.permute.xlu0 %5691
        %5693 = vrot.lane.b32.xlu0 %v5403, 15
        %v5694 = vpop.permute.xlu0 %5693
        %v5695 = vsel %vm2179, %v5680, %v5688
        %v5696 = vsel %vm2179, %v5682, %v5690
        %v5697 = vsel %vm2179, %v5684, %v5692
        %v5698 = vsel %vm2179, %v5686, %v5694
        %v5699 = vsel %vm2179, %v5688, %v5680
        %v5700 = vsel %vm2179, %v5690, %v5682
        %v5701 = vsel %vm2179, %v5692, %v5684
        %v5702 = vsel %vm2179, %v5694, %v5686
        %v5703 = vmul.f32 %v5699, %v2194
        %v5704 = vmul.f32 %v5695, %v2198
        %v5705 = vmul.f32 %v5700, %v2194
        %v5706 = vmul.f32 %v5696, %v2198
        %v5707 = vmul.f32 %v5701, %v2194
        %v5708 = vmul.f32 %v5697, %v2198
        %v5709 = vmul.f32 %v5702, %v2194
        %v5710 = vmul.f32 %v5698, %v2198
        %s5711 = scalar_lea.vmem %s20, 64
        %v5712 = vld [vmem:[%s5711] sm:$0xff]
        %v5713 = vld [vmem:[%s5711 + $0x8] sm:$0xff]
        %v5714 = vld [vmem:[%s5711 + $0x10] sm:$0xff]
        %v5715 = vld [vmem:[%s5711 + $0x18] sm:$0xff]
        %v5717 = vsel %vm1041, %v5712, 0
        %v5720 = vsel %vm1041, %v5713, 0
        %v5723 = vsel %vm1041, %v5714, 0
        %v5726 = vsel %vm1041, %v5715, 0
        %5728 = vmatprep.subr.mxu0 %v5704
        %5729 = vmatpush1.msra.mxu0 %v5703
        %5730 = vmatprep.subr.mxu0 %v5706
        %5731 = vmatpush1.msra.mxu0 %v5705
        %5732 = vmatprep.subr.mxu0 %v5708
        %5733 = vmatpush1.msra.mxu0 %v5707
        %5734 = vmatprep.subr.mxu0 %v5710
        %5735 = vmatpush1.msra.mxu0 %v5709
        %5736 = vmatprep.subr.mxu0 0.0
        %5737 = vmatpush1.msra.mxu0 0.0
        %5738 = vmatprep.subr.mxu0 0.0
        %5739 = vmatpush1.msra.mxu0 0.0
        %5740 = vmatprep.subr.mxu0 0.0
        %5741 = vmatpush1.msra.mxu0 0.0
        %5742 = vmatprep.subr.mxu0 0.0
        %5743 = vmatpush1.msra.mxu0 0.0
        %5744 = vmatprep.subr.mxu0 0.0
        %5745 = vmatpush1.msra.mxu0 0.0
        %5746 = vmatprep.subr.mxu0 0.0
        %5747 = vmatpush1.msra.mxu0 0.0
        %5748 = vmatprep.subr.mxu0 0.0
        %5749 = vmatpush1.msra.mxu0 0.0
        %5750 = vmatprep.subr.mxu0 0.0
        %5751 = vmatpush1.msra.mxu0 0.0
        %5752 = vmatprep.subr.mxu0 0.0
        %5753 = vmatpush1.msra.mxu0 0.0
        %5754 = vmatprep.subr.mxu0 0.0
        %5755 = vmatpush1.msra.mxu0 0.0
        %5756 = vmatprep.subr.mxu0 0.0
        %5757 = vmatpush1.msra.mxu0 0.0
        %5758 = vmatprep.subr.mxu0 0.0
        %5759 = vmatpush1.msra.mxu0 0.0
        %5760 = vmatprep.subr.mxu0 0.0
        %5761 = vmatpush1.msra.mxu0 0.0
        %5762 = vmatprep.subr.mxu0 0.0
        %5763 = vmatpush1.msra.mxu0 0.0
        %5764 = vmatprep.subr.mxu0 0.0
        %5765 = vmatpush1.msra.mxu0 0.0
        %5766 = vmatprep.subr.mxu0 0.0
        %5767 = vmatpush1.msra.mxu0 0.0
        %5768 = vmatprep.subr.mxu0 0.0
        %5769 = vmatpush1.msra.mxu0 0.0
        %5770 = vmatprep.subr.mxu0 0.0
        %5771 = vmatpush1.msra.mxu0 0.0
        %5772 = vmatprep.subr.mxu0 0.0
        %5773 = vmatpush1.msra.mxu0 0.0
        %5774 = vmatprep.subr.mxu0 0.0
        %5775 = vmatpush1.msra.mxu0 0.0
        %5776 = vmatprep.subr.mxu0 0.0
        %5777 = vmatpush1.msra.mxu0 0.0
        %5778 = vmatprep.subr.mxu0 0.0
        %5779 = vmatpush1.msra.mxu0 0.0
        %5780 = vmatprep.subr.mxu0 0.0
        %5781 = vmatpush1.msra.mxu0 0.0
        %5782 = vmatprep.subr.mxu0 0.0
        %5783 = vmatpush1.msra.mxu0 0.0
        %5784 = vmatprep.subr.mxu0 0.0
        %5785 = vmatpush1.msra.mxu0 0.0
        %5786 = vmatprep.subr.mxu0 0.0
        %5787 = vmatpush1.msra.mxu0 0.0
        %5788 = vmatprep.subr.mxu0 0.0
        %5789 = vmatpush1.msra.mxu0 0.0
        %5790 = vmatprep.subr.mxu0 0.0
        %5791 = vmatpush1.msra.mxu0 0.0
        %5792 = vmatprep.mubr.f32.mxu0 0.0
        %5793 = vmatmul.mubr.f32.gmra.mrb[0].mxu0 %v5717
        %v5794 = vpop.f32.mrb[0].mxu0
        %v5795 = vadd.f32 0.0, %v5794
        %v5796 = vpop.f32.mrb[0].mxu0
        %v5797 = vadd.f32 0.0, %v5796
        %5798 = vmatprep.mubr.f32.mxu0 0.0
        %5799 = vmatmul.mubr.f32.gmra.mrb[0].mxu0 %v5720
        %v5800 = vpop.f32.mrb[0].mxu0
        %v5801 = vadd.f32 0.0, %v5800
        %v5802 = vpop.f32.mrb[0].mxu0
        %v5803 = vadd.f32 0.0, %v5802
        %5804 = vmatprep.mubr.f32.mxu0 0.0
        %5805 = vmatmul.mubr.f32.gmra.mrb[0].mxu0 %v5723
        %v5806 = vpop.f32.mrb[0].mxu0
        %v5807 = vadd.f32 0.0, %v5806
        %v5808 = vpop.f32.mrb[0].mxu0
        %v5809 = vadd.f32 0.0, %v5808
        %5810 = vmatprep.mubr.f32.mxu0 0.0
        %5811 = vmatmul.mubr.f32.gmra.mrb[0].mxu0 %v5726
        %v5812 = vpop.f32.mrb[0].mxu0
        %v5813 = vadd.f32 0.0, %v5812
        %v5814 = vpop.f32.mrb[0].mxu0
        %v5815 = vadd.f32 0.0, %v5814
        %5816 = vdwg.mxu0
        %v5817 = vadd.f32 %v5657, %v5795
        %v5818 = vadd.f32 %v5659, %v5797
        %v5819 = vadd.f32 %v5663, %v5801
        %v5820 = vadd.f32 %v5665, %v5803
        %v5821 = vadd.f32 %v5669, %v5807
        %v5822 = vadd.f32 %v5671, %v5809
        %v5823 = vadd.f32 %v5675, %v5813
        %v5824 = vadd.f32 %v5677, %v5815
        %5825 = vrot.lane.b32.xlu0 %v5396, 1
        %v5826 = vpop.permute.xlu0 %5825
        %5827 = vrot.lane.b32.xlu0 %v5398, 1
        %v5828 = vpop.permute.xlu0 %5827
        %5829 = vrot.lane.b32.xlu0 %v5400, 1
        %v5830 = vpop.permute.xlu0 %5829
        %5831 = vrot.lane.b32.xlu0 %v5402, 1
        %v5832 = vpop.permute.xlu0 %5831
        %5833 = vrot.lane.b32.xlu0 %v5397, 1
        %v5834 = vpop.permute.xlu0 %5833
        %5835 = vrot.lane.b32.xlu0 %v5399, 1
        %v5836 = vpop.permute.xlu0 %5835
        %5837 = vrot.lane.b32.xlu0 %v5401, 1
        %v5838 = vpop.permute.xlu0 %5837
        %5839 = vrot.lane.b32.xlu0 %v5403, 1
        %v5840 = vpop.permute.xlu0 %5839
        %v5841 = vsel %vm2351, %v5826, %v5834
        %v5842 = vsel %vm2351, %v5828, %v5836
        %v5843 = vsel %vm2351, %v5830, %v5838
        %v5844 = vsel %vm2351, %v5832, %v5840
        %v5845 = vsel %vm2351, %v5834, %v5826
        %v5846 = vsel %vm2351, %v5836, %v5828
        %v5847 = vsel %vm2351, %v5838, %v5830
        %v5848 = vsel %vm2351, %v5840, %v5832
        %v5849 = vmul.f32 %v5845, %v2366
        %v5850 = vmul.f32 %v5841, %v2370
        %v5851 = vmul.f32 %v5846, %v2366
        %v5852 = vmul.f32 %v5842, %v2370
        %v5853 = vmul.f32 %v5847, %v2366
        %v5854 = vmul.f32 %v5843, %v2370
        %v5855 = vmul.f32 %v5848, %v2366
        %v5856 = vmul.f32 %v5844, %v2370
        %s5857 = scalar_lea.vmem %s20, 96
        %v5858 = vld [vmem:[%s5857] sm:$0xff]
        %v5859 = vld [vmem:[%s5857 + $0x8] sm:$0xff]
        %v5860 = vld [vmem:[%s5857 + $0x10] sm:$0xff]
        %v5861 = vld [vmem:[%s5857 + $0x18] sm:$0xff]
        %v5863 = vsel %vm1041, %v5858, 0
        %v5866 = vsel %vm1041, %v5859, 0
        %v5869 = vsel %vm1041, %v5860, 0
        %v5872 = vsel %vm1041, %v5861, 0
        %5874 = vmatprep.subr.mxu0 %v5850
        %5875 = vmatpush1.msra.mxu0 %v5849
        %5876 = vmatprep.subr.mxu0 %v5852
        %5877 = vmatpush1.msra.mxu0 %v5851
        %5878 = vmatprep.subr.mxu0 %v5854
        %5879 = vmatpush1.msra.mxu0 %v5853
        %5880 = vmatprep.subr.mxu0 %v5856
        %5881 = vmatpush1.msra.mxu0 %v5855
        %5882 = vmatprep.subr.mxu0 0.0
        %5883 = vmatpush1.msra.mxu0 0.0
        %5884 = vmatprep.subr.mxu0 0.0
        %5885 = vmatpush1.msra.mxu0 0.0
        %5886 = vmatprep.subr.mxu0 0.0
        %5887 = vmatpush1.msra.mxu0 0.0
        %5888 = vmatprep.subr.mxu0 0.0
        %5889 = vmatpush1.msra.mxu0 0.0
        %5890 = vmatprep.subr.mxu0 0.0
        %5891 = vmatpush1.msra.mxu0 0.0
        %5892 = vmatprep.subr.mxu0 0.0
        %5893 = vmatpush1.msra.mxu0 0.0
        %5894 = vmatprep.subr.mxu0 0.0
        %5895 = vmatpush1.msra.mxu0 0.0
        %5896 = vmatprep.subr.mxu0 0.0
        %5897 = vmatpush1.msra.mxu0 0.0
        %5898 = vmatprep.subr.mxu0 0.0
        %5899 = vmatpush1.msra.mxu0 0.0
        %5900 = vmatprep.subr.mxu0 0.0
        %5901 = vmatpush1.msra.mxu0 0.0
        %5902 = vmatprep.subr.mxu0 0.0
        %5903 = vmatpush1.msra.mxu0 0.0
        %5904 = vmatprep.subr.mxu0 0.0
        %5905 = vmatpush1.msra.mxu0 0.0
        %5906 = vmatprep.subr.mxu0 0.0
        %5907 = vmatpush1.msra.mxu0 0.0
        %5908 = vmatprep.subr.mxu0 0.0
        %5909 = vmatpush1.msra.mxu0 0.0
        %5910 = vmatprep.subr.mxu0 0.0
        %5911 = vmatpush1.msra.mxu0 0.0
        %5912 = vmatprep.subr.mxu0 0.0
        %5913 = vmatpush1.msra.mxu0 0.0
        %5914 = vmatprep.subr.mxu0 0.0
        %5915 = vmatpush1.msra.mxu0 0.0
        %5916 = vmatprep.subr.mxu0 0.0
        %5917 = vmatpush1.msra.mxu0 0.0
        %5918 = vmatprep.subr.mxu0 0.0
        %5919 = vmatpush1.msra.mxu0 0.0
        %5920 = vmatprep.subr.mxu0 0.0
        %5921 = vmatpush1.msra.mxu0 0.0
        %5922 = vmatprep.subr.mxu0 0.0
        %5923 = vmatpush1.msra.mxu0 0.0
        %5924 = vmatprep.subr.mxu0 0.0
        %5925 = vmatpush1.msra.mxu0 0.0
        %5926 = vmatprep.subr.mxu0 0.0
        %5927 = vmatpush1.msra.mxu0 0.0
        %5928 = vmatprep.subr.mxu0 0.0
        %5929 = vmatpush1.msra.mxu0 0.0
        %5930 = vmatprep.subr.mxu0 0.0
        %5931 = vmatpush1.msra.mxu0 0.0
        %5932 = vmatprep.subr.mxu0 0.0
        %5933 = vmatpush1.msra.mxu0 0.0
        %5934 = vmatprep.subr.mxu0 0.0
        %5935 = vmatpush1.msra.mxu0 0.0
        %5936 = vmatprep.subr.mxu0 0.0
        %5937 = vmatpush1.msra.mxu0 0.0
        %5938 = vmatprep.mubr.f32.mxu0 0.0
        %5939 = vmatmul.mubr.f32.gmra.mrb[0].mxu0 %v5863
        %v5940 = vpop.f32.mrb[0].mxu0
        %v5941 = vadd.f32 0.0, %v5940
        %v5942 = vpop.f32.mrb[0].mxu0
        %v5943 = vadd.f32 0.0, %v5942
        %5944 = vmatprep.mubr.f32.mxu0 0.0
        %5945 = vmatmul.mubr.f32.gmra.mrb[0].mxu0 %v5866
        %v5946 = vpop.f32.mrb[0].mxu0
        %v5947 = vadd.f32 0.0, %v5946
        %v5948 = vpop.f32.mrb[0].mxu0
        %v5949 = vadd.f32 0.0, %v5948
        %5950 = vmatprep.mubr.f32.mxu0 0.0
        %5951 = vmatmul.mubr.f32.gmra.mrb[0].mxu0 %v5869
        %v5952 = vpop.f32.mrb[0].mxu0
        %v5953 = vadd.f32 0.0, %v5952
        %v5954 = vpop.f32.mrb[0].mxu0
        %v5955 = vadd.f32 0.0, %v5954
        %5956 = vmatprep.mubr.f32.mxu0 0.0
        %5957 = vmatmul.mubr.f32.gmra.mrb[0].mxu0 %v5872
        %v5958 = vpop.f32.mrb[0].mxu0
        %v5959 = vadd.f32 0.0, %v5958
        %v5960 = vpop.f32.mrb[0].mxu0
        %v5961 = vadd.f32 0.0, %v5960
        %5962 = vdwg.mxu0
        %v5963 = vadd.f32 %v5817, %v5941
        %v5964 = vadd.f32 %v5818, %v5943
        %v5965 = vadd.f32 %v5819, %v5947
        %v5966 = vadd.f32 %v5820, %v5949
        %v5967 = vadd.f32 %v5821, %v5953
        %v5968 = vadd.f32 %v5822, %v5955
        %v5969 = vadd.f32 %v5823, %v5959
        %v5970 = vadd.f32 %v5824, %v5961
        %s5971 = scalar_lea.vmem %s20, 128
        %v5972 = vld [vmem:[%s5971] sm:$0xff]
        %v5973 = vld [vmem:[%s5971 + $0x8] sm:$0xff]
        %v5974 = vld [vmem:[%s5971 + $0x10] sm:$0xff]
        %v5975 = vld [vmem:[%s5971 + $0x18] sm:$0xff]
        %v5977 = vsel %vm1041, %v5972, 0
        %v5980 = vsel %vm1041, %v5973, 0
        %v5983 = vsel %vm1041, %v5974, 0
        %v5986 = vsel %vm1041, %v5975, 0
        %5988 = vmatprep.subr.mxu0 %v5397
        %5989 = vmatpush1.msra.mxu0 %v5396
        %5990 = vmatprep.subr.mxu0 %v5399
        %5991 = vmatpush1.msra.mxu0 %v5398
        %5992 = vmatprep.subr.mxu0 %v5401
        %5993 = vmatpush1.msra.mxu0 %v5400
        %5994 = vmatprep.subr.mxu0 %v5403
        %5995 = vmatpush1.msra.mxu0 %v5402
        %5996 = vmatprep.subr.mxu0 0.0
        %5997 = vmatpush1.msra.mxu0 0.0
        %5998 = vmatprep.subr.mxu0 0.0
        %5999 = vmatpush1.msra.mxu0 0.0
        %6000 = vmatprep.subr.mxu0 0.0
        %6001 = vmatpush1.msra.mxu0 0.0
        %6002 = vmatprep.subr.mxu0 0.0
        %6003 = vmatpush1.msra.mxu0 0.0
        %6004 = vmatprep.subr.mxu0 0.0
        %6005 = vmatpush1.msra.mxu0 0.0
        %6006 = vmatprep.subr.mxu0 0.0
        %6007 = vmatpush1.msra.mxu0 0.0
        %6008 = vmatprep.subr.mxu0 0.0
        %6009 = vmatpush1.msra.mxu0 0.0
        %6010 = vmatprep.subr.mxu0 0.0
        %6011 = vmatpush1.msra.mxu0 0.0
        %6012 = vmatprep.subr.mxu0 0.0
        %6013 = vmatpush1.msra.mxu0 0.0
        %6014 = vmatprep.subr.mxu0 0.0
        %6015 = vmatpush1.msra.mxu0 0.0
        %6016 = vmatprep.subr.mxu0 0.0
        %6017 = vmatpush1.msra.mxu0 0.0
        %6018 = vmatprep.subr.mxu0 0.0
        %6019 = vmatpush1.msra.mxu0 0.0
        %6020 = vmatprep.subr.mxu0 0.0
        %6021 = vmatpush1.msra.mxu0 0.0
        %6022 = vmatprep.subr.mxu0 0.0
        %6023 = vmatpush1.msra.mxu0 0.0
        %6024 = vmatprep.subr.mxu0 0.0
        %6025 = vmatpush1.msra.mxu0 0.0
        %6026 = vmatprep.subr.mxu0 0.0
        %6027 = vmatpush1.msra.mxu0 0.0
        %6028 = vmatprep.subr.mxu0 0.0
        %6029 = vmatpush1.msra.mxu0 0.0
        %6030 = vmatprep.subr.mxu0 0.0
        %6031 = vmatpush1.msra.mxu0 0.0
        %6032 = vmatprep.subr.mxu0 0.0
        %6033 = vmatpush1.msra.mxu0 0.0
        %6034 = vmatprep.subr.mxu0 0.0
        %6035 = vmatpush1.msra.mxu0 0.0
        %6036 = vmatprep.subr.mxu0 0.0
        %6037 = vmatpush1.msra.mxu0 0.0
        %6038 = vmatprep.subr.mxu0 0.0
        %6039 = vmatpush1.msra.mxu0 0.0
        %6040 = vmatprep.subr.mxu0 0.0
        %6041 = vmatpush1.msra.mxu0 0.0
        %6042 = vmatprep.subr.mxu0 0.0
        %6043 = vmatpush1.msra.mxu0 0.0
        %6044 = vmatprep.subr.mxu0 0.0
        %6045 = vmatpush1.msra.mxu0 0.0
        %6046 = vmatprep.subr.mxu0 0.0
        %6047 = vmatpush1.msra.mxu0 0.0
        %6048 = vmatprep.subr.mxu0 0.0
        %6049 = vmatpush1.msra.mxu0 0.0
        %6050 = vmatprep.subr.mxu0 0.0
        %6051 = vmatpush1.msra.mxu0 0.0
        %6052 = vmatprep.mubr.f32.mxu0 0.0
        %6053 = vmatmul.mubr.f32.gmra.mrb[0].mxu0 %v5977
        %v6054 = vpop.f32.mrb[0].mxu0
        %v6055 = vadd.f32 0.0, %v6054
        %v6056 = vpop.f32.mrb[0].mxu0
        %v6057 = vadd.f32 0.0, %v6056
        %6058 = vmatprep.mubr.f32.mxu0 0.0
        %6059 = vmatmul.mubr.f32.gmra.mrb[0].mxu0 %v5980
        %v6060 = vpop.f32.mrb[0].mxu0
        %v6061 = vadd.f32 0.0, %v6060
        %v6062 = vpop.f32.mrb[0].mxu0
        %v6063 = vadd.f32 0.0, %v6062
        %6064 = vmatprep.mubr.f32.mxu0 0.0
        %6065 = vmatmul.mubr.f32.gmra.mrb[0].mxu0 %v5983
        %v6066 = vpop.f32.mrb[0].mxu0
        %v6067 = vadd.f32 0.0, %v6066
        %v6068 = vpop.f32.mrb[0].mxu0
        %v6069 = vadd.f32 0.0, %v6068
        %6070 = vmatprep.mubr.f32.mxu0 0.0
        %6071 = vmatmul.mubr.f32.gmra.mrb[0].mxu0 %v5986
        %v6072 = vpop.f32.mrb[0].mxu0
        %v6073 = vadd.f32 0.0, %v6072
        %v6074 = vpop.f32.mrb[0].mxu0
        %v6075 = vadd.f32 0.0, %v6074
        %6076 = vdwg.mxu0
        %v6077 = vadd.f32 %v5963, %v6055
        %v6078 = vadd.f32 %v5964, %v6057
        %v6079 = vadd.f32 %v5965, %v6061
        %v6080 = vadd.f32 %v5966, %v6063
        %v6081 = vadd.f32 %v5967, %v6067
        %v6082 = vadd.f32 %v5968, %v6069
        %v6083 = vadd.f32 %v5969, %v6073
        %v6084 = vadd.f32 %v5970, %v6075
        %6085 = vrot.lane.b32.xlu0 %v5396, 127
        %v6086 = vpop.permute.xlu0 %6085
        %6087 = vrot.lane.b32.xlu0 %v5398, 127
        %v6088 = vpop.permute.xlu0 %6087
        %6089 = vrot.lane.b32.xlu0 %v5400, 127
        %v6090 = vpop.permute.xlu0 %6089
        %6091 = vrot.lane.b32.xlu0 %v5402, 127
        %v6092 = vpop.permute.xlu0 %6091
        %6093 = vrot.lane.b32.xlu0 %v5397, 127
        %v6094 = vpop.permute.xlu0 %6093
        %6095 = vrot.lane.b32.xlu0 %v5399, 127
        %v6096 = vpop.permute.xlu0 %6095
        %6097 = vrot.lane.b32.xlu0 %v5401, 127
        %v6098 = vpop.permute.xlu0 %6097
        %6099 = vrot.lane.b32.xlu0 %v5403, 127
        %v6100 = vpop.permute.xlu0 %6099
        %v6101 = vsel %vm2643, %v6086, %v6094
        %v6102 = vsel %vm2643, %v6088, %v6096
        %v6103 = vsel %vm2643, %v6090, %v6098
        %v6104 = vsel %vm2643, %v6092, %v6100
        %v6105 = vsel %vm2643, %v6094, %v6086
        %v6106 = vsel %vm2643, %v6096, %v6088
        %v6107 = vsel %vm2643, %v6098, %v6090
        %v6108 = vsel %vm2643, %v6100, %v6092
        %v6109 = vmul.f32 %v6101, %v2658
        %v6110 = vmul.f32 %v6105, %v2662
        %v6111 = vmul.f32 %v6102, %v2658
        %v6112 = vmul.f32 %v6106, %v2662
        %v6113 = vmul.f32 %v6103, %v2658
        %v6114 = vmul.f32 %v6107, %v2662
        %v6115 = vmul.f32 %v6104, %v2658
        %v6116 = vmul.f32 %v6108, %v2662
        %s6117 = scalar_lea.vmem %s20, 160
        %v6118 = vld [vmem:[%s6117] sm:$0xff]
        %v6119 = vld [vmem:[%s6117 + $0x8] sm:$0xff]
        %v6120 = vld [vmem:[%s6117 + $0x10] sm:$0xff]
        %v6121 = vld [vmem:[%s6117 + $0x18] sm:$0xff]
        %v6123 = vsel %vm1041, %v6118, 0
        %v6126 = vsel %vm1041, %v6119, 0
        %v6129 = vsel %vm1041, %v6120, 0
        %v6132 = vsel %vm1041, %v6121, 0
        %6134 = vmatprep.subr.mxu0 %v6110
        %6135 = vmatpush1.msra.mxu0 %v6109
        %6136 = vmatprep.subr.mxu0 %v6112
        %6137 = vmatpush1.msra.mxu0 %v6111
        %6138 = vmatprep.subr.mxu0 %v6114
        %6139 = vmatpush1.msra.mxu0 %v6113
        %6140 = vmatprep.subr.mxu0 %v6116
        %6141 = vmatpush1.msra.mxu0 %v6115
        %6142 = vmatprep.subr.mxu0 0.0
        %6143 = vmatpush1.msra.mxu0 0.0
        %6144 = vmatprep.subr.mxu0 0.0
        %6145 = vmatpush1.msra.mxu0 0.0
        %6146 = vmatprep.subr.mxu0 0.0
        %6147 = vmatpush1.msra.mxu0 0.0
        %6148 = vmatprep.subr.mxu0 0.0
        %6149 = vmatpush1.msra.mxu0 0.0
        %6150 = vmatprep.subr.mxu0 0.0
        %6151 = vmatpush1.msra.mxu0 0.0
        %6152 = vmatprep.subr.mxu0 0.0
        %6153 = vmatpush1.msra.mxu0 0.0
        %6154 = vmatprep.subr.mxu0 0.0
        %6155 = vmatpush1.msra.mxu0 0.0
        %6156 = vmatprep.subr.mxu0 0.0
        %6157 = vmatpush1.msra.mxu0 0.0
        %6158 = vmatprep.subr.mxu0 0.0
        %6159 = vmatpush1.msra.mxu0 0.0
        %6160 = vmatprep.subr.mxu0 0.0
        %6161 = vmatpush1.msra.mxu0 0.0
        %6162 = vmatprep.subr.mxu0 0.0
        %6163 = vmatpush1.msra.mxu0 0.0
        %6164 = vmatprep.subr.mxu0 0.0
        %6165 = vmatpush1.msra.mxu0 0.0
        %6166 = vmatprep.subr.mxu0 0.0
        %6167 = vmatpush1.msra.mxu0 0.0
        %6168 = vmatprep.subr.mxu0 0.0
        %6169 = vmatpush1.msra.mxu0 0.0
        %6170 = vmatprep.subr.mxu0 0.0
        %6171 = vmatpush1.msra.mxu0 0.0
        %6172 = vmatprep.subr.mxu0 0.0
        %6173 = vmatpush1.msra.mxu0 0.0
        %6174 = vmatprep.subr.mxu0 0.0
        %6175 = vmatpush1.msra.mxu0 0.0
        %6176 = vmatprep.subr.mxu0 0.0
        %6177 = vmatpush1.msra.mxu0 0.0
        %6178 = vmatprep.subr.mxu0 0.0
        %6179 = vmatpush1.msra.mxu0 0.0
        %6180 = vmatprep.subr.mxu0 0.0
        %6181 = vmatpush1.msra.mxu0 0.0
        %6182 = vmatprep.subr.mxu0 0.0
        %6183 = vmatpush1.msra.mxu0 0.0
        %6184 = vmatprep.subr.mxu0 0.0
        %6185 = vmatpush1.msra.mxu0 0.0
        %6186 = vmatprep.subr.mxu0 0.0
        %6187 = vmatpush1.msra.mxu0 0.0
        %6188 = vmatprep.subr.mxu0 0.0
        %6189 = vmatpush1.msra.mxu0 0.0
        %6190 = vmatprep.subr.mxu0 0.0
        %6191 = vmatpush1.msra.mxu0 0.0
        %6192 = vmatprep.subr.mxu0 0.0
        %6193 = vmatpush1.msra.mxu0 0.0
        %6194 = vmatprep.subr.mxu0 0.0
        %6195 = vmatpush1.msra.mxu0 0.0
        %6196 = vmatprep.subr.mxu0 0.0
        %6197 = vmatpush1.msra.mxu0 0.0
        %6198 = vmatprep.mubr.f32.mxu0 0.0
        %6199 = vmatmul.mubr.f32.gmra.mrb[0].mxu0 %v6123
        %v6200 = vpop.f32.mrb[0].mxu0
        %v6201 = vadd.f32 0.0, %v6200
        %v6202 = vpop.f32.mrb[0].mxu0
        %v6203 = vadd.f32 0.0, %v6202
        %6204 = vmatprep.mubr.f32.mxu0 0.0
        %6205 = vmatmul.mubr.f32.gmra.mrb[0].mxu0 %v6126
        %v6206 = vpop.f32.mrb[0].mxu0
        %v6207 = vadd.f32 0.0, %v6206
        %v6208 = vpop.f32.mrb[0].mxu0
        %v6209 = vadd.f32 0.0, %v6208
        %6210 = vmatprep.mubr.f32.mxu0 0.0
        %6211 = vmatmul.mubr.f32.gmra.mrb[0].mxu0 %v6129
        %v6212 = vpop.f32.mrb[0].mxu0
        %v6213 = vadd.f32 0.0, %v6212
        %v6214 = vpop.f32.mrb[0].mxu0
        %v6215 = vadd.f32 0.0, %v6214
        %6216 = vmatprep.mubr.f32.mxu0 0.0
        %6217 = vmatmul.mubr.f32.gmra.mrb[0].mxu0 %v6132
        %v6218 = vpop.f32.mrb[0].mxu0
        %v6219 = vadd.f32 0.0, %v6218
        %v6220 = vpop.f32.mrb[0].mxu0
        %v6221 = vadd.f32 0.0, %v6220
        %6222 = vdwg.mxu0
        %v6223 = vadd.f32 %v6077, %v6201
        %v6224 = vadd.f32 %v6078, %v6203
        %v6225 = vadd.f32 %v6079, %v6207
        %v6226 = vadd.f32 %v6080, %v6209
        %v6227 = vadd.f32 %v6081, %v6213
        %v6228 = vadd.f32 %v6082, %v6215
        %v6229 = vadd.f32 %v6083, %v6219
        %v6230 = vadd.f32 %v6084, %v6221
        %6231 = vrot.lane.b32.xlu0 %v5396, 113
        %v6232 = vpop.permute.xlu0 %6231
        %6233 = vrot.lane.b32.xlu0 %v5398, 113
        %v6234 = vpop.permute.xlu0 %6233
        %6235 = vrot.lane.b32.xlu0 %v5400, 113
        %v6236 = vpop.permute.xlu0 %6235
        %6237 = vrot.lane.b32.xlu0 %v5402, 113
        %v6238 = vpop.permute.xlu0 %6237
        %6239 = vrot.lane.b32.xlu0 %v5397, 113
        %v6240 = vpop.permute.xlu0 %6239
        %6241 = vrot.lane.b32.xlu0 %v5399, 113
        %v6242 = vpop.permute.xlu0 %6241
        %6243 = vrot.lane.b32.xlu0 %v5401, 113
        %v6244 = vpop.permute.xlu0 %6243
        %6245 = vrot.lane.b32.xlu0 %v5403, 113
        %v6246 = vpop.permute.xlu0 %6245
        %v6247 = vsel %vm2815, %v6232, %v6240
        %v6248 = vsel %vm2815, %v6234, %v6242
        %v6249 = vsel %vm2815, %v6236, %v6244
        %v6250 = vsel %vm2815, %v6238, %v6246
        %v6251 = vsel %vm2815, %v6240, %v6232
        %v6252 = vsel %vm2815, %v6242, %v6234
        %v6253 = vsel %vm2815, %v6244, %v6236
        %v6254 = vsel %vm2815, %v6246, %v6238
        %v6255 = vmul.f32 %v6247, %v2830
        %v6256 = vmul.f32 %v6251, %v2834
        %v6257 = vmul.f32 %v6248, %v2830
        %v6258 = vmul.f32 %v6252, %v2834
        %v6259 = vmul.f32 %v6249, %v2830
        %v6260 = vmul.f32 %v6253, %v2834
        %v6261 = vmul.f32 %v6250, %v2830
        %v6262 = vmul.f32 %v6254, %v2834
        %s6263 = scalar_lea.vmem %s20, 192
        %v6264 = vld [vmem:[%s6263] sm:$0xff]
        %v6265 = vld [vmem:[%s6263 + $0x8] sm:$0xff]
        %v6266 = vld [vmem:[%s6263 + $0x10] sm:$0xff]
        %v6267 = vld [vmem:[%s6263 + $0x18] sm:$0xff]
        %v6269 = vsel %vm1041, %v6264, 0
        %v6272 = vsel %vm1041, %v6265, 0
        %v6275 = vsel %vm1041, %v6266, 0
        %v6278 = vsel %vm1041, %v6267, 0
        %6280 = vmatprep.subr.mxu0 %v6256
        %6281 = vmatpush1.msra.mxu0 %v6255
        %6282 = vmatprep.subr.mxu0 %v6258
        %6283 = vmatpush1.msra.mxu0 %v6257
        %6284 = vmatprep.subr.mxu0 %v6260
        %6285 = vmatpush1.msra.mxu0 %v6259
        %6286 = vmatprep.subr.mxu0 %v6262
        %6287 = vmatpush1.msra.mxu0 %v6261
        %6288 = vmatprep.subr.mxu0 0.0
        %6289 = vmatpush1.msra.mxu0 0.0
        %6290 = vmatprep.subr.mxu0 0.0
        %6291 = vmatpush1.msra.mxu0 0.0
        %6292 = vmatprep.subr.mxu0 0.0
        %6293 = vmatpush1.msra.mxu0 0.0
        %6294 = vmatprep.subr.mxu0 0.0
        %6295 = vmatpush1.msra.mxu0 0.0
        %6296 = vmatprep.subr.mxu0 0.0
        %6297 = vmatpush1.msra.mxu0 0.0
        %6298 = vmatprep.subr.mxu0 0.0
        %6299 = vmatpush1.msra.mxu0 0.0
        %6300 = vmatprep.subr.mxu0 0.0
        %6301 = vmatpush1.msra.mxu0 0.0
        %6302 = vmatprep.subr.mxu0 0.0
        %6303 = vmatpush1.msra.mxu0 0.0
        %6304 = vmatprep.subr.mxu0 0.0
        %6305 = vmatpush1.msra.mxu0 0.0
        %6306 = vmatprep.subr.mxu0 0.0
        %6307 = vmatpush1.msra.mxu0 0.0
        %6308 = vmatprep.subr.mxu0 0.0
        %6309 = vmatpush1.msra.mxu0 0.0
        %6310 = vmatprep.subr.mxu0 0.0
        %6311 = vmatpush1.msra.mxu0 0.0
        %6312 = vmatprep.subr.mxu0 0.0
        %6313 = vmatpush1.msra.mxu0 0.0
        %6314 = vmatprep.subr.mxu0 0.0
        %6315 = vmatpush1.msra.mxu0 0.0
        %6316 = vmatprep.subr.mxu0 0.0
        %6317 = vmatpush1.msra.mxu0 0.0
        %6318 = vmatprep.subr.mxu0 0.0
        %6319 = vmatpush1.msra.mxu0 0.0
        %6320 = vmatprep.subr.mxu0 0.0
        %6321 = vmatpush1.msra.mxu0 0.0
        %6322 = vmatprep.subr.mxu0 0.0
        %6323 = vmatpush1.msra.mxu0 0.0
        %6324 = vmatprep.subr.mxu0 0.0
        %6325 = vmatpush1.msra.mxu0 0.0
        %6326 = vmatprep.subr.mxu0 0.0
        %6327 = vmatpush1.msra.mxu0 0.0
        %6328 = vmatprep.subr.mxu0 0.0
        %6329 = vmatpush1.msra.mxu0 0.0
        %6330 = vmatprep.subr.mxu0 0.0
        %6331 = vmatpush1.msra.mxu0 0.0
        %6332 = vmatprep.subr.mxu0 0.0
        %6333 = vmatpush1.msra.mxu0 0.0
        %6334 = vmatprep.subr.mxu0 0.0
        %6335 = vmatpush1.msra.mxu0 0.0
        %6336 = vmatprep.subr.mxu0 0.0
        %6337 = vmatpush1.msra.mxu0 0.0
        %6338 = vmatprep.subr.mxu0 0.0
        %6339 = vmatpush1.msra.mxu0 0.0
        %6340 = vmatprep.subr.mxu0 0.0
        %6341 = vmatpush1.msra.mxu0 0.0
        %6342 = vmatprep.subr.mxu0 0.0
        %6343 = vmatpush1.msra.mxu0 0.0
        %6344 = vmatprep.mubr.f32.mxu0 0.0
        %6345 = vmatmul.mubr.f32.gmra.mrb[0].mxu0 %v6269
        %v6346 = vpop.f32.mrb[0].mxu0
        %v6347 = vadd.f32 0.0, %v6346
        %v6348 = vpop.f32.mrb[0].mxu0
        %v6349 = vadd.f32 0.0, %v6348
        %6350 = vmatprep.mubr.f32.mxu0 0.0
        %6351 = vmatmul.mubr.f32.gmra.mrb[0].mxu0 %v6272
        %v6352 = vpop.f32.mrb[0].mxu0
        %v6353 = vadd.f32 0.0, %v6352
        %v6354 = vpop.f32.mrb[0].mxu0
        %v6355 = vadd.f32 0.0, %v6354
        %6356 = vmatprep.mubr.f32.mxu0 0.0
        %6357 = vmatmul.mubr.f32.gmra.mrb[0].mxu0 %v6275
        %v6358 = vpop.f32.mrb[0].mxu0
        %v6359 = vadd.f32 0.0, %v6358
        %v6360 = vpop.f32.mrb[0].mxu0
        %v6361 = vadd.f32 0.0, %v6360
        %6362 = vmatprep.mubr.f32.mxu0 0.0
        %6363 = vmatmul.mubr.f32.gmra.mrb[0].mxu0 %v6278
        %v6364 = vpop.f32.mrb[0].mxu0
        %v6365 = vadd.f32 0.0, %v6364
        %v6366 = vpop.f32.mrb[0].mxu0
        %v6367 = vadd.f32 0.0, %v6366
        %6368 = vdwg.mxu0
        %v6369 = vadd.f32 %v6223, %v6347
        %v6370 = vadd.f32 %v6224, %v6349
        %v6371 = vadd.f32 %v6225, %v6353
        %v6372 = vadd.f32 %v6226, %v6355
        %v6373 = vadd.f32 %v6227, %v6359
        %v6374 = vadd.f32 %v6228, %v6361
        %v6375 = vadd.f32 %v6229, %v6365
        %v6376 = vadd.f32 %v6230, %v6367
        %6377 = vrot.lane.b32.xlu0 %v5396, 112
        %v6378 = vpop.permute.xlu0 %6377
        %6379 = vrot.lane.b32.xlu0 %v5398, 112
        %v6380 = vpop.permute.xlu0 %6379
        %6381 = vrot.lane.b32.xlu0 %v5400, 112
        %v6382 = vpop.permute.xlu0 %6381
        %6383 = vrot.lane.b32.xlu0 %v5402, 112
        %v6384 = vpop.permute.xlu0 %6383
        %6385 = vrot.lane.b32.xlu0 %v5397, 112
        %v6386 = vpop.permute.xlu0 %6385
        %6387 = vrot.lane.b32.xlu0 %v5399, 112
        %v6388 = vpop.permute.xlu0 %6387
        %6389 = vrot.lane.b32.xlu0 %v5401, 112
        %v6390 = vpop.permute.xlu0 %6389
        %6391 = vrot.lane.b32.xlu0 %v5403, 112
        %v6392 = vpop.permute.xlu0 %6391
        %v6393 = vsel %vm2987, %v6378, %v6386
        %v6394 = vsel %vm2987, %v6380, %v6388
        %v6395 = vsel %vm2987, %v6382, %v6390
        %v6396 = vsel %vm2987, %v6384, %v6392
        %v6397 = vsel %vm2987, %v6386, %v6378
        %v6398 = vsel %vm2987, %v6388, %v6380
        %v6399 = vsel %vm2987, %v6390, %v6382
        %v6400 = vsel %vm2987, %v6392, %v6384
        %v6401 = vmul.f32 %v6393, %v3002
        %v6402 = vmul.f32 %v6397, %v3006
        %v6403 = vmul.f32 %v6394, %v3002
        %v6404 = vmul.f32 %v6398, %v3006
        %v6405 = vmul.f32 %v6395, %v3002
        %v6406 = vmul.f32 %v6399, %v3006
        %v6407 = vmul.f32 %v6396, %v3002
        %v6408 = vmul.f32 %v6400, %v3006
        %s6409 = scalar_lea.vmem %s20, 224
        %v6410 = vld [vmem:[%s6409] sm:$0xff]
        %v6411 = vld [vmem:[%s6409 + $0x8] sm:$0xff]
        %v6412 = vld [vmem:[%s6409 + $0x10] sm:$0xff]
        %v6413 = vld [vmem:[%s6409 + $0x18] sm:$0xff]
        %v6415 = vsel %vm1041, %v6410, 0
        %v6418 = vsel %vm1041, %v6411, 0
        %v6421 = vsel %vm1041, %v6412, 0
        %v6424 = vsel %vm1041, %v6413, 0
        %6426 = vmatprep.subr.mxu0 %v6402
        %6427 = vmatpush1.msra.mxu0 %v6401
        %6428 = vmatprep.subr.mxu0 %v6404
        %6429 = vmatpush1.msra.mxu0 %v6403
        %6430 = vmatprep.subr.mxu0 %v6406
        %6431 = vmatpush1.msra.mxu0 %v6405
        %6432 = vmatprep.subr.mxu0 %v6408
        %6433 = vmatpush1.msra.mxu0 %v6407
        %6434 = vmatprep.subr.mxu0 0.0
        %6435 = vmatpush1.msra.mxu0 0.0
        %6436 = vmatprep.subr.mxu0 0.0
        %6437 = vmatpush1.msra.mxu0 0.0
        %6438 = vmatprep.subr.mxu0 0.0
        %6439 = vmatpush1.msra.mxu0 0.0
        %6440 = vmatprep.subr.mxu0 0.0
        %6441 = vmatpush1.msra.mxu0 0.0
        %6442 = vmatprep.subr.mxu0 0.0
        %6443 = vmatpush1.msra.mxu0 0.0
        %6444 = vmatprep.subr.mxu0 0.0
        %6445 = vmatpush1.msra.mxu0 0.0
        %6446 = vmatprep.subr.mxu0 0.0
        %6447 = vmatpush1.msra.mxu0 0.0
        %6448 = vmatprep.subr.mxu0 0.0
        %6449 = vmatpush1.msra.mxu0 0.0
        %6450 = vmatprep.subr.mxu0 0.0
        %6451 = vmatpush1.msra.mxu0 0.0
        %6452 = vmatprep.subr.mxu0 0.0
        %6453 = vmatpush1.msra.mxu0 0.0
        %6454 = vmatprep.subr.mxu0 0.0
        %6455 = vmatpush1.msra.mxu0 0.0
        %6456 = vmatprep.subr.mxu0 0.0
        %6457 = vmatpush1.msra.mxu0 0.0
        %6458 = vmatprep.subr.mxu0 0.0
        %6459 = vmatpush1.msra.mxu0 0.0
        %6460 = vmatprep.subr.mxu0 0.0
        %6461 = vmatpush1.msra.mxu0 0.0
        %6462 = vmatprep.subr.mxu0 0.0
        %6463 = vmatpush1.msra.mxu0 0.0
        %6464 = vmatprep.subr.mxu0 0.0
        %6465 = vmatpush1.msra.mxu0 0.0
        %6466 = vmatprep.subr.mxu0 0.0
        %6467 = vmatpush1.msra.mxu0 0.0
        %6468 = vmatprep.subr.mxu0 0.0
        %6469 = vmatpush1.msra.mxu0 0.0
        %6470 = vmatprep.subr.mxu0 0.0
        %6471 = vmatpush1.msra.mxu0 0.0
        %6472 = vmatprep.subr.mxu0 0.0
        %6473 = vmatpush1.msra.mxu0 0.0
        %6474 = vmatprep.subr.mxu0 0.0
        %6475 = vmatpush1.msra.mxu0 0.0
        %6476 = vmatprep.subr.mxu0 0.0
        %6477 = vmatpush1.msra.mxu0 0.0
        %6478 = vmatprep.subr.mxu0 0.0
        %6479 = vmatpush1.msra.mxu0 0.0
        %6480 = vmatprep.subr.mxu0 0.0
        %6481 = vmatpush1.msra.mxu0 0.0
        %6482 = vmatprep.subr.mxu0 0.0
        %6483 = vmatpush1.msra.mxu0 0.0
        %6484 = vmatprep.subr.mxu0 0.0
        %6485 = vmatpush1.msra.mxu0 0.0
        %6486 = vmatprep.subr.mxu0 0.0
        %6487 = vmatpush1.msra.mxu0 0.0
        %6488 = vmatprep.subr.mxu0 0.0
        %6489 = vmatpush1.msra.mxu0 0.0
        %6490 = vmatprep.mubr.f32.mxu0 0.0
        %6491 = vmatmul.mubr.f32.gmra.mrb[0].mxu0 %v6415
        %v6492 = vpop.f32.mrb[0].mxu0
        %v6493 = vadd.f32 0.0, %v6492
        %v6494 = vpop.f32.mrb[0].mxu0
        %v6495 = vadd.f32 0.0, %v6494
        %6496 = vmatprep.mubr.f32.mxu0 0.0
        %6497 = vmatmul.mubr.f32.gmra.mrb[0].mxu0 %v6418
        %v6498 = vpop.f32.mrb[0].mxu0
        %v6499 = vadd.f32 0.0, %v6498
        %v6500 = vpop.f32.mrb[0].mxu0
        %v6501 = vadd.f32 0.0, %v6500
        %6502 = vmatprep.mubr.f32.mxu0 0.0
        %6503 = vmatmul.mubr.f32.gmra.mrb[0].mxu0 %v6421
        %v6504 = vpop.f32.mrb[0].mxu0
        %v6505 = vadd.f32 0.0, %v6504
        %v6506 = vpop.f32.mrb[0].mxu0
        %v6507 = vadd.f32 0.0, %v6506
        %6508 = vmatprep.mubr.f32.mxu0 0.0
        %6509 = vmatmul.mubr.f32.gmra.mrb[0].mxu0 %v6424
        %v6510 = vpop.f32.mrb[0].mxu0
        %v6511 = vadd.f32 0.0, %v6510
        %v6512 = vpop.f32.mrb[0].mxu0
        %v6513 = vadd.f32 0.0, %v6512
        %6514 = vdwg.mxu0
        %v6515 = vadd.f32 %v6369, %v6493
        %v6516 = vadd.f32 %v6370, %v6495
        %v6517 = vadd.f32 %v6371, %v6499
        %v6518 = vadd.f32 %v6372, %v6501
        %v6519 = vadd.f32 %v6373, %v6505
        %v6520 = vadd.f32 %v6374, %v6507
        %v6521 = vadd.f32 %v6375, %v6511
        %v6522 = vadd.f32 %v6376, %v6513
        %6523 = vrot.lane.b32.xlu0 %v5396, 111
        %v6524 = vpop.permute.xlu0 %6523
        %6525 = vrot.lane.b32.xlu0 %v5398, 111
        %v6526 = vpop.permute.xlu0 %6525
        %6527 = vrot.lane.b32.xlu0 %v5400, 111
        %v6528 = vpop.permute.xlu0 %6527
        %6529 = vrot.lane.b32.xlu0 %v5402, 111
        %v6530 = vpop.permute.xlu0 %6529
        %6531 = vrot.lane.b32.xlu0 %v5397, 111
        %v6532 = vpop.permute.xlu0 %6531
        %6533 = vrot.lane.b32.xlu0 %v5399, 111
        %v6534 = vpop.permute.xlu0 %6533
        %6535 = vrot.lane.b32.xlu0 %v5401, 111
        %v6536 = vpop.permute.xlu0 %6535
        %6537 = vrot.lane.b32.xlu0 %v5403, 111
        %v6538 = vpop.permute.xlu0 %6537
        %v6539 = vsel %vm3159, %v6524, %v6532
        %v6540 = vsel %vm3159, %v6526, %v6534
        %v6541 = vsel %vm3159, %v6528, %v6536
        %v6542 = vsel %vm3159, %v6530, %v6538
        %v6543 = vsel %vm3159, %v6532, %v6524
        %v6544 = vsel %vm3159, %v6534, %v6526
        %v6545 = vsel %vm3159, %v6536, %v6528
        %v6546 = vsel %vm3159, %v6538, %v6530
        %v6547 = vmul.f32 %v6539, %v3174
        %v6548 = vmul.f32 %v6543, %v3178
        %v6549 = vmul.f32 %v6540, %v3174
        %v6550 = vmul.f32 %v6544, %v3178
        %v6551 = vmul.f32 %v6541, %v3174
        %v6552 = vmul.f32 %v6545, %v3178
        %v6553 = vmul.f32 %v6542, %v3174
        %v6554 = vmul.f32 %v6546, %v3178
        %s6555 = scalar_lea.vmem %s20, 256
        %v6556 = vld [vmem:[%s6555] sm:$0xff]
        %v6557 = vld [vmem:[%s6555 + $0x8] sm:$0xff]
        %v6558 = vld [vmem:[%s6555 + $0x10] sm:$0xff]
        %v6559 = vld [vmem:[%s6555 + $0x18] sm:$0xff]
        %v6561 = vsel %vm1041, %v6556, 0
        %v6564 = vsel %vm1041, %v6557, 0
        %v6567 = vsel %vm1041, %v6558, 0
        %v6570 = vsel %vm1041, %v6559, 0
        %6572 = vmatprep.subr.mxu0 %v6548
        %6573 = vmatpush1.msra.mxu0 %v6547
        %6574 = vmatprep.subr.mxu0 %v6550
        %6575 = vmatpush1.msra.mxu0 %v6549
        %6576 = vmatprep.subr.mxu0 %v6552
        %6577 = vmatpush1.msra.mxu0 %v6551
        %6578 = vmatprep.subr.mxu0 %v6554
        %6579 = vmatpush1.msra.mxu0 %v6553
        %6580 = vmatprep.subr.mxu0 0.0
        %6581 = vmatpush1.msra.mxu0 0.0
        %6582 = vmatprep.subr.mxu0 0.0
        %6583 = vmatpush1.msra.mxu0 0.0
        %6584 = vmatprep.subr.mxu0 0.0
        %6585 = vmatpush1.msra.mxu0 0.0
        %6586 = vmatprep.subr.mxu0 0.0
        %6587 = vmatpush1.msra.mxu0 0.0
        %6588 = vmatprep.subr.mxu0 0.0
        %6589 = vmatpush1.msra.mxu0 0.0
        %6590 = vmatprep.subr.mxu0 0.0
        %6591 = vmatpush1.msra.mxu0 0.0
        %6592 = vmatprep.subr.mxu0 0.0
        %6593 = vmatpush1.msra.mxu0 0.0
        %6594 = vmatprep.subr.mxu0 0.0
        %6595 = vmatpush1.msra.mxu0 0.0
        %6596 = vmatprep.subr.mxu0 0.0
        %6597 = vmatpush1.msra.mxu0 0.0
        %6598 = vmatprep.subr.mxu0 0.0
        %6599 = vmatpush1.msra.mxu0 0.0
        %6600 = vmatprep.subr.mxu0 0.0
        %6601 = vmatpush1.msra.mxu0 0.0
        %6602 = vmatprep.subr.mxu0 0.0
        %6603 = vmatpush1.msra.mxu0 0.0
        %6604 = vmatprep.subr.mxu0 0.0
        %6605 = vmatpush1.msra.mxu0 0.0
        %6606 = vmatprep.subr.mxu0 0.0
        %6607 = vmatpush1.msra.mxu0 0.0
        %6608 = vmatprep.subr.mxu0 0.0
        %6609 = vmatpush1.msra.mxu0 0.0
        %6610 = vmatprep.subr.mxu0 0.0
        %6611 = vmatpush1.msra.mxu0 0.0
        %6612 = vmatprep.subr.mxu0 0.0
        %6613 = vmatpush1.msra.mxu0 0.0
        %6614 = vmatprep.subr.mxu0 0.0
        %6615 = vmatpush1.msra.mxu0 0.0
        %6616 = vmatprep.subr.mxu0 0.0
        %6617 = vmatpush1.msra.mxu0 0.0
        %6618 = vmatprep.subr.mxu0 0.0
        %6619 = vmatpush1.msra.mxu0 0.0
        %6620 = vmatprep.subr.mxu0 0.0
        %6621 = vmatpush1.msra.mxu0 0.0
        %6622 = vmatprep.subr.mxu0 0.0
        %6623 = vmatpush1.msra.mxu0 0.0
        %6624 = vmatprep.subr.mxu0 0.0
        %6625 = vmatpush1.msra.mxu0 0.0
        %6626 = vmatprep.subr.mxu0 0.0
        %6627 = vmatpush1.msra.mxu0 0.0
        %6628 = vmatprep.subr.mxu0 0.0
        %6629 = vmatpush1.msra.mxu0 0.0
        %6630 = vmatprep.subr.mxu0 0.0
        %6631 = vmatpush1.msra.mxu0 0.0
        %6632 = vmatprep.subr.mxu0 0.0
        %6633 = vmatpush1.msra.mxu0 0.0
        %6634 = vmatprep.subr.mxu0 0.0
        %6635 = vmatpush1.msra.mxu0 0.0
        %6636 = vmatprep.mubr.f32.mxu0 0.0
        %6637 = vmatmul.mubr.f32.gmra.mrb[0].mxu0 %v6561
        %v6638 = vpop.f32.mrb[0].mxu0
        %v6639 = vadd.f32 0.0, %v6638
        %v6640 = vpop.f32.mrb[0].mxu0
        %v6641 = vadd.f32 0.0, %v6640
        %6642 = vmatprep.mubr.f32.mxu0 0.0
        %6643 = vmatmul.mubr.f32.gmra.mrb[0].mxu0 %v6564
        %v6644 = vpop.f32.mrb[0].mxu0
        %v6645 = vadd.f32 0.0, %v6644
        %v6646 = vpop.f32.mrb[0].mxu0
        %v6647 = vadd.f32 0.0, %v6646
        %6648 = vmatprep.mubr.f32.mxu0 0.0
        %6649 = vmatmul.mubr.f32.gmra.mrb[0].mxu0 %v6567
        %v6650 = vpop.f32.mrb[0].mxu0
        %v6651 = vadd.f32 0.0, %v6650
        %v6652 = vpop.f32.mrb[0].mxu0
        %v6653 = vadd.f32 0.0, %v6652
        %6654 = vmatprep.mubr.f32.mxu0 0.0
        %6655 = vmatmul.mubr.f32.gmra.mrb[0].mxu0 %v6570
        %v6656 = vpop.f32.mrb[0].mxu0
        %v6657 = vadd.f32 0.0, %v6656
        %v6658 = vpop.f32.mrb[0].mxu0
        %v6659 = vadd.f32 0.0, %v6658
        %6660 = vdwg.mxu0
        %v6661 = vadd.f32 %v6515, %v6639
        %v6662 = vadd.f32 %v6516, %v6641
        %v6663 = vadd.f32 %v6517, %v6645
        %v6664 = vadd.f32 %v6518, %v6647
        %v6665 = vadd.f32 %v6519, %v6651
        %v6666 = vadd.f32 %v6520, %v6653
        %v6667 = vadd.f32 %v6521, %v6657
        %v6668 = vadd.f32 %v6522, %v6659
        %v6669 = vld [vmem:[%s21] sm:$0xff]
        %v6670 = vld [vmem:[%s21 + $0x8] sm:$0xff]
        %v6671 = vld [vmem:[%s21 + $0x10] sm:$0xff]
        %v6672 = vld [vmem:[%s21 + $0x18] sm:$0xff]
        %6674 = vset.pattern.permute.xlu0 0
        %6675 = vperm.xlu0 %6674, %v6669
        %v6676 = vpop.permute.xlu0 %6675
        %6679 = vset.pattern.permute.xlu0 0
        %6680 = vperm.xlu0 %6679, %v6670
        %v6681 = vpop.permute.xlu0 %6680
        %6684 = vset.pattern.permute.xlu0 0
        %6685 = vperm.xlu0 %6684, %v6671
        %v6686 = vpop.permute.xlu0 %6685
        %6689 = vset.pattern.permute.xlu0 0
        %6690 = vperm.xlu0 %6689, %v6672
        %v6691 = vpop.permute.xlu0 %6690
        %v6693 = vadd.f32 %v6661, %v6676
        %v6694 = vadd.f32 %v6662, %v6676
        %v6695 = vadd.f32 %v6663, %v6681
        %v6696 = vadd.f32 %v6664, %v6681
        %v6697 = vadd.f32 %v6665, %v6686
        %v6698 = vadd.f32 %v6666, %v6686
        %v6699 = vadd.f32 %v6667, %v6691
        %v6700 = vadd.f32 %v6668, %v6691
        %v6701 = vadd.f32 %v6693, %v3335
        %v6702 = vadd.f32 %v6694, %v3336
        %v6703 = vadd.f32 %v6695, %v3337
        %v6704 = vadd.f32 %v6696, %v3338
        %v6705 = vadd.f32 %v6697, %v3339
        %v6706 = vadd.f32 %v6698, %v3340
        %v6707 = vadd.f32 %v6699, %v3341
        %v6708 = vadd.f32 %v6700, %v3342
        %6709 = vmatprep.subr.mxu0 %v6702
        %6710 = vmatpush1.msra.mxu0 %v6701
        %6711 = vmatprep.subr.mxu0 %v6704
        %6712 = vmatpush1.msra.mxu0 %v6703
        %6713 = vmatprep.subr.mxu0 %v6706
        %6714 = vmatpush1.msra.mxu0 %v6705
        %6715 = vmatprep.subr.mxu0 %v6708
        %6716 = vmatpush1.msra.mxu0 %v6707
        %6717 = vmatprep.subr.mxu0 0.0
        %6718 = vmatpush1.msra.mxu0 0.0
        %6719 = vmatprep.subr.mxu0 0.0
        %6720 = vmatpush1.msra.mxu0 0.0
        %6721 = vmatprep.subr.mxu0 0.0
        %6722 = vmatpush1.msra.mxu0 0.0
        %6723 = vmatprep.subr.mxu0 0.0
        %6724 = vmatpush1.msra.mxu0 0.0
        %6725 = vmatprep.subr.mxu0 0.0
        %6726 = vmatpush1.msra.mxu0 0.0
        %6727 = vmatprep.subr.mxu0 0.0
        %6728 = vmatpush1.msra.mxu0 0.0
        %6729 = vmatprep.subr.mxu0 0.0
        %6730 = vmatpush1.msra.mxu0 0.0
        %6731 = vmatprep.subr.mxu0 0.0
        %6732 = vmatpush1.msra.mxu0 0.0
        %6733 = vmatprep.subr.mxu0 0.0
        %6734 = vmatpush1.msra.mxu0 0.0
        %6735 = vmatprep.subr.mxu0 0.0
        %6736 = vmatpush1.msra.mxu0 0.0
        %6737 = vmatprep.subr.mxu0 0.0
        %6738 = vmatpush1.msra.mxu0 0.0
        %6739 = vmatprep.subr.mxu0 0.0
        %6740 = vmatpush1.msra.mxu0 0.0
        %6741 = vmatprep.subr.mxu0 0.0
        %6742 = vmatpush1.msra.mxu0 0.0
        %6743 = vmatprep.subr.mxu0 0.0
        %6744 = vmatpush1.msra.mxu0 0.0
        %6745 = vmatprep.subr.mxu0 0.0
        %6746 = vmatpush1.msra.mxu0 0.0
        %6747 = vmatprep.subr.mxu0 0.0
        %6748 = vmatpush1.msra.mxu0 0.0
        %6749 = vmatprep.subr.mxu0 0.0
        %6750 = vmatpush1.msra.mxu0 0.0
        %6751 = vmatprep.subr.mxu0 0.0
        %6752 = vmatpush1.msra.mxu0 0.0
        %6753 = vmatprep.subr.mxu0 0.0
        %6754 = vmatpush1.msra.mxu0 0.0
        %6755 = vmatprep.subr.mxu0 0.0
        %6756 = vmatpush1.msra.mxu0 0.0
        %6757 = vmatprep.subr.mxu0 0.0
        %6758 = vmatpush1.msra.mxu0 0.0
        %6759 = vmatprep.subr.mxu0 0.0
        %6760 = vmatpush1.msra.mxu0 0.0
        %6761 = vmatprep.subr.mxu0 0.0
        %6762 = vmatpush1.msra.mxu0 0.0
        %6763 = vmatprep.subr.mxu0 0.0
        %6764 = vmatpush1.msra.mxu0 0.0
        %6765 = vmatprep.subr.mxu0 0.0
        %6766 = vmatpush1.msra.mxu0 0.0
        %6767 = vmatprep.subr.mxu0 0.0
        %6768 = vmatpush1.msra.mxu0 0.0
        %6769 = vmatprep.subr.mxu0 0.0
        %6770 = vmatpush1.msra.mxu0 0.0
        %6771 = vmatprep.subr.mxu0 0.0
        %6772 = vmatpush1.msra.mxu0 0.0
        %6773 = vmatprep.mubr.f32.mxu0 0.0
        %6774 = vmatmul.mubr.f32.gmra.mrb[0].mxu0 %v3344
        %v6775 = vpop.f32.mrb[0].mxu0
        %v6776 = vadd.f32 0.0, %v6775
        %v6777 = vpop.f32.mrb[0].mxu0
        %v6778 = vadd.f32 0.0, %v6777
        %6779 = vmatprep.mubr.f32.mxu0 0.0
        %6780 = vmatmul.mubr.f32.gmra.mrb[0].mxu0 %v3347
        %v6781 = vpop.f32.mrb[0].mxu0
        %v6782 = vadd.f32 0.0, %v6781
        %v6783 = vpop.f32.mrb[0].mxu0
        %v6784 = vadd.f32 0.0, %v6783
        %6785 = vmatprep.mubr.f32.mxu0 0.0
        %6786 = vmatmul.mubr.f32.gmra.mrb[0].mxu0 %v3350
        %v6787 = vpop.f32.mrb[0].mxu0
        %v6788 = vadd.f32 0.0, %v6787
        %v6789 = vpop.f32.mrb[0].mxu0
        %v6790 = vadd.f32 0.0, %v6789
        %6791 = vmatprep.mubr.f32.mxu0 0.0
        %6792 = vmatmul.mubr.f32.gmra.mrb[0].mxu0 %v3353
        %v6793 = vpop.f32.mrb[0].mxu0
        %v6794 = vadd.f32 0.0, %v6793
        %v6795 = vpop.f32.mrb[0].mxu0
        %v6796 = vadd.f32 0.0, %v6795
        %6797 = vdwg.mxu0
        %v6798 = vadd.f32 %v6776, %v6778
        %6799 = vadd.xlane.f32.xlu0 %v6798
        %v6800 = vpop.xlane.xlu0 %6799
        %v6801 = vadd.f32 %v6782, %v6784
        %6802 = vadd.xlane.f32.xlu0 %v6801
        %v6803 = vpop.xlane.xlu0 %6802
        %v6804 = vadd.f32 %v6788, %v6790
        %6805 = vadd.xlane.f32.xlu0 %v6804
        %v6806 = vpop.xlane.xlu0 %6805
        %v6807 = vadd.f32 %v6794, %v6796
        %6808 = vadd.xlane.f32.xlu0 %v6807
        %v6809 = vpop.xlane.xlu0 %6808
        %v6810 = vmul.f32 %v6800, 0.0009765625
        %v6811 = vmul.f32 %v6803, 0.0009765625
        %v6812 = vmul.f32 %v6806, 0.0009765625
        %v6813 = vmul.f32 %v6809, 0.0009765625
        %v6814 = vsub.f32 %v6701, %v6810
        %v6815 = vsub.f32 %v6702, %v6810
        %v6816 = vsub.f32 %v6703, %v6811
        %v6817 = vsub.f32 %v6704, %v6811
        %v6818 = vsub.f32 %v6705, %v6812
        %v6819 = vsub.f32 %v6706, %v6812
        %v6820 = vsub.f32 %v6707, %v6813
        %v6821 = vsub.f32 %v6708, %v6813
        %v6822 = vmul.f32 %v6814, %v6814
        %v6823 = vmul.f32 %v6815, %v6815
        %v6824 = vmul.f32 %v6816, %v6816
        %v6825 = vmul.f32 %v6817, %v6817
        %v6826 = vmul.f32 %v6818, %v6818
        %v6827 = vmul.f32 %v6819, %v6819
        %v6828 = vmul.f32 %v6820, %v6820
        %v6829 = vmul.f32 %v6821, %v6821
        %6830 = vmatprep.subr.mxu0 %v6823
        %6831 = vmatpush1.msra.mxu0 %v6822
        %6832 = vmatprep.subr.mxu0 %v6825
        %6833 = vmatpush1.msra.mxu0 %v6824
        %6834 = vmatprep.subr.mxu0 %v6827
        %6835 = vmatpush1.msra.mxu0 %v6826
        %6836 = vmatprep.subr.mxu0 %v6829
        %6837 = vmatpush1.msra.mxu0 %v6828
        %6838 = vmatprep.subr.mxu0 0.0
        %6839 = vmatpush1.msra.mxu0 0.0
        %6840 = vmatprep.subr.mxu0 0.0
        %6841 = vmatpush1.msra.mxu0 0.0
        %6842 = vmatprep.subr.mxu0 0.0
        %6843 = vmatpush1.msra.mxu0 0.0
        %6844 = vmatprep.subr.mxu0 0.0
        %6845 = vmatpush1.msra.mxu0 0.0
        %6846 = vmatprep.subr.mxu0 0.0
        %6847 = vmatpush1.msra.mxu0 0.0
        %6848 = vmatprep.subr.mxu0 0.0
        %6849 = vmatpush1.msra.mxu0 0.0
        %6850 = vmatprep.subr.mxu0 0.0
        %6851 = vmatpush1.msra.mxu0 0.0
        %6852 = vmatprep.subr.mxu0 0.0
        %6853 = vmatpush1.msra.mxu0 0.0
        %6854 = vmatprep.subr.mxu0 0.0
        %6855 = vmatpush1.msra.mxu0 0.0
        %6856 = vmatprep.subr.mxu0 0.0
        %6857 = vmatpush1.msra.mxu0 0.0
        %6858 = vmatprep.subr.mxu0 0.0
        %6859 = vmatpush1.msra.mxu0 0.0
        %6860 = vmatprep.subr.mxu0 0.0
        %6861 = vmatpush1.msra.mxu0 0.0
        %6862 = vmatprep.subr.mxu0 0.0
        %6863 = vmatpush1.msra.mxu0 0.0
        %6864 = vmatprep.subr.mxu0 0.0
        %6865 = vmatpush1.msra.mxu0 0.0
        %6866 = vmatprep.subr.mxu0 0.0
        %6867 = vmatpush1.msra.mxu0 0.0
        %6868 = vmatprep.subr.mxu0 0.0
        %6869 = vmatpush1.msra.mxu0 0.0
        %6870 = vmatprep.subr.mxu0 0.0
        %6871 = vmatpush1.msra.mxu0 0.0
        %6872 = vmatprep.subr.mxu0 0.0
        %6873 = vmatpush1.msra.mxu0 0.0
        %6874 = vmatprep.subr.mxu0 0.0
        %6875 = vmatpush1.msra.mxu0 0.0
        %6876 = vmatprep.subr.mxu0 0.0
        %6877 = vmatpush1.msra.mxu0 0.0
        %6878 = vmatprep.subr.mxu0 0.0
        %6879 = vmatpush1.msra.mxu0 0.0
        %6880 = vmatprep.subr.mxu0 0.0
        %6881 = vmatpush1.msra.mxu0 0.0
        %6882 = vmatprep.subr.mxu0 0.0
        %6883 = vmatpush1.msra.mxu0 0.0
        %6884 = vmatprep.subr.mxu0 0.0
        %6885 = vmatpush1.msra.mxu0 0.0
        %6886 = vmatprep.subr.mxu0 0.0
        %6887 = vmatpush1.msra.mxu0 0.0
        %6888 = vmatprep.subr.mxu0 0.0
        %6889 = vmatpush1.msra.mxu0 0.0
        %6890 = vmatprep.subr.mxu0 0.0
        %6891 = vmatpush1.msra.mxu0 0.0
        %6892 = vmatprep.subr.mxu0 0.0
        %6893 = vmatpush1.msra.mxu0 0.0
        %6894 = vmatprep.mubr.f32.mxu0 0.0
        %6895 = vmatmul.mubr.f32.gmra.mrb[0].mxu0 %v3344
        %v6896 = vpop.f32.mrb[0].mxu0
        %v6897 = vadd.f32 0.0, %v6896
        %v6898 = vpop.f32.mrb[0].mxu0
        %v6899 = vadd.f32 0.0, %v6898
        %6900 = vmatprep.mubr.f32.mxu0 0.0
        %6901 = vmatmul.mubr.f32.gmra.mrb[0].mxu0 %v3347
        %v6902 = vpop.f32.mrb[0].mxu0
        %v6903 = vadd.f32 0.0, %v6902
        %v6904 = vpop.f32.mrb[0].mxu0
        %v6905 = vadd.f32 0.0, %v6904
        %6906 = vmatprep.mubr.f32.mxu0 0.0
        %6907 = vmatmul.mubr.f32.gmra.mrb[0].mxu0 %v3350
        %v6908 = vpop.f32.mrb[0].mxu0
        %v6909 = vadd.f32 0.0, %v6908
        %v6910 = vpop.f32.mrb[0].mxu0
        %v6911 = vadd.f32 0.0, %v6910
        %6912 = vmatprep.mubr.f32.mxu0 0.0
        %6913 = vmatmul.mubr.f32.gmra.mrb[0].mxu0 %v3353
        %v6914 = vpop.f32.mrb[0].mxu0
        %v6915 = vadd.f32 0.0, %v6914
        %v6916 = vpop.f32.mrb[0].mxu0
        %v6917 = vadd.f32 0.0, %v6916
        %6918 = vdwg.mxu0
        %v6919 = vadd.f32 %v6897, %v6899
        %6920 = vadd.xlane.f32.xlu0 %v6919
        %v6921 = vpop.xlane.xlu0 %6920
        %v6922 = vadd.f32 %v6903, %v6905
        %6923 = vadd.xlane.f32.xlu0 %v6922
        %v6924 = vpop.xlane.xlu0 %6923
        %v6925 = vadd.f32 %v6909, %v6911
        %6926 = vadd.xlane.f32.xlu0 %v6925
        %v6927 = vpop.xlane.xlu0 %6926
        %v6928 = vadd.f32 %v6915, %v6917
        %6929 = vadd.xlane.f32.xlu0 %v6928
        %v6930 = vpop.xlane.xlu0 %6929
        %v6931 = vmul.f32 %v6921, 0.0009765625
        %v6932 = vmul.f32 %v6924, 0.0009765625
        %v6933 = vmul.f32 %v6927, 0.0009765625
        %v6934 = vmul.f32 %v6930, 0.0009765625
        %v6935 = vadd.f32 %v6931, 1e-05
        %v6936 = vadd.f32 %v6932, 1e-05
        %v6937 = vadd.f32 %v6933, 1e-05
        %v6938 = vadd.f32 %v6934, 1e-05
        %v6939 = vrsqrt.pop %v6935
        %v6940 = vrsqrt.pop %v6936
        %v6941 = vrsqrt.pop %v6937
        %v6942 = vrsqrt.pop %v6938
        %v6943 = vmul.f32 %v6814, %v6939
        %v6944 = vmul.f32 %v6815, %v6939
        %v6945 = vmul.f32 %v6816, %v6940
        %v6946 = vmul.f32 %v6817, %v6940
        %v6947 = vmul.f32 %v6818, %v6941
        %v6948 = vmul.f32 %v6819, %v6941
        %v6949 = vmul.f32 %v6820, %v6942
        %v6950 = vmul.f32 %v6821, %v6942
        %v6951 = vld [vmem:[%s22] sm:$0xff]
        %v6952 = vld [vmem:[%s22 + $0x8] sm:$0xff]
        %v6953 = vld [vmem:[%s22 + $0x10] sm:$0xff]
        %v6954 = vld [vmem:[%s22 + $0x18] sm:$0xff]
        %6956 = vset.pattern.permute.xlu0 0
        %6957 = vperm.xlu0 %6956, %v6951
        %v6958 = vpop.permute.xlu0 %6957
        %6961 = vset.pattern.permute.xlu0 0
        %6962 = vperm.xlu0 %6961, %v6952
        %v6963 = vpop.permute.xlu0 %6962
        %6966 = vset.pattern.permute.xlu0 0
        %6967 = vperm.xlu0 %6966, %v6953
        %v6968 = vpop.permute.xlu0 %6967
        %6971 = vset.pattern.permute.xlu0 0
        %6972 = vperm.xlu0 %6971, %v6954
        %v6973 = vpop.permute.xlu0 %6972
        %v6975 = vmul.f32 %v6943, %v6958
        %v6976 = vmul.f32 %v6944, %v6958
        %v6977 = vmul.f32 %v6945, %v6963
        %v6978 = vmul.f32 %v6946, %v6963
        %v6979 = vmul.f32 %v6947, %v6968
        %v6980 = vmul.f32 %v6948, %v6968
        %v6981 = vmul.f32 %v6949, %v6973
        %v6982 = vmul.f32 %v6950, %v6973
        %v6983 = vld [vmem:[%s23] sm:$0xff]
        %v6984 = vld [vmem:[%s23 + $0x8] sm:$0xff]
        %v6985 = vld [vmem:[%s23 + $0x10] sm:$0xff]
        %v6986 = vld [vmem:[%s23 + $0x18] sm:$0xff]
        %6988 = vset.pattern.permute.xlu0 0
        %6989 = vperm.xlu0 %6988, %v6983
        %v6990 = vpop.permute.xlu0 %6989
        %6993 = vset.pattern.permute.xlu0 0
        %6994 = vperm.xlu0 %6993, %v6984
        %v6995 = vpop.permute.xlu0 %6994
        %6998 = vset.pattern.permute.xlu0 0
        %6999 = vperm.xlu0 %6998, %v6985
        %v7000 = vpop.permute.xlu0 %6999
        %7003 = vset.pattern.permute.xlu0 0
        %7004 = vperm.xlu0 %7003, %v6986
        %v7005 = vpop.permute.xlu0 %7004
        %v7007 = vadd.f32 %v6975, %v6990
        %v7008 = vadd.f32 %v6976, %v6990
        %v7009 = vadd.f32 %v6977, %v6995
        %v7010 = vadd.f32 %v6978, %v6995
        %v7011 = vadd.f32 %v6979, %v7000
        %v7012 = vadd.f32 %v6980, %v7000
        %v7013 = vadd.f32 %v6981, %v7005
        %v7014 = vadd.f32 %v6982, %v7005
        %v7015 = vxor.u32 %v7007, 2147483648
        %v7016 = vxor.u32 %v7008, 2147483648
        %v7017 = vxor.u32 %v7009, 2147483648
        %v7018 = vxor.u32 %v7010, 2147483648
        %v7019 = vxor.u32 %v7011, 2147483648
        %v7020 = vxor.u32 %v7012, 2147483648
        %v7021 = vxor.u32 %v7013, 2147483648
        %v7022 = vxor.u32 %v7014, 2147483648
        %v7023 = vmul.f32 %v7015, 1.442695
        %v7024 = vpow.pop %v7023
        %v7025 = vmul.f32 %v7016, 1.442695
        %v7026 = vpow.pop %v7025
        %v7027 = vmul.f32 %v7017, 1.442695
        %v7028 = vpow.pop %v7027
        %v7029 = vmul.f32 %v7018, 1.442695
        %v7030 = vpow.pop %v7029
        %v7031 = vmul.f32 %v7019, 1.442695
        %v7032 = vpow.pop %v7031
        %v7033 = vmul.f32 %v7020, 1.442695
        %v7034 = vpow.pop %v7033
        %v7035 = vmul.f32 %v7021, 1.442695
        %v7036 = vpow.pop %v7035
        %v7037 = vmul.f32 %v7022, 1.442695
        %v7038 = vpow.pop %v7037
        %v7039 = vadd.f32 %v7024, 1.0
        %v7040 = vadd.f32 %v7026, 1.0
        %v7041 = vadd.f32 %v7028, 1.0
        %v7042 = vadd.f32 %v7030, 1.0
        %v7043 = vadd.f32 %v7032, 1.0
        %v7044 = vadd.f32 %v7034, 1.0
        %v7045 = vadd.f32 %v7036, 1.0
        %v7046 = vadd.f32 %v7038, 1.0
        %v7047 = vrcp.pop %v7039
        %v7048 = vmul.f32 1.0, %v7047
        %v7049 = vrcp.pop %v7040
        %v7050 = vmul.f32 1.0, %v7049
        %v7051 = vrcp.pop %v7041
        %v7052 = vmul.f32 1.0, %v7051
        %v7053 = vrcp.pop %v7042
        %v7054 = vmul.f32 1.0, %v7053
        %v7055 = vrcp.pop %v7043
        %v7056 = vmul.f32 1.0, %v7055
        %v7057 = vrcp.pop %v7044
        %v7058 = vmul.f32 1.0, %v7057
        %v7059 = vrcp.pop %v7045
        %v7060 = vmul.f32 1.0, %v7059
        %v7061 = vrcp.pop %v7046
        %v7062 = vmul.f32 1.0, %v7061
        %v7063 = vmul.f32 %v7007, %v7048
        %v7064 = vmul.f32 %v7008, %v7050
        %v7065 = vmul.f32 %v7009, %v7052
        %v7066 = vmul.f32 %v7010, %v7054
        %v7067 = vmul.f32 %v7011, %v7056
        %v7068 = vmul.f32 %v7012, %v7058
        %v7069 = vmul.f32 %v7013, %v7060
        %v7070 = vmul.f32 %v7014, %v7062
        %7071 = vrot.lane.b32.xlu0 %v7063, 17
        %v7072 = vpop.permute.xlu0 %7071
        %7073 = vrot.lane.b32.xlu0 %v7065, 17
        %v7074 = vpop.permute.xlu0 %7073
        %7075 = vrot.lane.b32.xlu0 %v7067, 17
        %v7076 = vpop.permute.xlu0 %7075
        %7077 = vrot.lane.b32.xlu0 %v7069, 17
        %v7078 = vpop.permute.xlu0 %7077
        %7079 = vrot.lane.b32.xlu0 %v7064, 17
        %v7080 = vpop.permute.xlu0 %7079
        %7081 = vrot.lane.b32.xlu0 %v7066, 17
        %v7082 = vpop.permute.xlu0 %7081
        %7083 = vrot.lane.b32.xlu0 %v7068, 17
        %v7084 = vpop.permute.xlu0 %7083
        %7085 = vrot.lane.b32.xlu0 %v7070, 17
        %v7086 = vpop.permute.xlu0 %7085
        %v7087 = vsel %vm1851, %v7072, %v7080
        %v7088 = vsel %vm1851, %v7074, %v7082
        %v7089 = vsel %vm1851, %v7076, %v7084
        %v7090 = vsel %vm1851, %v7078, %v7086
        %v7091 = vsel %vm1851, %v7080, %v7072
        %v7092 = vsel %vm1851, %v7082, %v7074
        %v7093 = vsel %vm1851, %v7084, %v7076
        %v7094 = vsel %vm1851, %v7086, %v7078
        %v7095 = vmul.f32 %v7091, %v1866
        %v7096 = vmul.f32 %v7087, %v1870
        %v7097 = vmul.f32 %v7092, %v1866
        %v7098 = vmul.f32 %v7088, %v1870
        %v7099 = vmul.f32 %v7093, %v1866
        %v7100 = vmul.f32 %v7089, %v1870
        %v7101 = vmul.f32 %v7094, %v1866
        %v7102 = vmul.f32 %v7090, %v1870
        %v7103 = vld [vmem:[%s24] sm:$0xf]
        %7104 = vrot.lane.b32.xlu0 %v7063, 16
        %v7105 = vpop.permute.xlu0 %7104
        %7106 = vrot.lane.b32.xlu0 %v7065, 16
        %v7107 = vpop.permute.xlu0 %7106
        %7108 = vrot.lane.b32.xlu0 %v7067, 16
        %v7109 = vpop.permute.xlu0 %7108
        %7110 = vrot.lane.b32.xlu0 %v7069, 16
        %v7111 = vpop.permute.xlu0 %7110
        %7112 = vrot.lane.b32.xlu0 %v7064, 16
        %v7113 = vpop.permute.xlu0 %7112
        %7114 = vrot.lane.b32.xlu0 %v7066, 16
        %v7115 = vpop.permute.xlu0 %7114
        %7116 = vrot.lane.b32.xlu0 %v7068, 16
        %v7117 = vpop.permute.xlu0 %7116
        %7118 = vrot.lane.b32.xlu0 %v7070, 16
        %v7119 = vpop.permute.xlu0 %7118
        %v7120 = vsel %vm1907, %v7105, %v7113
        %v7121 = vsel %vm1907, %v7107, %v7115
        %v7122 = vsel %vm1907, %v7109, %v7117
        %v7123 = vsel %vm1907, %v7111, %v7119
        %v7124 = vsel %vm1907, %v7113, %v7105
        %v7125 = vsel %vm1907, %v7115, %v7107
        %v7126 = vsel %vm1907, %v7117, %v7109
        %v7127 = vsel %vm1907, %v7119, %v7111
        %v7128 = vmul.f32 %v7124, %v1922
        %v7129 = vmul.f32 %v7120, %v1926
        %v7130 = vmul.f32 %v7125, %v1922
        %v7131 = vmul.f32 %v7121, %v1926
        %v7132 = vmul.f32 %v7126, %v1922
        %v7133 = vmul.f32 %v7122, %v1926
        %v7134 = vmul.f32 %v7127, %v1922
        %v7135 = vmul.f32 %v7123, %v1926
        %s7136 = scalar_lea.vmem %s24, 4
        %v7137 = vld [vmem:[%s7136] sm:$0xf]
        %v7139 = vsel %vm1041, %v7137, 0
        %7141 = vmatprep.subr.mxu0 %v7129
        %7142 = vmatpush1.msra.mxu0 %v7128
        %7143 = vmatprep.subr.mxu0 %v7131
        %7144 = vmatpush1.msra.mxu0 %v7130
        %7145 = vmatprep.subr.mxu0 %v7133
        %7146 = vmatpush1.msra.mxu0 %v7132
        %7147 = vmatprep.subr.mxu0 %v7135
        %7148 = vmatpush1.msra.mxu0 %v7134
        %7149 = vmatprep.subr.mxu0 0.0
        %7150 = vmatpush1.msra.mxu0 0.0
        %7151 = vmatprep.subr.mxu0 0.0
        %7152 = vmatpush1.msra.mxu0 0.0
        %7153 = vmatprep.subr.mxu0 0.0
        %7154 = vmatpush1.msra.mxu0 0.0
        %7155 = vmatprep.subr.mxu0 0.0
        %7156 = vmatpush1.msra.mxu0 0.0
        %7157 = vmatprep.subr.mxu0 0.0
        %7158 = vmatpush1.msra.mxu0 0.0
        %7159 = vmatprep.subr.mxu0 0.0
        %7160 = vmatpush1.msra.mxu0 0.0
        %7161 = vmatprep.subr.mxu0 0.0
        %7162 = vmatpush1.msra.mxu0 0.0
        %7163 = vmatprep.subr.mxu0 0.0
        %7164 = vmatpush1.msra.mxu0 0.0
        %7165 = vmatprep.subr.mxu0 0.0
        %7166 = vmatpush1.msra.mxu0 0.0
        %7167 = vmatprep.subr.mxu0 0.0
        %7168 = vmatpush1.msra.mxu0 0.0
        %7169 = vmatprep.subr.mxu0 0.0
        %7170 = vmatpush1.msra.mxu0 0.0
        %7171 = vmatprep.subr.mxu0 0.0
        %7172 = vmatpush1.msra.mxu0 0.0
        %7173 = vmatprep.subr.mxu0 0.0
        %7174 = vmatpush1.msra.mxu0 0.0
        %7175 = vmatprep.subr.mxu0 0.0
        %7176 = vmatpush1.msra.mxu0 0.0
        %7177 = vmatprep.subr.mxu0 0.0
        %7178 = vmatpush1.msra.mxu0 0.0
        %7179 = vmatprep.subr.mxu0 0.0
        %7180 = vmatpush1.msra.mxu0 0.0
        %7181 = vmatprep.subr.mxu0 0.0
        %7182 = vmatpush1.msra.mxu0 0.0
        %7183 = vmatprep.subr.mxu0 0.0
        %7184 = vmatpush1.msra.mxu0 0.0
        %7185 = vmatprep.subr.mxu0 0.0
        %7186 = vmatpush1.msra.mxu0 0.0
        %7187 = vmatprep.subr.mxu0 0.0
        %7188 = vmatpush1.msra.mxu0 0.0
        %7189 = vmatprep.subr.mxu0 0.0
        %7190 = vmatpush1.msra.mxu0 0.0
        %7191 = vmatprep.subr.mxu0 0.0
        %7192 = vmatpush1.msra.mxu0 0.0
        %7193 = vmatprep.subr.mxu0 0.0
        %7194 = vmatpush1.msra.mxu0 0.0
        %7195 = vmatprep.subr.mxu0 0.0
        %7196 = vmatpush1.msra.mxu0 0.0
        %7197 = vmatprep.subr.mxu0 0.0
        %7198 = vmatpush1.msra.mxu0 0.0
        %7199 = vmatprep.subr.mxu0 0.0
        %7200 = vmatpush1.msra.mxu0 0.0
        %7201 = vmatprep.subr.mxu0 0.0
        %7202 = vmatpush1.msra.mxu0 0.0
        %7203 = vmatprep.subr.mxu0 0.0
        %7204 = vmatpush1.msra.mxu0 0.0
        %7205 = vmatprep.mubr.f32.mxu0 0.0
        %7206 = vmatmul.mubr.f32.gmra.mrb[0].mxu0 %v7139
        %v7207 = vpop.f32.mrb[0].mxu0
        %v7208 = vadd.f32 0.0, %v7207
        %v7209 = vpop.f32.mrb[0].mxu0
        %v7210 = vadd.f32 0.0, %v7209
        %7211 = vdwg.mxu0
        %v7213 = vsel %vm1041, %v7103, 0
        %7215 = vmatprep.subr.mxu0 %v7096
        %7216 = vmatpush1.msra.mxu0 %v7095
        %7217 = vmatprep.subr.mxu0 %v7098
        %7218 = vmatpush1.msra.mxu0 %v7097
        %7219 = vmatprep.subr.mxu0 %v7100
        %7220 = vmatpush1.msra.mxu0 %v7099
        %7221 = vmatprep.subr.mxu0 %v7102
        %7222 = vmatpush1.msra.mxu0 %v7101
        %7223 = vmatprep.subr.mxu0 0.0
        %7224 = vmatpush1.msra.mxu0 0.0
        %7225 = vmatprep.subr.mxu0 0.0
        %7226 = vmatpush1.msra.mxu0 0.0
        %7227 = vmatprep.subr.mxu0 0.0
        %7228 = vmatpush1.msra.mxu0 0.0
        %7229 = vmatprep.subr.mxu0 0.0
        %7230 = vmatpush1.msra.mxu0 0.0
        %7231 = vmatprep.subr.mxu0 0.0
        %7232 = vmatpush1.msra.mxu0 0.0
        %7233 = vmatprep.subr.mxu0 0.0
        %7234 = vmatpush1.msra.mxu0 0.0
        %7235 = vmatprep.subr.mxu0 0.0
        %7236 = vmatpush1.msra.mxu0 0.0
        %7237 = vmatprep.subr.mxu0 0.0
        %7238 = vmatpush1.msra.mxu0 0.0
        %7239 = vmatprep.subr.mxu0 0.0
        %7240 = vmatpush1.msra.mxu0 0.0
        %7241 = vmatprep.subr.mxu0 0.0
        %7242 = vmatpush1.msra.mxu0 0.0
        %7243 = vmatprep.subr.mxu0 0.0
        %7244 = vmatpush1.msra.mxu0 0.0
        %7245 = vmatprep.subr.mxu0 0.0
        %7246 = vmatpush1.msra.mxu0 0.0
        %7247 = vmatprep.subr.mxu0 0.0
        %7248 = vmatpush1.msra.mxu0 0.0
        %7249 = vmatprep.subr.mxu0 0.0
        %7250 = vmatpush1.msra.mxu0 0.0
        %7251 = vmatprep.subr.mxu0 0.0
        %7252 = vmatpush1.msra.mxu0 0.0
        %7253 = vmatprep.subr.mxu0 0.0
        %7254 = vmatpush1.msra.mxu0 0.0
        %7255 = vmatprep.subr.mxu0 0.0
        %7256 = vmatpush1.msra.mxu0 0.0
        %7257 = vmatprep.subr.mxu0 0.0
        %7258 = vmatpush1.msra.mxu0 0.0
        %7259 = vmatprep.subr.mxu0 0.0
        %7260 = vmatpush1.msra.mxu0 0.0
        %7261 = vmatprep.subr.mxu0 0.0
        %7262 = vmatpush1.msra.mxu0 0.0
        %7263 = vmatprep.subr.mxu0 0.0
        %7264 = vmatpush1.msra.mxu0 0.0
        %7265 = vmatprep.subr.mxu0 0.0
        %7266 = vmatpush1.msra.mxu0 0.0
        %7267 = vmatprep.subr.mxu0 0.0
        %7268 = vmatpush1.msra.mxu0 0.0
        %7269 = vmatprep.subr.mxu0 0.0
        %7270 = vmatpush1.msra.mxu0 0.0
        %7271 = vmatprep.subr.mxu0 0.0
        %7272 = vmatpush1.msra.mxu0 0.0
        %7273 = vmatprep.subr.mxu0 0.0
        %7274 = vmatpush1.msra.mxu0 0.0
        %7275 = vmatprep.subr.mxu0 0.0
        %7276 = vmatpush1.msra.mxu0 0.0
        %7277 = vmatprep.subr.mxu0 0.0
        %7278 = vmatpush1.msra.mxu0 0.0
        %7279 = vmatprep.mubr.f32.mxu0 0.0
        %7280 = vmatmul.mubr.f32.gmra.mrb[0].mxu0 %v7213
        %v7281 = vpop.f32.mrb[0].mxu0
        %v7282 = vadd.f32 %v7208, %v7281
        %v7283 = vpop.f32.mrb[0].mxu0
        %v7284 = vadd.f32 %v7210, %v7283
        %7285 = vdwg.mxu0
        %7286 = vrot.lane.b32.xlu0 %v7063, 15
        %v7287 = vpop.permute.xlu0 %7286
        %7288 = vrot.lane.b32.xlu0 %v7065, 15
        %v7289 = vpop.permute.xlu0 %7288
        %7290 = vrot.lane.b32.xlu0 %v7067, 15
        %v7291 = vpop.permute.xlu0 %7290
        %7292 = vrot.lane.b32.xlu0 %v7069, 15
        %v7293 = vpop.permute.xlu0 %7292
        %7294 = vrot.lane.b32.xlu0 %v7064, 15
        %v7295 = vpop.permute.xlu0 %7294
        %7296 = vrot.lane.b32.xlu0 %v7066, 15
        %v7297 = vpop.permute.xlu0 %7296
        %7298 = vrot.lane.b32.xlu0 %v7068, 15
        %v7299 = vpop.permute.xlu0 %7298
        %7300 = vrot.lane.b32.xlu0 %v7070, 15
        %v7301 = vpop.permute.xlu0 %7300
        %v7302 = vsel %vm2179, %v7287, %v7295
        %v7303 = vsel %vm2179, %v7289, %v7297
        %v7304 = vsel %vm2179, %v7291, %v7299
        %v7305 = vsel %vm2179, %v7293, %v7301
        %v7306 = vsel %vm2179, %v7295, %v7287
        %v7307 = vsel %vm2179, %v7297, %v7289
        %v7308 = vsel %vm2179, %v7299, %v7291
        %v7309 = vsel %vm2179, %v7301, %v7293
        %v7310 = vmul.f32 %v7306, %v2194
        %v7311 = vmul.f32 %v7302, %v2198
        %v7312 = vmul.f32 %v7307, %v2194
        %v7313 = vmul.f32 %v7303, %v2198
        %v7314 = vmul.f32 %v7308, %v2194
        %v7315 = vmul.f32 %v7304, %v2198
        %v7316 = vmul.f32 %v7309, %v2194
        %v7317 = vmul.f32 %v7305, %v2198
        %s7318 = scalar_lea.vmem %s24, 8
        %v7319 = vld [vmem:[%s7318] sm:$0xf]
        %v7321 = vsel %vm1041, %v7319, 0
        %7323 = vmatprep.subr.mxu0 %v7311
        %7324 = vmatpush1.msra.mxu0 %v7310
        %7325 = vmatprep.subr.mxu0 %v7313
        %7326 = vmatpush1.msra.mxu0 %v7312
        %7327 = vmatprep.subr.mxu0 %v7315
        %7328 = vmatpush1.msra.mxu0 %v7314
        %7329 = vmatprep.subr.mxu0 %v7317
        %7330 = vmatpush1.msra.mxu0 %v7316
        %7331 = vmatprep.subr.mxu0 0.0
        %7332 = vmatpush1.msra.mxu0 0.0
        %7333 = vmatprep.subr.mxu0 0.0
        %7334 = vmatpush1.msra.mxu0 0.0
        %7335 = vmatprep.subr.mxu0 0.0
        %7336 = vmatpush1.msra.mxu0 0.0
        %7337 = vmatprep.subr.mxu0 0.0
        %7338 = vmatpush1.msra.mxu0 0.0
        %7339 = vmatprep.subr.mxu0 0.0
        %7340 = vmatpush1.msra.mxu0 0.0
        %7341 = vmatprep.subr.mxu0 0.0
        %7342 = vmatpush1.msra.mxu0 0.0
        %7343 = vmatprep.subr.mxu0 0.0
        %7344 = vmatpush1.msra.mxu0 0.0
        %7345 = vmatprep.subr.mxu0 0.0
        %7346 = vmatpush1.msra.mxu0 0.0
        %7347 = vmatprep.subr.mxu0 0.0
        %7348 = vmatpush1.msra.mxu0 0.0
        %7349 = vmatprep.subr.mxu0 0.0
        %7350 = vmatpush1.msra.mxu0 0.0
        %7351 = vmatprep.subr.mxu0 0.0
        %7352 = vmatpush1.msra.mxu0 0.0
        %7353 = vmatprep.subr.mxu0 0.0
        %7354 = vmatpush1.msra.mxu0 0.0
        %7355 = vmatprep.subr.mxu0 0.0
        %7356 = vmatpush1.msra.mxu0 0.0
        %7357 = vmatprep.subr.mxu0 0.0
        %7358 = vmatpush1.msra.mxu0 0.0
        %7359 = vmatprep.subr.mxu0 0.0
        %7360 = vmatpush1.msra.mxu0 0.0
        %7361 = vmatprep.subr.mxu0 0.0
        %7362 = vmatpush1.msra.mxu0 0.0
        %7363 = vmatprep.subr.mxu0 0.0
        %7364 = vmatpush1.msra.mxu0 0.0
        %7365 = vmatprep.subr.mxu0 0.0
        %7366 = vmatpush1.msra.mxu0 0.0
        %7367 = vmatprep.subr.mxu0 0.0
        %7368 = vmatpush1.msra.mxu0 0.0
        %7369 = vmatprep.subr.mxu0 0.0
        %7370 = vmatpush1.msra.mxu0 0.0
        %7371 = vmatprep.subr.mxu0 0.0
        %7372 = vmatpush1.msra.mxu0 0.0
        %7373 = vmatprep.subr.mxu0 0.0
        %7374 = vmatpush1.msra.mxu0 0.0
        %7375 = vmatprep.subr.mxu0 0.0
        %7376 = vmatpush1.msra.mxu0 0.0
        %7377 = vmatprep.subr.mxu0 0.0
        %7378 = vmatpush1.msra.mxu0 0.0
        %7379 = vmatprep.subr.mxu0 0.0
        %7380 = vmatpush1.msra.mxu0 0.0
        %7381 = vmatprep.subr.mxu0 0.0
        %7382 = vmatpush1.msra.mxu0 0.0
        %7383 = vmatprep.subr.mxu0 0.0
        %7384 = vmatpush1.msra.mxu0 0.0
        %7385 = vmatprep.subr.mxu0 0.0
        %7386 = vmatpush1.msra.mxu0 0.0
        %7387 = vmatprep.mubr.f32.mxu0 0.0
        %7388 = vmatmul.mubr.f32.gmra.mrb[0].mxu0 %v7321
        %v7389 = vpop.f32.mrb[0].mxu0
        %v7390 = vadd.f32 0.0, %v7389
        %v7391 = vpop.f32.mrb[0].mxu0
        %v7392 = vadd.f32 0.0, %v7391
        %7393 = vdwg.mxu0
        %v7394 = vadd.f32 %v7282, %v7390
        %v7395 = vadd.f32 %v7284, %v7392
        %7396 = vrot.lane.b32.xlu0 %v7063, 1
        %v7397 = vpop.permute.xlu0 %7396
        %7398 = vrot.lane.b32.xlu0 %v7065, 1
        %v7399 = vpop.permute.xlu0 %7398
        %7400 = vrot.lane.b32.xlu0 %v7067, 1
        %v7401 = vpop.permute.xlu0 %7400
        %7402 = vrot.lane.b32.xlu0 %v7069, 1
        %v7403 = vpop.permute.xlu0 %7402
        %7404 = vrot.lane.b32.xlu0 %v7064, 1
        %v7405 = vpop.permute.xlu0 %7404
        %7406 = vrot.lane.b32.xlu0 %v7066, 1
        %v7407 = vpop.permute.xlu0 %7406
        %7408 = vrot.lane.b32.xlu0 %v7068, 1
        %v7409 = vpop.permute.xlu0 %7408
        %7410 = vrot.lane.b32.xlu0 %v7070, 1
        %v7411 = vpop.permute.xlu0 %7410
        %v7412 = vsel %vm2351, %v7397, %v7405
        %v7413 = vsel %vm2351, %v7399, %v7407
        %v7414 = vsel %vm2351, %v7401, %v7409
        %v7415 = vsel %vm2351, %v7403, %v7411
        %v7416 = vsel %vm2351, %v7405, %v7397
        %v7417 = vsel %vm2351, %v7407, %v7399
        %v7418 = vsel %vm2351, %v7409, %v7401
        %v7419 = vsel %vm2351, %v7411, %v7403
        %v7420 = vmul.f32 %v7416, %v2366
        %v7421 = vmul.f32 %v7412, %v2370
        %v7422 = vmul.f32 %v7417, %v2366
        %v7423 = vmul.f32 %v7413, %v2370
        %v7424 = vmul.f32 %v7418, %v2366
        %v7425 = vmul.f32 %v7414, %v2370
        %v7426 = vmul.f32 %v7419, %v2366
        %v7427 = vmul.f32 %v7415, %v2370
        %s7428 = scalar_lea.vmem %s24, 12
        %v7429 = vld [vmem:[%s7428] sm:$0xf]
        %v7431 = vsel %vm1041, %v7429, 0
        %7433 = vmatprep.subr.mxu0 %v7421
        %7434 = vmatpush1.msra.mxu0 %v7420
        %7435 = vmatprep.subr.mxu0 %v7423
        %7436 = vmatpush1.msra.mxu0 %v7422
        %7437 = vmatprep.subr.mxu0 %v7425
        %7438 = vmatpush1.msra.mxu0 %v7424
        %7439 = vmatprep.subr.mxu0 %v7427
        %7440 = vmatpush1.msra.mxu0 %v7426
        %7441 = vmatprep.subr.mxu0 0.0
        %7442 = vmatpush1.msra.mxu0 0.0
        %7443 = vmatprep.subr.mxu0 0.0
        %7444 = vmatpush1.msra.mxu0 0.0
        %7445 = vmatprep.subr.mxu0 0.0
        %7446 = vmatpush1.msra.mxu0 0.0
        %7447 = vmatprep.subr.mxu0 0.0
        %7448 = vmatpush1.msra.mxu0 0.0
        %7449 = vmatprep.subr.mxu0 0.0
        %7450 = vmatpush1.msra.mxu0 0.0
        %7451 = vmatprep.subr.mxu0 0.0
        %7452 = vmatpush1.msra.mxu0 0.0
        %7453 = vmatprep.subr.mxu0 0.0
        %7454 = vmatpush1.msra.mxu0 0.0
        %7455 = vmatprep.subr.mxu0 0.0
        %7456 = vmatpush1.msra.mxu0 0.0
        %7457 = vmatprep.subr.mxu0 0.0
        %7458 = vmatpush1.msra.mxu0 0.0
        %7459 = vmatprep.subr.mxu0 0.0
        %7460 = vmatpush1.msra.mxu0 0.0
        %7461 = vmatprep.subr.mxu0 0.0
        %7462 = vmatpush1.msra.mxu0 0.0
        %7463 = vmatprep.subr.mxu0 0.0
        %7464 = vmatpush1.msra.mxu0 0.0
        %7465 = vmatprep.subr.mxu0 0.0
        %7466 = vmatpush1.msra.mxu0 0.0
        %7467 = vmatprep.subr.mxu0 0.0
        %7468 = vmatpush1.msra.mxu0 0.0
        %7469 = vmatprep.subr.mxu0 0.0
        %7470 = vmatpush1.msra.mxu0 0.0
        %7471 = vmatprep.subr.mxu0 0.0
        %7472 = vmatpush1.msra.mxu0 0.0
        %7473 = vmatprep.subr.mxu0 0.0
        %7474 = vmatpush1.msra.mxu0 0.0
        %7475 = vmatprep.subr.mxu0 0.0
        %7476 = vmatpush1.msra.mxu0 0.0
        %7477 = vmatprep.subr.mxu0 0.0
        %7478 = vmatpush1.msra.mxu0 0.0
        %7479 = vmatprep.subr.mxu0 0.0
        %7480 = vmatpush1.msra.mxu0 0.0
        %7481 = vmatprep.subr.mxu0 0.0
        %7482 = vmatpush1.msra.mxu0 0.0
        %7483 = vmatprep.subr.mxu0 0.0
        %7484 = vmatpush1.msra.mxu0 0.0
        %7485 = vmatprep.subr.mxu0 0.0
        %7486 = vmatpush1.msra.mxu0 0.0
        %7487 = vmatprep.subr.mxu0 0.0
        %7488 = vmatpush1.msra.mxu0 0.0
        %7489 = vmatprep.subr.mxu0 0.0
        %7490 = vmatpush1.msra.mxu0 0.0
        %7491 = vmatprep.subr.mxu0 0.0
        %7492 = vmatpush1.msra.mxu0 0.0
        %7493 = vmatprep.subr.mxu0 0.0
        %7494 = vmatpush1.msra.mxu0 0.0
        %7495 = vmatprep.subr.mxu0 0.0
        %7496 = vmatpush1.msra.mxu0 0.0
        %7497 = vmatprep.mubr.f32.mxu0 0.0
        %7498 = vmatmul.mubr.f32.gmra.mrb[0].mxu0 %v7431
        %v7499 = vpop.f32.mrb[0].mxu0
        %v7500 = vadd.f32 0.0, %v7499
        %v7501 = vpop.f32.mrb[0].mxu0
        %v7502 = vadd.f32 0.0, %v7501
        %7503 = vdwg.mxu0
        %v7504 = vadd.f32 %v7394, %v7500
        %v7505 = vadd.f32 %v7395, %v7502
        %s7506 = scalar_lea.vmem %s24, 16
        %v7507 = vld [vmem:[%s7506] sm:$0xf]
        %v7509 = vsel %vm1041, %v7507, 0
        %7511 = vmatprep.subr.mxu0 %v7064
        %7512 = vmatpush1.msra.mxu0 %v7063
        %7513 = vmatprep.subr.mxu0 %v7066
        %7514 = vmatpush1.msra.mxu0 %v7065
        %7515 = vmatprep.subr.mxu0 %v7068
        %7516 = vmatpush1.msra.mxu0 %v7067
        %7517 = vmatprep.subr.mxu0 %v7070
        %7518 = vmatpush1.msra.mxu0 %v7069
        %7519 = vmatprep.subr.mxu0 0.0
        %7520 = vmatpush1.msra.mxu0 0.0
        %7521 = vmatprep.subr.mxu0 0.0
        %7522 = vmatpush1.msra.mxu0 0.0
        %7523 = vmatprep.subr.mxu0 0.0
        %7524 = vmatpush1.msra.mxu0 0.0
        %7525 = vmatprep.subr.mxu0 0.0
        %7526 = vmatpush1.msra.mxu0 0.0
        %7527 = vmatprep.subr.mxu0 0.0
        %7528 = vmatpush1.msra.mxu0 0.0
        %7529 = vmatprep.subr.mxu0 0.0
        %7530 = vmatpush1.msra.mxu0 0.0
        %7531 = vmatprep.subr.mxu0 0.0
        %7532 = vmatpush1.msra.mxu0 0.0
        %7533 = vmatprep.subr.mxu0 0.0
        %7534 = vmatpush1.msra.mxu0 0.0
        %7535 = vmatprep.subr.mxu0 0.0
        %7536 = vmatpush1.msra.mxu0 0.0
        %7537 = vmatprep.subr.mxu0 0.0
        %7538 = vmatpush1.msra.mxu0 0.0
        %7539 = vmatprep.subr.mxu0 0.0
        %7540 = vmatpush1.msra.mxu0 0.0
        %7541 = vmatprep.subr.mxu0 0.0
        %7542 = vmatpush1.msra.mxu0 0.0
        %7543 = vmatprep.subr.mxu0 0.0
        %7544 = vmatpush1.msra.mxu0 0.0
        %7545 = vmatprep.subr.mxu0 0.0
        %7546 = vmatpush1.msra.mxu0 0.0
        %7547 = vmatprep.subr.mxu0 0.0
        %7548 = vmatpush1.msra.mxu0 0.0
        %7549 = vmatprep.subr.mxu0 0.0
        %7550 = vmatpush1.msra.mxu0 0.0
        %7551 = vmatprep.subr.mxu0 0.0
        %7552 = vmatpush1.msra.mxu0 0.0
        %7553 = vmatprep.subr.mxu0 0.0
        %7554 = vmatpush1.msra.mxu0 0.0
        %7555 = vmatprep.subr.mxu0 0.0
        %7556 = vmatpush1.msra.mxu0 0.0
        %7557 = vmatprep.subr.mxu0 0.0
        %7558 = vmatpush1.msra.mxu0 0.0
        %7559 = vmatprep.subr.mxu0 0.0
        %7560 = vmatpush1.msra.mxu0 0.0
        %7561 = vmatprep.subr.mxu0 0.0
        %7562 = vmatpush1.msra.mxu0 0.0
        %7563 = vmatprep.subr.mxu0 0.0
        %7564 = vmatpush1.msra.mxu0 0.0
        %7565 = vmatprep.subr.mxu0 0.0
        %7566 = vmatpush1.msra.mxu0 0.0
        %7567 = vmatprep.subr.mxu0 0.0
        %7568 = vmatpush1.msra.mxu0 0.0
        %7569 = vmatprep.subr.mxu0 0.0
        %7570 = vmatpush1.msra.mxu0 0.0
        %7571 = vmatprep.subr.mxu0 0.0
        %7572 = vmatpush1.msra.mxu0 0.0
        %7573 = vmatprep.subr.mxu0 0.0
        %7574 = vmatpush1.msra.mxu0 0.0
        %7575 = vmatprep.mubr.f32.mxu0 0.0
        %7576 = vmatmul.mubr.f32.gmra.mrb[0].mxu0 %v7509
        %v7577 = vpop.f32.mrb[0].mxu0
        %v7578 = vadd.f32 0.0, %v7577
        %v7579 = vpop.f32.mrb[0].mxu0
        %v7580 = vadd.f32 0.0, %v7579
        %7581 = vdwg.mxu0
        %v7582 = vadd.f32 %v7504, %v7578
        %v7583 = vadd.f32 %v7505, %v7580
        %7584 = vrot.lane.b32.xlu0 %v7063, 127
        %v7585 = vpop.permute.xlu0 %7584
        %7586 = vrot.lane.b32.xlu0 %v7065, 127
        %v7587 = vpop.permute.xlu0 %7586
        %7588 = vrot.lane.b32.xlu0 %v7067, 127
        %v7589 = vpop.permute.xlu0 %7588
        %7590 = vrot.lane.b32.xlu0 %v7069, 127
        %v7591 = vpop.permute.xlu0 %7590
        %7592 = vrot.lane.b32.xlu0 %v7064, 127
        %v7593 = vpop.permute.xlu0 %7592
        %7594 = vrot.lane.b32.xlu0 %v7066, 127
        %v7595 = vpop.permute.xlu0 %7594
        %7596 = vrot.lane.b32.xlu0 %v7068, 127
        %v7597 = vpop.permute.xlu0 %7596
        %7598 = vrot.lane.b32.xlu0 %v7070, 127
        %v7599 = vpop.permute.xlu0 %7598
        %v7600 = vsel %vm2643, %v7585, %v7593
        %v7601 = vsel %vm2643, %v7587, %v7595
        %v7602 = vsel %vm2643, %v7589, %v7597
        %v7603 = vsel %vm2643, %v7591, %v7599
        %v7604 = vsel %vm2643, %v7593, %v7585
        %v7605 = vsel %vm2643, %v7595, %v7587
        %v7606 = vsel %vm2643, %v7597, %v7589
        %v7607 = vsel %vm2643, %v7599, %v7591
        %v7608 = vmul.f32 %v7600, %v2658
        %v7609 = vmul.f32 %v7604, %v2662
        %v7610 = vmul.f32 %v7601, %v2658
        %v7611 = vmul.f32 %v7605, %v2662
        %v7612 = vmul.f32 %v7602, %v2658
        %v7613 = vmul.f32 %v7606, %v2662
        %v7614 = vmul.f32 %v7603, %v2658
        %v7615 = vmul.f32 %v7607, %v2662
        %s7616 = scalar_lea.vmem %s24, 20
        %v7617 = vld [vmem:[%s7616] sm:$0xf]
        %v7619 = vsel %vm1041, %v7617, 0
        %7621 = vmatprep.subr.mxu0 %v7609
        %7622 = vmatpush1.msra.mxu0 %v7608
        %7623 = vmatprep.subr.mxu0 %v7611
        %7624 = vmatpush1.msra.mxu0 %v7610
        %7625 = vmatprep.subr.mxu0 %v7613
        %7626 = vmatpush1.msra.mxu0 %v7612
        %7627 = vmatprep.subr.mxu0 %v7615
        %7628 = vmatpush1.msra.mxu0 %v7614
        %7629 = vmatprep.subr.mxu0 0.0
        %7630 = vmatpush1.msra.mxu0 0.0
        %7631 = vmatprep.subr.mxu0 0.0
        %7632 = vmatpush1.msra.mxu0 0.0
        %7633 = vmatprep.subr.mxu0 0.0
        %7634 = vmatpush1.msra.mxu0 0.0
        %7635 = vmatprep.subr.mxu0 0.0
        %7636 = vmatpush1.msra.mxu0 0.0
        %7637 = vmatprep.subr.mxu0 0.0
        %7638 = vmatpush1.msra.mxu0 0.0
        %7639 = vmatprep.subr.mxu0 0.0
        %7640 = vmatpush1.msra.mxu0 0.0
        %7641 = vmatprep.subr.mxu0 0.0
        %7642 = vmatpush1.msra.mxu0 0.0
        %7643 = vmatprep.subr.mxu0 0.0
        %7644 = vmatpush1.msra.mxu0 0.0
        %7645 = vmatprep.subr.mxu0 0.0
        %7646 = vmatpush1.msra.mxu0 0.0
        %7647 = vmatprep.subr.mxu0 0.0
        %7648 = vmatpush1.msra.mxu0 0.0
        %7649 = vmatprep.subr.mxu0 0.0
        %7650 = vmatpush1.msra.mxu0 0.0
        %7651 = vmatprep.subr.mxu0 0.0
        %7652 = vmatpush1.msra.mxu0 0.0
        %7653 = vmatprep.subr.mxu0 0.0
        %7654 = vmatpush1.msra.mxu0 0.0
        %7655 = vmatprep.subr.mxu0 0.0
        %7656 = vmatpush1.msra.mxu0 0.0
        %7657 = vmatprep.subr.mxu0 0.0
        %7658 = vmatpush1.msra.mxu0 0.0
        %7659 = vmatprep.subr.mxu0 0.0
        %7660 = vmatpush1.msra.mxu0 0.0
        %7661 = vmatprep.subr.mxu0 0.0
        %7662 = vmatpush1.msra.mxu0 0.0
        %7663 = vmatprep.subr.mxu0 0.0
        %7664 = vmatpush1.msra.mxu0 0.0
        %7665 = vmatprep.subr.mxu0 0.0
        %7666 = vmatpush1.msra.mxu0 0.0
        %7667 = vmatprep.subr.mxu0 0.0
        %7668 = vmatpush1.msra.mxu0 0.0
        %7669 = vmatprep.subr.mxu0 0.0
        %7670 = vmatpush1.msra.mxu0 0.0
        %7671 = vmatprep.subr.mxu0 0.0
        %7672 = vmatpush1.msra.mxu0 0.0
        %7673 = vmatprep.subr.mxu0 0.0
        %7674 = vmatpush1.msra.mxu0 0.0
        %7675 = vmatprep.subr.mxu0 0.0
        %7676 = vmatpush1.msra.mxu0 0.0
        %7677 = vmatprep.subr.mxu0 0.0
        %7678 = vmatpush1.msra.mxu0 0.0
        %7679 = vmatprep.subr.mxu0 0.0
        %7680 = vmatpush1.msra.mxu0 0.0
        %7681 = vmatprep.subr.mxu0 0.0
        %7682 = vmatpush1.msra.mxu0 0.0
        %7683 = vmatprep.subr.mxu0 0.0
        %7684 = vmatpush1.msra.mxu0 0.0
        %7685 = vmatprep.mubr.f32.mxu0 0.0
        %7686 = vmatmul.mubr.f32.gmra.mrb[0].mxu0 %v7619
        %v7687 = vpop.f32.mrb[0].mxu0
        %v7688 = vadd.f32 0.0, %v7687
        %v7689 = vpop.f32.mrb[0].mxu0
        %v7690 = vadd.f32 0.0, %v7689
        %7691 = vdwg.mxu0
        %v7692 = vadd.f32 %v7582, %v7688
        %v7693 = vadd.f32 %v7583, %v7690
        %7694 = vrot.lane.b32.xlu0 %v7063, 113
        %v7695 = vpop.permute.xlu0 %7694
        %7696 = vrot.lane.b32.xlu0 %v7065, 113
        %v7697 = vpop.permute.xlu0 %7696
        %7698 = vrot.lane.b32.xlu0 %v7067, 113
        %v7699 = vpop.permute.xlu0 %7698
        %7700 = vrot.lane.b32.xlu0 %v7069, 113
        %v7701 = vpop.permute.xlu0 %7700
        %7702 = vrot.lane.b32.xlu0 %v7064, 113
        %v7703 = vpop.permute.xlu0 %7702
        %7704 = vrot.lane.b32.xlu0 %v7066, 113
        %v7705 = vpop.permute.xlu0 %7704
        %7706 = vrot.lane.b32.xlu0 %v7068, 113
        %v7707 = vpop.permute.xlu0 %7706
        %7708 = vrot.lane.b32.xlu0 %v7070, 113
        %v7709 = vpop.permute.xlu0 %7708
        %v7710 = vsel %vm2815, %v7695, %v7703
        %v7711 = vsel %vm2815, %v7697, %v7705
        %v7712 = vsel %vm2815, %v7699, %v7707
        %v7713 = vsel %vm2815, %v7701, %v7709
        %v7714 = vsel %vm2815, %v7703, %v7695
        %v7715 = vsel %vm2815, %v7705, %v7697
        %v7716 = vsel %vm2815, %v7707, %v7699
        %v7717 = vsel %vm2815, %v7709, %v7701
        %v7718 = vmul.f32 %v7710, %v2830
        %v7719 = vmul.f32 %v7714, %v2834
        %v7720 = vmul.f32 %v7711, %v2830
        %v7721 = vmul.f32 %v7715, %v2834
        %v7722 = vmul.f32 %v7712, %v2830
        %v7723 = vmul.f32 %v7716, %v2834
        %v7724 = vmul.f32 %v7713, %v2830
        %v7725 = vmul.f32 %v7717, %v2834
        %s7726 = scalar_lea.vmem %s24, 24
        %v7727 = vld [vmem:[%s7726] sm:$0xf]
        %v7729 = vsel %vm1041, %v7727, 0
        %7731 = vmatprep.subr.mxu0 %v7719
        %7732 = vmatpush1.msra.mxu0 %v7718
        %7733 = vmatprep.subr.mxu0 %v7721
        %7734 = vmatpush1.msra.mxu0 %v7720
        %7735 = vmatprep.subr.mxu0 %v7723
        %7736 = vmatpush1.msra.mxu0 %v7722
        %7737 = vmatprep.subr.mxu0 %v7725
        %7738 = vmatpush1.msra.mxu0 %v7724
        %7739 = vmatprep.subr.mxu0 0.0
        %7740 = vmatpush1.msra.mxu0 0.0
        %7741 = vmatprep.subr.mxu0 0.0
        %7742 = vmatpush1.msra.mxu0 0.0
        %7743 = vmatprep.subr.mxu0 0.0
        %7744 = vmatpush1.msra.mxu0 0.0
        %7745 = vmatprep.subr.mxu0 0.0
        %7746 = vmatpush1.msra.mxu0 0.0
        %7747 = vmatprep.subr.mxu0 0.0
        %7748 = vmatpush1.msra.mxu0 0.0
        %7749 = vmatprep.subr.mxu0 0.0
        %7750 = vmatpush1.msra.mxu0 0.0
        %7751 = vmatprep.subr.mxu0 0.0
        %7752 = vmatpush1.msra.mxu0 0.0
        %7753 = vmatprep.subr.mxu0 0.0
        %7754 = vmatpush1.msra.mxu0 0.0
        %7755 = vmatprep.subr.mxu0 0.0
        %7756 = vmatpush1.msra.mxu0 0.0
        %7757 = vmatprep.subr.mxu0 0.0
        %7758 = vmatpush1.msra.mxu0 0.0
        %7759 = vmatprep.subr.mxu0 0.0
        %7760 = vmatpush1.msra.mxu0 0.0
        %7761 = vmatprep.subr.mxu0 0.0
        %7762 = vmatpush1.msra.mxu0 0.0
        %7763 = vmatprep.subr.mxu0 0.0
        %7764 = vmatpush1.msra.mxu0 0.0
        %7765 = vmatprep.subr.mxu0 0.0
        %7766 = vmatpush1.msra.mxu0 0.0
        %7767 = vmatprep.subr.mxu0 0.0
        %7768 = vmatpush1.msra.mxu0 0.0
        %7769 = vmatprep.subr.mxu0 0.0
        %7770 = vmatpush1.msra.mxu0 0.0
        %7771 = vmatprep.subr.mxu0 0.0
        %7772 = vmatpush1.msra.mxu0 0.0
        %7773 = vmatprep.subr.mxu0 0.0
        %7774 = vmatpush1.msra.mxu0 0.0
        %7775 = vmatprep.subr.mxu0 0.0
        %7776 = vmatpush1.msra.mxu0 0.0
        %7777 = vmatprep.subr.mxu0 0.0
        %7778 = vmatpush1.msra.mxu0 0.0
        %7779 = vmatprep.subr.mxu0 0.0
        %7780 = vmatpush1.msra.mxu0 0.0
        %7781 = vmatprep.subr.mxu0 0.0
        %7782 = vmatpush1.msra.mxu0 0.0
        %7783 = vmatprep.subr.mxu0 0.0
        %7784 = vmatpush1.msra.mxu0 0.0
        %7785 = vmatprep.subr.mxu0 0.0
        %7786 = vmatpush1.msra.mxu0 0.0
        %7787 = vmatprep.subr.mxu0 0.0
        %7788 = vmatpush1.msra.mxu0 0.0
        %7789 = vmatprep.subr.mxu0 0.0
        %7790 = vmatpush1.msra.mxu0 0.0
        %7791 = vmatprep.subr.mxu0 0.0
        %7792 = vmatpush1.msra.mxu0 0.0
        %7793 = vmatprep.subr.mxu0 0.0
        %7794 = vmatpush1.msra.mxu0 0.0
        %7795 = vmatprep.mubr.f32.mxu0 0.0
        %7796 = vmatmul.mubr.f32.gmra.mrb[0].mxu0 %v7729
        %v7797 = vpop.f32.mrb[0].mxu0
        %v7798 = vadd.f32 0.0, %v7797
        %v7799 = vpop.f32.mrb[0].mxu0
        %v7800 = vadd.f32 0.0, %v7799
        %7801 = vdwg.mxu0
        %v7802 = vadd.f32 %v7692, %v7798
        %v7803 = vadd.f32 %v7693, %v7800
        %7804 = vrot.lane.b32.xlu0 %v7063, 112
        %v7805 = vpop.permute.xlu0 %7804
        %7806 = vrot.lane.b32.xlu0 %v7065, 112
        %v7807 = vpop.permute.xlu0 %7806
        %7808 = vrot.lane.b32.xlu0 %v7067, 112
        %v7809 = vpop.permute.xlu0 %7808
        %7810 = vrot.lane.b32.xlu0 %v7069, 112
        %v7811 = vpop.permute.xlu0 %7810
        %7812 = vrot.lane.b32.xlu0 %v7064, 112
        %v7813 = vpop.permute.xlu0 %7812
        %7814 = vrot.lane.b32.xlu0 %v7066, 112
        %v7815 = vpop.permute.xlu0 %7814
        %7816 = vrot.lane.b32.xlu0 %v7068, 112
        %v7817 = vpop.permute.xlu0 %7816
        %7818 = vrot.lane.b32.xlu0 %v7070, 112
        %v7819 = vpop.permute.xlu0 %7818
        %v7820 = vsel %vm2987, %v7805, %v7813
        %v7821 = vsel %vm2987, %v7807, %v7815
        %v7822 = vsel %vm2987, %v7809, %v7817
        %v7823 = vsel %vm2987, %v7811, %v7819
        %v7824 = vsel %vm2987, %v7813, %v7805
        %v7825 = vsel %vm2987, %v7815, %v7807
        %v7826 = vsel %vm2987, %v7817, %v7809
        %v7827 = vsel %vm2987, %v7819, %v7811
        %v7828 = vmul.f32 %v7820, %v3002
        %v7829 = vmul.f32 %v7824, %v3006
        %v7830 = vmul.f32 %v7821, %v3002
        %v7831 = vmul.f32 %v7825, %v3006
        %v7832 = vmul.f32 %v7822, %v3002
        %v7833 = vmul.f32 %v7826, %v3006
        %v7834 = vmul.f32 %v7823, %v3002
        %v7835 = vmul.f32 %v7827, %v3006
        %s7836 = scalar_lea.vmem %s24, 28
        %v7837 = vld [vmem:[%s7836] sm:$0xf]
        %v7839 = vsel %vm1041, %v7837, 0
        %7841 = vmatprep.subr.mxu0 %v7829
        %7842 = vmatpush1.msra.mxu0 %v7828
        %7843 = vmatprep.subr.mxu0 %v7831
        %7844 = vmatpush1.msra.mxu0 %v7830
        %7845 = vmatprep.subr.mxu0 %v7833
        %7846 = vmatpush1.msra.mxu0 %v7832
        %7847 = vmatprep.subr.mxu0 %v7835
        %7848 = vmatpush1.msra.mxu0 %v7834
        %7849 = vmatprep.subr.mxu0 0.0
        %7850 = vmatpush1.msra.mxu0 0.0
        %7851 = vmatprep.subr.mxu0 0.0
        %7852 = vmatpush1.msra.mxu0 0.0
        %7853 = vmatprep.subr.mxu0 0.0
        %7854 = vmatpush1.msra.mxu0 0.0
        %7855 = vmatprep.subr.mxu0 0.0
        %7856 = vmatpush1.msra.mxu0 0.0
        %7857 = vmatprep.subr.mxu0 0.0
        %7858 = vmatpush1.msra.mxu0 0.0
        %7859 = vmatprep.subr.mxu0 0.0
        %7860 = vmatpush1.msra.mxu0 0.0
        %7861 = vmatprep.subr.mxu0 0.0
        %7862 = vmatpush1.msra.mxu0 0.0
        %7863 = vmatprep.subr.mxu0 0.0
        %7864 = vmatpush1.msra.mxu0 0.0
        %7865 = vmatprep.subr.mxu0 0.0
        %7866 = vmatpush1.msra.mxu0 0.0
        %7867 = vmatprep.subr.mxu0 0.0
        %7868 = vmatpush1.msra.mxu0 0.0
        %7869 = vmatprep.subr.mxu0 0.0
        %7870 = vmatpush1.msra.mxu0 0.0
        %7871 = vmatprep.subr.mxu0 0.0
        %7872 = vmatpush1.msra.mxu0 0.0
        %7873 = vmatprep.subr.mxu0 0.0
        %7874 = vmatpush1.msra.mxu0 0.0
        %7875 = vmatprep.subr.mxu0 0.0
        %7876 = vmatpush1.msra.mxu0 0.0
        %7877 = vmatprep.subr.mxu0 0.0
        %7878 = vmatpush1.msra.mxu0 0.0
        %7879 = vmatprep.subr.mxu0 0.0
        %7880 = vmatpush1.msra.mxu0 0.0
        %7881 = vmatprep.subr.mxu0 0.0
        %7882 = vmatpush1.msra.mxu0 0.0
        %7883 = vmatprep.subr.mxu0 0.0
        %7884 = vmatpush1.msra.mxu0 0.0
        %7885 = vmatprep.subr.mxu0 0.0
        %7886 = vmatpush1.msra.mxu0 0.0
        %7887 = vmatprep.subr.mxu0 0.0
        %7888 = vmatpush1.msra.mxu0 0.0
        %7889 = vmatprep.subr.mxu0 0.0
        %7890 = vmatpush1.msra.mxu0 0.0
        %7891 = vmatprep.subr.mxu0 0.0
        %7892 = vmatpush1.msra.mxu0 0.0
        %7893 = vmatprep.subr.mxu0 0.0
        %7894 = vmatpush1.msra.mxu0 0.0
        %7895 = vmatprep.subr.mxu0 0.0
        %7896 = vmatpush1.msra.mxu0 0.0
        %7897 = vmatprep.subr.mxu0 0.0
        %7898 = vmatpush1.msra.mxu0 0.0
        %7899 = vmatprep.subr.mxu0 0.0
        %7900 = vmatpush1.msra.mxu0 0.0
        %7901 = vmatprep.subr.mxu0 0.0
        %7902 = vmatpush1.msra.mxu0 0.0
        %7903 = vmatprep.subr.mxu0 0.0
        %7904 = vmatpush1.msra.mxu0 0.0
        %7905 = vmatprep.mubr.f32.mxu0 0.0
        %7906 = vmatmul.mubr.f32.gmra.mrb[0].mxu0 %v7839
        %v7907 = vpop.f32.mrb[0].mxu0
        %v7908 = vadd.f32 0.0, %v7907
        %v7909 = vpop.f32.mrb[0].mxu0
        %v7910 = vadd.f32 0.0, %v7909
        %7911 = vdwg.mxu0
        %v7912 = vadd.f32 %v7802, %v7908
        %v7913 = vadd.f32 %v7803, %v7910
        %7914 = vrot.lane.b32.xlu0 %v7063, 111
        %v7915 = vpop.permute.xlu0 %7914
        %7916 = vrot.lane.b32.xlu0 %v7065, 111
        %v7917 = vpop.permute.xlu0 %7916
        %7918 = vrot.lane.b32.xlu0 %v7067, 111
        %v7919 = vpop.permute.xlu0 %7918
        %7920 = vrot.lane.b32.xlu0 %v7069, 111
        %v7921 = vpop.permute.xlu0 %7920
        %7922 = vrot.lane.b32.xlu0 %v7064, 111
        %v7923 = vpop.permute.xlu0 %7922
        %7924 = vrot.lane.b32.xlu0 %v7066, 111
        %v7925 = vpop.permute.xlu0 %7924
        %7926 = vrot.lane.b32.xlu0 %v7068, 111
        %v7927 = vpop.permute.xlu0 %7926
        %7928 = vrot.lane.b32.xlu0 %v7070, 111
        %v7929 = vpop.permute.xlu0 %7928
        %v7930 = vsel %vm3159, %v7915, %v7923
        %v7931 = vsel %vm3159, %v7917, %v7925
        %v7932 = vsel %vm3159, %v7919, %v7927
        %v7933 = vsel %vm3159, %v7921, %v7929
        %v7934 = vsel %vm3159, %v7923, %v7915
        %v7935 = vsel %vm3159, %v7925, %v7917
        %v7936 = vsel %vm3159, %v7927, %v7919
        %v7937 = vsel %vm3159, %v7929, %v7921
        %v7938 = vmul.f32 %v7930, %v3174
        %v7939 = vmul.f32 %v7934, %v3178
        %v7940 = vmul.f32 %v7931, %v3174
        %v7941 = vmul.f32 %v7935, %v3178
        %v7942 = vmul.f32 %v7932, %v3174
        %v7943 = vmul.f32 %v7936, %v3178
        %v7944 = vmul.f32 %v7933, %v3174
        %v7945 = vmul.f32 %v7937, %v3178
        %s7946 = scalar_lea.vmem %s24, 32
        %v7947 = vld [vmem:[%s7946] sm:$0xf]
        %v7949 = vsel %vm1041, %v7947, 0
        %7951 = vmatprep.subr.mxu0 %v7939
        %7952 = vmatpush1.msra.mxu0 %v7938
        %7953 = vmatprep.subr.mxu0 %v7941
        %7954 = vmatpush1.msra.mxu0 %v7940
        %7955 = vmatprep.subr.mxu0 %v7943
        %7956 = vmatpush1.msra.mxu0 %v7942
        %7957 = vmatprep.subr.mxu0 %v7945
        %7958 = vmatpush1.msra.mxu0 %v7944
        %7959 = vmatprep.subr.mxu0 0.0
        %7960 = vmatpush1.msra.mxu0 0.0
        %7961 = vmatprep.subr.mxu0 0.0
        %7962 = vmatpush1.msra.mxu0 0.0
        %7963 = vmatprep.subr.mxu0 0.0
        %7964 = vmatpush1.msra.mxu0 0.0
        %7965 = vmatprep.subr.mxu0 0.0
        %7966 = vmatpush1.msra.mxu0 0.0
        %7967 = vmatprep.subr.mxu0 0.0
        %7968 = vmatpush1.msra.mxu0 0.0
        %7969 = vmatprep.subr.mxu0 0.0
        %7970 = vmatpush1.msra.mxu0 0.0
        %7971 = vmatprep.subr.mxu0 0.0
        %7972 = vmatpush1.msra.mxu0 0.0
        %7973 = vmatprep.subr.mxu0 0.0
        %7974 = vmatpush1.msra.mxu0 0.0
        %7975 = vmatprep.subr.mxu0 0.0
        %7976 = vmatpush1.msra.mxu0 0.0
        %7977 = vmatprep.subr.mxu0 0.0
        %7978 = vmatpush1.msra.mxu0 0.0
        %7979 = vmatprep.subr.mxu0 0.0
        %7980 = vmatpush1.msra.mxu0 0.0
        %7981 = vmatprep.subr.mxu0 0.0
        %7982 = vmatpush1.msra.mxu0 0.0
        %7983 = vmatprep.subr.mxu0 0.0
        %7984 = vmatpush1.msra.mxu0 0.0
        %7985 = vmatprep.subr.mxu0 0.0
        %7986 = vmatpush1.msra.mxu0 0.0
        %7987 = vmatprep.subr.mxu0 0.0
        %7988 = vmatpush1.msra.mxu0 0.0
        %7989 = vmatprep.subr.mxu0 0.0
        %7990 = vmatpush1.msra.mxu0 0.0
        %7991 = vmatprep.subr.mxu0 0.0
        %7992 = vmatpush1.msra.mxu0 0.0
        %7993 = vmatprep.subr.mxu0 0.0
        %7994 = vmatpush1.msra.mxu0 0.0
        %7995 = vmatprep.subr.mxu0 0.0
        %7996 = vmatpush1.msra.mxu0 0.0
        %7997 = vmatprep.subr.mxu0 0.0
        %7998 = vmatpush1.msra.mxu0 0.0
        %7999 = vmatprep.subr.mxu0 0.0
        %8000 = vmatpush1.msra.mxu0 0.0
        %8001 = vmatprep.subr.mxu0 0.0
        %8002 = vmatpush1.msra.mxu0 0.0
        %8003 = vmatprep.subr.mxu0 0.0
        %8004 = vmatpush1.msra.mxu0 0.0
        %8005 = vmatprep.subr.mxu0 0.0
        %8006 = vmatpush1.msra.mxu0 0.0
        %8007 = vmatprep.subr.mxu0 0.0
        %8008 = vmatpush1.msra.mxu0 0.0
        %8009 = vmatprep.subr.mxu0 0.0
        %8010 = vmatpush1.msra.mxu0 0.0
        %8011 = vmatprep.subr.mxu0 0.0
        %8012 = vmatpush1.msra.mxu0 0.0
        %8013 = vmatprep.subr.mxu0 0.0
        %8014 = vmatpush1.msra.mxu0 0.0
        %8015 = vmatprep.mubr.f32.mxu0 0.0
        %8016 = vmatmul.mubr.f32.gmra.mrb[0].mxu0 %v7949
        %v8017 = vpop.f32.mrb[0].mxu0
        %v8018 = vadd.f32 0.0, %v8017
        %v8019 = vpop.f32.mrb[0].mxu0
        %v8020 = vadd.f32 0.0, %v8019
        %8021 = vdwg.mxu0
        %v8022 = vadd.f32 %v7912, %v8018
        %v8023 = vadd.f32 %v7913, %v8020
        %v8024 = vld [vmem:[%s25] sm:$0xf]
        %8026 = vset.pattern.permute.xlu0 0
        %8027 = vperm.xlu0 %8026, %v8024
        %v8028 = vpop.permute.xlu0 %8027
        %v8030 = vadd.f32 %v8022, %v8028
        %v8031 = vadd.f32 %v8023, %v8028
        %v8034 = vcombine.low %v8030, %v8031
        %8036 = vst [vmem:[%s833] sm:$0xff] %v8034
        %p8037 = scmp.lt.s32.totalorder %s44, 1
        %s8038 = scalar_select %p8037, %s44, 1
        %s8039 = smul.addr %s8038, 2
        %s8040 = smul.addr %s8039, 4
        %s8041 = scalar_lea.vmem %s26, %s8040
        // Predicated region
        $region125: #{conditional_unet_forward.1} parent=119 // pred_check
          %p8042 = pneg %p604
        $region126: #{conditional_unet_forward.1} parent=119 // pred_check_branch
          %8044 = sbr.rel (%p8042) target = $region128
        $region127: #{conditional_unet_forward.1} parent=119 // pred_region
          _
        $region128: #{conditional_unet_forward.1} parent=119 // pred_fallthru
          _
      $region120: #{conditional_unet_forward.1} parent=5 // pred_fallthru
        _
      %p8045 = scmp.le.s32.totalorder 2, %s39
      // Predicated region
      $region129: #{conditional_unet_forward.1} parent=5 // pred_check
        %p8046 = pneg %p8045
      $region130: #{conditional_unet_forward.1} parent=5 // pred_check_branch
        %8048 = sbr.rel (%p8046) target = $region132
      $region131: #{conditional_unet_forward.1} parent=5 // pred_region
        %s8049 = ssub.s32 %s39, 2
        // Predicated region
        $region133: #{conditional_unet_forward.1} parent=131 // pred_check
          %p8050 = pneg %p610
        $region134: #{conditional_unet_forward.1} parent=131 // pred_check_branch
          %8052 = sbr.rel (%p8050) target = $region136
        $region135: #{conditional_unet_forward.1} parent=131 // pred_region
          %p8053 = scmp.lt.s32.totalorder %s45, 1
          %s8054 = scalar_select %p8053, %s45, 1
          %s8055 = smul.addr %s8054, 2
          %s8056 = smul.addr %s8055, 4
          %s8057 = scalar_lea.vmem %s26, %s8056
        $region136: #{conditional_unet_forward.1} parent=131 // pred_fallthru
          _
      $region132: #{conditional_unet_forward.1} parent=5 // pred_fallthru
        _
    $region6: #{conditional_unet_forward.1} parent=1 // loop_footer
      %s43 = sadd.s32 1, %s39
    $region7: #{conditional_unet_forward.1} parent=1 // loop_footer_branch
      %38 = sbr.rel target = $region3
    $region8: #{conditional_unet_forward.1} parent=1 // loop_exit
      _
    %8058 = vsyncpa [#allocation6], 1
    %s8059 = scalar_lea.sflag [#allocation6], 1
    %8060 = vsyncpa %s8059, 1

</llo_original>
